<compile_context>
chip_gen: v5e
topology: v5e:2x2
jax: 0.10.0
libtpu: 0.0.40
codegen_flags: <defaults>
</compile_context>

<pallas_src>
import jax
import jax.numpy as jnp
from jax import lax
from jax.experimental import pallas as pl
from jax.experimental.pallas import tpu as pltpu

# ----------------------------------------------------------------------------
# Model configuration (synthetic stand-in for the sit_fuse IJEPA encoder).
# ----------------------------------------------------------------------------
PATCH = 4
DIM = 32
HEADS = 4
DIM_HEAD = DIM // HEADS
DEPTH = 2
FF_MULT = 4
FF_DIM = DIM * FF_MULT
NUM_HIDDENS = 2 * DEPTH + 1          # x-transformers layer_hiddens for depth=2
FEATURE_MAPS = (0, 1, 2, 3, 4)       # indices into student_encoder layer_hiddens
LN_EPS = 1e-5
BN_EPS = 1e-5


def _ln(v, g, b, eps=LN_EPS):
    mu = jnp.mean(v, axis=-1, keepdims=True)
    var = jnp.mean(jnp.square(v - mu), axis=-1, keepdims=True)
    return (v - mu) * lax.rsqrt(var + eps) * g + b


# ----------------------------------------------------------------------------
# The single fused kernel: encoder stack + fpn1 + fpn2 (grid=(1,))
# ----------------------------------------------------------------------------
def _fused_kernel(patch_ref, avg_ref, ing_ref, inb_ref, pw_ref, pb_ref,
                  pos_ref, postg_ref, postb_ref, hmask_ref,
                  ag_ref, ab_ref, wq_ref, wk_ref, wv_ref, wo_ref, bo_ref,
                  fg_ref, fb_ref, w1_ref, b1_ref, w2_ref, b2_ref,
                  f1w1_ref, f1b1_ref, bng_ref, bnb_ref, f1w2_ref, f1b2_ref,
                  f2w_ref, f2b_ref,
                  out1_ref, out2_ref, hid_ref):
    n_tok = hmask_ref.shape[0] // HEADS
    n_rows = patch_ref.shape[0]
    n_batch = n_rows // n_tok

    # ---- init_norm: per-pixel channel LayerNorm via block-averaging matmul,
    # two-pass variance (consistent with _ln, no E[x^2]-E[x]^2 cancellation).
    # TODO(synk): vit_encoder.init_norm is defined outside this module; a
    # per-pixel channel LayerNorm is used as the stand-in.
    xp = patch_ref[...]                                          # (B*n, P*P*C)
    avg = avg_ref[...]
    mu = jnp.dot(xp, avg, preferred_element_type=jnp.float32)
    xc = xp - mu
    var = jnp.dot(xc * xc, avg, preferred_element_type=jnp.float32)
    xn = xc * lax.rsqrt(var + LN_EPS) * ing_ref[...] + inb_ref[...]

    # ---- patch_embed (Conv2d k=s=PATCH == per-patch matmul) + pos + post LN
    x = jnp.dot(xn, pw_ref[...], preferred_element_type=jnp.float32)
    x = x + pb_ref[...] + pos_ref[...]
    x = _ln(x, postg_ref[...], postb_ref[...])

    scale = DIM_HEAD ** -0.5
    hmask = hmask_ref[...]                                       # (HEADS*n, DIM)
    hiddens = []
    for d in range(DEPTH):
        hiddens.append(x)        # hidden recorded before the attention block

        # ---- attention: no sub-32-lane slicing anywhere ----
        hln = _ln(x, ag_ref[d], ab_ref[d])
        q = jnp.dot(hln, wq_ref[d], preferred_element_type=jnp.float32)
        k = jnp.dot(hln, wk_ref[d], preferred_element_type=jnp.float32)
        v = jnp.dot(hln, wv_ref[d], preferred_element_type=jnp.float32)

        o_parts = []
        for b in range(n_batch):                 # per-batch, 16-row sublane slices
            r0, r1 = b * n_tok, (b + 1) * n_tok
            qb, kb, vb = q[r0:r1], k[r0:r1], v[r0:r1]
            # Block-diagonal Q: row block h keeps only head-h columns, so one
            # matmul produces all-head scores stacked along sublanes.
            q_bd = jnp.concatenate([qb] * HEADS, axis=0) * hmask      # (H*n, D)
            s = lax.dot_general(q_bd, kb, (((1,), (1,)), ((), ())),
                                preferred_element_type=jnp.float32) * scale
            # One softmax for all heads (exact division, no approx reciprocal).
            s = s - jnp.max(s, axis=-1, keepdims=True)
            p = jnp.exp(s)
            p = p / jnp.sum(p, axis=-1, keepdims=True)                # (H*n, n)
            # Single P @ V; masked row-block sum gives the lane-concatenated
            # per-head outputs directly (no per-head 8-lane slicing).
            o_full = jnp.dot(p, vb, preferred_element_type=jnp.float32) * hmask
            ob = o_full[0:n_tok]
            for h in range(1, HEADS):
                ob = ob + o_full[h * n_tok:(h + 1) * n_tok]           # (n, DIM)
            o_parts.append(ob)
        o_all = o_parts[0] if n_batch == 1 else jnp.concatenate(o_parts, axis=0)
        x = x + jnp.dot(o_all, wo_ref[d], preferred_element_type=jnp.float32) + bo_ref[d]

        hiddens.append(x)        # hidden recorded before the feed-forward block

        # ---- feed-forward ----
        hln = _ln(x, fg_ref[d], fb_ref[d])
        hm = jnp.dot(hln, w1_ref[d], preferred_element_type=jnp.float32) + b1_ref[d]
        # TODO(synk): PyTorch nn.GELU() default is erf-exact; tanh approximation
        # is used for guaranteed Mosaic EUP lowering.
        hm = jax.nn.gelu(hm, approximate=True)
        x = x + jnp.dot(hm, w2_ref[d], preferred_element_type=jnp.float32) + b2_ref[d]

    hiddens.append(x)            # final hidden  (len == NUM_HIDDENS)

    # ---- fpn1: ConvT(2,2) -> BatchNorm2d -> GELU -> ConvT(2,2), all in VMEM,
    # f32 matmuls, two-pass full-batch BN statistics.
    h0 = hiddens[FEATURE_MAPS[0]]
    h1 = hiddens[FEATURE_MAPS[1]]
    rows = h0.shape[0]

    ys = []
    tot = None
    for kk in range(4):                       # per (dh, dw) offset of ConvT #1
        y = jnp.dot(h0, f1w1_ref[kk], preferred_element_type=jnp.float32) + f1b1_ref[...]
        ys.append(y)
        ssum = jnp.sum(y, axis=0, keepdims=True)
        tot = ssum if tot is None else tot + ssum
    inv_count = 1.0 / (4.0 * rows)
    mu_bn = tot * inv_count
    sq = None
    for kk in range(4):
        dd = ys[kk] - mu_bn
        ssum = jnp.sum(dd * dd, axis=0, keepdims=True)
        sq = ssum if sq is None else sq + ssum
    var_bn = sq * inv_count                   # biased variance (train-mode BN)
    # TODO(synk): eval-mode running statistics are not modelled.
    inv_bn = lax.rsqrt(var_bn + BN_EPS)

    w2f = f1w2_ref[...]
    for kk in range(4):
        g = (ys[kk] - mu_bn) * inv_bn * bng_ref[...] + bnb_ref[...]
        g = jax.nn.gelu(g, approximate=True)
        # ConvTranspose2d #2: output columns ordered (c_out, dh2, dw2)
        out1_ref[pl.ds(kk * rows, rows), :] = (
            jnp.dot(g, w2f, preferred_element_type=jnp.float32) + f1b2_ref[...])

    # ---- fpn2: single ConvTranspose2d(2, 2)
    out2_ref[...] = (jnp.dot(h1, f2w_ref[...], preferred_element_type=jnp.float32)
                     + f2b_ref[...])

    # ---- pass-through hiddens (fpn3 / fpn4-input / fpn5): one output slab
    hid_ref[0] = hiddens[FEATURE_MAPS[2]]
    hid_ref[1] = hiddens[FEATURE_MAPS[3]]
    hid_ref[2] = hiddens[FEATURE_MAPS[4]]


def _full(shape):
    return pl.BlockSpec(tuple(shape), lambda *_: (0,) * len(shape))


def fused_forward(patches, pos_tiled, hmask, kp):
    """One pallas_call for the whole forward. patches: (B*n, P*P*C)."""
    BN, _ = patches.shape
    c2cols = DIM * 4 * 4
    in_arrays = [
        patches, kp["pix_avg"], kp["init_g"], kp["init_b"],
        kp["patch_w"], kp["patch_b"], pos_tiled, kp["post_g"], kp["post_b"], hmask,
        kp["attn_g"], kp["attn_b"], kp["wq"], kp["wk"], kp["wv"],
        kp["wo"], kp["bo"], kp["ff_g"], kp["ff_b"],
        kp["w1"], kp["b1"], kp["w2"], kp["b2"],
        kp["fpn1_w1"], kp["fpn1_b1"], kp["fpn1_bng"], kp["fpn1_bnb"],
        kp["fpn1_w2"], kp["fpn1_b2"], kp["fpn2_w"], kp["fpn2_b"],
    ]
    in_specs = [_full(a.shape) for a in in_arrays]
    out_specs = [_full((4 * BN, c2cols)), _full((BN, c2cols)),
                 _full((3, BN, DIM))]
    out_shape = [jax.ShapeDtypeStruct((4 * BN, c2cols), jnp.float32),
                 jax.ShapeDtypeStruct((BN, c2cols), jnp.float32),
                 jax.ShapeDtypeStruct((3, BN, DIM), jnp.float32)]
    return pl.pallas_call(
        _fused_kernel,
        grid=(1,),
        in_specs=in_specs,
        out_specs=out_specs,
        out_shape=out_shape,
        compiler_params=pltpu.CompilerParams(dimension_semantics=("arbitrary",)),
    )(*in_arrays)


# ----------------------------------------------------------------------------
# JEPASegmentEncoder.forward
# ----------------------------------------------------------------------------
def jepa_segment_encoder_forward(cube, kp):
    # torch.squeeze analogue restricted to leading wrapper dims so that a
    # B==1 batch (or size-1 spatial dim) can never be dropped by accident.
    while cube.ndim > 4 and cube.shape[0] == 1:
        cube = jnp.squeeze(cube, axis=0)
    B, C, H, W = cube.shape
    Hp, Wp = H // PATCH, W // PATCH
    n = Hp * Wp
    BN = B * n

    # Host-side patch extraction (one-time layout permutation):
    # (B, C, H, W) -> (B*n, PATCH*PATCH*C), rows (b, hp, wp), cols (ph, pw, c).
    patches = (cube.reshape(B, C, Hp, PATCH, Wp, PATCH)
                   .transpose(0, 2, 4, 3, 5, 1)
                   .reshape(BN, PATCH * PATCH * C))
    pos_tiled = jnp.tile(kp["pos"], (B, 1))                     # (B*n, DIM)

    # Block-diagonal head mask: ones at rows [h*n,(h+1)*n), cols [h*8,(h+1)*8).
    row_head = jnp.repeat(jnp.arange(HEADS), n)
    col_head = jnp.repeat(jnp.arange(HEADS), DIM_HEAD)
    hmask = (row_head[:, None] == col_head[None, :]).astype(jnp.float32)

    out1, out2, hid = fused_forward(patches, pos_tiled, hmask, kp)

    # Single layout permute at the NCHW output boundary.
    # out1 rows = (dh, dw, b, hp, wp); cols = (c2, dh2, dw2)
    f0 = (out1.reshape(2, 2, B, Hp, Wp, DIM * 4, 2, 2)
              .transpose(2, 5, 3, 0, 6, 4, 1, 7)
              .reshape(B, DIM * 4, Hp * 4, Wp * 4))
    # out2 rows = (b, hp, wp); cols = (co, dh, dw)
    f1 = (out2.reshape(B, Hp, Wp, DIM * 4, 2, 2)
              .transpose(0, 3, 1, 4, 2, 5)
              .reshape(B, DIM * 4, Hp * 2, Wp * 2))
    # fpn3: Identity -> rearrange 'B (H W) D -> B D H W'
    f2 = hid[0].reshape(B, n, DIM).transpose(0, 2, 1).reshape(B, DIM, Hp, Wp)
    # fpn4: MaxPool2d(2,2) -- plain jnp (Pallas launch overhead >> work)
    f3 = hid[1].reshape(B, n, DIM).transpose(0, 2, 1).reshape(B, DIM, Hp, Wp)
    f3 = f3.reshape(B, DIM, Hp // 2, 2, Wp // 2, 2).max(axis=(3, 5))
    # fpn5: Identity
    f4 = hid[2].reshape(B, n, DIM).transpose(0, 2, 1).reshape(B, DIM, Hp, Wp)
    return [f0, f1, f2, f3, f4]


# ----------------------------------------------------------------------------
# Deterministic parameter initialisation + kernel-layout packing
# ----------------------------------------------------------------------------
def init_params(key, C, n_tokens):
    def nrm(k, shape, scale=0.02):
        return scale * jax.random.normal(k, shape, jnp.float32)

    keys = iter(jax.random.split(key, 64))
    p = {
        "init_norm_g": jnp.ones((C,), jnp.float32),
        "init_norm_b": jnp.zeros((C,), jnp.float32),
        # rows pixel-major: (ph, pw, c)
        "patch_w": nrm(next(keys), (PATCH * PATCH * C, DIM)),
        "patch_b": nrm(next(keys), (DIM,)),
        "pos_embedding": nrm(next(keys), (1, n_tokens, DIM)),
        "post_ln_g": jnp.ones((DIM,), jnp.float32),
        "post_ln_b": jnp.zeros((DIM,), jnp.float32),
    }
    layers = []
    for _ in range(DEPTH):
        layers.append(dict(
            attn_ln_g=jnp.ones((DIM,), jnp.float32),
            attn_ln_b=jnp.zeros((DIM,), jnp.float32),
            wq=nrm(next(keys), (DIM, DIM)),
            wk=nrm(next(keys), (DIM, DIM)),
            wv=nrm(next(keys), (DIM, DIM)),
            wo=nrm(next(keys), (DIM, DIM)),
            bo=jnp.zeros((DIM,), jnp.float32),
            ff_ln_g=jnp.ones((DIM,), jnp.float32),
            ff_ln_b=jnp.zeros((DIM,), jnp.float32),
            w1=nrm(next(keys), (DIM, FF_DIM)),
            b1=jnp.zeros((FF_DIM,), jnp.float32),
            w2=nrm(next(keys), (FF_DIM, DIM)),
            b2=jnp.zeros((DIM,), jnp.float32),
        ))
    p["layers"] = layers
    # FPN heads (ConvTranspose2d weights in PyTorch (Cin, Cout, 2, 2) layout)
    p["fpn1_ct1_w"] = nrm(next(keys), (DIM, DIM * 8, 2, 2))
    p["fpn1_ct1_b"] = jnp.zeros((DIM * 8,), jnp.float32)
    p["fpn1_bn_g"] = jnp.ones((DIM * 8,), jnp.float32)
    p["fpn1_bn_b"] = jnp.zeros((DIM * 8,), jnp.float32)
    p["fpn1_ct2_w"] = nrm(next(keys), (DIM * 8, DIM * 4, 2, 2))
    p["fpn1_ct2_b"] = jnp.zeros((DIM * 4,), jnp.float32)
    p["fpn2_ct_w"] = nrm(next(keys), (DIM, DIM * 4, 2, 2))
    p["fpn2_ct_b"] = jnp.zeros((DIM * 4,), jnp.float32)
    return p


def pack_params(p, C, n_tokens):
    """One-time host-side repack into the layouts the fused kernel expects."""
    P2 = PATCH * PATCH
    kp = {}
    # init_norm as block-diagonal channel-averaging matmul + tiled affine rows
    kp["pix_avg"] = jnp.kron(jnp.eye(P2, dtype=jnp.float32),
                             jnp.full((C, C), 1.0 / C, jnp.float32))
    kp["init_g"] = jnp.tile(p["init_norm_g"], P2).reshape(1, P2 * C)
    kp["init_b"] = jnp.tile(p["init_norm_b"], P2).reshape(1, P2 * C)
    kp["patch_w"] = p["patch_w"]
    kp["patch_b"] = p["patch_b"].reshape(1, DIM)
    kp["pos"] = p["pos_embedding"].reshape(n_tokens, DIM)
    kp["post_g"] = p["post_ln_g"].reshape(1, DIM)
    kp["post_b"] = p["post_ln_b"].reshape(1, DIM)

    def stack(name, shape):
        return jnp.stack([l[name].reshape(shape) for l in p["layers"]])

    kp["attn_g"] = stack("attn_ln_g", (1, DIM))
    kp["attn_b"] = stack("attn_ln_b", (1, DIM))
    # separate Q/K/V weights so the kernel never lane-slices a fused qkv slab
    kp["wq"] = stack("wq", (DIM, DIM))
    kp["wk"] = stack("wk", (DIM, DIM))
    kp["wv"] = stack("wv", (DIM, DIM))
    kp["wo"] = stack("wo", (DIM, DIM))
    kp["bo"] = stack("bo", (1, DIM))
    kp["ff_g"] = stack("ff_ln_g", (1, DIM))
    kp["ff_b"] = stack("ff_ln_b", (1, DIM))
    kp["w1"] = stack("w1", (DIM, FF_DIM))
    kp["b1"] = stack("b1", (1, FF_DIM))
    kp["w2"] = stack("w2", (FF_DIM, DIM))
    kp["b2"] = stack("b2", (1, DIM))

    # FPN: ConvT #1 as 4 per-offset (Cin, Cout) matmuls; ConvT #2 / fpn2 with
    # columns ordered (c_out, dh, dw); biases repeated to match.
    kp["fpn1_w1"] = p["fpn1_ct1_w"].transpose(2, 3, 0, 1).reshape(4, DIM, DIM * 8)
    kp["fpn1_b1"] = p["fpn1_ct1_b"].reshape(1, DIM * 8)
    kp["fpn1_bng"] = p["fpn1_bn_g"].reshape(1, DIM * 8)
    kp["fpn1_bnb"] = p["fpn1_bn_b"].reshape(1, DIM * 8)
    kp["fpn1_w2"] = p["fpn1_ct2_w"].reshape(DIM * 8, DIM * 4 * 4)
    kp["fpn1_b2"] = jnp.repeat(p["fpn1_ct2_b"], 4).reshape(1, DIM * 4 * 4)
    kp["fpn2_w"] = p["fpn2_ct_w"].reshape(DIM, DIM * 4 * 4)
    kp["fpn2_b"] = jnp.repeat(p["fpn2_ct_b"], 4).reshape(1, DIM * 4 * 4)
    return kp


if __name__ == "__main__":
    key = jax.random.PRNGKey(0)
    k_in, k_par = jax.random.split(key)
    B, C, H, W = 2, 4, 16, 16
    n_tokens = (H // PATCH) * (W // PATCH)

    cube = jax.random.normal(k_in, (B, C, H, W), jnp.float32)
    params = init_params(k_par, C, n_tokens)
    kparams = pack_params(params, C, n_tokens)

    feats = jepa_segment_encoder_forward(cube, kparams)
    feats = [jax.block_until_ready(f) for f in feats]

    expected = [
        (B, DIM * 4, H, W),            # fpn1
        (B, DIM * 4, H // 2, W // 2),  # fpn2
        (B, DIM, H // 4, W // 4),      # fpn3 (identity)
        (B, DIM, H // 8, W // 8),      # fpn4 (maxpool)
        (B, DIM, H // 4, W // 4),      # fpn5 (identity)
    ]
    assert [f.shape for f in feats] == expected, [f.shape for f in feats]
    assert all(bool(jnp.all(jnp.isfinite(f))) for f in feats)
    print("KERNEL_OK")
</pallas_src>

<mosaic_0001>
module attributes {stable_mosaic.version = 11 : i64} {
  func.func @_fused_kernel(%arg0: i32, %arg1: memref<32x64xf32, #tpu.memory_space<vmem>>, %arg2: memref<64x64xf32, #tpu.memory_space<vmem>>, %arg3: memref<1x64xf32, #tpu.memory_space<vmem>>, %arg4: memref<1x64xf32, #tpu.memory_space<vmem>>, %arg5: memref<64x32xf32, #tpu.memory_space<vmem>>, %arg6: memref<1x32xf32, #tpu.memory_space<vmem>>, %arg7: memref<32x32xf32, #tpu.memory_space<vmem>>, %arg8: memref<1x32xf32, #tpu.memory_space<vmem>>, %arg9: memref<1x32xf32, #tpu.memory_space<vmem>>, %arg10: memref<64x32xf32, #tpu.memory_space<vmem>>, %arg11: memref<2x1x32xf32, #tpu.memory_space<vmem>>, %arg12: memref<2x1x32xf32, #tpu.memory_space<vmem>>, %arg13: memref<2x32x32xf32, #tpu.memory_space<vmem>>, %arg14: memref<2x32x32xf32, #tpu.memory_space<vmem>>, %arg15: memref<2x32x32xf32, #tpu.memory_space<vmem>>, %arg16: memref<2x32x32xf32, #tpu.memory_space<vmem>>, %arg17: memref<2x1x32xf32, #tpu.memory_space<vmem>>, %arg18: memref<2x1x32xf32, #tpu.memory_space<vmem>>, %arg19: memref<2x1x32xf32, #tpu.memory_space<vmem>>, %arg20: memref<2x32x128xf32, #tpu.memory_space<vmem>>, %arg21: memref<2x1x128xf32, #tpu.memory_space<vmem>>, %arg22: memref<2x128x32xf32, #tpu.memory_space<vmem>>, %arg23: memref<2x1x32xf32, #tpu.memory_space<vmem>>, %arg24: memref<4x32x256xf32, #tpu.memory_space<vmem>>, %arg25: memref<1x256xf32, #tpu.memory_space<vmem>>, %arg26: memref<1x256xf32, #tpu.memory_space<vmem>>, %arg27: memref<1x256xf32, #tpu.memory_space<vmem>>, %arg28: memref<256x512xf32, #tpu.memory_space<vmem>>, %arg29: memref<1x512xf32, #tpu.memory_space<vmem>>, %arg30: memref<32x512xf32, #tpu.memory_space<vmem>>, %arg31: memref<1x512xf32, #tpu.memory_space<vmem>>, %arg32: memref<128x512xf32, #tpu.memory_space<vmem>>, %arg33: memref<32x512xf32, #tpu.memory_space<vmem>>, %arg34: memref<3x32x32xf32, #tpu.memory_space<vmem>>) attributes {dimension_semantics = [#tpu.dimension_semantics<arbitrary>], iteration_bounds = array<i64: 1>, scalar_prefetch = 0 : i64, scratch_operands = 0 : i64, tpu.core_type = #tpu.core_type<tc>, window_params = [{pipeline_mode = #tpu.pipeline_mode<synchronous>, transform_indices = @transform_0, window_bounds = array<i64: 32, 64>}, {pipeline_mode = #tpu.pipeline_mode<synchronous>, transform_indices = @transform_1, window_bounds = array<i64: 64, 64>}, {pipeline_mode = #tpu.pipeline_mode<synchronous>, transform_indices = @transform_2, window_bounds = array<i64: 1, 64>}, {pipeline_mode = #tpu.pipeline_mode<synchronous>, transform_indices = @transform_3, window_bounds = array<i64: 1, 64>}, {pipeline_mode = #tpu.pipeline_mode<synchronous>, transform_indices = @transform_4, window_bounds = array<i64: 64, 32>}, {pipeline_mode = #tpu.pipeline_mode<synchronous>, transform_indices = @transform_5, window_bounds = array<i64: 1, 32>}, {pipeline_mode = #tpu.pipeline_mode<synchronous>, transform_indices = @transform_6, window_bounds = array<i64: 32, 32>}, {pipeline_mode = #tpu.pipeline_mode<synchronous>, transform_indices = @transform_7, window_bounds = array<i64: 1, 32>}, {pipeline_mode = #tpu.pipeline_mode<synchronous>, transform_indices = @transform_8, window_bounds = array<i64: 1, 32>}, {pipeline_mode = #tpu.pipeline_mode<synchronous>, transform_indices = @transform_9, window_bounds = array<i64: 64, 32>}, {pipeline_mode = #tpu.pipeline_mode<synchronous>, transform_indices = @transform_10, window_bounds = array<i64: 2, 1, 32>}, {pipeline_mode = #tpu.pipeline_mode<synchronous>, transform_indices = @transform_11, window_bounds = array<i64: 2, 1, 32>}, {pipeline_mode = #tpu.pipeline_mode<synchronous>, transform_indices = @transform_12, window_bounds = array<i64: 2, 32, 32>}, {pipeline_mode = #tpu.pipeline_mode<synchronous>, transform_indices = @transform_13, window_bounds = array<i64: 2, 32, 32>}, {pipeline_mode = #tpu.pipeline_mode<synchronous>, transform_indices = @transform_14, window_bounds = array<i64: 2, 32, 32>}, {pipeline_mode = #tpu.pipeline_mode<synchronous>, transform_indices = @transform_15, window_bounds = array<i64: 2, 32, 32>}, {pipeline_mode = #tpu.pipeline_mode<synchronous>, transform_indices = @transform_16, window_bounds = array<i64: 2, 1, 32>}, {pipeline_mode = #tpu.pipeline_mode<synchronous>, transform_indices = @transform_17, window_bounds = array<i64: 2, 1, 32>}, {pipeline_mode = #tpu.pipeline_mode<synchronous>, transform_indices = @transform_18, window_bounds = array<i64: 2, 1, 32>}, {pipeline_mode = #tpu.pipeline_mode<synchronous>, transform_indices = @transform_19, window_bounds = array<i64: 2, 32, 128>}, {pipeline_mode = #tpu.pipeline_mode<synchronous>, transform_indices = @transform_20, window_bounds = array<i64: 2, 1, 128>}, {pipeline_mode = #tpu.pipeline_mode<synchronous>, transform_indices = @transform_21, window_bounds = array<i64: 2, 128, 32>}, {pipeline_mode = #tpu.pipeline_mode<synchronous>, transform_indices = @transform_22, window_bounds = array<i64: 2, 1, 32>}, {pipeline_mode = #tpu.pipeline_mode<synchronous>, transform_indices = @transform_23, window_bounds = array<i64: 4, 32, 256>}, {pipeline_mode = #tpu.pipeline_mode<synchronous>, transform_indices = @transform_24, window_bounds = array<i64: 1, 256>}, {pipeline_mode = #tpu.pipeline_mode<synchronous>, transform_indices = @transform_25, window_bounds = array<i64: 1, 256>}, {pipeline_mode = #tpu.pipeline_mode<synchronous>, transform_indices = @transform_26, window_bounds = array<i64: 1, 256>}, {pipeline_mode = #tpu.pipeline_mode<synchronous>, transform_indices = @transform_27, window_bounds = array<i64: 256, 512>}, {pipeline_mode = #tpu.pipeline_mode<synchronous>, transform_indices = @transform_28, window_bounds = array<i64: 1, 512>}, {pipeline_mode = #tpu.pipeline_mode<synchronous>, transform_indices = @transform_29, window_bounds = array<i64: 32, 512>}, {pipeline_mode = #tpu.pipeline_mode<synchronous>, transform_indices = @transform_30, window_bounds = array<i64: 1, 512>}, {pipeline_mode = #tpu.pipeline_mode<synchronous>, transform_indices = @transform_31, window_bounds = array<i64: 128, 512>}, {pipeline_mode = #tpu.pipeline_mode<synchronous>, transform_indices = @transform_32, window_bounds = array<i64: 32, 512>}, {pipeline_mode = #tpu.pipeline_mode<synchronous>, transform_indices = @transform_33, window_bounds = array<i64: 3, 32, 32>}]} {
    %c0 = arith.constant 0 : index
    %c0_0 = arith.constant 0 : index
    %0 = vector.load %arg1[%c0, %c0_0] : memref<32x64xf32, #tpu.memory_space<vmem>>, vector<32x64xf32>
    %c0_1 = arith.constant 0 : index
    %c0_2 = arith.constant 0 : index
    %1 = vector.load %arg2[%c0_1, %c0_2] : memref<64x64xf32, #tpu.memory_space<vmem>>, vector<64x64xf32>
    %cst = arith.constant dense<0.000000e+00> : vector<32x64xf32>
    %2 = tpu.matmul %0, %1, %cst {dimension_numbers = #tpu.dot_dimension_numbers<[1], [0], [0], [1], [0, 0, 1, 1], [], []>} : vector<32x64xf32>, vector<64x64xf32>, vector<32x64xf32> -> vector<32x64xf32>
    %3 = arith.subf %0, %2 : vector<32x64xf32>
    %4 = arith.mulf %3, %3 : vector<32x64xf32>
    %cst_3 = arith.constant dense<0.000000e+00> : vector<32x64xf32>
    %5 = tpu.matmul %4, %1, %cst_3 {dimension_numbers = #tpu.dot_dimension_numbers<[1], [0], [0], [1], [0, 0, 1, 1], [], []>} : vector<32x64xf32>, vector<64x64xf32>, vector<32x64xf32> -> vector<32x64xf32>
    %cst_4 = arith.constant 9.99999974E-6 : f32
    %6 = vector.broadcast %cst_4 : f32 to vector<32x64xf32>
    %7 = arith.addf %5, %6 : vector<32x64xf32>
    %8 = math.rsqrt %7 : vector<32x64xf32>
    %9 = arith.mulf %3, %8 : vector<32x64xf32>
    %c0_5 = arith.constant 0 : index
    %c0_6 = arith.constant 0 : index
    %10 = vector.load %arg3[%c0_5, %c0_6] : memref<1x64xf32, #tpu.memory_space<vmem>>, vector<1x64xf32>
    %11 = vector.broadcast %10 : vector<1x64xf32> to vector<32x64xf32>
    %12 = arith.mulf %9, %11 : vector<32x64xf32>
    %c0_7 = arith.constant 0 : index
    %c0_8 = arith.constant 0 : index
    %13 = vector.load %arg4[%c0_7, %c0_8] : memref<1x64xf32, #tpu.memory_space<vmem>>, vector<1x64xf32>
    %14 = vector.broadcast %13 : vector<1x64xf32> to vector<32x64xf32>
    %15 = arith.addf %12, %14 : vector<32x64xf32>
    %c0_9 = arith.constant 0 : index
    %c0_10 = arith.constant 0 : index
    %16 = vector.load %arg5[%c0_9, %c0_10] : memref<64x32xf32, #tpu.memory_space<vmem>>, vector<64x32xf32>
    %cst_11 = arith.constant dense<0.000000e+00> : vector<32x32xf32>
    %17 = tpu.matmul %15, %16, %cst_11 {dimension_numbers = #tpu.dot_dimension_numbers<[1], [0], [0], [1], [0, 0, 1, 1], [], []>} : vector<32x64xf32>, vector<64x32xf32>, vector<32x32xf32> -> vector<32x32xf32>
    %c0_12 = arith.constant 0 : index
    %c0_13 = arith.constant 0 : index
    %18 = vector.load %arg6[%c0_12, %c0_13] : memref<1x32xf32, #tpu.memory_space<vmem>>, vector<1x32xf32>
    %19 = vector.broadcast %18 : vector<1x32xf32> to vector<32x32xf32>
    %20 = arith.addf %17, %19 : vector<32x32xf32>
    %c0_14 = arith.constant 0 : index
    %c0_15 = arith.constant 0 : index
    %21 = vector.load %arg7[%c0_14, %c0_15] : memref<32x32xf32, #tpu.memory_space<vmem>>, vector<32x32xf32>
    %22 = arith.addf %20, %21 : vector<32x32xf32>
    %c0_16 = arith.constant 0 : index
    %c0_17 = arith.constant 0 : index
    %23 = vector.load %arg8[%c0_16, %c0_17] : memref<1x32xf32, #tpu.memory_space<vmem>>, vector<1x32xf32>
    %c0_18 = arith.constant 0 : index
    %c0_19 = arith.constant 0 : index
    %24 = vector.load %arg9[%c0_18, %c0_19] : memref<1x32xf32, #tpu.memory_space<vmem>>, vector<1x32xf32>
    %cst_20 = arith.constant dense<0.000000e+00> : vector<32xf32>
    %25 = vector.multi_reduction <add>, %22, %cst_20 [1] : vector<32x32xf32> to vector<32xf32>
    %26 = vector.shape_cast %25 : vector<32xf32> to vector<32x1xf32>
    %cst_21 = arith.constant 3.200000e+01 : f32
    %27 = vector.broadcast %cst_21 : f32 to vector<32x1xf32>
    %28 = arith.divf %26, %27 : vector<32x1xf32>
    %29 = vector.broadcast %28 : vector<32x1xf32> to vector<32x32xf32>
    %30 = arith.subf %22, %29 : vector<32x32xf32>
    %31 = arith.mulf %30, %30 : vector<32x32xf32>
    %cst_22 = arith.constant dense<0.000000e+00> : vector<32xf32>
    %32 = vector.multi_reduction <add>, %31, %cst_22 [1] : vector<32x32xf32> to vector<32xf32>
    %33 = vector.shape_cast %32 : vector<32xf32> to vector<32x1xf32>
    %cst_23 = arith.constant 3.200000e+01 : f32
    %34 = vector.broadcast %cst_23 : f32 to vector<32x1xf32>
    %35 = arith.divf %33, %34 : vector<32x1xf32>
    %36 = vector.broadcast %28 : vector<32x1xf32> to vector<32x32xf32>
    %37 = arith.subf %22, %36 : vector<32x32xf32>
    %cst_24 = arith.constant 9.99999974E-6 : f32
    %38 = vector.broadcast %cst_24 : f32 to vector<32x1xf32>
    %39 = arith.addf %35, %38 : vector<32x1xf32>
    %40 = math.rsqrt %39 : vector<32x1xf32>
    %41 = vector.broadcast %40 : vector<32x1xf32> to vector<32x32xf32>
    %42 = arith.mulf %37, %41 : vector<32x32xf32>
    %43 = vector.broadcast %23 : vector<1x32xf32> to vector<32x32xf32>
    %44 = arith.mulf %42, %43 : vector<32x32xf32>
    %45 = vector.broadcast %24 : vector<1x32xf32> to vector<32x32xf32>
    %46 = arith.addf %44, %45 : vector<32x32xf32>
    %c0_25 = arith.constant 0 : index
    %c0_26 = arith.constant 0 : index
    %47 = vector.load %arg10[%c0_25, %c0_26] : memref<64x32xf32, #tpu.memory_space<vmem>>, vector<64x32xf32>
    %c0_27 = arith.constant 0 : index
    %c0_28 = arith.constant 0 : index
    %c0_29 = arith.constant 0 : index
    %48 = vector.load %arg11[%c0_27, %c0_28, %c0_29] : memref<2x1x32xf32, #tpu.memory_space<vmem>>, vector<1x1x32xf32>
    %49 = vector.shape_cast %48 : vector<1x1x32xf32> to vector<1x32xf32>
    %c0_30 = arith.constant 0 : index
    %c0_31 = arith.constant 0 : index
    %c0_32 = arith.constant 0 : index
    %50 = vector.load %arg12[%c0_30, %c0_31, %c0_32] : memref<2x1x32xf32, #tpu.memory_space<vmem>>, vector<1x1x32xf32>
    %51 = vector.shape_cast %50 : vector<1x1x32xf32> to vector<1x32xf32>
    %cst_33 = arith.constant dense<0.000000e+00> : vector<32xf32>
    %52 = vector.multi_reduction <add>, %46, %cst_33 [1] : vector<32x32xf32> to vector<32xf32>
    %53 = vector.shape_cast %52 : vector<32xf32> to vector<32x1xf32>
    %cst_34 = arith.constant 3.200000e+01 : f32
    %54 = vector.broadcast %cst_34 : f32 to vector<32x1xf32>
    %55 = arith.divf %53, %54 : vector<32x1xf32>
    %56 = vector.broadcast %55 : vector<32x1xf32> to vector<32x32xf32>
    %57 = arith.subf %46, %56 : vector<32x32xf32>
    %58 = arith.mulf %57, %57 : vector<32x32xf32>
    %cst_35 = arith.constant dense<0.000000e+00> : vector<32xf32>
    %59 = vector.multi_reduction <add>, %58, %cst_35 [1] : vector<32x32xf32> to vector<32xf32>
    %60 = vector.shape_cast %59 : vector<32xf32> to vector<32x1xf32>
    %cst_36 = arith.constant 3.200000e+01 : f32
    %61 = vector.broadcast %cst_36 : f32 to vector<32x1xf32>
    %62 = arith.divf %60, %61 : vector<32x1xf32>
    %63 = vector.broadcast %55 : vector<32x1xf32> to vector<32x32xf32>
    %64 = arith.subf %46, %63 : vector<32x32xf32>
    %cst_37 = arith.constant 9.99999974E-6 : f32
    %65 = vector.broadcast %cst_37 : f32 to vector<32x1xf32>
    %66 = arith.addf %62, %65 : vector<32x1xf32>
    %67 = math.rsqrt %66 : vector<32x1xf32>
    %68 = vector.broadcast %67 : vector<32x1xf32> to vector<32x32xf32>
    %69 = arith.mulf %64, %68 : vector<32x32xf32>
    %70 = vector.broadcast %49 : vector<1x32xf32> to vector<32x32xf32>
    %71 = arith.mulf %69, %70 : vector<32x32xf32>
    %72 = vector.broadcast %51 : vector<1x32xf32> to vector<32x32xf32>
    %73 = arith.addf %71, %72 : vector<32x32xf32>
    %c0_38 = arith.constant 0 : index
    %c0_39 = arith.constant 0 : index
    %c0_40 = arith.constant 0 : index
    %74 = vector.load %arg13[%c0_38, %c0_39, %c0_40] : memref<2x32x32xf32, #tpu.memory_space<vmem>>, vector<1x32x32xf32>
    %75 = vector.shape_cast %74 : vector<1x32x32xf32> to vector<32x32xf32>
    %cst_41 = arith.constant dense<0.000000e+00> : vector<32x32xf32>
    %76 = tpu.matmul %73, %75, %cst_41 {dimension_numbers = #tpu.dot_dimension_numbers<[1], [0], [0], [1], [0, 0, 1, 1], [], []>} : vector<32x32xf32>, vector<32x32xf32>, vector<32x32xf32> -> vector<32x32xf32>
    %c0_42 = arith.constant 0 : index
    %c0_43 = arith.constant 0 : index
    %c0_44 = arith.constant 0 : index
    %77 = vector.load %arg14[%c0_42, %c0_43, %c0_44] : memref<2x32x32xf32, #tpu.memory_space<vmem>>, vector<1x32x32xf32>
    %78 = vector.shape_cast %77 : vector<1x32x32xf32> to vector<32x32xf32>
    %cst_45 = arith.constant dense<0.000000e+00> : vector<32x32xf32>
    %79 = tpu.matmul %73, %78, %cst_45 {dimension_numbers = #tpu.dot_dimension_numbers<[1], [0], [0], [1], [0, 0, 1, 1], [], []>} : vector<32x32xf32>, vector<32x32xf32>, vector<32x32xf32> -> vector<32x32xf32>
    %c0_46 = arith.constant 0 : index
    %c0_47 = arith.constant 0 : index
    %c0_48 = arith.constant 0 : index
    %80 = vector.load %arg15[%c0_46, %c0_47, %c0_48] : memref<2x32x32xf32, #tpu.memory_space<vmem>>, vector<1x32x32xf32>
    %81 = vector.shape_cast %80 : vector<1x32x32xf32> to vector<32x32xf32>
    %cst_49 = arith.constant dense<0.000000e+00> : vector<32x32xf32>
    %82 = tpu.matmul %73, %81, %cst_49 {dimension_numbers = #tpu.dot_dimension_numbers<[1], [0], [0], [1], [0, 0, 1, 1], [], []>} : vector<32x32xf32>, vector<32x32xf32>, vector<32x32xf32> -> vector<32x32xf32>
    %83 = vector.extract_strided_slice %76 {offsets = [0, 0], sizes = [16, 32], strides = [1, 1]} : vector<32x32xf32> to vector<16x32xf32>
    %84 = vector.extract_strided_slice %79 {offsets = [0, 0], sizes = [16, 32], strides = [1, 1]} : vector<32x32xf32> to vector<16x32xf32>
    %85 = vector.extract_strided_slice %82 {offsets = [0, 0], sizes = [16, 32], strides = [1, 1]} : vector<32x32xf32> to vector<16x32xf32>
    %86 = tpu.concatenate %83, %83, %83, %83 in 0 : vector<16x32xf32>, vector<16x32xf32>, vector<16x32xf32>, vector<16x32xf32> -> vector<64x32xf32>
    %87 = arith.mulf %86, %47 : vector<64x32xf32>
    %cst_50 = arith.constant dense<0.000000e+00> : vector<64x16xf32>
    %88 = tpu.matmul %87, %84, %cst_50 {dimension_numbers = #tpu.dot_dimension_numbers<[1], [1], [0], [0], [0, 0, 1, 0], [], []>} : vector<64x32xf32>, vector<16x32xf32>, vector<64x16xf32> -> vector<64x16xf32>
    %cst_51 = arith.constant 0.353553385 : f32
    %89 = vector.broadcast %cst_51 : f32 to vector<64x16xf32>
    %90 = arith.mulf %88, %89 : vector<64x16xf32>
    %cst_52 = arith.constant dense<0xFF800000> : vector<64xf32>
    %91 = vector.multi_reduction <maximumf>, %90, %cst_52 [1] : vector<64x16xf32> to vector<64xf32>
    %92 = vector.shape_cast %91 : vector<64xf32> to vector<64x1xf32>
    %93 = vector.broadcast %92 : vector<64x1xf32> to vector<64x16xf32>
    %94 = arith.subf %90, %93 : vector<64x16xf32>
    %95 = math.exp %94 : vector<64x16xf32>
    %cst_53 = arith.constant dense<0.000000e+00> : vector<64xf32>
    %96 = vector.multi_reduction <add>, %95, %cst_53 [1] : vector<64x16xf32> to vector<64xf32>
    %97 = vector.shape_cast %96 : vector<64xf32> to vector<64x1xf32>
    %98 = vector.broadcast %97 : vector<64x1xf32> to vector<64x16xf32>
    %99 = arith.divf %95, %98 : vector<64x16xf32>
    %cst_54 = arith.constant dense<0.000000e+00> : vector<64x32xf32>
    %100 = tpu.matmul %99, %85, %cst_54 {dimension_numbers = #tpu.dot_dimension_numbers<[1], [0], [0], [1], [0, 0, 1, 1], [], []>} : vector<64x16xf32>, vector<16x32xf32>, vector<64x32xf32> -> vector<64x32xf32>
    %101 = arith.mulf %100, %47 : vector<64x32xf32>
    %102 = vector.extract_strided_slice %101 {offsets = [0, 0], sizes = [16, 32], strides = [1, 1]} : vector<64x32xf32> to vector<16x32xf32>
    %103 = vector.extract_strided_slice %101 {offsets = [16, 0], sizes = [16, 32], strides = [1, 1]} : vector<64x32xf32> to vector<16x32xf32>
    %104 = arith.addf %102, %103 : vector<16x32xf32>
    %105 = vector.extract_strided_slice %101 {offsets = [32, 0], sizes = [16, 32], strides = [1, 1]} : vector<64x32xf32> to vector<16x32xf32>
    %106 = arith.addf %104, %105 : vector<16x32xf32>
    %107 = vector.extract_strided_slice %101 {offsets = [48, 0], sizes = [16, 32], strides = [1, 1]} : vector<64x32xf32> to vector<16x32xf32>
    %108 = arith.addf %106, %107 : vector<16x32xf32>
    %109 = vector.extract_strided_slice %76 {offsets = [16, 0], sizes = [16, 32], strides = [1, 1]} : vector<32x32xf32> to vector<16x32xf32>
    %110 = vector.extract_strided_slice %79 {offsets = [16, 0], sizes = [16, 32], strides = [1, 1]} : vector<32x32xf32> to vector<16x32xf32>
    %111 = vector.extract_strided_slice %82 {offsets = [16, 0], sizes = [16, 32], strides = [1, 1]} : vector<32x32xf32> to vector<16x32xf32>
    %112 = tpu.concatenate %109, %109, %109, %109 in 0 : vector<16x32xf32>, vector<16x32xf32>, vector<16x32xf32>, vector<16x32xf32> -> vector<64x32xf32>
    %113 = arith.mulf %112, %47 : vector<64x32xf32>
    %cst_55 = arith.constant dense<0.000000e+00> : vector<64x16xf32>
    %114 = tpu.matmul %113, %110, %cst_55 {dimension_numbers = #tpu.dot_dimension_numbers<[1], [1], [0], [0], [0, 0, 1, 0], [], []>} : vector<64x32xf32>, vector<16x32xf32>, vector<64x16xf32> -> vector<64x16xf32>
    %cst_56 = arith.constant 0.353553385 : f32
    %115 = vector.broadcast %cst_56 : f32 to vector<64x16xf32>
    %116 = arith.mulf %114, %115 : vector<64x16xf32>
    %cst_57 = arith.constant dense<0xFF800000> : vector<64xf32>
    %117 = vector.multi_reduction <maximumf>, %116, %cst_57 [1] : vector<64x16xf32> to vector<64xf32>
    %118 = vector.shape_cast %117 : vector<64xf32> to vector<64x1xf32>
    %119 = vector.broadcast %118 : vector<64x1xf32> to vector<64x16xf32>
    %120 = arith.subf %116, %119 : vector<64x16xf32>
    %121 = math.exp %120 : vector<64x16xf32>
    %cst_58 = arith.constant dense<0.000000e+00> : vector<64xf32>
    %122 = vector.multi_reduction <add>, %121, %cst_58 [1] : vector<64x16xf32> to vector<64xf32>
    %123 = vector.shape_cast %122 : vector<64xf32> to vector<64x1xf32>
    %124 = vector.broadcast %123 : vector<64x1xf32> to vector<64x16xf32>
    %125 = arith.divf %121, %124 : vector<64x16xf32>
    %cst_59 = arith.constant dense<0.000000e+00> : vector<64x32xf32>
    %126 = tpu.matmul %125, %111, %cst_59 {dimension_numbers = #tpu.dot_dimension_numbers<[1], [0], [0], [1], [0, 0, 1, 1], [], []>} : vector<64x16xf32>, vector<16x32xf32>, vector<64x32xf32> -> vector<64x32xf32>
    %127 = arith.mulf %126, %47 : vector<64x32xf32>
    %128 = vector.extract_strided_slice %127 {offsets = [0, 0], sizes = [16, 32], strides = [1, 1]} : vector<64x32xf32> to vector<16x32xf32>
    %129 = vector.extract_strided_slice %127 {offsets = [16, 0], sizes = [16, 32], strides = [1, 1]} : vector<64x32xf32> to vector<16x32xf32>
    %130 = arith.addf %128, %129 : vector<16x32xf32>
    %131 = vector.extract_strided_slice %127 {offsets = [32, 0], sizes = [16, 32], strides = [1, 1]} : vector<64x32xf32> to vector<16x32xf32>
    %132 = arith.addf %130, %131 : vector<16x32xf32>
    %133 = vector.extract_strided_slice %127 {offsets = [48, 0], sizes = [16, 32], strides = [1, 1]} : vector<64x32xf32> to vector<16x32xf32>
    %134 = arith.addf %132, %133 : vector<16x32xf32>
    %135 = tpu.concatenate %108, %134 in 0 : vector<16x32xf32>, vector<16x32xf32> -> vector<32x32xf32>
    %c0_60 = arith.constant 0 : index
    %c0_61 = arith.constant 0 : index
    %c0_62 = arith.constant 0 : index
    %136 = vector.load %arg16[%c0_60, %c0_61, %c0_62] : memref<2x32x32xf32, #tpu.memory_space<vmem>>, vector<1x32x32xf32>
    %137 = vector.shape_cast %136 : vector<1x32x32xf32> to vector<32x32xf32>
    %cst_63 = arith.constant dense<0.000000e+00> : vector<32x32xf32>
    %138 = tpu.matmul %135, %137, %cst_63 {dimension_numbers = #tpu.dot_dimension_numbers<[1], [0], [0], [1], [0, 0, 1, 1], [], []>} : vector<32x32xf32>, vector<32x32xf32>, vector<32x32xf32> -> vector<32x32xf32>
    %139 = arith.addf %46, %138 : vector<32x32xf32>
    %c0_64 = arith.constant 0 : index
    %c0_65 = arith.constant 0 : index
    %c0_66 = arith.constant 0 : index
    %140 = vector.load %arg17[%c0_64, %c0_65, %c0_66] : memref<2x1x32xf32, #tpu.memory_space<vmem>>, vector<1x1x32xf32>
    %141 = vector.shape_cast %140 : vector<1x1x32xf32> to vector<1x32xf32>
    %142 = vector.broadcast %141 : vector<1x32xf32> to vector<32x32xf32>
    %143 = arith.addf %139, %142 : vector<32x32xf32>
    %c0_67 = arith.constant 0 : index
    %c0_68 = arith.constant 0 : index
    %c0_69 = arith.constant 0 : index
    %144 = vector.load %arg18[%c0_67, %c0_68, %c0_69] : memref<2x1x32xf32, #tpu.memory_space<vmem>>, vector<1x1x32xf32>
    %145 = vector.shape_cast %144 : vector<1x1x32xf32> to vector<1x32xf32>
    %c0_70 = arith.constant 0 : index
    %c0_71 = arith.constant 0 : index
    %c0_72 = arith.constant 0 : index
    %146 = vector.load %arg19[%c0_70, %c0_71, %c0_72] : memref<2x1x32xf32, #tpu.memory_space<vmem>>, vector<1x1x32xf32>
    %147 = vector.shape_cast %146 : vector<1x1x32xf32> to vector<1x32xf32>
    %cst_73 = arith.constant dense<0.000000e+00> : vector<32xf32>
    %148 = vector.multi_reduction <add>, %143, %cst_73 [1] : vector<32x32xf32> to vector<32xf32>
    %149 = vector.shape_cast %148 : vector<32xf32> to vector<32x1xf32>
    %cst_74 = arith.constant 3.200000e+01 : f32
    %150 = vector.broadcast %cst_74 : f32 to vector<32x1xf32>
    %151 = arith.divf %149, %150 : vector<32x1xf32>
    %152 = vector.broadcast %151 : vector<32x1xf32> to vector<32x32xf32>
    %153 = arith.subf %143, %152 : vector<32x32xf32>
    %154 = arith.mulf %153, %153 : vector<32x32xf32>
    %cst_75 = arith.constant dense<0.000000e+00> : vector<32xf32>
    %155 = vector.multi_reduction <add>, %154, %cst_75 [1] : vector<32x32xf32> to vector<32xf32>
    %156 = vector.shape_cast %155 : vector<32xf32> to vector<32x1xf32>
    %cst_76 = arith.constant 3.200000e+01 : f32
    %157 = vector.broadcast %cst_76 : f32 to vector<32x1xf32>
    %158 = arith.divf %156, %157 : vector<32x1xf32>
    %159 = vector.broadcast %151 : vector<32x1xf32> to vector<32x32xf32>
    %160 = arith.subf %143, %159 : vector<32x32xf32>
    %cst_77 = arith.constant 9.99999974E-6 : f32
    %161 = vector.broadcast %cst_77 : f32 to vector<32x1xf32>
    %162 = arith.addf %158, %161 : vector<32x1xf32>
    %163 = math.rsqrt %162 : vector<32x1xf32>
    %164 = vector.broadcast %163 : vector<32x1xf32> to vector<32x32xf32>
    %165 = arith.mulf %160, %164 : vector<32x32xf32>
    %166 = vector.broadcast %145 : vector<1x32xf32> to vector<32x32xf32>
    %167 = arith.mulf %165, %166 : vector<32x32xf32>
    %168 = vector.broadcast %147 : vector<1x32xf32> to vector<32x32xf32>
    %169 = arith.addf %167, %168 : vector<32x32xf32>
    %c0_78 = arith.constant 0 : index
    %c0_79 = arith.constant 0 : index
    %c0_80 = arith.constant 0 : index
    %170 = vector.load %arg20[%c0_78, %c0_79, %c0_80] : memref<2x32x128xf32, #tpu.memory_space<vmem>>, vector<1x32x128xf32>
    %171 = vector.shape_cast %170 : vector<1x32x128xf32> to vector<32x128xf32>
    %cst_81 = arith.constant dense<0.000000e+00> : vector<32x128xf32>
    %172 = tpu.matmul %169, %171, %cst_81 {dimension_numbers = #tpu.dot_dimension_numbers<[1], [0], [0], [1], [0, 0, 1, 1], [], []>} : vector<32x32xf32>, vector<32x128xf32>, vector<32x128xf32> -> vector<32x128xf32>
    %c0_82 = arith.constant 0 : index
    %c0_83 = arith.constant 0 : index
    %c0_84 = arith.constant 0 : index
    %173 = vector.load %arg21[%c0_82, %c0_83, %c0_84] : memref<2x1x128xf32, #tpu.memory_space<vmem>>, vector<1x1x128xf32>
    %174 = vector.shape_cast %173 : vector<1x1x128xf32> to vector<1x128xf32>
    %175 = vector.broadcast %174 : vector<1x128xf32> to vector<32x128xf32>
    %176 = arith.addf %172, %175 : vector<32x128xf32>
    %177 = arith.mulf %176, %176 : vector<32x128xf32>
    %178 = arith.mulf %176, %177 : vector<32x128xf32>
    %cst_85 = arith.constant 4.471500e-02 : f32
    %179 = vector.broadcast %cst_85 : f32 to vector<32x128xf32>
    %180 = arith.mulf %179, %178 : vector<32x128xf32>
    %181 = arith.addf %176, %180 : vector<32x128xf32>
    %cst_86 = arith.constant 0.797884583 : f32
    %182 = vector.broadcast %cst_86 : f32 to vector<32x128xf32>
    %183 = arith.mulf %182, %181 : vector<32x128xf32>
    %184 = math.tanh %183 : vector<32x128xf32>
    %cst_87 = arith.constant 1.000000e+00 : f32
    %185 = vector.broadcast %cst_87 : f32 to vector<32x128xf32>
    %186 = arith.addf %185, %184 : vector<32x128xf32>
    %cst_88 = arith.constant 5.000000e-01 : f32
    %187 = vector.broadcast %cst_88 : f32 to vector<32x128xf32>
    %188 = arith.mulf %187, %186 : vector<32x128xf32>
    %189 = arith.mulf %176, %188 : vector<32x128xf32>
    %c0_89 = arith.constant 0 : index
    %c0_90 = arith.constant 0 : index
    %c0_91 = arith.constant 0 : index
    %190 = vector.load %arg22[%c0_89, %c0_90, %c0_91] : memref<2x128x32xf32, #tpu.memory_space<vmem>>, vector<1x128x32xf32>
    %191 = vector.shape_cast %190 : vector<1x128x32xf32> to vector<128x32xf32>
    %cst_92 = arith.constant dense<0.000000e+00> : vector<32x32xf32>
    %192 = tpu.matmul %189, %191, %cst_92 {dimension_numbers = #tpu.dot_dimension_numbers<[1], [0], [0], [1], [0, 0, 1, 1], [], []>} : vector<32x128xf32>, vector<128x32xf32>, vector<32x32xf32> -> vector<32x32xf32>
    %193 = arith.addf %143, %192 : vector<32x32xf32>
    %c0_93 = arith.constant 0 : index
    %c0_94 = arith.constant 0 : index
    %c0_95 = arith.constant 0 : index
    %194 = vector.load %arg23[%c0_93, %c0_94, %c0_95] : memref<2x1x32xf32, #tpu.memory_space<vmem>>, vector<1x1x32xf32>
    %195 = vector.shape_cast %194 : vector<1x1x32xf32> to vector<1x32xf32>
    %196 = vector.broadcast %195 : vector<1x32xf32> to vector<32x32xf32>
    %197 = arith.addf %193, %196 : vector<32x32xf32>
    %c1 = arith.constant 1 : index
    %c0_96 = arith.constant 0 : index
    %c0_97 = arith.constant 0 : index
    %198 = vector.load %arg11[%c1, %c0_96, %c0_97] : memref<2x1x32xf32, #tpu.memory_space<vmem>>, vector<1x1x32xf32>
    %199 = vector.shape_cast %198 : vector<1x1x32xf32> to vector<1x32xf32>
    %c1_98 = arith.constant 1 : index
    %c0_99 = arith.constant 0 : index
    %c0_100 = arith.constant 0 : index
    %200 = vector.load %arg12[%c1_98, %c0_99, %c0_100] : memref<2x1x32xf32, #tpu.memory_space<vmem>>, vector<1x1x32xf32>
    %201 = vector.shape_cast %200 : vector<1x1x32xf32> to vector<1x32xf32>
    %cst_101 = arith.constant dense<0.000000e+00> : vector<32xf32>
    %202 = vector.multi_reduction <add>, %197, %cst_101 [1] : vector<32x32xf32> to vector<32xf32>
    %203 = vector.shape_cast %202 : vector<32xf32> to vector<32x1xf32>
    %cst_102 = arith.constant 3.200000e+01 : f32
    %204 = vector.broadcast %cst_102 : f32 to vector<32x1xf32>
    %205 = arith.divf %203, %204 : vector<32x1xf32>
    %206 = vector.broadcast %205 : vector<32x1xf32> to vector<32x32xf32>
    %207 = arith.subf %197, %206 : vector<32x32xf32>
    %208 = arith.mulf %207, %207 : vector<32x32xf32>
    %cst_103 = arith.constant dense<0.000000e+00> : vector<32xf32>
    %209 = vector.multi_reduction <add>, %208, %cst_103 [1] : vector<32x32xf32> to vector<32xf32>
    %210 = vector.shape_cast %209 : vector<32xf32> to vector<32x1xf32>
    %cst_104 = arith.constant 3.200000e+01 : f32
    %211 = vector.broadcast %cst_104 : f32 to vector<32x1xf32>
    %212 = arith.divf %210, %211 : vector<32x1xf32>
    %213 = vector.broadcast %205 : vector<32x1xf32> to vector<32x32xf32>
    %214 = arith.subf %197, %213 : vector<32x32xf32>
    %cst_105 = arith.constant 9.99999974E-6 : f32
    %215 = vector.broadcast %cst_105 : f32 to vector<32x1xf32>
    %216 = arith.addf %212, %215 : vector<32x1xf32>
    %217 = math.rsqrt %216 : vector<32x1xf32>
    %218 = vector.broadcast %217 : vector<32x1xf32> to vector<32x32xf32>
    %219 = arith.mulf %214, %218 : vector<32x32xf32>
    %220 = vector.broadcast %199 : vector<1x32xf32> to vector<32x32xf32>
    %221 = arith.mulf %219, %220 : vector<32x32xf32>
    %222 = vector.broadcast %201 : vector<1x32xf32> to vector<32x32xf32>
    %223 = arith.addf %221, %222 : vector<32x32xf32>
    %c1_106 = arith.constant 1 : index
    %c0_107 = arith.constant 0 : index
    %c0_108 = arith.constant 0 : index
    %224 = vector.load %arg13[%c1_106, %c0_107, %c0_108] : memref<2x32x32xf32, #tpu.memory_space<vmem>>, vector<1x32x32xf32>
    %225 = vector.shape_cast %224 : vector<1x32x32xf32> to vector<32x32xf32>
    %cst_109 = arith.constant dense<0.000000e+00> : vector<32x32xf32>
    %226 = tpu.matmul %223, %225, %cst_109 {dimension_numbers = #tpu.dot_dimension_numbers<[1], [0], [0], [1], [0, 0, 1, 1], [], []>} : vector<32x32xf32>, vector<32x32xf32>, vector<32x32xf32> -> vector<32x32xf32>
    %c1_110 = arith.constant 1 : index
    %c0_111 = arith.constant 0 : index
    %c0_112 = arith.constant 0 : index
    %227 = vector.load %arg14[%c1_110, %c0_111, %c0_112] : memref<2x32x32xf32, #tpu.memory_space<vmem>>, vector<1x32x32xf32>
    %228 = vector.shape_cast %227 : vector<1x32x32xf32> to vector<32x32xf32>
    %cst_113 = arith.constant dense<0.000000e+00> : vector<32x32xf32>
    %229 = tpu.matmul %223, %228, %cst_113 {dimension_numbers = #tpu.dot_dimension_numbers<[1], [0], [0], [1], [0, 0, 1, 1], [], []>} : vector<32x32xf32>, vector<32x32xf32>, vector<32x32xf32> -> vector<32x32xf32>
    %c1_114 = arith.constant 1 : index
    %c0_115 = arith.constant 0 : index
    %c0_116 = arith.constant 0 : index
    %230 = vector.load %arg15[%c1_114, %c0_115, %c0_116] : memref<2x32x32xf32, #tpu.memory_space<vmem>>, vector<1x32x32xf32>
    %231 = vector.shape_cast %230 : vector<1x32x32xf32> to vector<32x32xf32>
    %cst_117 = arith.constant dense<0.000000e+00> : vector<32x32xf32>
    %232 = tpu.matmul %223, %231, %cst_117 {dimension_numbers = #tpu.dot_dimension_numbers<[1], [0], [0], [1], [0, 0, 1, 1], [], []>} : vector<32x32xf32>, vector<32x32xf32>, vector<32x32xf32> -> vector<32x32xf32>
    %233 = vector.extract_strided_slice %226 {offsets = [0, 0], sizes = [16, 32], strides = [1, 1]} : vector<32x32xf32> to vector<16x32xf32>
    %234 = vector.extract_strided_slice %229 {offsets = [0, 0], sizes = [16, 32], strides = [1, 1]} : vector<32x32xf32> to vector<16x32xf32>
    %235 = vector.extract_strided_slice %232 {offsets = [0, 0], sizes = [16, 32], strides = [1, 1]} : vector<32x32xf32> to vector<16x32xf32>
    %236 = tpu.concatenate %233, %233, %233, %233 in 0 : vector<16x32xf32>, vector<16x32xf32>, vector<16x32xf32>, vector<16x32xf32> -> vector<64x32xf32>
    %237 = arith.mulf %236, %47 : vector<64x32xf32>
    %cst_118 = arith.constant dense<0.000000e+00> : vector<64x16xf32>
    %238 = tpu.matmul %237, %234, %cst_118 {dimension_numbers = #tpu.dot_dimension_numbers<[1], [1], [0], [0], [0, 0, 1, 0], [], []>} : vector<64x32xf32>, vector<16x32xf32>, vector<64x16xf32> -> vector<64x16xf32>
    %cst_119 = arith.constant 0.353553385 : f32
    %239 = vector.broadcast %cst_119 : f32 to vector<64x16xf32>
    %240 = arith.mulf %238, %239 : vector<64x16xf32>
    %cst_120 = arith.constant dense<0xFF800000> : vector<64xf32>
    %241 = vector.multi_reduction <maximumf>, %240, %cst_120 [1] : vector<64x16xf32> to vector<64xf32>
    %242 = vector.shape_cast %241 : vector<64xf32> to vector<64x1xf32>
    %243 = vector.broadcast %242 : vector<64x1xf32> to vector<64x16xf32>
    %244 = arith.subf %240, %243 : vector<64x16xf32>
    %245 = math.exp %244 : vector<64x16xf32>
    %cst_121 = arith.constant dense<0.000000e+00> : vector<64xf32>
    %246 = vector.multi_reduction <add>, %245, %cst_121 [1] : vector<64x16xf32> to vector<64xf32>
    %247 = vector.shape_cast %246 : vector<64xf32> to vector<64x1xf32>
    %248 = vector.broadcast %247 : vector<64x1xf32> to vector<64x16xf32>
    %249 = arith.divf %245, %248 : vector<64x16xf32>
    %cst_122 = arith.constant dense<0.000000e+00> : vector<64x32xf32>
    %250 = tpu.matmul %249, %235, %cst_122 {dimension_numbers = #tpu.dot_dimension_numbers<[1], [0], [0], [1], [0, 0, 1, 1], [], []>} : vector<64x16xf32>, vector<16x32xf32>, vector<64x32xf32> -> vector<64x32xf32>
    %251 = arith.mulf %250, %47 : vector<64x32xf32>
    %252 = vector.extract_strided_slice %251 {offsets = [0, 0], sizes = [16, 32], strides = [1, 1]} : vector<64x32xf32> to vector<16x32xf32>
    %253 = vector.extract_strided_slice %251 {offsets = [16, 0], sizes = [16, 32], strides = [1, 1]} : vector<64x32xf32> to vector<16x32xf32>
    %254 = arith.addf %252, %253 : vector<16x32xf32>
    %255 = vector.extract_strided_slice %251 {offsets = [32, 0], sizes = [16, 32], strides = [1, 1]} : vector<64x32xf32> to vector<16x32xf32>
    %256 = arith.addf %254, %255 : vector<16x32xf32>
    %257 = vector.extract_strided_slice %251 {offsets = [48, 0], sizes = [16, 32], strides = [1, 1]} : vector<64x32xf32> to vector<16x32xf32>
    %258 = arith.addf %256, %257 : vector<16x32xf32>
    %259 = vector.extract_strided_slice %226 {offsets = [16, 0], sizes = [16, 32], strides = [1, 1]} : vector<32x32xf32> to vector<16x32xf32>
    %260 = vector.extract_strided_slice %229 {offsets = [16, 0], sizes = [16, 32], strides = [1, 1]} : vector<32x32xf32> to vector<16x32xf32>
    %261 = vector.extract_strided_slice %232 {offsets = [16, 0], sizes = [16, 32], strides = [1, 1]} : vector<32x32xf32> to vector<16x32xf32>
    %262 = tpu.concatenate %259, %259, %259, %259 in 0 : vector<16x32xf32>, vector<16x32xf32>, vector<16x32xf32>, vector<16x32xf32> -> vector<64x32xf32>
    %263 = arith.mulf %262, %47 : vector<64x32xf32>
    %cst_123 = arith.constant dense<0.000000e+00> : vector<64x16xf32>
    %264 = tpu.matmul %263, %260, %cst_123 {dimension_numbers = #tpu.dot_dimension_numbers<[1], [1], [0], [0], [0, 0, 1, 0], [], []>} : vector<64x32xf32>, vector<16x32xf32>, vector<64x16xf32> -> vector<64x16xf32>
    %cst_124 = arith.constant 0.353553385 : f32
    %265 = vector.broadcast %cst_124 : f32 to vector<64x16xf32>
    %266 = arith.mulf %264, %265 : vector<64x16xf32>
    %cst_125 = arith.constant dense<0xFF800000> : vector<64xf32>
    %267 = vector.multi_reduction <maximumf>, %266, %cst_125 [1] : vector<64x16xf32> to vector<64xf32>
    %268 = vector.shape_cast %267 : vector<64xf32> to vector<64x1xf32>
    %269 = vector.broadcast %268 : vector<64x1xf32> to vector<64x16xf32>
    %270 = arith.subf %266, %269 : vector<64x16xf32>
    %271 = math.exp %270 : vector<64x16xf32>
    %cst_126 = arith.constant dense<0.000000e+00> : vector<64xf32>
    %272 = vector.multi_reduction <add>, %271, %cst_126 [1] : vector<64x16xf32> to vector<64xf32>
    %273 = vector.shape_cast %272 : vector<64xf32> to vector<64x1xf32>
    %274 = vector.broadcast %273 : vector<64x1xf32> to vector<64x16xf32>
    %275 = arith.divf %271, %274 : vector<64x16xf32>
    %cst_127 = arith.constant dense<0.000000e+00> : vector<64x32xf32>
    %276 = tpu.matmul %275, %261, %cst_127 {dimension_numbers = #tpu.dot_dimension_numbers<[1], [0], [0], [1], [0, 0, 1, 1], [], []>} : vector<64x16xf32>, vector<16x32xf32>, vector<64x32xf32> -> vector<64x32xf32>
    %277 = arith.mulf %276, %47 : vector<64x32xf32>
    %278 = vector.extract_strided_slice %277 {offsets = [0, 0], sizes = [16, 32], strides = [1, 1]} : vector<64x32xf32> to vector<16x32xf32>
    %279 = vector.extract_strided_slice %277 {offsets = [16, 0], sizes = [16, 32], strides = [1, 1]} : vector<64x32xf32> to vector<16x32xf32>
    %280 = arith.addf %278, %279 : vector<16x32xf32>
    %281 = vector.extract_strided_slice %277 {offsets = [32, 0], sizes = [16, 32], strides = [1, 1]} : vector<64x32xf32> to vector<16x32xf32>
    %282 = arith.addf %280, %281 : vector<16x32xf32>
    %283 = vector.extract_strided_slice %277 {offsets = [48, 0], sizes = [16, 32], strides = [1, 1]} : vector<64x32xf32> to vector<16x32xf32>
    %284 = arith.addf %282, %283 : vector<16x32xf32>
    %285 = tpu.concatenate %258, %284 in 0 : vector<16x32xf32>, vector<16x32xf32> -> vector<32x32xf32>
    %c1_128 = arith.constant 1 : index
    %c0_129 = arith.constant 0 : index
    %c0_130 = arith.constant 0 : index
    %286 = vector.load %arg16[%c1_128, %c0_129, %c0_130] : memref<2x32x32xf32, #tpu.memory_space<vmem>>, vector<1x32x32xf32>
    %287 = vector.shape_cast %286 : vector<1x32x32xf32> to vector<32x32xf32>
    %cst_131 = arith.constant dense<0.000000e+00> : vector<32x32xf32>
    %288 = tpu.matmul %285, %287, %cst_131 {dimension_numbers = #tpu.dot_dimension_numbers<[1], [0], [0], [1], [0, 0, 1, 1], [], []>} : vector<32x32xf32>, vector<32x32xf32>, vector<32x32xf32> -> vector<32x32xf32>
    %289 = arith.addf %197, %288 : vector<32x32xf32>
    %c1_132 = arith.constant 1 : index
    %c0_133 = arith.constant 0 : index
    %c0_134 = arith.constant 0 : index
    %290 = vector.load %arg17[%c1_132, %c0_133, %c0_134] : memref<2x1x32xf32, #tpu.memory_space<vmem>>, vector<1x1x32xf32>
    %291 = vector.shape_cast %290 : vector<1x1x32xf32> to vector<1x32xf32>
    %292 = vector.broadcast %291 : vector<1x32xf32> to vector<32x32xf32>
    %293 = arith.addf %289, %292 : vector<32x32xf32>
    %c1_135 = arith.constant 1 : index
    %c0_136 = arith.constant 0 : index
    %c0_137 = arith.constant 0 : index
    %294 = vector.load %arg18[%c1_135, %c0_136, %c0_137] : memref<2x1x32xf32, #tpu.memory_space<vmem>>, vector<1x1x32xf32>
    %295 = vector.shape_cast %294 : vector<1x1x32xf32> to vector<1x32xf32>
    %c1_138 = arith.constant 1 : index
    %c0_139 = arith.constant 0 : index
    %c0_140 = arith.constant 0 : index
    %296 = vector.load %arg19[%c1_138, %c0_139, %c0_140] : memref<2x1x32xf32, #tpu.memory_space<vmem>>, vector<1x1x32xf32>
    %297 = vector.shape_cast %296 : vector<1x1x32xf32> to vector<1x32xf32>
    %cst_141 = arith.constant dense<0.000000e+00> : vector<32xf32>
    %298 = vector.multi_reduction <add>, %293, %cst_141 [1] : vector<32x32xf32> to vector<32xf32>
    %299 = vector.shape_cast %298 : vector<32xf32> to vector<32x1xf32>
    %cst_142 = arith.constant 3.200000e+01 : f32
    %300 = vector.broadcast %cst_142 : f32 to vector<32x1xf32>
    %301 = arith.divf %299, %300 : vector<32x1xf32>
    %302 = vector.broadcast %301 : vector<32x1xf32> to vector<32x32xf32>
    %303 = arith.subf %293, %302 : vector<32x32xf32>
    %304 = arith.mulf %303, %303 : vector<32x32xf32>
    %cst_143 = arith.constant dense<0.000000e+00> : vector<32xf32>
    %305 = vector.multi_reduction <add>, %304, %cst_143 [1] : vector<32x32xf32> to vector<32xf32>
    %306 = vector.shape_cast %305 : vector<32xf32> to vector<32x1xf32>
    %cst_144 = arith.constant 3.200000e+01 : f32
    %307 = vector.broadcast %cst_144 : f32 to vector<32x1xf32>
    %308 = arith.divf %306, %307 : vector<32x1xf32>
    %309 = vector.broadcast %301 : vector<32x1xf32> to vector<32x32xf32>
    %310 = arith.subf %293, %309 : vector<32x32xf32>
    %cst_145 = arith.constant 9.99999974E-6 : f32
    %311 = vector.broadcast %cst_145 : f32 to vector<32x1xf32>
    %312 = arith.addf %308, %311 : vector<32x1xf32>
    %313 = math.rsqrt %312 : vector<32x1xf32>
    %314 = vector.broadcast %313 : vector<32x1xf32> to vector<32x32xf32>
    %315 = arith.mulf %310, %314 : vector<32x32xf32>
    %316 = vector.broadcast %295 : vector<1x32xf32> to vector<32x32xf32>
    %317 = arith.mulf %315, %316 : vector<32x32xf32>
    %318 = vector.broadcast %297 : vector<1x32xf32> to vector<32x32xf32>
    %319 = arith.addf %317, %318 : vector<32x32xf32>
    %c1_146 = arith.constant 1 : index
    %c0_147 = arith.constant 0 : index
    %c0_148 = arith.constant 0 : index
    %320 = vector.load %arg20[%c1_146, %c0_147, %c0_148] : memref<2x32x128xf32, #tpu.memory_space<vmem>>, vector<1x32x128xf32>
    %321 = vector.shape_cast %320 : vector<1x32x128xf32> to vector<32x128xf32>
    %cst_149 = arith.constant dense<0.000000e+00> : vector<32x128xf32>
    %322 = tpu.matmul %319, %321, %cst_149 {dimension_numbers = #tpu.dot_dimension_numbers<[1], [0], [0], [1], [0, 0, 1, 1], [], []>} : vector<32x32xf32>, vector<32x128xf32>, vector<32x128xf32> -> vector<32x128xf32>
    %c1_150 = arith.constant 1 : index
    %c0_151 = arith.constant 0 : index
    %c0_152 = arith.constant 0 : index
    %323 = vector.load %arg21[%c1_150, %c0_151, %c0_152] : memref<2x1x128xf32, #tpu.memory_space<vmem>>, vector<1x1x128xf32>
    %324 = vector.shape_cast %323 : vector<1x1x128xf32> to vector<1x128xf32>
    %325 = vector.broadcast %324 : vector<1x128xf32> to vector<32x128xf32>
    %326 = arith.addf %322, %325 : vector<32x128xf32>
    %327 = arith.mulf %326, %326 : vector<32x128xf32>
    %328 = arith.mulf %326, %327 : vector<32x128xf32>
    %cst_153 = arith.constant 4.471500e-02 : f32
    %329 = vector.broadcast %cst_153 : f32 to vector<32x128xf32>
    %330 = arith.mulf %329, %328 : vector<32x128xf32>
    %331 = arith.addf %326, %330 : vector<32x128xf32>
    %cst_154 = arith.constant 0.797884583 : f32
    %332 = vector.broadcast %cst_154 : f32 to vector<32x128xf32>
    %333 = arith.mulf %332, %331 : vector<32x128xf32>
    %334 = math.tanh %333 : vector<32x128xf32>
    %cst_155 = arith.constant 1.000000e+00 : f32
    %335 = vector.broadcast %cst_155 : f32 to vector<32x128xf32>
    %336 = arith.addf %335, %334 : vector<32x128xf32>
    %cst_156 = arith.constant 5.000000e-01 : f32
    %337 = vector.broadcast %cst_156 : f32 to vector<32x128xf32>
    %338 = arith.mulf %337, %336 : vector<32x128xf32>
    %339 = arith.mulf %326, %338 : vector<32x128xf32>
    %c1_157 = arith.constant 1 : index
    %c0_158 = arith.constant 0 : index
    %c0_159 = arith.constant 0 : index
    %340 = vector.load %arg22[%c1_157, %c0_158, %c0_159] : memref<2x128x32xf32, #tpu.memory_space<vmem>>, vector<1x128x32xf32>
    %341 = vector.shape_cast %340 : vector<1x128x32xf32> to vector<128x32xf32>
    %cst_160 = arith.constant dense<0.000000e+00> : vector<32x32xf32>
    %342 = tpu.matmul %339, %341, %cst_160 {dimension_numbers = #tpu.dot_dimension_numbers<[1], [0], [0], [1], [0, 0, 1, 1], [], []>} : vector<32x128xf32>, vector<128x32xf32>, vector<32x32xf32> -> vector<32x32xf32>
    %343 = arith.addf %293, %342 : vector<32x32xf32>
    %c1_161 = arith.constant 1 : index
    %c0_162 = arith.constant 0 : index
    %c0_163 = arith.constant 0 : index
    %344 = vector.load %arg23[%c1_161, %c0_162, %c0_163] : memref<2x1x32xf32, #tpu.memory_space<vmem>>, vector<1x1x32xf32>
    %345 = vector.shape_cast %344 : vector<1x1x32xf32> to vector<1x32xf32>
    %346 = vector.broadcast %345 : vector<1x32xf32> to vector<32x32xf32>
    %347 = arith.addf %343, %346 : vector<32x32xf32>
    %c0_164 = arith.constant 0 : index
    %c0_165 = arith.constant 0 : index
    %c0_166 = arith.constant 0 : index
    %348 = vector.load %arg24[%c0_164, %c0_165, %c0_166] : memref<4x32x256xf32, #tpu.memory_space<vmem>>, vector<1x32x256xf32>
    %349 = vector.shape_cast %348 : vector<1x32x256xf32> to vector<32x256xf32>
    %cst_167 = arith.constant dense<0.000000e+00> : vector<32x256xf32>
    %350 = tpu.matmul %46, %349, %cst_167 {dimension_numbers = #tpu.dot_dimension_numbers<[1], [0], [0], [1], [0, 0, 1, 1], [], []>} : vector<32x32xf32>, vector<32x256xf32>, vector<32x256xf32> -> vector<32x256xf32>
    %c0_168 = arith.constant 0 : index
    %c0_169 = arith.constant 0 : index
    %351 = vector.load %arg25[%c0_168, %c0_169] : memref<1x256xf32, #tpu.memory_space<vmem>>, vector<1x256xf32>
    %352 = vector.broadcast %351 : vector<1x256xf32> to vector<32x256xf32>
    %353 = arith.addf %350, %352 : vector<32x256xf32>
    %cst_170 = arith.constant dense<0.000000e+00> : vector<256xf32>
    %354 = vector.multi_reduction <add>, %353, %cst_170 [0] : vector<32x256xf32> to vector<256xf32>
    %355 = vector.shape_cast %354 : vector<256xf32> to vector<1x256xf32>
    %c1_171 = arith.constant 1 : index
    %c0_172 = arith.constant 0 : index
    %c0_173 = arith.constant 0 : index
    %356 = vector.load %arg24[%c1_171, %c0_172, %c0_173] : memref<4x32x256xf32, #tpu.memory_space<vmem>>, vector<1x32x256xf32>
    %357 = vector.shape_cast %356 : vector<1x32x256xf32> to vector<32x256xf32>
    %cst_174 = arith.constant dense<0.000000e+00> : vector<32x256xf32>
    %358 = tpu.matmul %46, %357, %cst_174 {dimension_numbers = #tpu.dot_dimension_numbers<[1], [0], [0], [1], [0, 0, 1, 1], [], []>} : vector<32x32xf32>, vector<32x256xf32>, vector<32x256xf32> -> vector<32x256xf32>
    %c0_175 = arith.constant 0 : index
    %c0_176 = arith.constant 0 : index
    %359 = vector.load %arg25[%c0_175, %c0_176] : memref<1x256xf32, #tpu.memory_space<vmem>>, vector<1x256xf32>
    %360 = vector.broadcast %359 : vector<1x256xf32> to vector<32x256xf32>
    %361 = arith.addf %358, %360 : vector<32x256xf32>
    %cst_177 = arith.constant dense<0.000000e+00> : vector<256xf32>
    %362 = vector.multi_reduction <add>, %361, %cst_177 [0] : vector<32x256xf32> to vector<256xf32>
    %363 = vector.shape_cast %362 : vector<256xf32> to vector<1x256xf32>
    %364 = arith.addf %355, %363 : vector<1x256xf32>
    %c2 = arith.constant 2 : index
    %c0_178 = arith.constant 0 : index
    %c0_179 = arith.constant 0 : index
    %365 = vector.load %arg24[%c2, %c0_178, %c0_179] : memref<4x32x256xf32, #tpu.memory_space<vmem>>, vector<1x32x256xf32>
    %366 = vector.shape_cast %365 : vector<1x32x256xf32> to vector<32x256xf32>
    %cst_180 = arith.constant dense<0.000000e+00> : vector<32x256xf32>
    %367 = tpu.matmul %46, %366, %cst_180 {dimension_numbers = #tpu.dot_dimension_numbers<[1], [0], [0], [1], [0, 0, 1, 1], [], []>} : vector<32x32xf32>, vector<32x256xf32>, vector<32x256xf32> -> vector<32x256xf32>
    %c0_181 = arith.constant 0 : index
    %c0_182 = arith.constant 0 : index
    %368 = vector.load %arg25[%c0_181, %c0_182] : memref<1x256xf32, #tpu.memory_space<vmem>>, vector<1x256xf32>
    %369 = vector.broadcast %368 : vector<1x256xf32> to vector<32x256xf32>
    %370 = arith.addf %367, %369 : vector<32x256xf32>
    %cst_183 = arith.constant dense<0.000000e+00> : vector<256xf32>
    %371 = vector.multi_reduction <add>, %370, %cst_183 [0] : vector<32x256xf32> to vector<256xf32>
    %372 = vector.shape_cast %371 : vector<256xf32> to vector<1x256xf32>
    %373 = arith.addf %364, %372 : vector<1x256xf32>
    %c3 = arith.constant 3 : index
    %c0_184 = arith.constant 0 : index
    %c0_185 = arith.constant 0 : index
    %374 = vector.load %arg24[%c3, %c0_184, %c0_185] : memref<4x32x256xf32, #tpu.memory_space<vmem>>, vector<1x32x256xf32>
    %375 = vector.shape_cast %374 : vector<1x32x256xf32> to vector<32x256xf32>
    %cst_186 = arith.constant dense<0.000000e+00> : vector<32x256xf32>
    %376 = tpu.matmul %46, %375, %cst_186 {dimension_numbers = #tpu.dot_dimension_numbers<[1], [0], [0], [1], [0, 0, 1, 1], [], []>} : vector<32x32xf32>, vector<32x256xf32>, vector<32x256xf32> -> vector<32x256xf32>
    %c0_187 = arith.constant 0 : index
    %c0_188 = arith.constant 0 : index
    %377 = vector.load %arg25[%c0_187, %c0_188] : memref<1x256xf32, #tpu.memory_space<vmem>>, vector<1x256xf32>
    %378 = vector.broadcast %377 : vector<1x256xf32> to vector<32x256xf32>
    %379 = arith.addf %376, %378 : vector<32x256xf32>
    %cst_189 = arith.constant dense<0.000000e+00> : vector<256xf32>
    %380 = vector.multi_reduction <add>, %379, %cst_189 [0] : vector<32x256xf32> to vector<256xf32>
    %381 = vector.shape_cast %380 : vector<256xf32> to vector<1x256xf32>
    %382 = arith.addf %373, %381 : vector<1x256xf32>
    %cst_190 = arith.constant 7.812500e-03 : f32
    %383 = vector.broadcast %cst_190 : f32 to vector<1x256xf32>
    %384 = arith.mulf %382, %383 : vector<1x256xf32>
    %385 = vector.broadcast %384 : vector<1x256xf32> to vector<32x256xf32>
    %386 = arith.subf %353, %385 : vector<32x256xf32>
    %387 = arith.mulf %386, %386 : vector<32x256xf32>
    %cst_191 = arith.constant dense<0.000000e+00> : vector<256xf32>
    %388 = vector.multi_reduction <add>, %387, %cst_191 [0] : vector<32x256xf32> to vector<256xf32>
    %389 = vector.shape_cast %388 : vector<256xf32> to vector<1x256xf32>
    %390 = vector.broadcast %384 : vector<1x256xf32> to vector<32x256xf32>
    %391 = arith.subf %361, %390 : vector<32x256xf32>
    %392 = arith.mulf %391, %391 : vector<32x256xf32>
    %cst_192 = arith.constant dense<0.000000e+00> : vector<256xf32>
    %393 = vector.multi_reduction <add>, %392, %cst_192 [0] : vector<32x256xf32> to vector<256xf32>
    %394 = vector.shape_cast %393 : vector<256xf32> to vector<1x256xf32>
    %395 = arith.addf %389, %394 : vector<1x256xf32>
    %396 = vector.broadcast %384 : vector<1x256xf32> to vector<32x256xf32>
    %397 = arith.subf %370, %396 : vector<32x256xf32>
    %398 = arith.mulf %397, %397 : vector<32x256xf32>
    %cst_193 = arith.constant dense<0.000000e+00> : vector<256xf32>
    %399 = vector.multi_reduction <add>, %398, %cst_193 [0] : vector<32x256xf32> to vector<256xf32>
    %400 = vector.shape_cast %399 : vector<256xf32> to vector<1x256xf32>
    %401 = arith.addf %395, %400 : vector<1x256xf32>
    %402 = vector.broadcast %384 : vector<1x256xf32> to vector<32x256xf32>
    %403 = arith.subf %379, %402 : vector<32x256xf32>
    %404 = arith.mulf %403, %403 : vector<32x256xf32>
    %cst_194 = arith.constant dense<0.000000e+00> : vector<256xf32>
    %405 = vector.multi_reduction <add>, %404, %cst_194 [0] : vector<32x256xf32> to vector<256xf32>
    %406 = vector.shape_cast %405 : vector<256xf32> to vector<1x256xf32>
    %407 = arith.addf %401, %406 : vector<1x256xf32>
    %cst_195 = arith.constant 7.812500e-03 : f32
    %408 = vector.broadcast %cst_195 : f32 to vector<1x256xf32>
    %409 = arith.mulf %407, %408 : vector<1x256xf32>
    %cst_196 = arith.constant 9.99999974E-6 : f32
    %410 = vector.broadcast %cst_196 : f32 to vector<1x256xf32>
    %411 = arith.addf %409, %410 : vector<1x256xf32>
    %412 = math.rsqrt %411 : vector<1x256xf32>
    %c0_197 = arith.constant 0 : index
    %c0_198 = arith.constant 0 : index
    %413 = vector.load %arg28[%c0_197, %c0_198] : memref<256x512xf32, #tpu.memory_space<vmem>>, vector<256x512xf32>
    %414 = vector.broadcast %384 : vector<1x256xf32> to vector<32x256xf32>
    %415 = arith.subf %353, %414 : vector<32x256xf32>
    %416 = vector.broadcast %412 : vector<1x256xf32> to vector<32x256xf32>
    %417 = arith.mulf %415, %416 : vector<32x256xf32>
    %c0_199 = arith.constant 0 : index
    %c0_200 = arith.constant 0 : index
    %418 = vector.load %arg26[%c0_199, %c0_200] : memref<1x256xf32, #tpu.memory_space<vmem>>, vector<1x256xf32>
    %419 = vector.broadcast %418 : vector<1x256xf32> to vector<32x256xf32>
    %420 = arith.mulf %417, %419 : vector<32x256xf32>
    %c0_201 = arith.constant 0 : index
    %c0_202 = arith.constant 0 : index
    %421 = vector.load %arg27[%c0_201, %c0_202] : memref<1x256xf32, #tpu.memory_space<vmem>>, vector<1x256xf32>
    %422 = vector.broadcast %421 : vector<1x256xf32> to vector<32x256xf32>
    %423 = arith.addf %420, %422 : vector<32x256xf32>
    %424 = arith.mulf %423, %423 : vector<32x256xf32>
    %425 = arith.mulf %423, %424 : vector<32x256xf32>
    %cst_203 = arith.constant 4.471500e-02 : f32
    %426 = vector.broadcast %cst_203 : f32 to vector<32x256xf32>
    %427 = arith.mulf %426, %425 : vector<32x256xf32>
    %428 = arith.addf %423, %427 : vector<32x256xf32>
    %cst_204 = arith.constant 0.797884583 : f32
    %429 = vector.broadcast %cst_204 : f32 to vector<32x256xf32>
    %430 = arith.mulf %429, %428 : vector<32x256xf32>
    %431 = math.tanh %430 : vector<32x256xf32>
    %cst_205 = arith.constant 1.000000e+00 : f32
    %432 = vector.broadcast %cst_205 : f32 to vector<32x256xf32>
    %433 = arith.addf %432, %431 : vector<32x256xf32>
    %cst_206 = arith.constant 5.000000e-01 : f32
    %434 = vector.broadcast %cst_206 : f32 to vector<32x256xf32>
    %435 = arith.mulf %434, %433 : vector<32x256xf32>
    %436 = arith.mulf %423, %435 : vector<32x256xf32>
    %cst_207 = arith.constant dense<0.000000e+00> : vector<32x512xf32>
    %437 = tpu.matmul %436, %413, %cst_207 {dimension_numbers = #tpu.dot_dimension_numbers<[1], [0], [0], [1], [0, 0, 1, 1], [], []>} : vector<32x256xf32>, vector<256x512xf32>, vector<32x512xf32> -> vector<32x512xf32>
    %c0_208 = arith.constant 0 : index
    %c0_209 = arith.constant 0 : index
    %438 = vector.load %arg29[%c0_208, %c0_209] : memref<1x512xf32, #tpu.memory_space<vmem>>, vector<1x512xf32>
    %439 = vector.broadcast %438 : vector<1x512xf32> to vector<32x512xf32>
    %440 = arith.addf %437, %439 : vector<32x512xf32>
    %c0_210 = arith.constant 0 : index
    %c0_211 = arith.constant 0 : index
    %441 = vector.load %arg32[%c0_210, %c0_211] : memref<128x512xf32, #tpu.memory_space<vmem>>, vector<32x512xf32>
    tpu.vector_store %arg32[%c0_210, %c0_211], %440 {strides = array<i32>} : memref<128x512xf32, #tpu.memory_space<vmem>>, vector<32x512xf32>,
    %442 = vector.broadcast %384 : vector<1x256xf32> to vector<32x256xf32>
    %443 = arith.subf %361, %442 : vector<32x256xf32>
    %444 = vector.broadcast %412 : vector<1x256xf32> to vector<32x256xf32>
    %445 = arith.mulf %443, %444 : vector<32x256xf32>
    %c0_212 = arith.constant 0 : index
    %c0_213 = arith.constant 0 : index
    %446 = vector.load %arg26[%c0_212, %c0_213] : memref<1x256xf32, #tpu.memory_space<vmem>>, vector<1x256xf32>
    %447 = vector.broadcast %446 : vector<1x256xf32> to vector<32x256xf32>
    %448 = arith.mulf %445, %447 : vector<32x256xf32>
    %c0_214 = arith.constant 0 : index
    %c0_215 = arith.constant 0 : index
    %449 = vector.load %arg27[%c0_214, %c0_215] : memref<1x256xf32, #tpu.memory_space<vmem>>, vector<1x256xf32>
    %450 = vector.broadcast %449 : vector<1x256xf32> to vector<32x256xf32>
    %451 = arith.addf %448, %450 : vector<32x256xf32>
    %452 = arith.mulf %451, %451 : vector<32x256xf32>
    %453 = arith.mulf %451, %452 : vector<32x256xf32>
    %cst_216 = arith.constant 4.471500e-02 : f32
    %454 = vector.broadcast %cst_216 : f32 to vector<32x256xf32>
    %455 = arith.mulf %454, %453 : vector<32x256xf32>
    %456 = arith.addf %451, %455 : vector<32x256xf32>
    %cst_217 = arith.constant 0.797884583 : f32
    %457 = vector.broadcast %cst_217 : f32 to vector<32x256xf32>
    %458 = arith.mulf %457, %456 : vector<32x256xf32>
    %459 = math.tanh %458 : vector<32x256xf32>
    %cst_218 = arith.constant 1.000000e+00 : f32
    %460 = vector.broadcast %cst_218 : f32 to vector<32x256xf32>
    %461 = arith.addf %460, %459 : vector<32x256xf32>
    %cst_219 = arith.constant 5.000000e-01 : f32
    %462 = vector.broadcast %cst_219 : f32 to vector<32x256xf32>
    %463 = arith.mulf %462, %461 : vector<32x256xf32>
    %464 = arith.mulf %451, %463 : vector<32x256xf32>
    %cst_220 = arith.constant dense<0.000000e+00> : vector<32x512xf32>
    %465 = tpu.matmul %464, %413, %cst_220 {dimension_numbers = #tpu.dot_dimension_numbers<[1], [0], [0], [1], [0, 0, 1, 1], [], []>} : vector<32x256xf32>, vector<256x512xf32>, vector<32x512xf32> -> vector<32x512xf32>
    %c0_221 = arith.constant 0 : index
    %c0_222 = arith.constant 0 : index
    %466 = vector.load %arg29[%c0_221, %c0_222] : memref<1x512xf32, #tpu.memory_space<vmem>>, vector<1x512xf32>
    %467 = vector.broadcast %466 : vector<1x512xf32> to vector<32x512xf32>
    %468 = arith.addf %465, %467 : vector<32x512xf32>
    %c32 = arith.constant 32 : index
    %c0_223 = arith.constant 0 : index
    %469 = vector.load %arg32[%c32, %c0_223] : memref<128x512xf32, #tpu.memory_space<vmem>>, vector<32x512xf32>
    tpu.vector_store %arg32[%c32, %c0_223], %468 {strides = array<i32>} : memref<128x512xf32, #tpu.memory_space<vmem>>, vector<32x512xf32>,
    %470 = vector.broadcast %384 : vector<1x256xf32> to vector<32x256xf32>
    %471 = arith.subf %370, %470 : vector<32x256xf32>
    %472 = vector.broadcast %412 : vector<1x256xf32> to vector<32x256xf32>
    %473 = arith.mulf %471, %472 : vector<32x256xf32>
    %c0_224 = arith.constant 0 : index
    %c0_225 = arith.constant 0 : index
    %474 = vector.load %arg26[%c0_224, %c0_225] : memref<1x256xf32, #tpu.memory_space<vmem>>, vector<1x256xf32>
    %475 = vector.broadcast %474 : vector<1x256xf32> to vector<32x256xf32>
    %476 = arith.mulf %473, %475 : vector<32x256xf32>
    %c0_226 = arith.constant 0 : index
    %c0_227 = arith.constant 0 : index
    %477 = vector.load %arg27[%c0_226, %c0_227] : memref<1x256xf32, #tpu.memory_space<vmem>>, vector<1x256xf32>
    %478 = vector.broadcast %477 : vector<1x256xf32> to vector<32x256xf32>
    %479 = arith.addf %476, %478 : vector<32x256xf32>
    %480 = arith.mulf %479, %479 : vector<32x256xf32>
    %481 = arith.mulf %479, %480 : vector<32x256xf32>
    %cst_228 = arith.constant 4.471500e-02 : f32
    %482 = vector.broadcast %cst_228 : f32 to vector<32x256xf32>
    %483 = arith.mulf %482, %481 : vector<32x256xf32>
    %484 = arith.addf %479, %483 : vector<32x256xf32>
    %cst_229 = arith.constant 0.797884583 : f32
    %485 = vector.broadcast %cst_229 : f32 to vector<32x256xf32>
    %486 = arith.mulf %485, %484 : vector<32x256xf32>
    %487 = math.tanh %486 : vector<32x256xf32>
    %cst_230 = arith.constant 1.000000e+00 : f32
    %488 = vector.broadcast %cst_230 : f32 to vector<32x256xf32>
    %489 = arith.addf %488, %487 : vector<32x256xf32>
    %cst_231 = arith.constant 5.000000e-01 : f32
    %490 = vector.broadcast %cst_231 : f32 to vector<32x256xf32>
    %491 = arith.mulf %490, %489 : vector<32x256xf32>
    %492 = arith.mulf %479, %491 : vector<32x256xf32>
    %cst_232 = arith.constant dense<0.000000e+00> : vector<32x512xf32>
    %493 = tpu.matmul %492, %413, %cst_232 {dimension_numbers = #tpu.dot_dimension_numbers<[1], [0], [0], [1], [0, 0, 1, 1], [], []>} : vector<32x256xf32>, vector<256x512xf32>, vector<32x512xf32> -> vector<32x512xf32>
    %c0_233 = arith.constant 0 : index
    %c0_234 = arith.constant 0 : index
    %494 = vector.load %arg29[%c0_233, %c0_234] : memref<1x512xf32, #tpu.memory_space<vmem>>, vector<1x512xf32>
    %495 = vector.broadcast %494 : vector<1x512xf32> to vector<32x512xf32>
    %496 = arith.addf %493, %495 : vector<32x512xf32>
    %c64 = arith.constant 64 : index
    %c0_235 = arith.constant 0 : index
    %497 = vector.load %arg32[%c64, %c0_235] : memref<128x512xf32, #tpu.memory_space<vmem>>, vector<32x512xf32>
    tpu.vector_store %arg32[%c64, %c0_235], %496 {strides = array<i32>} : memref<128x512xf32, #tpu.memory_space<vmem>>, vector<32x512xf32>,
    %498 = vector.broadcast %384 : vector<1x256xf32> to vector<32x256xf32>
    %499 = arith.subf %379, %498 : vector<32x256xf32>
    %500 = vector.broadcast %412 : vector<1x256xf32> to vector<32x256xf32>
    %501 = arith.mulf %499, %500 : vector<32x256xf32>
    %c0_236 = arith.constant 0 : index
    %c0_237 = arith.constant 0 : index
    %502 = vector.load %arg26[%c0_236, %c0_237] : memref<1x256xf32, #tpu.memory_space<vmem>>, vector<1x256xf32>
    %503 = vector.broadcast %502 : vector<1x256xf32> to vector<32x256xf32>
    %504 = arith.mulf %501, %503 : vector<32x256xf32>
    %c0_238 = arith.constant 0 : index
    %c0_239 = arith.constant 0 : index
    %505 = vector.load %arg27[%c0_238, %c0_239] : memref<1x256xf32, #tpu.memory_space<vmem>>, vector<1x256xf32>
    %506 = vector.broadcast %505 : vector<1x256xf32> to vector<32x256xf32>
    %507 = arith.addf %504, %506 : vector<32x256xf32>
    %508 = arith.mulf %507, %507 : vector<32x256xf32>
    %509 = arith.mulf %507, %508 : vector<32x256xf32>
    %cst_240 = arith.constant 4.471500e-02 : f32
    %510 = vector.broadcast %cst_240 : f32 to vector<32x256xf32>
    %511 = arith.mulf %510, %509 : vector<32x256xf32>
    %512 = arith.addf %507, %511 : vector<32x256xf32>
    %cst_241 = arith.constant 0.797884583 : f32
    %513 = vector.broadcast %cst_241 : f32 to vector<32x256xf32>
    %514 = arith.mulf %513, %512 : vector<32x256xf32>
    %515 = math.tanh %514 : vector<32x256xf32>
    %cst_242 = arith.constant 1.000000e+00 : f32
    %516 = vector.broadcast %cst_242 : f32 to vector<32x256xf32>
    %517 = arith.addf %516, %515 : vector<32x256xf32>
    %cst_243 = arith.constant 5.000000e-01 : f32
    %518 = vector.broadcast %cst_243 : f32 to vector<32x256xf32>
    %519 = arith.mulf %518, %517 : vector<32x256xf32>
    %520 = arith.mulf %507, %519 : vector<32x256xf32>
    %cst_244 = arith.constant dense<0.000000e+00> : vector<32x512xf32>
    %521 = tpu.matmul %520, %413, %cst_244 {dimension_numbers = #tpu.dot_dimension_numbers<[1], [0], [0], [1], [0, 0, 1, 1], [], []>} : vector<32x256xf32>, vector<256x512xf32>, vector<32x512xf32> -> vector<32x512xf32>
    %c0_245 = arith.constant 0 : index
    %c0_246 = arith.constant 0 : index
    %522 = vector.load %arg29[%c0_245, %c0_246] : memref<1x512xf32, #tpu.memory_space<vmem>>, vector<1x512xf32>
    %523 = vector.broadcast %522 : vector<1x512xf32> to vector<32x512xf32>
    %524 = arith.addf %521, %523 : vector<32x512xf32>
    %c96 = arith.constant 96 : index
    %c0_247 = arith.constant 0 : index
    %525 = vector.load %arg32[%c96, %c0_247] : memref<128x512xf32, #tpu.memory_space<vmem>>, vector<32x512xf32>
    tpu.vector_store %arg32[%c96, %c0_247], %524 {strides = array<i32>} : memref<128x512xf32, #tpu.memory_space<vmem>>, vector<32x512xf32>,
    %c0_248 = arith.constant 0 : index
    %c0_249 = arith.constant 0 : index
    %526 = vector.load %arg30[%c0_248, %c0_249] : memref<32x512xf32, #tpu.memory_space<vmem>>, vector<32x512xf32>
    %cst_250 = arith.constant dense<0.000000e+00> : vector<32x512xf32>
    %527 = tpu.matmul %143, %526, %cst_250 {dimension_numbers = #tpu.dot_dimension_numbers<[1], [0], [0], [1], [0, 0, 1, 1], [], []>} : vector<32x32xf32>, vector<32x512xf32>, vector<32x512xf32> -> vector<32x512xf32>
    %c0_251 = arith.constant 0 : index
    %c0_252 = arith.constant 0 : index
    %528 = vector.load %arg31[%c0_251, %c0_252] : memref<1x512xf32, #tpu.memory_space<vmem>>, vector<1x512xf32>
    %529 = vector.broadcast %528 : vector<1x512xf32> to vector<32x512xf32>
    %530 = arith.addf %527, %529 : vector<32x512xf32>
    %c0_253 = arith.constant 0 : index
    %c0_254 = arith.constant 0 : index
    %531 = vector.load %arg33[%c0_253, %c0_254] : memref<32x512xf32, #tpu.memory_space<vmem>>, vector<32x512xf32>
    tpu.vector_store %arg33[%c0_253, %c0_254], %530 {strides = array<i32>} : memref<32x512xf32, #tpu.memory_space<vmem>>, vector<32x512xf32>,
    %c0_255 = arith.constant 0 : index
    %c0_256 = arith.constant 0 : index
    %c0_257 = arith.constant 0 : index
    %532 = vector.load %arg34[%c0_255, %c0_256, %c0_257] : memref<3x32x32xf32, #tpu.memory_space<vmem>>, vector<1x32x32xf32>
    %533 = vector.shape_cast %532 : vector<1x32x32xf32> to vector<32x32xf32>
    %534 = vector.shape_cast %197 : vector<32x32xf32> to vector<1x32x32xf32>
    tpu.vector_store %arg34[%c0_255, %c0_256, %c0_257], %534 {strides = array<i32>} : memref<3x32x32xf32, #tpu.memory_space<vmem>>, vector<1x32x32xf32>,
    %c1_258 = arith.constant 1 : index
    %c0_259 = arith.constant 0 : index
    %c0_260 = arith.constant 0 : index
    %535 = vector.load %arg34[%c1_258, %c0_259, %c0_260] : memref<3x32x32xf32, #tpu.memory_space<vmem>>, vector<1x32x32xf32>
    %536 = vector.shape_cast %535 : vector<1x32x32xf32> to vector<32x32xf32>
    %537 = vector.shape_cast %293 : vector<32x32xf32> to vector<1x32x32xf32>
    tpu.vector_store %arg34[%c1_258, %c0_259, %c0_260], %537 {strides = array<i32>} : memref<3x32x32xf32, #tpu.memory_space<vmem>>, vector<1x32x32xf32>,
    %c2_261 = arith.constant 2 : index
    %c0_262 = arith.constant 0 : index
    %c0_263 = arith.constant 0 : index
    %538 = vector.load %arg34[%c2_261, %c0_262, %c0_263] : memref<3x32x32xf32, #tpu.memory_space<vmem>>, vector<1x32x32xf32>
    %539 = vector.shape_cast %538 : vector<1x32x32xf32> to vector<32x32xf32>
    %540 = vector.shape_cast %347 : vector<32x32xf32> to vector<1x32x32xf32>
    tpu.vector_store %arg34[%c2_261, %c0_262, %c0_263], %540 {strides = array<i32>} : memref<3x32x32xf32, #tpu.memory_space<vmem>>, vector<1x32x32xf32>,
    return
  }
  func.func @transform_0(%arg0: i32) -> (i32, i32) {
    %c0_i32 = arith.constant 0 : i32
    %c0_i32_0 = arith.constant 0 : i32
    %c0_i32_1 = arith.constant 0 : i32
    return %c0_i32, %c0_i32_0 : i32, i32
  }
  func.func @transform_1(%arg0: i32) -> (i32, i32) {
    %c0_i32 = arith.constant 0 : i32
    %c0_i32_0 = arith.constant 0 : i32
    %c0_i32_1 = arith.constant 0 : i32
    return %c0_i32, %c0_i32_0 : i32, i32
  }
  func.func @transform_2(%arg0: i32) -> (i32, i32) {
    %c0_i32 = arith.constant 0 : i32
    %c0_i32_0 = arith.constant 0 : i32
    %c0_i32_1 = arith.constant 0 : i32
    return %c0_i32, %c0_i32_0 : i32, i32
  }
  func.func @transform_3(%arg0: i32) -> (i32, i32) {
    %c0_i32 = arith.constant 0 : i32
    %c0_i32_0 = arith.constant 0 : i32
    %c0_i32_1 = arith.constant 0 : i32
    return %c0_i32, %c0_i32_0 : i32, i32
  }
  func.func @transform_4(%arg0: i32) -> (i32, i32) {
    %c0_i32 = arith.constant 0 : i32
    %c0_i32_0 = arith.constant 0 : i32
    %c0_i32_1 = arith.constant 0 : i32
    return %c0_i32, %c0_i32_0 : i32, i32
  }
  func.func @transform_5(%arg0: i32) -> (i32, i32) {
    %c0_i32 = arith.constant 0 : i32
    %c0_i32_0 = arith.constant 0 : i32
    %c0_i32_1 = arith.constant 0 : i32
    return %c0_i32, %c0_i32_0 : i32, i32
  }
  func.func @transform_6(%arg0: i32) -> (i32, i32) {
    %c0_i32 = arith.constant 0 : i32
    %c0_i32_0 = arith.constant 0 : i32
    %c0_i32_1 = arith.constant 0 : i32
    return %c0_i32, %c0_i32_0 : i32, i32
  }
  func.func @transform_7(%arg0: i32) -> (i32, i32) {
    %c0_i32 = arith.constant 0 : i32
    %c0_i32_0 = arith.constant 0 : i32
    %c0_i32_1 = arith.constant 0 : i32
    return %c0_i32, %c0_i32_0 : i32, i32
  }
  func.func @transform_8(%arg0: i32) -> (i32, i32) {
    %c0_i32 = arith.constant 0 : i32
    %c0_i32_0 = arith.constant 0 : i32
    %c0_i32_1 = arith.constant 0 : i32
    return %c0_i32, %c0_i32_0 : i32, i32
  }
  func.func @transform_9(%arg0: i32) -> (i32, i32) {
    %c0_i32 = arith.constant 0 : i32
    %c0_i32_0 = arith.constant 0 : i32
    %c0_i32_1 = arith.constant 0 : i32
    return %c0_i32, %c0_i32_0 : i32, i32
  }
  func.func @transform_10(%arg0: i32) -> (i32, i32, i32) {
    %c0_i32 = arith.constant 0 : i32
    %c0_i32_0 = arith.constant 0 : i32
    %c0_i32_1 = arith.constant 0 : i32
    %c0_i32_2 = arith.constant 0 : i32
    return %c0_i32, %c0_i32_0, %c0_i32_1 : i32, i32, i32
  }
  func.func @transform_11(%arg0: i32) -> (i32, i32, i32) {
    %c0_i32 = arith.constant 0 : i32
    %c0_i32_0 = arith.constant 0 : i32
    %c0_i32_1 = arith.constant 0 : i32
    %c0_i32_2 = arith.constant 0 : i32
    return %c0_i32, %c0_i32_0, %c0_i32_1 : i32, i32, i32
  }
  func.func @transform_12(%arg0: i32) -> (i32, i32, i32) {
    %c0_i32 = arith.constant 0 : i32
    %c0_i32_0 = arith.constant 0 : i32
    %c0_i32_1 = arith.constant 0 : i32
    %c0_i32_2 = arith.constant 0 : i32
    return %c0_i32, %c0_i32_0, %c0_i32_1 : i32, i32, i32
  }
  func.func @transform_13(%arg0: i32) -> (i32, i32, i32) {
    %c0_i32 = arith.constant 0 : i32
    %c0_i32_0 = arith.constant 0 : i32
    %c0_i32_1 = arith.constant 0 : i32
    %c0_i32_2 = arith.constant 0 : i32
    return %c0_i32, %c0_i32_0, %c0_i32_1 : i32, i32, i32
  }
  func.func @transform_14(%arg0: i32) -> (i32, i32, i32) {
    %c0_i32 = arith.constant 0 : i32
    %c0_i32_0 = arith.constant 0 : i32
    %c0_i32_1 = arith.constant 0 : i32
    %c0_i32_2 = arith.constant 0 : i32
    return %c0_i32, %c0_i32_0, %c0_i32_1 : i32, i32, i32
  }
  func.func @transform_15(%arg0: i32) -> (i32, i32, i32) {
    %c0_i32 = arith.constant 0 : i32
    %c0_i32_0 = arith.constant 0 : i32
    %c0_i32_1 = arith.constant 0 : i32
    %c0_i32_2 = arith.constant 0 : i32
    return %c0_i32, %c0_i32_0, %c0_i32_1 : i32, i32, i32
  }
  func.func @transform_16(%arg0: i32) -> (i32, i32, i32) {
    %c0_i32 = arith.constant 0 : i32
    %c0_i32_0 = arith.constant 0 : i32
    %c0_i32_1 = arith.constant 0 : i32
    %c0_i32_2 = arith.constant 0 : i32
    return %c0_i32, %c0_i32_0, %c0_i32_1 : i32, i32, i32
  }
  func.func @transform_17(%arg0: i32) -> (i32, i32, i32) {
    %c0_i32 = arith.constant 0 : i32
    %c0_i32_0 = arith.constant 0 : i32
    %c0_i32_1 = arith.constant 0 : i32
    %c0_i32_2 = arith.constant 0 : i32
    return %c0_i32, %c0_i32_0, %c0_i32_1 : i32, i32, i32
  }
  func.func @transform_18(%arg0: i32) -> (i32, i32, i32) {
    %c0_i32 = arith.constant 0 : i32
    %c0_i32_0 = arith.constant 0 : i32
    %c0_i32_1 = arith.constant 0 : i32
    %c0_i32_2 = arith.constant 0 : i32
    return %c0_i32, %c0_i32_0, %c0_i32_1 : i32, i32, i32
  }
  func.func @transform_19(%arg0: i32) -> (i32, i32, i32) {
    %c0_i32 = arith.constant 0 : i32
    %c0_i32_0 = arith.constant 0 : i32
    %c0_i32_1 = arith.constant 0 : i32
    %c0_i32_2 = arith.constant 0 : i32
    return %c0_i32, %c0_i32_0, %c0_i32_1 : i32, i32, i32
  }
  func.func @transform_20(%arg0: i32) -> (i32, i32, i32) {
    %c0_i32 = arith.constant 0 : i32
    %c0_i32_0 = arith.constant 0 : i32
    %c0_i32_1 = arith.constant 0 : i32
    %c0_i32_2 = arith.constant 0 : i32
    return %c0_i32, %c0_i32_0, %c0_i32_1 : i32, i32, i32
  }
  func.func @transform_21(%arg0: i32) -> (i32, i32, i32) {
    %c0_i32 = arith.constant 0 : i32
    %c0_i32_0 = arith.constant 0 : i32
    %c0_i32_1 = arith.constant 0 : i32
    %c0_i32_2 = arith.constant 0 : i32
    return %c0_i32, %c0_i32_0, %c0_i32_1 : i32, i32, i32
  }
  func.func @transform_22(%arg0: i32) -> (i32, i32, i32) {
    %c0_i32 = arith.constant 0 : i32
    %c0_i32_0 = arith.constant 0 : i32
    %c0_i32_1 = arith.constant 0 : i32
    %c0_i32_2 = arith.constant 0 : i32
    return %c0_i32, %c0_i32_0, %c0_i32_1 : i32, i32, i32
  }
  func.func @transform_23(%arg0: i32) -> (i32, i32, i32) {
    %c0_i32 = arith.constant 0 : i32
    %c0_i32_0 = arith.constant 0 : i32
    %c0_i32_1 = arith.constant 0 : i32
    %c0_i32_2 = arith.constant 0 : i32
    return %c0_i32, %c0_i32_0, %c0_i32_1 : i32, i32, i32
  }
  func.func @transform_24(%arg0: i32) -> (i32, i32) {
    %c0_i32 = arith.constant 0 : i32
    %c0_i32_0 = arith.constant 0 : i32
    %c0_i32_1 = arith.constant 0 : i32
    return %c0_i32, %c0_i32_0 : i32, i32
  }
  func.func @transform_25(%arg0: i32) -> (i32, i32) {
    %c0_i32 = arith.constant 0 : i32
    %c0_i32_0 = arith.constant 0 : i32
    %c0_i32_1 = arith.constant 0 : i32
    return %c0_i32, %c0_i32_0 : i32, i32
  }
  func.func @transform_26(%arg0: i32) -> (i32, i32) {
    %c0_i32 = arith.constant 0 : i32
    %c0_i32_0 = arith.constant 0 : i32
    %c0_i32_1 = arith.constant 0 : i32
    return %c0_i32, %c0_i32_0 : i32, i32
  }
  func.func @transform_27(%arg0: i32) -> (i32, i32) {
    %c0_i32 = arith.constant 0 : i32
    %c0_i32_0 = arith.constant 0 : i32
    %c0_i32_1 = arith.constant 0 : i32
    return %c0_i32, %c0_i32_0 : i32, i32
  }
  func.func @transform_28(%arg0: i32) -> (i32, i32) {
    %c0_i32 = arith.constant 0 : i32
    %c0_i32_0 = arith.constant 0 : i32
    %c0_i32_1 = arith.constant 0 : i32
    return %c0_i32, %c0_i32_0 : i32, i32
  }
  func.func @transform_29(%arg0: i32) -> (i32, i32) {
    %c0_i32 = arith.constant 0 : i32
    %c0_i32_0 = arith.constant 0 : i32
    %c0_i32_1 = arith.constant 0 : i32
    return %c0_i32, %c0_i32_0 : i32, i32
  }
  func.func @transform_30(%arg0: i32) -> (i32, i32) {
    %c0_i32 = arith.constant 0 : i32
    %c0_i32_0 = arith.constant 0 : i32
    %c0_i32_1 = arith.constant 0 : i32
    return %c0_i32, %c0_i32_0 : i32, i32
  }
  func.func @transform_31(%arg0: i32) -> (i32, i32) {
    %c0_i32 = arith.constant 0 : i32
    %c0_i32_0 = arith.constant 0 : i32
    %c0_i32_1 = arith.constant 0 : i32
    return %c0_i32, %c0_i32_0 : i32, i32
  }
  func.func @transform_32(%arg0: i32) -> (i32, i32) {
    %c0_i32 = arith.constant 0 : i32
    %c0_i32_0 = arith.constant 0 : i32
    %c0_i32_1 = arith.constant 0 : i32
    return %c0_i32, %c0_i32_0 : i32, i32
  }
  func.func @transform_33(%arg0: i32) -> (i32, i32, i32) {
    %c0_i32 = arith.constant 0 : i32
    %c0_i32_0 = arith.constant 0 : i32
    %c0_i32_1 = arith.constant 0 : i32
    %c0_i32_2 = arith.constant 0 : i32
    return %c0_i32, %c0_i32_0, %c0_i32_1 : i32, i32, i32
  }
}

</mosaic_0001>

<llo_original>
// kernel: tpu_custom_call.1
$region0: #{tpu_custom_call.1}
  #allocation0 [shape = 'u32[]', space=smem, size = 0x4, offset = 0x4, fixed_abs, tag = 'smem constant byte address 0x4 - core index']
  #allocation1 [shape = 'u32[72,128]{1,0:T(1,128)}', space=vmem, size = 0x9000, scoped, tag = 'internal scratch']
  %s0 = inlined_call_operand.smem [shape: u32[34], index: -1, kind: input, shape index: {}]
  %s1 = sld [smem:[%s0]]
  %s2 = scalar_lea.smem %s0, 1
  %s3 = sld [smem:[%s2]]
  %s4 = scalar_lea.smem %s0, 2
  %s5 = sld [smem:[%s4]]
  %s6 = scalar_lea.smem %s0, 3
  %s7 = sld [smem:[%s6]]
  %s8 = scalar_lea.smem %s0, 4
  %s9 = sld [smem:[%s8]]
  %s10 = scalar_lea.smem %s0, 5
  %s11 = sld [smem:[%s10]]
  %s12 = scalar_lea.smem %s0, 6
  %s13 = sld [smem:[%s12]]
  %s14 = scalar_lea.smem %s0, 7
  %s15 = sld [smem:[%s14]]
  %s16 = scalar_lea.smem %s0, 8
  %s17 = sld [smem:[%s16]]
  %s18 = scalar_lea.smem %s0, 9
  %s19 = sld [smem:[%s18]]
  %s20 = scalar_lea.smem %s0, 10
  %s21 = sld [smem:[%s20]]
  %s22 = scalar_lea.smem %s0, 11
  %s23 = sld [smem:[%s22]]
  %s24 = scalar_lea.smem %s0, 12
  %s25 = sld [smem:[%s24]]
  %s26 = scalar_lea.smem %s0, 13
  %s27 = sld [smem:[%s26]]
  %s28 = scalar_lea.smem %s0, 14
  %s29 = sld [smem:[%s28]]
  %s30 = scalar_lea.smem %s0, 15
  %s31 = sld [smem:[%s30]]
  %s32 = scalar_lea.smem %s0, 16
  %s33 = sld [smem:[%s32]]
  %s34 = scalar_lea.smem %s0, 17
  %s35 = sld [smem:[%s34]]
  %s36 = scalar_lea.smem %s0, 18
  %s37 = sld [smem:[%s36]]
  %s38 = scalar_lea.smem %s0, 19
  %s39 = sld [smem:[%s38]]
  %s40 = scalar_lea.smem %s0, 20
  %s41 = sld [smem:[%s40]]
  %s42 = scalar_lea.smem %s0, 21
  %s43 = sld [smem:[%s42]]
  %s44 = scalar_lea.smem %s0, 22
  %s45 = sld [smem:[%s44]]
  %s46 = scalar_lea.smem %s0, 23
  %s47 = sld [smem:[%s46]]
  %s48 = scalar_lea.smem %s0, 24
  %s49 = sld [smem:[%s48]]
  %s50 = scalar_lea.smem %s0, 25
  %s51 = sld [smem:[%s50]]
  %s52 = scalar_lea.smem %s0, 26
  %s53 = sld [smem:[%s52]]
  %s54 = scalar_lea.smem %s0, 27
  %s55 = sld [smem:[%s54]]
  %s56 = scalar_lea.smem %s0, 28
  %s57 = sld [smem:[%s56]]
  %s58 = scalar_lea.smem %s0, 29
  %s59 = sld [smem:[%s58]]
  %s60 = scalar_lea.smem %s0, 30
  %s61 = sld [smem:[%s60]]
  %s62 = scalar_lea.smem %s0, 31
  %s63 = sld [smem:[%s62]]
  %s64 = scalar_lea.smem %s0, 32
  %s65 = sld [smem:[%s64]]
  %s66 = scalar_lea.smem %s0, 33
  %s67 = sld [smem:[%s66]]
  %68 = xla_tuple %s63, %s65, %s67
  %s69 = sld [smem:[#allocation0]]
  $region206: #{tpu_custom_call.1} parent=0
    _
  %s71 = ssub.s32 1, %s69
  %s72 = scalar_select 0, %s71, %s69
  $region1: #{tpu_custom_call.1} parent=0
    #allocation2 [shape = 'u8[512]{0}', space=vmem, size = 0x400, scoped, tag = 'input window, operand 2, single buffered']
    #allocation3 [shape = 's32[1]{0}', space=sflag, size = 0x4, scoped, tag = 'scoped memory for tpu_custom_call.1']
    #allocation4 [shape = 's32[1]{0}', space=sflag, size = 0x4, scoped, tag = 'scoped memory for tpu_custom_call.1']
    #allocation5 [shape = 'u8[512]{0}', space=vmem, size = 0x400, scoped, tag = 'input window, operand 3, single buffered']
    #allocation6 [shape = 's32[1]{0}', space=sflag, size = 0x4, scoped, tag = 'scoped memory for tpu_custom_call.1']
    #allocation7 [shape = 'u8[512]{0}', space=vmem, size = 0x400, scoped, tag = 'input window, operand 5, single buffered']
    #allocation8 [shape = 'u8[16384]{0}', space=vmem, size = 0x4000, scoped, tag = 'input window, operand 6, single buffered']
    #allocation9 [shape = 's32[1]{0}', space=sflag, size = 0x4, scoped, tag = 'scoped memory for tpu_custom_call.1']
    #allocation10 [shape = 'u8[512]{0}', space=vmem, size = 0x400, scoped, tag = 'input window, operand 8, single buffered']
    #allocation11 [shape = 'u8[1024]{0}', space=vmem, size = 0x400, scoped, tag = 'input window, operand 10, single buffered']
    #allocation12 [shape = 's32[1]{0}', space=sflag, size = 0x4, scoped, tag = 'scoped memory for tpu_custom_call.1']
    #allocation13 [shape = 'u8[1024]{0}', space=vmem, size = 0x400, scoped, tag = 'input window, operand 11, single buffered']
    #allocation14 [shape = 'u8[32768]{0}', space=vmem, size = 0x8000, scoped, tag = 'input window, operand 13, single buffered']
    #allocation15 [shape = 's32[1]{0}', space=sflag, size = 0x4, scoped, tag = 'scoped memory for tpu_custom_call.1']
    #allocation16 [shape = 'u8[32768]{0}', space=vmem, size = 0x8000, scoped, tag = 'input window, operand 14, single buffered']
    #allocation17 [shape = 'u8[32768]{0}', space=vmem, size = 0x8000, scoped, tag = 'input window, operand 15, single buffered']
    #allocation18 [shape = 's32[1]{0}', space=sflag, size = 0x4, scoped, tag = 'scoped memory for tpu_custom_call.1']
    #allocation19 [shape = 'u8[1024]{0}', space=vmem, size = 0x400, scoped, tag = 'input window, operand 17, single buffered']
    #allocation20 [shape = 'u8[32768]{0}', space=vmem, size = 0x8000, scoped, tag = 'input window, operand 19, single buffered']
    #allocation21 [shape = 's32[1]{0}', space=sflag, size = 0x4, scoped, tag = 'scoped memory for tpu_custom_call.1']
    #allocation22 [shape = 'u8[524288]{0}', space=vmem, size = 0x80000, scoped, tag = 'input window, operand 27, single buffered']
    #allocation23 [shape = 'u8[65536]{0}', space=vmem, size = 0x10000, scoped, tag = 'input window, operand 29, single buffered']
    #allocation24 [shape = 's32[1]{0}', space=sflag, size = 0x4, scoped, tag = 'scoped memory for tpu_custom_call.1']
    #allocation25 [shape = 'u8[262144]{0}', space=vmem, size = 0x40000, scoped, tag = 'output window, operand 0, single buffered']
    #allocation26 [shape = 'u8[65536]{0}', space=vmem, size = 0x10000, scoped, tag = 'output window, operand 1, single buffered']
    #allocation27 [shape = 's32[1]{0}', space=sflag, size = 0x4, scoped, tag = 'scoped memory for tpu_custom_call.1']
    #allocation28 [shape = 'u8[49152]{0}', space=vmem, size = 0xc000, scoped, tag = 'output window, operand 2, single buffered']
    %73 = vsyncpa [#allocation3], 0
    %74 = vsyncpa [#allocation6], 0
    %75 = vsyncpa [#allocation9], 0
    %76 = vsyncpa [#allocation12], 0
    %77 = vsyncpa [#allocation15], 0
    %78 = vsyncpa [#allocation18], 0
    %79 = vsyncpa [#allocation21], 0
    %80 = vsyncpa [#allocation24], 0
    %81 = vsyncpa [#allocation4], 0
    %82 = vsyncpa [#allocation27], 0
    // Predicated region
    $region2: #{tpu_custom_call.1} parent=1 // pred_check
      _
    $region3: #{tpu_custom_call.1} parent=1 // pred_check_branch
      %84 = sbr.rel (0) target = $region5
    $region4: #{tpu_custom_call.1} parent=1 // pred_region
      _
    $region5: #{tpu_custom_call.1} parent=1 // pred_fallthru
      _
    // Predicated region
    $region6: #{tpu_custom_call.1} parent=1 // pred_check
      _
    $region7: #{tpu_custom_call.1} parent=1 // pred_check_branch
      %86 = sbr.rel (0) target = $region9
    $region8: #{tpu_custom_call.1} parent=1 // pred_region
      _
    $region9: #{tpu_custom_call.1} parent=1 // pred_fallthru
      _
    // Predicated region
    $region10: #{tpu_custom_call.1} parent=1 // pred_check
      _
    $region11: #{tpu_custom_call.1} parent=1 // pred_check_branch
      %88 = sbr.rel (0) target = $region13
    $region12: #{tpu_custom_call.1} parent=1 // pred_region
      %90 = vsyncadd [#allocation3], 0
      %s92 = sshll.u32 %s5, 4
      %s93 = int_to_ptr.hbm [resolvable:$true] %s92
      %s94 = sshll.u32 [#allocation2], 4
      %s95 = int_to_ptr.vmem [resolvable:$true] %s94
      %97 = dma.hbm_to_vmem [thread:$0]  %s93, 16, %s95, [#allocation3]
    $region13: #{tpu_custom_call.1} parent=1 // pred_fallthru
      _
    // Predicated region
    $region14: #{tpu_custom_call.1} parent=1 // pred_check
      _
    $region15: #{tpu_custom_call.1} parent=1 // pred_check_branch
      %99 = sbr.rel (0) target = $region17
    $region16: #{tpu_custom_call.1} parent=1 // pred_region
      %101 = vsyncadd [#allocation6], 0
      %s103 = sshll.u32 %s7, 4
      %s104 = int_to_ptr.hbm [resolvable:$true] %s103
      %s105 = sshll.u32 [#allocation5], 4
      %s106 = int_to_ptr.vmem [resolvable:$true] %s105
      %108 = dma.hbm_to_vmem [thread:$0]  %s104, 16, %s106, [#allocation6]
    $region17: #{tpu_custom_call.1} parent=1 // pred_fallthru
      _
    // Predicated region
    $region18: #{tpu_custom_call.1} parent=1 // pred_check
      _
    $region19: #{tpu_custom_call.1} parent=1 // pred_check_branch
      %110 = sbr.rel (0) target = $region21
    $region20: #{tpu_custom_call.1} parent=1 // pred_region
      _
    $region21: #{tpu_custom_call.1} parent=1 // pred_fallthru
      _
    // Predicated region
    $region22: #{tpu_custom_call.1} parent=1 // pred_check
      _
    $region23: #{tpu_custom_call.1} parent=1 // pred_check_branch
      %112 = sbr.rel (0) target = $region25
    $region24: #{tpu_custom_call.1} parent=1 // pred_region
      %114 = vsyncadd [#allocation6], 0
      %s116 = sshll.u32 %s11, 4
      %s117 = int_to_ptr.hbm [resolvable:$true] %s116
      %s118 = sshll.u32 [#allocation7], 4
      %s119 = int_to_ptr.vmem [resolvable:$true] %s118
      %121 = dma.hbm_to_vmem [thread:$0]  %s117, 16, %s119, [#allocation6]
    $region25: #{tpu_custom_call.1} parent=1 // pred_fallthru
      _
    // Predicated region
    $region26: #{tpu_custom_call.1} parent=1 // pred_check
      _
    $region27: #{tpu_custom_call.1} parent=1 // pred_check_branch
      %123 = sbr.rel (0) target = $region29
    $region28: #{tpu_custom_call.1} parent=1 // pred_region
      %125 = vsyncadd [#allocation9], 0
      %s126 = sshll.u32 %s13, 4
      %s127 = int_to_ptr.hbm [resolvable:$true] %s126
      %s128 = sshll.u32 [#allocation8], 4
      %s129 = int_to_ptr.vmem [resolvable:$true] %s128
      %134 = dma.hbm_to_vmem [thread:$0]  %s127, 512, %s129, [#allocation9], 128, 128, 8
    $region29: #{tpu_custom_call.1} parent=1 // pred_fallthru
      _
    // Predicated region
    $region30: #{tpu_custom_call.1} parent=1 // pred_check
      _
    $region31: #{tpu_custom_call.1} parent=1 // pred_check_branch
      %136 = sbr.rel (0) target = $region33
    $region32: #{tpu_custom_call.1} parent=1 // pred_region
      _
    $region33: #{tpu_custom_call.1} parent=1 // pred_fallthru
      _
    // Predicated region
    $region34: #{tpu_custom_call.1} parent=1 // pred_check
      _
    $region35: #{tpu_custom_call.1} parent=1 // pred_check_branch
      %138 = sbr.rel (0) target = $region37
    $region36: #{tpu_custom_call.1} parent=1 // pred_region
      %140 = vsyncadd [#allocation9], 0
      %s142 = sshll.u32 %s17, 4
      %s143 = int_to_ptr.hbm [resolvable:$true] %s142
      %s144 = sshll.u32 [#allocation10], 4
      %s145 = int_to_ptr.vmem [resolvable:$true] %s144
      %147 = dma.hbm_to_vmem [thread:$0]  %s143, 16, %s145, [#allocation9]
    $region37: #{tpu_custom_call.1} parent=1 // pred_fallthru
      _
    // Predicated region
    $region38: #{tpu_custom_call.1} parent=1 // pred_check
      _
    $region39: #{tpu_custom_call.1} parent=1 // pred_check_branch
      %149 = sbr.rel (0) target = $region41
    $region40: #{tpu_custom_call.1} parent=1 // pred_region
      _
    $region41: #{tpu_custom_call.1} parent=1 // pred_fallthru
      _
    // Predicated region
    $region42: #{tpu_custom_call.1} parent=1 // pred_check
      _
    $region43: #{tpu_custom_call.1} parent=1 // pred_check_branch
      %151 = sbr.rel (0) target = $region45
    $region44: #{tpu_custom_call.1} parent=1 // pred_region
      %153 = vsyncadd [#allocation12], 0
      %s154 = sshll.u32 %s21, 4
      %s155 = int_to_ptr.hbm [resolvable:$true] %s154
      %s156 = sshll.u32 [#allocation11], 4
      %s157 = int_to_ptr.vmem [resolvable:$true] %s156
      %162 = dma.hbm_to_vmem [thread:$0]  %s155, 32, %s157, [#allocation12], 16, 16, 1
    $region45: #{tpu_custom_call.1} parent=1 // pred_fallthru
      _
    // Predicated region
    $region46: #{tpu_custom_call.1} parent=1 // pred_check
      _
    $region47: #{tpu_custom_call.1} parent=1 // pred_check_branch
      %164 = sbr.rel (0) target = $region49
    $region48: #{tpu_custom_call.1} parent=1 // pred_region
      %166 = vsyncadd [#allocation12], 0
      %s167 = sshll.u32 %s23, 4
      %s168 = int_to_ptr.hbm [resolvable:$true] %s167
      %s169 = sshll.u32 [#allocation13], 4
      %s170 = int_to_ptr.vmem [resolvable:$true] %s169
      %175 = dma.hbm_to_vmem [thread:$0]  %s168, 32, %s170, [#allocation12], 16, 16, 1
    $region49: #{tpu_custom_call.1} parent=1 // pred_fallthru
      _
    // Predicated region
    $region50: #{tpu_custom_call.1} parent=1 // pred_check
      _
    $region51: #{tpu_custom_call.1} parent=1 // pred_check_branch
      %177 = sbr.rel (0) target = $region53
    $region52: #{tpu_custom_call.1} parent=1 // pred_region
      _
    $region53: #{tpu_custom_call.1} parent=1 // pred_fallthru
      _
    // Predicated region
    $region54: #{tpu_custom_call.1} parent=1 // pred_check
      _
    $region55: #{tpu_custom_call.1} parent=1 // pred_check_branch
      %179 = sbr.rel (0) target = $region57
    $region56: #{tpu_custom_call.1} parent=1 // pred_region
      %181 = vsyncadd [#allocation15], 0
      %s182 = sshll.u32 %s27, 4
      %s183 = int_to_ptr.hbm [resolvable:$true] %s182
      %s184 = sshll.u32 [#allocation14], 4
      %s185 = int_to_ptr.vmem [resolvable:$true] %s184
      %190 = dma.hbm_to_vmem [thread:$0]  %s183, 1024, %s185, [#allocation15], 128, 128, 8
    $region57: #{tpu_custom_call.1} parent=1 // pred_fallthru
      _
    // Predicated region
    $region58: #{tpu_custom_call.1} parent=1 // pred_check
      _
    $region59: #{tpu_custom_call.1} parent=1 // pred_check_branch
      %192 = sbr.rel (0) target = $region61
    $region60: #{tpu_custom_call.1} parent=1 // pred_region
      %194 = vsyncadd [#allocation15], 0
      %s195 = sshll.u32 %s29, 4
      %s196 = int_to_ptr.hbm [resolvable:$true] %s195
      %s197 = sshll.u32 [#allocation16], 4
      %s198 = int_to_ptr.vmem [resolvable:$true] %s197
      %203 = dma.hbm_to_vmem [thread:$0]  %s196, 1024, %s198, [#allocation15], 128, 128, 8
    $region61: #{tpu_custom_call.1} parent=1 // pred_fallthru
      _
    // Predicated region
    $region62: #{tpu_custom_call.1} parent=1 // pred_check
      _
    $region63: #{tpu_custom_call.1} parent=1 // pred_check_branch
      %205 = sbr.rel (0) target = $region65
    $region64: #{tpu_custom_call.1} parent=1 // pred_region
      %207 = vsyncadd [#allocation18], 0
      %s208 = sshll.u32 %s31, 4
      %s209 = int_to_ptr.hbm [resolvable:$true] %s208
      %s210 = sshll.u32 [#allocation17], 4
      %s211 = int_to_ptr.vmem [resolvable:$true] %s210
      %216 = dma.hbm_to_vmem [thread:$0]  %s209, 1024, %s211, [#allocation18], 128, 128, 8
    $region65: #{tpu_custom_call.1} parent=1 // pred_fallthru
      _
    // Predicated region
    $region66: #{tpu_custom_call.1} parent=1 // pred_check
      _
    $region67: #{tpu_custom_call.1} parent=1 // pred_check_branch
      %218 = sbr.rel (0) target = $region69
    $region68: #{tpu_custom_call.1} parent=1 // pred_region
      _
    $region69: #{tpu_custom_call.1} parent=1 // pred_fallthru
      _
    // Predicated region
    $region70: #{tpu_custom_call.1} parent=1 // pred_check
      _
    $region71: #{tpu_custom_call.1} parent=1 // pred_check_branch
      %220 = sbr.rel (0) target = $region73
    $region72: #{tpu_custom_call.1} parent=1 // pred_region
      %222 = vsyncadd [#allocation18], 0
      %s223 = sshll.u32 %s35, 4
      %s224 = int_to_ptr.hbm [resolvable:$true] %s223
      %s225 = sshll.u32 [#allocation19], 4
      %s226 = int_to_ptr.vmem [resolvable:$true] %s225
      %231 = dma.hbm_to_vmem [thread:$0]  %s224, 32, %s226, [#allocation18], 16, 16, 1
    $region73: #{tpu_custom_call.1} parent=1 // pred_fallthru
      _
    // Predicated region
    $region74: #{tpu_custom_call.1} parent=1 // pred_check
      _
    $region75: #{tpu_custom_call.1} parent=1 // pred_check_branch
      %233 = sbr.rel (0) target = $region77
    $region76: #{tpu_custom_call.1} parent=1 // pred_region
      _
    $region77: #{tpu_custom_call.1} parent=1 // pred_fallthru
      _
    // Predicated region
    $region78: #{tpu_custom_call.1} parent=1 // pred_check
      _
    $region79: #{tpu_custom_call.1} parent=1 // pred_check_branch
      %235 = sbr.rel (0) target = $region81
    $region80: #{tpu_custom_call.1} parent=1 // pred_region
      %237 = vsyncadd [#allocation21], 0
      %s238 = sshll.u32 %s39, 4
      %s239 = int_to_ptr.hbm [resolvable:$true] %s238
      %s240 = sshll.u32 [#allocation20], 4
      %s241 = int_to_ptr.vmem [resolvable:$true] %s240
      %246 = dma.hbm_to_vmem [thread:$0]  %s239, 1024, %s241, [#allocation21], 128, 128, 8
    $region81: #{tpu_custom_call.1} parent=1 // pred_fallthru
      _
    // Predicated region
    $region82: #{tpu_custom_call.1} parent=1 // pred_check
      _
    $region83: #{tpu_custom_call.1} parent=1 // pred_check_branch
      %248 = sbr.rel (0) target = $region85
    $region84: #{tpu_custom_call.1} parent=1 // pred_region
      _
    $region85: #{tpu_custom_call.1} parent=1 // pred_fallthru
      _
    // Predicated region
    $region86: #{tpu_custom_call.1} parent=1 // pred_check
      _
    $region87: #{tpu_custom_call.1} parent=1 // pred_check_branch
      %250 = sbr.rel (0) target = $region89
    $region88: #{tpu_custom_call.1} parent=1 // pred_region
      _
    $region89: #{tpu_custom_call.1} parent=1 // pred_fallthru
      _
    // Predicated region
    $region90: #{tpu_custom_call.1} parent=1 // pred_check
      _
    $region91: #{tpu_custom_call.1} parent=1 // pred_check_branch
      %252 = sbr.rel (0) target = $region93
    $region92: #{tpu_custom_call.1} parent=1 // pred_region
      _
    $region93: #{tpu_custom_call.1} parent=1 // pred_fallthru
      _
    // Predicated region
    $region94: #{tpu_custom_call.1} parent=1 // pred_check
      _
    $region95: #{tpu_custom_call.1} parent=1 // pred_check_branch
      %254 = sbr.rel (0) target = $region97
    $region96: #{tpu_custom_call.1} parent=1 // pred_region
      _
    $region97: #{tpu_custom_call.1} parent=1 // pred_fallthru
      _
    // Predicated region
    $region98: #{tpu_custom_call.1} parent=1 // pred_check
      _
    $region99: #{tpu_custom_call.1} parent=1 // pred_check_branch
      %256 = sbr.rel (0) target = $region101
    $region100: #{tpu_custom_call.1} parent=1 // pred_region
      _
    $region101: #{tpu_custom_call.1} parent=1 // pred_fallthru
      _
    // Predicated region
    $region102: #{tpu_custom_call.1} parent=1 // pred_check
      _
    $region103: #{tpu_custom_call.1} parent=1 // pred_check_branch
      %258 = sbr.rel (0) target = $region105
    $region104: #{tpu_custom_call.1} parent=1 // pred_region
      _
    $region105: #{tpu_custom_call.1} parent=1 // pred_fallthru
      _
    // Predicated region
    $region106: #{tpu_custom_call.1} parent=1 // pred_check
      _
    $region107: #{tpu_custom_call.1} parent=1 // pred_check_branch
      %260 = sbr.rel (0) target = $region109
    $region108: #{tpu_custom_call.1} parent=1 // pred_region
      _
    $region109: #{tpu_custom_call.1} parent=1 // pred_fallthru
      _
    // Predicated region
    $region110: #{tpu_custom_call.1} parent=1 // pred_check
      _
    $region111: #{tpu_custom_call.1} parent=1 // pred_check_branch
      %262 = sbr.rel (0) target = $region113
    $region112: #{tpu_custom_call.1} parent=1 // pred_region
      %264 = vsyncadd [#allocation21], 0
      %s265 = sshll.u32 %s55, 4
      %s266 = int_to_ptr.hbm [resolvable:$true] %s265
      %s267 = sshll.u32 [#allocation22], 4
      %s268 = int_to_ptr.vmem [resolvable:$true] %s267
      %273 = dma.hbm_to_vmem [thread:$0]  %s266, 16384, %s268, [#allocation21], 512, 512, 32
    $region113: #{tpu_custom_call.1} parent=1 // pred_fallthru
      _
    // Predicated region
    $region114: #{tpu_custom_call.1} parent=1 // pred_check
      _
    $region115: #{tpu_custom_call.1} parent=1 // pred_check_branch
      %275 = sbr.rel (0) target = $region117
    $region116: #{tpu_custom_call.1} parent=1 // pred_region
      _
    $region117: #{tpu_custom_call.1} parent=1 // pred_fallthru
      _
    // Predicated region
    $region118: #{tpu_custom_call.1} parent=1 // pred_check
      _
    $region119: #{tpu_custom_call.1} parent=1 // pred_check_branch
      %277 = sbr.rel (0) target = $region121
    $region120: #{tpu_custom_call.1} parent=1 // pred_region
      %279 = vsyncadd [#allocation24], 0
      %s280 = sshll.u32 %s59, 4
      %s281 = int_to_ptr.hbm [resolvable:$true] %s280
      %s282 = sshll.u32 [#allocation23], 4
      %s283 = int_to_ptr.vmem [resolvable:$true] %s282
      %288 = dma.hbm_to_vmem [thread:$0]  %s281, 2048, %s283, [#allocation24], 512, 512, 32
    $region121: #{tpu_custom_call.1} parent=1 // pred_fallthru
      _
    // Predicated region
    $region122: #{tpu_custom_call.1} parent=1 // pred_check
      _
    $region123: #{tpu_custom_call.1} parent=1 // pred_check_branch
      %290 = sbr.rel (0) target = $region125
    $region124: #{tpu_custom_call.1} parent=1 // pred_region
      _
    $region125: #{tpu_custom_call.1} parent=1 // pred_fallthru
      _
    // Predicated region
    $region126: #{tpu_custom_call.1} parent=1 // pred_check
      _
    $region127: #{tpu_custom_call.1} parent=1 // pred_check_branch
      %292 = sbr.rel (0) target = $region129
    $region128: #{tpu_custom_call.1} parent=1 // pred_region
      %294 = dma.done [#allocation3], 16
    $region129: #{tpu_custom_call.1} parent=1 // pred_fallthru
      _
    // Predicated region
    $region130: #{tpu_custom_call.1} parent=1 // pred_check
      _
    $region131: #{tpu_custom_call.1} parent=1 // pred_check_branch
      %296 = sbr.rel (0) target = $region133
    $region132: #{tpu_custom_call.1} parent=1 // pred_region
      %298 = dma.done [#allocation6], 16
    $region133: #{tpu_custom_call.1} parent=1 // pred_fallthru
      _
    // Predicated region
    $region134: #{tpu_custom_call.1} parent=1 // pred_check
      _
    $region135: #{tpu_custom_call.1} parent=1 // pred_check_branch
      %300 = sbr.rel (0) target = $region137
    $region136: #{tpu_custom_call.1} parent=1 // pred_region
      %302 = dma.done [#allocation6], 16
    $region137: #{tpu_custom_call.1} parent=1 // pred_fallthru
      _
    // Predicated region
    $region138: #{tpu_custom_call.1} parent=1 // pred_check
      _
    $region139: #{tpu_custom_call.1} parent=1 // pred_check_branch
      %304 = sbr.rel (0) target = $region141
    $region140: #{tpu_custom_call.1} parent=1 // pred_region
      %306 = dma.done [#allocation9], 512
    $region141: #{tpu_custom_call.1} parent=1 // pred_fallthru
      _
    // Predicated region
    $region142: #{tpu_custom_call.1} parent=1 // pred_check
      _
    $region143: #{tpu_custom_call.1} parent=1 // pred_check_branch
      %308 = sbr.rel (0) target = $region145
    $region144: #{tpu_custom_call.1} parent=1 // pred_region
      %310 = dma.done [#allocation9], 16
    $region145: #{tpu_custom_call.1} parent=1 // pred_fallthru
      _
    // Predicated region
    $region146: #{tpu_custom_call.1} parent=1 // pred_check
      _
    $region147: #{tpu_custom_call.1} parent=1 // pred_check_branch
      %312 = sbr.rel (0) target = $region149
    $region148: #{tpu_custom_call.1} parent=1 // pred_region
      %314 = dma.done [#allocation12], 32
    $region149: #{tpu_custom_call.1} parent=1 // pred_fallthru
      _
    // Predicated region
    $region150: #{tpu_custom_call.1} parent=1 // pred_check
      _
    $region151: #{tpu_custom_call.1} parent=1 // pred_check_branch
      %316 = sbr.rel (0) target = $region153
    $region152: #{tpu_custom_call.1} parent=1 // pred_region
      %318 = dma.done [#allocation12], 32
    $region153: #{tpu_custom_call.1} parent=1 // pred_fallthru
      _
    // Predicated region
    $region154: #{tpu_custom_call.1} parent=1 // pred_check
      _
    $region155: #{tpu_custom_call.1} parent=1 // pred_check_branch
      %320 = sbr.rel (0) target = $region157
    $region156: #{tpu_custom_call.1} parent=1 // pred_region
      %322 = dma.done [#allocation15], 1024
    $region157: #{tpu_custom_call.1} parent=1 // pred_fallthru
      _
    // Predicated region
    $region158: #{tpu_custom_call.1} parent=1 // pred_check
      _
    $region159: #{tpu_custom_call.1} parent=1 // pred_check_branch
      %324 = sbr.rel (0) target = $region161
    $region160: #{tpu_custom_call.1} parent=1 // pred_region
      %326 = dma.done [#allocation15], 1024
    $region161: #{tpu_custom_call.1} parent=1 // pred_fallthru
      _
    // Predicated region
    $region162: #{tpu_custom_call.1} parent=1 // pred_check
      _
    $region163: #{tpu_custom_call.1} parent=1 // pred_check_branch
      %328 = sbr.rel (0) target = $region165
    $region164: #{tpu_custom_call.1} parent=1 // pred_region
      %330 = dma.done [#allocation18], 1024
    $region165: #{tpu_custom_call.1} parent=1 // pred_fallthru
      _
    // Predicated region
    $region166: #{tpu_custom_call.1} parent=1 // pred_check
      _
    $region167: #{tpu_custom_call.1} parent=1 // pred_check_branch
      %332 = sbr.rel (0) target = $region169
    $region168: #{tpu_custom_call.1} parent=1 // pred_region
      %334 = dma.done [#allocation18], 32
    $region169: #{tpu_custom_call.1} parent=1 // pred_fallthru
      _
    // Predicated region
    $region170: #{tpu_custom_call.1} parent=1 // pred_check
      _
    $region171: #{tpu_custom_call.1} parent=1 // pred_check_branch
      %336 = sbr.rel (0) target = $region173
    $region172: #{tpu_custom_call.1} parent=1 // pred_region
      %338 = dma.done [#allocation21], 1024
    $region173: #{tpu_custom_call.1} parent=1 // pred_fallthru
      _
    // Predicated region
    $region174: #{tpu_custom_call.1} parent=1 // pred_check
      _
    $region175: #{tpu_custom_call.1} parent=1 // pred_check_branch
      %340 = sbr.rel (0) target = $region177
    $region176: #{tpu_custom_call.1} parent=1 // pred_region
      %342 = dma.done [#allocation21], 16384
    $region177: #{tpu_custom_call.1} parent=1 // pred_fallthru
      _
    // Predicated region
    $region178: #{tpu_custom_call.1} parent=1 // pred_check
      _
    $region179: #{tpu_custom_call.1} parent=1 // pred_check_branch
      %344 = sbr.rel (0) target = $region181
    $region180: #{tpu_custom_call.1} parent=1 // pred_region
      %346 = dma.done [#allocation24], 2048
    $region181: #{tpu_custom_call.1} parent=1 // pred_fallthru
      _
    %v347 = vld [vmem:[%s1] sm:$0xff]
    %v348 = vld [vmem:[%s1 + $0x8] sm:$0xff]
    %v349 = vld [vmem:[%s1 + $0x10] sm:$0xff]
    %v350 = vld [vmem:[%s1 + $0x18] sm:$0xff]
    %v351 = vld [vmem:[%s3] sm:$0xff]
    %v352 = vld [vmem:[%s3 + $0x8] sm:$0xff]
    %v353 = vld [vmem:[%s3 + $0x10] sm:$0xff]
    %v354 = vld [vmem:[%s3 + $0x18] sm:$0xff]
    %v355 = vld [vmem:[%s3 + $0x20] sm:$0xff]
    %v356 = vld [vmem:[%s3 + $0x28] sm:$0xff]
    %v357 = vld [vmem:[%s3 + $0x30] sm:$0xff]
    %v358 = vld [vmem:[%s3 + $0x38] sm:$0xff]
    %vm359 = vcmask 523264
    %v361 = vsel %vm359, %v347, 0
    %v364 = vsel %vm359, %v348, 0
    %v367 = vsel %vm359, %v349, 0
    %v370 = vsel %vm359, %v350, 0
    %372 = vmatpush.msra.mxu0 0.0
    %373 = vmatpush.msra.mxu0 0.0
    %374 = vmatpush.msra.mxu0 0.0
    %375 = vmatpush.msra.mxu0 0.0
    %376 = vmatpush.msra.mxu0 0.0
    %377 = vmatpush.msra.mxu0 0.0
    %378 = vmatpush.msra.mxu0 0.0
    %379 = vmatpush.msra.mxu0 0.0
    %380 = vmatpush.msra.mxu0 %v358
    %381 = vmatpush.msra.mxu0 %v357
    %382 = vmatpush.msra.mxu0 %v356
    %383 = vmatpush.msra.mxu0 %v355
    %384 = vmatpush.msra.mxu0 %v354
    %385 = vmatpush.msra.mxu0 %v353
    %386 = vmatpush.msra.mxu0 %v352
    %387 = vmatpush.msra.mxu0 %v351
    %388 = vmatmul.f32.gmra.mxu0 %v361
    %v389 = vpop.f32.mrf.mxu0
    %v390 = vadd.f32 0.0, %v389
    %391 = vmatmul.f32.gmra.mxu0 %v364
    %v392 = vpop.f32.mrf.mxu0
    %v393 = vadd.f32 0.0, %v392
    %394 = vmatmul.f32.gmra.mxu0 %v367
    %v395 = vpop.f32.mrf.mxu0
    %v396 = vadd.f32 0.0, %v395
    %397 = vmatmul.f32.gmra.mxu0 %v370
    %v398 = vpop.f32.mrf.mxu0
    %v399 = vadd.f32 0.0, %v398
    %400 = vdwg.mxu0
    %v401 = vsub.f32 %v347, %v390
    %v402 = vsub.f32 %v348, %v393
    %v403 = vsub.f32 %v349, %v396
    %v404 = vsub.f32 %v350, %v399
    %v405 = vmul.f32 %v401, %v401
    %v406 = vmul.f32 %v402, %v402
    %v407 = vmul.f32 %v403, %v403
    %v408 = vmul.f32 %v404, %v404
    %v410 = vsel %vm359, %v405, 0
    %v413 = vsel %vm359, %v406, 0
    %v416 = vsel %vm359, %v407, 0
    %v419 = vsel %vm359, %v408, 0
    %421 = vmatpush.msra.mxu0 0.0
    %422 = vmatpush.msra.mxu0 0.0
    %423 = vmatpush.msra.mxu0 0.0
    %424 = vmatpush.msra.mxu0 0.0
    %425 = vmatpush.msra.mxu0 0.0
    %426 = vmatpush.msra.mxu0 0.0
    %427 = vmatpush.msra.mxu0 0.0
    %428 = vmatpush.msra.mxu0 0.0
    %429 = vmatpush.msra.mxu0 %v358
    %430 = vmatpush.msra.mxu0 %v357
    %431 = vmatpush.msra.mxu0 %v356
    %432 = vmatpush.msra.mxu0 %v355
    %433 = vmatpush.msra.mxu0 %v354
    %434 = vmatpush.msra.mxu0 %v353
    %435 = vmatpush.msra.mxu0 %v352
    %436 = vmatpush.msra.mxu0 %v351
    %437 = vmatmul.f32.gmra.mxu0 %v410
    %v438 = vpop.f32.mrf.mxu0
    %v439 = vadd.f32 1e-05, %v438
    %440 = vmatmul.f32.gmra.mxu0 %v413
    %v441 = vpop.f32.mrf.mxu0
    %v442 = vadd.f32 1e-05, %v441
    %443 = vmatmul.f32.gmra.mxu0 %v416
    %v444 = vpop.f32.mrf.mxu0
    %v445 = vadd.f32 1e-05, %v444
    %446 = vmatmul.f32.gmra.mxu0 %v419
    %v447 = vpop.f32.mrf.mxu0
    %v448 = vadd.f32 1e-05, %v447
    %449 = vdwg.mxu0
    %v450 = vrsqrt.pop %v439
    %v451 = vmul.f32 %v450, %v439
    %v452 = vmul.f32 %v451, %v450
    %v453 = vmul.f32 0.5, %v452
    %v454 = vsub.f32 1.5, %v453
    %v455 = vmul.f32 %v450, %v454
    %vm456 = vweird.f32 %v439
    %vm457 = vweird.f32 %v450
    %vm458 = vmor %vm456, %vm457
    %v459 = vsel %vm458, %v450, %v455
    %v460 = vrsqrt.pop %v442
    %v461 = vmul.f32 %v460, %v442
    %v462 = vmul.f32 %v461, %v460
    %v463 = vmul.f32 0.5, %v462
    %v464 = vsub.f32 1.5, %v463
    %v465 = vmul.f32 %v460, %v464
    %vm466 = vweird.f32 %v442
    %vm467 = vweird.f32 %v460
    %vm468 = vmor %vm466, %vm467
    %v469 = vsel %vm468, %v460, %v465
    %v470 = vrsqrt.pop %v445
    %v471 = vmul.f32 %v470, %v445
    %v472 = vmul.f32 %v471, %v470
    %v473 = vmul.f32 0.5, %v472
    %v474 = vsub.f32 1.5, %v473
    %v475 = vmul.f32 %v470, %v474
    %vm476 = vweird.f32 %v445
    %vm477 = vweird.f32 %v470
    %vm478 = vmor %vm476, %vm477
    %v479 = vsel %vm478, %v470, %v475
    %v480 = vrsqrt.pop %v448
    %v481 = vmul.f32 %v480, %v448
    %v482 = vmul.f32 %v481, %v480
    %v483 = vmul.f32 0.5, %v482
    %v484 = vsub.f32 1.5, %v483
    %v485 = vmul.f32 %v480, %v484
    %vm486 = vweird.f32 %v448
    %vm487 = vweird.f32 %v480
    %vm488 = vmor %vm486, %vm487
    %v489 = vsel %vm488, %v480, %v485
    %v490 = vmul.f32 %v401, %v459
    %v491 = vmul.f32 %v402, %v469
    %v492 = vmul.f32 %v403, %v479
    %v493 = vmul.f32 %v404, %v489
    %v494 = vld [vmem:[#allocation2] sm:$0x1]
    %v496 = vperm.slane %v494, 0
    %v498 = vmul.f32 %v490, %v496
    %v499 = vmul.f32 %v491, %v496
    %v500 = vmul.f32 %v492, %v496
    %v501 = vmul.f32 %v493, %v496
    %v502 = vld [vmem:[#allocation5] sm:$0x1]
    %v504 = vperm.slane %v502, 0
    %v506 = vadd.f32 %v498, %v504
    %v507 = vadd.f32 %v499, %v504
    %v508 = vadd.f32 %v500, %v504
    %v509 = vadd.f32 %v501, %v504
    %v510 = vld [vmem:[%s9] sm:$0xff]
    %v511 = vld [vmem:[%s9 + $0x8] sm:$0xff]
    %v512 = vld [vmem:[%s9 + $0x10] sm:$0xff]
    %v513 = vld [vmem:[%s9 + $0x18] sm:$0xff]
    %v514 = vld [vmem:[%s9 + $0x20] sm:$0xff]
    %v515 = vld [vmem:[%s9 + $0x28] sm:$0xff]
    %v516 = vld [vmem:[%s9 + $0x30] sm:$0xff]
    %v517 = vld [vmem:[%s9 + $0x38] sm:$0xff]
    %v518 = vld [vmem:[#allocation7] sm:$0x1]
    %v520 = vperm.slane %v518, 0
    %v523 = vsel %vm359, %v506, 0
    %v526 = vsel %vm359, %v507, 0
    %v529 = vsel %vm359, %v508, 0
    %v532 = vsel %vm359, %v509, 0
    %534 = vmatpush.msra.mxu0 0.0
    %535 = vmatpush.msra.mxu0 0.0
    %536 = vmatpush.msra.mxu0 0.0
    %537 = vmatpush.msra.mxu0 0.0
    %538 = vmatpush.msra.mxu0 0.0
    %539 = vmatpush.msra.mxu0 0.0
    %540 = vmatpush.msra.mxu0 0.0
    %541 = vmatpush.msra.mxu0 0.0
    %542 = vmatpush.msra.mxu0 %v517
    %543 = vmatpush.msra.mxu0 %v516
    %544 = vmatpush.msra.mxu0 %v515
    %545 = vmatpush.msra.mxu0 %v514
    %546 = vmatpush.msra.mxu0 %v513
    %547 = vmatpush.msra.mxu0 %v512
    %548 = vmatpush.msra.mxu0 %v511
    %549 = vmatpush.msra.mxu0 %v510
    %550 = vmatmul.f32.gmra.mxu0 %v523
    %v551 = vpop.f32.mrf.mxu0
    %v552 = vadd.f32 %v520, %v551
    %553 = vmatmul.f32.gmra.mxu0 %v526
    %v554 = vpop.f32.mrf.mxu0
    %v555 = vadd.f32 %v520, %v554
    %556 = vmatmul.f32.gmra.mxu0 %v529
    %v557 = vpop.f32.mrf.mxu0
    %v558 = vadd.f32 %v520, %v557
    %559 = vmatmul.f32.gmra.mxu0 %v532
    %v560 = vpop.f32.mrf.mxu0
    %v561 = vadd.f32 %v520, %v560
    %562 = vdwg.mxu0
    %v563 = vld [vmem:[#allocation8] sm:$0xff]
    %v564 = vld [vmem:[#allocation8 + $0x8] sm:$0xff]
    %v565 = vld [vmem:[#allocation8 + $0x10] sm:$0xff]
    %v566 = vld [vmem:[#allocation8 + $0x18] sm:$0xff]
    %v567 = vadd.f32 %v552, %v563
    %v568 = vadd.f32 %v555, %v564
    %v569 = vadd.f32 %v558, %v565
    %v570 = vadd.f32 %v561, %v566
    %v571 = vld [vmem:[%s15] sm:$0x1]
    %v572 = vld [vmem:[#allocation10] sm:$0x1]
    %vm573 = vcmask 261120
    %v574 = vsel %vm573, %v567, 0.0
    %575 = vadd.xlane.f32.xlu0 %v574
    %v576 = vpop.xlane.xlu0 %575
    %v577 = vsel %vm573, %v568, 0.0
    %578 = vadd.xlane.f32.xlu0 %v577
    %v579 = vpop.xlane.xlu0 %578
    %v580 = vsel %vm573, %v569, 0.0
    %581 = vadd.xlane.f32.xlu0 %v580
    %v582 = vpop.xlane.xlu0 %581
    %v583 = vsel %vm573, %v570, 0.0
    %584 = vadd.xlane.f32.xlu0 %v583
    %v585 = vpop.xlane.xlu0 %584
    %v586 = vrcp.pop 32.0
    %v587 = vmul.f32 32.0, %v586
    %v588 = vsub.f32 1.0, %v587
    %v589 = vmul.f32 %v586, %v588
    %v590 = vadd.f32 %v586, %v589
    %vm591 = vweird.f32 %v586
    %v592 = vsel %vm591, %v586, %v590
    %v593 = vmul.f32 %v576, %v592
    %v594 = vmul.f32 %v579, %v592
    %v595 = vmul.f32 %v582, %v592
    %v596 = vmul.f32 %v585, %v592
    %v597 = vsub.f32 %v567, %v593
    %v598 = vsub.f32 %v568, %v594
    %v599 = vsub.f32 %v569, %v595
    %v600 = vsub.f32 %v570, %v596
    %v601 = vmul.f32 %v597, %v597
    %v602 = vmul.f32 %v598, %v598
    %v603 = vmul.f32 %v599, %v599
    %v604 = vmul.f32 %v600, %v600
    %v605 = vsel %vm573, %v601, 0.0
    %606 = vadd.xlane.f32.xlu0 %v605
    %v607 = vpop.xlane.xlu0 %606
    %v608 = vsel %vm573, %v602, 0.0
    %609 = vadd.xlane.f32.xlu0 %v608
    %v610 = vpop.xlane.xlu0 %609
    %v611 = vsel %vm573, %v603, 0.0
    %612 = vadd.xlane.f32.xlu0 %v611
    %v613 = vpop.xlane.xlu0 %612
    %v614 = vsel %vm573, %v604, 0.0
    %615 = vadd.xlane.f32.xlu0 %v614
    %v616 = vpop.xlane.xlu0 %615
    %v617 = vmul.f32 %v607, %v592
    %v618 = vmul.f32 %v610, %v592
    %v619 = vmul.f32 %v613, %v592
    %v620 = vmul.f32 %v616, %v592
    %v621 = vadd.f32 %v617, 1e-05
    %v622 = vadd.f32 %v618, 1e-05
    %v623 = vadd.f32 %v619, 1e-05
    %v624 = vadd.f32 %v620, 1e-05
    %v625 = vrsqrt.pop %v621
    %v626 = vmul.f32 %v625, %v621
    %v627 = vmul.f32 %v626, %v625
    %v628 = vmul.f32 0.5, %v627
    %v629 = vsub.f32 1.5, %v628
    %v630 = vmul.f32 %v625, %v629
    %vm631 = vweird.f32 %v621
    %vm632 = vweird.f32 %v625
    %vm633 = vmor %vm631, %vm632
    %v634 = vsel %vm633, %v625, %v630
    %v635 = vrsqrt.pop %v622
    %v636 = vmul.f32 %v635, %v622
    %v637 = vmul.f32 %v636, %v635
    %v638 = vmul.f32 0.5, %v637
    %v639 = vsub.f32 1.5, %v638
    %v640 = vmul.f32 %v635, %v639
    %vm641 = vweird.f32 %v622
    %vm642 = vweird.f32 %v635
    %vm643 = vmor %vm641, %vm642
    %v644 = vsel %vm643, %v635, %v640
    %v645 = vrsqrt.pop %v623
    %v646 = vmul.f32 %v645, %v623
    %v647 = vmul.f32 %v646, %v645
    %v648 = vmul.f32 0.5, %v647
    %v649 = vsub.f32 1.5, %v648
    %v650 = vmul.f32 %v645, %v649
    %vm651 = vweird.f32 %v623
    %vm652 = vweird.f32 %v645
    %vm653 = vmor %vm651, %vm652
    %v654 = vsel %vm653, %v645, %v650
    %v655 = vrsqrt.pop %v624
    %v656 = vmul.f32 %v655, %v624
    %v657 = vmul.f32 %v656, %v655
    %v658 = vmul.f32 0.5, %v657
    %v659 = vsub.f32 1.5, %v658
    %v660 = vmul.f32 %v655, %v659
    %vm661 = vweird.f32 %v624
    %vm662 = vweird.f32 %v655
    %vm663 = vmor %vm661, %vm662
    %v664 = vsel %vm663, %v655, %v660
    %v665 = vmul.f32 %v597, %v634
    %v666 = vmul.f32 %v598, %v644
    %v667 = vmul.f32 %v599, %v654
    %v668 = vmul.f32 %v600, %v664
    %v670 = vperm.slane %v571, 0
    %v672 = vmul.f32 %v665, %v670
    %v673 = vmul.f32 %v666, %v670
    %v674 = vmul.f32 %v667, %v670
    %v675 = vmul.f32 %v668, %v670
    %v677 = vperm.slane %v572, 0
    %v679 = vadd.f32 %v672, %v677
    %v680 = vadd.f32 %v673, %v677
    %v681 = vadd.f32 %v674, %v677
    %v682 = vadd.f32 %v675, %v677
    %v683 = vld [vmem:[%s19] sm:$0xff]
    %v684 = vld [vmem:[%s19 + $0x8] sm:$0xff]
    %v685 = vld [vmem:[%s19 + $0x10] sm:$0xff]
    %v686 = vld [vmem:[%s19 + $0x18] sm:$0xff]
    %v687 = vld [vmem:[%s19 + $0x20] sm:$0xff]
    %v688 = vld [vmem:[%s19 + $0x28] sm:$0xff]
    %v689 = vld [vmem:[%s19 + $0x30] sm:$0xff]
    %v690 = vld [vmem:[%s19 + $0x38] sm:$0xff]
    %v691 = vld [vmem:[#allocation11] sm:$0x1]
    %v692 = vld [vmem:[#allocation13] sm:$0x1]
    %v693 = vsel %vm573, %v679, 0.0
    %694 = vadd.xlane.f32.xlu0 %v693
    %v695 = vpop.xlane.xlu0 %694
    %v696 = vsel %vm573, %v680, 0.0
    %697 = vadd.xlane.f32.xlu0 %v696
    %v698 = vpop.xlane.xlu0 %697
    %v699 = vsel %vm573, %v681, 0.0
    %700 = vadd.xlane.f32.xlu0 %v699
    %v701 = vpop.xlane.xlu0 %700
    %v702 = vsel %vm573, %v682, 0.0
    %703 = vadd.xlane.f32.xlu0 %v702
    %v704 = vpop.xlane.xlu0 %703
    %v705 = vmul.f32 %v695, %v592
    %v706 = vmul.f32 %v698, %v592
    %v707 = vmul.f32 %v701, %v592
    %v708 = vmul.f32 %v704, %v592
    %v709 = vsub.f32 %v679, %v705
    %v710 = vsub.f32 %v680, %v706
    %v711 = vsub.f32 %v681, %v707
    %v712 = vsub.f32 %v682, %v708
    %v713 = vmul.f32 %v709, %v709
    %v714 = vmul.f32 %v710, %v710
    %v715 = vmul.f32 %v711, %v711
    %v716 = vmul.f32 %v712, %v712
    %v717 = vsel %vm573, %v713, 0.0
    %718 = vadd.xlane.f32.xlu0 %v717
    %v719 = vpop.xlane.xlu0 %718
    %v720 = vsel %vm573, %v714, 0.0
    %721 = vadd.xlane.f32.xlu0 %v720
    %v722 = vpop.xlane.xlu0 %721
    %v723 = vsel %vm573, %v715, 0.0
    %724 = vadd.xlane.f32.xlu0 %v723
    %v725 = vpop.xlane.xlu0 %724
    %v726 = vsel %vm573, %v716, 0.0
    %727 = vadd.xlane.f32.xlu0 %v726
    %v728 = vpop.xlane.xlu0 %727
    %v729 = vmul.f32 %v719, %v592
    %v730 = vmul.f32 %v722, %v592
    %v731 = vmul.f32 %v725, %v592
    %v732 = vmul.f32 %v728, %v592
    %v733 = vadd.f32 %v729, 1e-05
    %v734 = vadd.f32 %v730, 1e-05
    %v735 = vadd.f32 %v731, 1e-05
    %v736 = vadd.f32 %v732, 1e-05
    %v737 = vrsqrt.pop %v733
    %v738 = vmul.f32 %v737, %v733
    %v739 = vmul.f32 %v738, %v737
    %v740 = vmul.f32 0.5, %v739
    %v741 = vsub.f32 1.5, %v740
    %v742 = vmul.f32 %v737, %v741
    %vm743 = vweird.f32 %v733
    %vm744 = vweird.f32 %v737
    %vm745 = vmor %vm743, %vm744
    %v746 = vsel %vm745, %v737, %v742
    %v747 = vrsqrt.pop %v734
    %v748 = vmul.f32 %v747, %v734
    %v749 = vmul.f32 %v748, %v747
    %v750 = vmul.f32 0.5, %v749
    %v751 = vsub.f32 1.5, %v750
    %v752 = vmul.f32 %v747, %v751
    %vm753 = vweird.f32 %v734
    %vm754 = vweird.f32 %v747
    %vm755 = vmor %vm753, %vm754
    %v756 = vsel %vm755, %v747, %v752
    %v757 = vrsqrt.pop %v735
    %v758 = vmul.f32 %v757, %v735
    %v759 = vmul.f32 %v758, %v757
    %v760 = vmul.f32 0.5, %v759
    %v761 = vsub.f32 1.5, %v760
    %v762 = vmul.f32 %v757, %v761
    %vm763 = vweird.f32 %v735
    %vm764 = vweird.f32 %v757
    %vm765 = vmor %vm763, %vm764
    %v766 = vsel %vm765, %v757, %v762
    %v767 = vrsqrt.pop %v736
    %v768 = vmul.f32 %v767, %v736
    %v769 = vmul.f32 %v768, %v767
    %v770 = vmul.f32 0.5, %v769
    %v771 = vsub.f32 1.5, %v770
    %v772 = vmul.f32 %v767, %v771
    %vm773 = vweird.f32 %v736
    %vm774 = vweird.f32 %v767
    %vm775 = vmor %vm773, %vm774
    %v776 = vsel %vm775, %v767, %v772
    %v777 = vmul.f32 %v709, %v746
    %v778 = vmul.f32 %v710, %v756
    %v779 = vmul.f32 %v711, %v766
    %v780 = vmul.f32 %v712, %v776
    %v782 = vperm.slane %v691, 0
    %v784 = vmul.f32 %v777, %v782
    %v785 = vmul.f32 %v778, %v782
    %v786 = vmul.f32 %v779, %v782
    %v787 = vmul.f32 %v780, %v782
    %v789 = vperm.slane %v692, 0
    %v791 = vadd.f32 %v784, %v789
    %v792 = vadd.f32 %v785, %v789
    %v793 = vadd.f32 %v786, %v789
    %v794 = vadd.f32 %v787, %v789
    %v795 = vld [vmem:[%s25] sm:$0xff]
    %v796 = vld [vmem:[%s25 + $0x8] sm:$0xff]
    %v797 = vld [vmem:[%s25 + $0x10] sm:$0xff]
    %v798 = vld [vmem:[%s25 + $0x18] sm:$0xff]
    %v800 = vsel %vm573, %v791, 0
    %v803 = vsel %vm573, %v792, 0
    %v806 = vsel %vm573, %v793, 0
    %v809 = vsel %vm573, %v794, 0
    %811 = vmatpush.msra.mxu0 0.0
    %812 = vmatpush.msra.mxu0 0.0
    %813 = vmatpush.msra.mxu0 0.0
    %814 = vmatpush.msra.mxu0 0.0
    %815 = vmatpush.msra.mxu0 0.0
    %816 = vmatpush.msra.mxu0 0.0
    %817 = vmatpush.msra.mxu0 0.0
    %818 = vmatpush.msra.mxu0 0.0
    %819 = vmatpush.msra.mxu0 0.0
    %820 = vmatpush.msra.mxu0 0.0
    %821 = vmatpush.msra.mxu0 0.0
    %822 = vmatpush.msra.mxu0 0.0
    %823 = vmatpush.msra.mxu0 %v798
    %824 = vmatpush.msra.mxu0 %v797
    %825 = vmatpush.msra.mxu0 %v796
    %826 = vmatpush.msra.mxu0 %v795
    %827 = vmatmul.f32.gmra.mxu0 %v800
    %v828 = vpop.f32.mrf.mxu0
    %v829 = vadd.f32 0.0, %v828
    %830 = vmatmul.f32.gmra.mxu0 %v803
    %v831 = vpop.f32.mrf.mxu0
    %v832 = vadd.f32 0.0, %v831
    %833 = vmatmul.f32.gmra.mxu0 %v806
    %v834 = vpop.f32.mrf.mxu0
    %v835 = vadd.f32 0.0, %v834
    %836 = vmatmul.f32.gmra.mxu0 %v809
    %v837 = vpop.f32.mrf.mxu0
    %v838 = vadd.f32 0.0, %v837
    %839 = vdwg.mxu0
    %v840 = vld [vmem:[#allocation14] sm:$0xff]
    %v841 = vld [vmem:[#allocation14 + $0x8] sm:$0xff]
    %v842 = vld [vmem:[#allocation14 + $0x10] sm:$0xff]
    %v843 = vld [vmem:[#allocation14 + $0x18] sm:$0xff]
    %844 = vmatpush.msra.mxu0 0.0
    %845 = vmatpush.msra.mxu0 0.0
    %846 = vmatpush.msra.mxu0 0.0
    %847 = vmatpush.msra.mxu0 0.0
    %848 = vmatpush.msra.mxu0 0.0
    %849 = vmatpush.msra.mxu0 0.0
    %850 = vmatpush.msra.mxu0 0.0
    %851 = vmatpush.msra.mxu0 0.0
    %852 = vmatpush.msra.mxu0 0.0
    %853 = vmatpush.msra.mxu0 0.0
    %854 = vmatpush.msra.mxu0 0.0
    %855 = vmatpush.msra.mxu0 0.0
    %856 = vmatpush.msra.mxu0 %v843
    %857 = vmatpush.msra.mxu0 %v842
    %858 = vmatpush.msra.mxu0 %v841
    %859 = vmatpush.msra.mxu0 %v840
    %860 = vmatmul.f32.gmra.mxu0 %v800
    %v861 = vpop.f32.mrf.mxu0
    %v862 = vadd.f32 0.0, %v861
    %863 = vmatmul.f32.gmra.mxu0 %v803
    %v864 = vpop.f32.mrf.mxu0
    %v865 = vadd.f32 0.0, %v864
    %866 = vmatmul.f32.gmra.mxu0 %v806
    %v867 = vpop.f32.mrf.mxu0
    %v868 = vadd.f32 0.0, %v867
    %869 = vmatmul.f32.gmra.mxu0 %v809
    %v870 = vpop.f32.mrf.mxu0
    %v871 = vadd.f32 0.0, %v870
    %872 = vdwg.mxu0
    %v873 = vld [vmem:[#allocation16] sm:$0xff]
    %v874 = vld [vmem:[#allocation16 + $0x8] sm:$0xff]
    %v875 = vld [vmem:[#allocation16 + $0x10] sm:$0xff]
    %v876 = vld [vmem:[#allocation16 + $0x18] sm:$0xff]
    %877 = vmatpush.msra.mxu0 0.0
    %878 = vmatpush.msra.mxu0 0.0
    %879 = vmatpush.msra.mxu0 0.0
    %880 = vmatpush.msra.mxu0 0.0
    %881 = vmatpush.msra.mxu0 0.0
    %882 = vmatpush.msra.mxu0 0.0
    %883 = vmatpush.msra.mxu0 0.0
    %884 = vmatpush.msra.mxu0 0.0
    %885 = vmatpush.msra.mxu0 0.0
    %886 = vmatpush.msra.mxu0 0.0
    %887 = vmatpush.msra.mxu0 0.0
    %888 = vmatpush.msra.mxu0 0.0
    %889 = vmatpush.msra.mxu0 %v876
    %890 = vmatpush.msra.mxu0 %v875
    %891 = vmatpush.msra.mxu0 %v874
    %892 = vmatpush.msra.mxu0 %v873
    %893 = vmatmul.f32.gmra.mxu0 %v800
    %v894 = vpop.f32.mrf.mxu0
    %v895 = vadd.f32 0.0, %v894
    %896 = vmatmul.f32.gmra.mxu0 %v803
    %v897 = vpop.f32.mrf.mxu0
    %v898 = vadd.f32 0.0, %v897
    %899 = vmatmul.f32.gmra.mxu0 %v806
    %v900 = vpop.f32.mrf.mxu0
    %v901 = vadd.f32 0.0, %v900
    %902 = vmatmul.f32.gmra.mxu0 %v809
    %v903 = vpop.f32.mrf.mxu0
    %v904 = vadd.f32 0.0, %v903
    %905 = vdwg.mxu0
    %v906 = vmul.f32 %v829, %v683
    %v907 = vmul.f32 %v832, %v684
    %v908 = vmul.f32 %v829, %v685
    %v909 = vmul.f32 %v832, %v686
    %v910 = vmul.f32 %v829, %v687
    %v911 = vmul.f32 %v832, %v688
    %v912 = vmul.f32 %v829, %v689
    %v913 = vmul.f32 %v832, %v690
    %v915 = vsel %vm573, %v906, 0
    %v918 = vsel %vm573, %v907, 0
    %v921 = vsel %vm573, %v908, 0
    %v924 = vsel %vm573, %v909, 0
    %v927 = vsel %vm573, %v910, 0
    %v930 = vsel %vm573, %v911, 0
    %v933 = vsel %vm573, %v912, 0
    %v936 = vsel %vm573, %v913, 0
    %v939 = vsel %vm573, %v862, 0
    %v942 = vsel %vm573, %v865, 0
    %944 = vmatpush.xpose.msra.mxu0 0.0
    %945 = vmatpush.xpose.msra.mxu0 0.0
    %946 = vmatpush.xpose.msra.mxu0 0.0
    %947 = vmatpush.xpose.msra.mxu0 0.0
    %948 = vmatpush.xpose.msra.mxu0 0.0
    %949 = vmatpush.xpose.msra.mxu0 0.0
    %950 = vmatpush.xpose.msra.mxu0 0.0
    %951 = vmatpush.xpose.msra.mxu0 0.0
    %952 = vmatpush.xpose.msra.mxu0 0.0
    %953 = vmatpush.xpose.msra.mxu0 0.0
    %954 = vmatpush.xpose.msra.mxu0 0.0
    %955 = vmatpush.xpose.msra.mxu0 0.0
    %956 = vmatpush.xpose.msra.mxu0 0.0
    %957 = vmatpush.xpose.msra.mxu0 0.0
    %958 = vmatpush.xpose.msra.mxu0 %v942
    %959 = vmatpush.xpose.msra.mxu0 %v939
    %960 = vmatmul.f32.gmra.mxu0 %v915
    %v961 = vpop.f32.mrf.mxu0
    %v962 = vadd.f32 0.0, %v961
    %963 = vmatmul.f32.gmra.mxu0 %v918
    %v964 = vpop.f32.mrf.mxu0
    %v965 = vadd.f32 0.0, %v964
    %966 = vmatmul.f32.gmra.mxu0 %v921
    %v967 = vpop.f32.mrf.mxu0
    %v968 = vadd.f32 0.0, %v967
    %969 = vmatmul.f32.gmra.mxu0 %v924
    %v970 = vpop.f32.mrf.mxu0
    %v971 = vadd.f32 0.0, %v970
    %972 = vmatmul.f32.gmra.mxu0 %v927
    %v973 = vpop.f32.mrf.mxu0
    %v974 = vadd.f32 0.0, %v973
    %975 = vmatmul.f32.gmra.mxu0 %v930
    %v976 = vpop.f32.mrf.mxu0
    %v977 = vadd.f32 0.0, %v976
    %978 = vmatmul.f32.gmra.mxu0 %v933
    %v979 = vpop.f32.mrf.mxu0
    %v980 = vadd.f32 0.0, %v979
    %981 = vmatmul.f32.gmra.mxu0 %v936
    %v982 = vpop.f32.mrf.mxu0
    %v983 = vadd.f32 0.0, %v982
    %984 = vdwg.mxu0
    %v985 = vmul.f32 %v962, 0.35355338
    %v986 = vmul.f32 %v965, 0.35355338
    %v987 = vmul.f32 %v968, 0.35355338
    %v988 = vmul.f32 %v971, 0.35355338
    %v989 = vmul.f32 %v974, 0.35355338
    %v990 = vmul.f32 %v977, 0.35355338
    %v991 = vmul.f32 %v980, 0.35355338
    %v992 = vmul.f32 %v983, 0.35355338
    %vm993 = vcmask 130048
    %v994 = vsel %vm993, %v985, -inf
    %995 = vmax.xlane.f32.xlu0 %v994
    %v996 = vpop.xlane.xlu0 %995
    %v997 = vsel %vm993, %v986, -inf
    %998 = vmax.xlane.f32.xlu0 %v997
    %v999 = vpop.xlane.xlu0 %998
    %v1000 = vsel %vm993, %v987, -inf
    %1001 = vmax.xlane.f32.xlu0 %v1000
    %v1002 = vpop.xlane.xlu0 %1001
    %v1003 = vsel %vm993, %v988, -inf
    %1004 = vmax.xlane.f32.xlu0 %v1003
    %v1005 = vpop.xlane.xlu0 %1004
    %v1006 = vsel %vm993, %v989, -inf
    %1007 = vmax.xlane.f32.xlu0 %v1006
    %v1008 = vpop.xlane.xlu0 %1007
    %v1009 = vsel %vm993, %v990, -inf
    %1010 = vmax.xlane.f32.xlu0 %v1009
    %v1011 = vpop.xlane.xlu0 %1010
    %v1012 = vsel %vm993, %v991, -inf
    %1013 = vmax.xlane.f32.xlu0 %v1012
    %v1014 = vpop.xlane.xlu0 %1013
    %v1015 = vsel %vm993, %v992, -inf
    %1016 = vmax.xlane.f32.xlu0 %v1015
    %v1017 = vpop.xlane.xlu0 %1016
    %v1018 = vsub.f32 %v985, %v996
    %v1019 = vsub.f32 %v986, %v999
    %v1020 = vsub.f32 %v987, %v1002
    %v1021 = vsub.f32 %v988, %v1005
    %v1022 = vsub.f32 %v989, %v1008
    %v1023 = vsub.f32 %v990, %v1011
    %v1024 = vsub.f32 %v991, %v1014
    %v1025 = vsub.f32 %v992, %v1017
    %v1026 = vmul.f32 %v1018, 1.442695
    %v1027 = vpow.pop %v1026
    %v1028 = vmul.f32 %v1019, 1.442695
    %v1029 = vpow.pop %v1028
    %v1030 = vmul.f32 %v1020, 1.442695
    %v1031 = vpow.pop %v1030
    %v1032 = vmul.f32 %v1021, 1.442695
    %v1033 = vpow.pop %v1032
    %v1034 = vmul.f32 %v1022, 1.442695
    %v1035 = vpow.pop %v1034
    %v1036 = vmul.f32 %v1023, 1.442695
    %v1037 = vpow.pop %v1036
    %v1038 = vmul.f32 %v1024, 1.442695
    %v1039 = vpow.pop %v1038
    %v1040 = vmul.f32 %v1025, 1.442695
    %v1041 = vpow.pop %v1040
    %v1042 = vsel %vm993, %v1027, 0.0
    %1043 = vadd.xlane.f32.xlu0 %v1042
    %v1044 = vpop.xlane.xlu0 %1043
    %v1045 = vsel %vm993, %v1029, 0.0
    %1046 = vadd.xlane.f32.xlu0 %v1045
    %v1047 = vpop.xlane.xlu0 %1046
    %v1048 = vsel %vm993, %v1031, 0.0
    %1049 = vadd.xlane.f32.xlu0 %v1048
    %v1050 = vpop.xlane.xlu0 %1049
    %v1051 = vsel %vm993, %v1033, 0.0
    %1052 = vadd.xlane.f32.xlu0 %v1051
    %v1053 = vpop.xlane.xlu0 %1052
    %v1054 = vsel %vm993, %v1035, 0.0
    %1055 = vadd.xlane.f32.xlu0 %v1054
    %v1056 = vpop.xlane.xlu0 %1055
    %v1057 = vsel %vm993, %v1037, 0.0
    %1058 = vadd.xlane.f32.xlu0 %v1057
    %v1059 = vpop.xlane.xlu0 %1058
    %v1060 = vsel %vm993, %v1039, 0.0
    %1061 = vadd.xlane.f32.xlu0 %v1060
    %v1062 = vpop.xlane.xlu0 %1061
    %v1063 = vsel %vm993, %v1041, 0.0
    %1064 = vadd.xlane.f32.xlu0 %v1063
    %v1065 = vpop.xlane.xlu0 %1064
    %v1066 = vrcp.pop %v1044
    %v1067 = vmul.f32 %v1044, %v1066
    %v1068 = vsub.f32 1.0, %v1067
    %v1069 = vmul.f32 %v1066, %v1068
    %v1070 = vadd.f32 %v1066, %v1069
    %vm1071 = vweird.f32 %v1044
    %vm1072 = vweird.f32 %v1066
    %vm1073 = vmor %vm1071, %vm1072
    %v1074 = vsel %vm1073, %v1066, %v1070
    %v1075 = vand.u32 2147483647, %v1044
    %vm1076 = vcmp.eq.f32.partialorder %v1075, 8.507059e+37
    %v1077 = vand.u32 %v1044, 2147483648
    %v1078 = vor.u32 1.1754944e-38, %v1077
    %v1079 = vsel %vm1076, %v1078, %v1074
    %v1080 = vmul.f32 %v1027, %v1079
    %v1081 = vrcp.pop %v1047
    %v1082 = vmul.f32 %v1047, %v1081
    %v1083 = vsub.f32 1.0, %v1082
    %v1084 = vmul.f32 %v1081, %v1083
    %v1085 = vadd.f32 %v1081, %v1084
    %vm1086 = vweird.f32 %v1047
    %vm1087 = vweird.f32 %v1081
    %vm1088 = vmor %vm1086, %vm1087
    %v1089 = vsel %vm1088, %v1081, %v1085
    %v1090 = vand.u32 2147483647, %v1047
    %vm1091 = vcmp.eq.f32.partialorder %v1090, 8.507059e+37
    %v1092 = vand.u32 %v1047, 2147483648
    %v1093 = vor.u32 1.1754944e-38, %v1092
    %v1094 = vsel %vm1091, %v1093, %v1089
    %v1095 = vmul.f32 %v1029, %v1094
    %v1096 = vrcp.pop %v1050
    %v1097 = vmul.f32 %v1050, %v1096
    %v1098 = vsub.f32 1.0, %v1097
    %v1099 = vmul.f32 %v1096, %v1098
    %v1100 = vadd.f32 %v1096, %v1099
    %vm1101 = vweird.f32 %v1050
    %vm1102 = vweird.f32 %v1096
    %vm1103 = vmor %vm1101, %vm1102
    %v1104 = vsel %vm1103, %v1096, %v1100
    %v1105 = vand.u32 2147483647, %v1050
    %vm1106 = vcmp.eq.f32.partialorder %v1105, 8.507059e+37
    %v1107 = vand.u32 %v1050, 2147483648
    %v1108 = vor.u32 1.1754944e-38, %v1107
    %v1109 = vsel %vm1106, %v1108, %v1104
    %v1110 = vmul.f32 %v1031, %v1109
    %v1111 = vrcp.pop %v1053
    %v1112 = vmul.f32 %v1053, %v1111
    %v1113 = vsub.f32 1.0, %v1112
    %v1114 = vmul.f32 %v1111, %v1113
    %v1115 = vadd.f32 %v1111, %v1114
    %vm1116 = vweird.f32 %v1053
    %vm1117 = vweird.f32 %v1111
    %vm1118 = vmor %vm1116, %vm1117
    %v1119 = vsel %vm1118, %v1111, %v1115
    %v1120 = vand.u32 2147483647, %v1053
    %vm1121 = vcmp.eq.f32.partialorder %v1120, 8.507059e+37
    %v1122 = vand.u32 %v1053, 2147483648
    %v1123 = vor.u32 1.1754944e-38, %v1122
    %v1124 = vsel %vm1121, %v1123, %v1119
    %v1125 = vmul.f32 %v1033, %v1124
    %v1126 = vrcp.pop %v1056
    %v1127 = vmul.f32 %v1056, %v1126
    %v1128 = vsub.f32 1.0, %v1127
    %v1129 = vmul.f32 %v1126, %v1128
    %v1130 = vadd.f32 %v1126, %v1129
    %vm1131 = vweird.f32 %v1056
    %vm1132 = vweird.f32 %v1126
    %vm1133 = vmor %vm1131, %vm1132
    %v1134 = vsel %vm1133, %v1126, %v1130
    %v1135 = vand.u32 2147483647, %v1056
    %vm1136 = vcmp.eq.f32.partialorder %v1135, 8.507059e+37
    %v1137 = vand.u32 %v1056, 2147483648
    %v1138 = vor.u32 1.1754944e-38, %v1137
    %v1139 = vsel %vm1136, %v1138, %v1134
    %v1140 = vmul.f32 %v1035, %v1139
    %v1141 = vrcp.pop %v1059
    %v1142 = vmul.f32 %v1059, %v1141
    %v1143 = vsub.f32 1.0, %v1142
    %v1144 = vmul.f32 %v1141, %v1143
    %v1145 = vadd.f32 %v1141, %v1144
    %vm1146 = vweird.f32 %v1059
    %vm1147 = vweird.f32 %v1141
    %vm1148 = vmor %vm1146, %vm1147
    %v1149 = vsel %vm1148, %v1141, %v1145
    %v1150 = vand.u32 2147483647, %v1059
    %vm1151 = vcmp.eq.f32.partialorder %v1150, 8.507059e+37
    %v1152 = vand.u32 %v1059, 2147483648
    %v1153 = vor.u32 1.1754944e-38, %v1152
    %v1154 = vsel %vm1151, %v1153, %v1149
    %v1155 = vmul.f32 %v1037, %v1154
    %v1156 = vrcp.pop %v1062
    %v1157 = vmul.f32 %v1062, %v1156
    %v1158 = vsub.f32 1.0, %v1157
    %v1159 = vmul.f32 %v1156, %v1158
    %v1160 = vadd.f32 %v1156, %v1159
    %vm1161 = vweird.f32 %v1062
    %vm1162 = vweird.f32 %v1156
    %vm1163 = vmor %vm1161, %vm1162
    %v1164 = vsel %vm1163, %v1156, %v1160
    %v1165 = vand.u32 2147483647, %v1062
    %vm1166 = vcmp.eq.f32.partialorder %v1165, 8.507059e+37
    %v1167 = vand.u32 %v1062, 2147483648
    %v1168 = vor.u32 1.1754944e-38, %v1167
    %v1169 = vsel %vm1166, %v1168, %v1164
    %v1170 = vmul.f32 %v1039, %v1169
    %v1171 = vrcp.pop %v1065
    %v1172 = vmul.f32 %v1065, %v1171
    %v1173 = vsub.f32 1.0, %v1172
    %v1174 = vmul.f32 %v1171, %v1173
    %v1175 = vadd.f32 %v1171, %v1174
    %vm1176 = vweird.f32 %v1065
    %vm1177 = vweird.f32 %v1171
    %vm1178 = vmor %vm1176, %vm1177
    %v1179 = vsel %vm1178, %v1171, %v1175
    %v1180 = vand.u32 2147483647, %v1065
    %vm1181 = vcmp.eq.f32.partialorder %v1180, 8.507059e+37
    %v1182 = vand.u32 %v1065, 2147483648
    %v1183 = vor.u32 1.1754944e-38, %v1182
    %v1184 = vsel %vm1181, %v1183, %v1179
    %v1185 = vmul.f32 %v1041, %v1184
    %v1187 = vsel %vm993, %v1080, 0
    %v1190 = vsel %vm993, %v1095, 0
    %v1193 = vsel %vm993, %v1110, 0
    %v1196 = vsel %vm993, %v1125, 0
    %v1199 = vsel %vm993, %v1140, 0
    %v1202 = vsel %vm993, %v1155, 0
    %v1205 = vsel %vm993, %v1170, 0
    %v1208 = vsel %vm993, %v1185, 0
    %1210 = vmatpush.msra.mxu0 0.0
    %1211 = vmatpush.msra.mxu0 0.0
    %1212 = vmatpush.msra.mxu0 0.0
    %1213 = vmatpush.msra.mxu0 0.0
    %1214 = vmatpush.msra.mxu0 0.0
    %1215 = vmatpush.msra.mxu0 0.0
    %1216 = vmatpush.msra.mxu0 0.0
    %1217 = vmatpush.msra.mxu0 0.0
    %1218 = vmatpush.msra.mxu0 0.0
    %1219 = vmatpush.msra.mxu0 0.0
    %1220 = vmatpush.msra.mxu0 0.0
    %1221 = vmatpush.msra.mxu0 0.0
    %1222 = vmatpush.msra.mxu0 0.0
    %1223 = vmatpush.msra.mxu0 0.0
    %1224 = vmatpush.msra.mxu0 %v898
    %1225 = vmatpush.msra.mxu0 %v895
    %1226 = vmatmul.f32.gmra.mxu0 %v1187
    %v1227 = vpop.f32.mrf.mxu0
    %v1228 = vadd.f32 0.0, %v1227
    %1229 = vmatmul.f32.gmra.mxu0 %v1190
    %v1230 = vpop.f32.mrf.mxu0
    %v1231 = vadd.f32 0.0, %v1230
    %1232 = vmatmul.f32.gmra.mxu0 %v1193
    %v1233 = vpop.f32.mrf.mxu0
    %v1234 = vadd.f32 0.0, %v1233
    %1235 = vmatmul.f32.gmra.mxu0 %v1196
    %v1236 = vpop.f32.mrf.mxu0
    %v1237 = vadd.f32 0.0, %v1236
    %1238 = vmatmul.f32.gmra.mxu0 %v1199
    %v1239 = vpop.f32.mrf.mxu0
    %v1240 = vadd.f32 0.0, %v1239
    %1241 = vmatmul.f32.gmra.mxu0 %v1202
    %v1242 = vpop.f32.mrf.mxu0
    %v1243 = vadd.f32 0.0, %v1242
    %1244 = vmatmul.f32.gmra.mxu0 %v1205
    %v1245 = vpop.f32.mrf.mxu0
    %v1246 = vadd.f32 0.0, %v1245
    %1247 = vmatmul.f32.gmra.mxu0 %v1208
    %v1248 = vpop.f32.mrf.mxu0
    %v1249 = vadd.f32 0.0, %v1248
    %1250 = vdwg.mxu0
    %v1251 = vmul.f32 %v1228, %v683
    %v1252 = vmul.f32 %v1231, %v684
    %v1253 = vmul.f32 %v1234, %v685
    %v1254 = vmul.f32 %v1237, %v686
    %v1255 = vmul.f32 %v1240, %v687
    %v1256 = vmul.f32 %v1243, %v688
    %v1257 = vmul.f32 %v1246, %v689
    %v1258 = vmul.f32 %v1249, %v690
    %v1259 = vadd.f32 %v1251, %v1253
    %v1260 = vadd.f32 %v1252, %v1254
    %v1261 = vadd.f32 %v1259, %v1255
    %v1262 = vadd.f32 %v1260, %v1256
    %v1263 = vadd.f32 %v1261, %v1257
    %v1264 = vadd.f32 %v1262, %v1258
    %v1265 = vmul.f32 %v835, %v683
    %v1266 = vmul.f32 %v838, %v684
    %v1267 = vmul.f32 %v835, %v685
    %v1268 = vmul.f32 %v838, %v686
    %v1269 = vmul.f32 %v835, %v687
    %v1270 = vmul.f32 %v838, %v688
    %v1271 = vmul.f32 %v835, %v689
    %v1272 = vmul.f32 %v838, %v690
    %v1274 = vsel %vm573, %v1265, 0
    %v1277 = vsel %vm573, %v1266, 0
    %v1280 = vsel %vm573, %v1267, 0
    %v1283 = vsel %vm573, %v1268, 0
    %v1286 = vsel %vm573, %v1269, 0
    %v1289 = vsel %vm573, %v1270, 0
    %v1292 = vsel %vm573, %v1271, 0
    %v1295 = vsel %vm573, %v1272, 0
    %v1298 = vsel %vm573, %v868, 0
    %v1301 = vsel %vm573, %v871, 0
    %1303 = vmatpush.xpose.msra.mxu0 0.0
    %1304 = vmatpush.xpose.msra.mxu0 0.0
    %1305 = vmatpush.xpose.msra.mxu0 0.0
    %1306 = vmatpush.xpose.msra.mxu0 0.0
    %1307 = vmatpush.xpose.msra.mxu0 0.0
    %1308 = vmatpush.xpose.msra.mxu0 0.0
    %1309 = vmatpush.xpose.msra.mxu0 0.0
    %1310 = vmatpush.xpose.msra.mxu0 0.0
    %1311 = vmatpush.xpose.msra.mxu0 0.0
    %1312 = vmatpush.xpose.msra.mxu0 0.0
    %1313 = vmatpush.xpose.msra.mxu0 0.0
    %1314 = vmatpush.xpose.msra.mxu0 0.0
    %1315 = vmatpush.xpose.msra.mxu0 0.0
    %1316 = vmatpush.xpose.msra.mxu0 0.0
    %1317 = vmatpush.xpose.msra.mxu0 %v1301
    %1318 = vmatpush.xpose.msra.mxu0 %v1298
    %1319 = vmatmul.f32.gmra.mxu0 %v1274
    %v1320 = vpop.f32.mrf.mxu0
    %v1321 = vadd.f32 0.0, %v1320
    %1322 = vmatmul.f32.gmra.mxu0 %v1277
    %v1323 = vpop.f32.mrf.mxu0
    %v1324 = vadd.f32 0.0, %v1323
    %1325 = vmatmul.f32.gmra.mxu0 %v1280
    %v1326 = vpop.f32.mrf.mxu0
    %v1327 = vadd.f32 0.0, %v1326
    %1328 = vmatmul.f32.gmra.mxu0 %v1283
    %v1329 = vpop.f32.mrf.mxu0
    %v1330 = vadd.f32 0.0, %v1329
    %1331 = vmatmul.f32.gmra.mxu0 %v1286
    %v1332 = vpop.f32.mrf.mxu0
    %v1333 = vadd.f32 0.0, %v1332
    %1334 = vmatmul.f32.gmra.mxu0 %v1289
    %v1335 = vpop.f32.mrf.mxu0
    %v1336 = vadd.f32 0.0, %v1335
    %1337 = vmatmul.f32.gmra.mxu0 %v1292
    %v1338 = vpop.f32.mrf.mxu0
    %v1339 = vadd.f32 0.0, %v1338
    %1340 = vmatmul.f32.gmra.mxu0 %v1295
    %v1341 = vpop.f32.mrf.mxu0
    %v1342 = vadd.f32 0.0, %v1341
    %1343 = vdwg.mxu0
    %v1344 = vmul.f32 %v1321, 0.35355338
    %v1345 = vmul.f32 %v1324, 0.35355338
    %v1346 = vmul.f32 %v1327, 0.35355338
    %v1347 = vmul.f32 %v1330, 0.35355338
    %v1348 = vmul.f32 %v1333, 0.35355338
    %v1349 = vmul.f32 %v1336, 0.35355338
    %v1350 = vmul.f32 %v1339, 0.35355338
    %v1351 = vmul.f32 %v1342, 0.35355338
    %v1352 = vsel %vm993, %v1344, -inf
    %1353 = vmax.xlane.f32.xlu0 %v1352
    %v1354 = vpop.xlane.xlu0 %1353
    %v1355 = vsel %vm993, %v1345, -inf
    %1356 = vmax.xlane.f32.xlu0 %v1355
    %v1357 = vpop.xlane.xlu0 %1356
    %v1358 = vsel %vm993, %v1346, -inf
    %1359 = vmax.xlane.f32.xlu0 %v1358
    %v1360 = vpop.xlane.xlu0 %1359
    %v1361 = vsel %vm993, %v1347, -inf
    %1362 = vmax.xlane.f32.xlu0 %v1361
    %v1363 = vpop.xlane.xlu0 %1362
    %v1364 = vsel %vm993, %v1348, -inf
    %1365 = vmax.xlane.f32.xlu0 %v1364
    %v1366 = vpop.xlane.xlu0 %1365
    %v1367 = vsel %vm993, %v1349, -inf
    %1368 = vmax.xlane.f32.xlu0 %v1367
    %v1369 = vpop.xlane.xlu0 %1368
    %v1370 = vsel %vm993, %v1350, -inf
    %1371 = vmax.xlane.f32.xlu0 %v1370
    %v1372 = vpop.xlane.xlu0 %1371
    %v1373 = vsel %vm993, %v1351, -inf
    %1374 = vmax.xlane.f32.xlu0 %v1373
    %v1375 = vpop.xlane.xlu0 %1374
    %v1376 = vsub.f32 %v1344, %v1354
    %v1377 = vsub.f32 %v1345, %v1357
    %v1378 = vsub.f32 %v1346, %v1360
    %v1379 = vsub.f32 %v1347, %v1363
    %v1380 = vsub.f32 %v1348, %v1366
    %v1381 = vsub.f32 %v1349, %v1369
    %v1382 = vsub.f32 %v1350, %v1372
    %v1383 = vsub.f32 %v1351, %v1375
    %v1384 = vmul.f32 %v1376, 1.442695
    %v1385 = vpow.pop %v1384
    %v1386 = vmul.f32 %v1377, 1.442695
    %v1387 = vpow.pop %v1386
    %v1388 = vmul.f32 %v1378, 1.442695
    %v1389 = vpow.pop %v1388
    %v1390 = vmul.f32 %v1379, 1.442695
    %v1391 = vpow.pop %v1390
    %v1392 = vmul.f32 %v1380, 1.442695
    %v1393 = vpow.pop %v1392
    %v1394 = vmul.f32 %v1381, 1.442695
    %v1395 = vpow.pop %v1394
    %v1396 = vmul.f32 %v1382, 1.442695
    %v1397 = vpow.pop %v1396
    %v1398 = vmul.f32 %v1383, 1.442695
    %v1399 = vpow.pop %v1398
    %v1400 = vsel %vm993, %v1385, 0.0
    %1401 = vadd.xlane.f32.xlu0 %v1400
    %v1402 = vpop.xlane.xlu0 %1401
    %v1403 = vsel %vm993, %v1387, 0.0
    %1404 = vadd.xlane.f32.xlu0 %v1403
    %v1405 = vpop.xlane.xlu0 %1404
    %v1406 = vsel %vm993, %v1389, 0.0
    %1407 = vadd.xlane.f32.xlu0 %v1406
    %v1408 = vpop.xlane.xlu0 %1407
    %v1409 = vsel %vm993, %v1391, 0.0
    %1410 = vadd.xlane.f32.xlu0 %v1409
    %v1411 = vpop.xlane.xlu0 %1410
    %v1412 = vsel %vm993, %v1393, 0.0
    %1413 = vadd.xlane.f32.xlu0 %v1412
    %v1414 = vpop.xlane.xlu0 %1413
    %v1415 = vsel %vm993, %v1395, 0.0
    %1416 = vadd.xlane.f32.xlu0 %v1415
    %v1417 = vpop.xlane.xlu0 %1416
    %v1418 = vsel %vm993, %v1397, 0.0
    %1419 = vadd.xlane.f32.xlu0 %v1418
    %v1420 = vpop.xlane.xlu0 %1419
    %v1421 = vsel %vm993, %v1399, 0.0
    %1422 = vadd.xlane.f32.xlu0 %v1421
    %v1423 = vpop.xlane.xlu0 %1422
    %v1424 = vrcp.pop %v1402
    %v1425 = vmul.f32 %v1402, %v1424
    %v1426 = vsub.f32 1.0, %v1425
    %v1427 = vmul.f32 %v1424, %v1426
    %v1428 = vadd.f32 %v1424, %v1427
    %vm1429 = vweird.f32 %v1402
    %vm1430 = vweird.f32 %v1424
    %vm1431 = vmor %vm1429, %vm1430
    %v1432 = vsel %vm1431, %v1424, %v1428
    %v1433 = vand.u32 2147483647, %v1402
    %vm1434 = vcmp.eq.f32.partialorder %v1433, 8.507059e+37
    %v1435 = vand.u32 %v1402, 2147483648
    %v1436 = vor.u32 1.1754944e-38, %v1435
    %v1437 = vsel %vm1434, %v1436, %v1432
    %v1438 = vmul.f32 %v1385, %v1437
    %v1439 = vrcp.pop %v1405
    %v1440 = vmul.f32 %v1405, %v1439
    %v1441 = vsub.f32 1.0, %v1440
    %v1442 = vmul.f32 %v1439, %v1441
    %v1443 = vadd.f32 %v1439, %v1442
    %vm1444 = vweird.f32 %v1405
    %vm1445 = vweird.f32 %v1439
    %vm1446 = vmor %vm1444, %vm1445
    %v1447 = vsel %vm1446, %v1439, %v1443
    %v1448 = vand.u32 2147483647, %v1405
    %vm1449 = vcmp.eq.f32.partialorder %v1448, 8.507059e+37
    %v1450 = vand.u32 %v1405, 2147483648
    %v1451 = vor.u32 1.1754944e-38, %v1450
    %v1452 = vsel %vm1449, %v1451, %v1447
    %v1453 = vmul.f32 %v1387, %v1452
    %v1454 = vrcp.pop %v1408
    %v1455 = vmul.f32 %v1408, %v1454
    %v1456 = vsub.f32 1.0, %v1455
    %v1457 = vmul.f32 %v1454, %v1456
    %v1458 = vadd.f32 %v1454, %v1457
    %vm1459 = vweird.f32 %v1408
    %vm1460 = vweird.f32 %v1454
    %vm1461 = vmor %vm1459, %vm1460
    %v1462 = vsel %vm1461, %v1454, %v1458
    %v1463 = vand.u32 2147483647, %v1408
    %vm1464 = vcmp.eq.f32.partialorder %v1463, 8.507059e+37
    %v1465 = vand.u32 %v1408, 2147483648
    %v1466 = vor.u32 1.1754944e-38, %v1465
    %v1467 = vsel %vm1464, %v1466, %v1462
    %v1468 = vmul.f32 %v1389, %v1467
    %v1469 = vrcp.pop %v1411
    %v1470 = vmul.f32 %v1411, %v1469
    %v1471 = vsub.f32 1.0, %v1470
    %v1472 = vmul.f32 %v1469, %v1471
    %v1473 = vadd.f32 %v1469, %v1472
    %vm1474 = vweird.f32 %v1411
    %vm1475 = vweird.f32 %v1469
    %vm1476 = vmor %vm1474, %vm1475
    %v1477 = vsel %vm1476, %v1469, %v1473
    %v1478 = vand.u32 2147483647, %v1411
    %vm1479 = vcmp.eq.f32.partialorder %v1478, 8.507059e+37
    %v1480 = vand.u32 %v1411, 2147483648
    %v1481 = vor.u32 1.1754944e-38, %v1480
    %v1482 = vsel %vm1479, %v1481, %v1477
    %v1483 = vmul.f32 %v1391, %v1482
    %v1484 = vrcp.pop %v1414
    %v1485 = vmul.f32 %v1414, %v1484
    %v1486 = vsub.f32 1.0, %v1485
    %v1487 = vmul.f32 %v1484, %v1486
    %v1488 = vadd.f32 %v1484, %v1487
    %vm1489 = vweird.f32 %v1414
    %vm1490 = vweird.f32 %v1484
    %vm1491 = vmor %vm1489, %vm1490
    %v1492 = vsel %vm1491, %v1484, %v1488
    %v1493 = vand.u32 2147483647, %v1414
    %vm1494 = vcmp.eq.f32.partialorder %v1493, 8.507059e+37
    %v1495 = vand.u32 %v1414, 2147483648
    %v1496 = vor.u32 1.1754944e-38, %v1495
    %v1497 = vsel %vm1494, %v1496, %v1492
    %v1498 = vmul.f32 %v1393, %v1497
    %v1499 = vrcp.pop %v1417
    %v1500 = vmul.f32 %v1417, %v1499
    %v1501 = vsub.f32 1.0, %v1500
    %v1502 = vmul.f32 %v1499, %v1501
    %v1503 = vadd.f32 %v1499, %v1502
    %vm1504 = vweird.f32 %v1417
    %vm1505 = vweird.f32 %v1499
    %vm1506 = vmor %vm1504, %vm1505
    %v1507 = vsel %vm1506, %v1499, %v1503
    %v1508 = vand.u32 2147483647, %v1417
    %vm1509 = vcmp.eq.f32.partialorder %v1508, 8.507059e+37
    %v1510 = vand.u32 %v1417, 2147483648
    %v1511 = vor.u32 1.1754944e-38, %v1510
    %v1512 = vsel %vm1509, %v1511, %v1507
    %v1513 = vmul.f32 %v1395, %v1512
    %v1514 = vrcp.pop %v1420
    %v1515 = vmul.f32 %v1420, %v1514
    %v1516 = vsub.f32 1.0, %v1515
    %v1517 = vmul.f32 %v1514, %v1516
    %v1518 = vadd.f32 %v1514, %v1517
    %vm1519 = vweird.f32 %v1420
    %vm1520 = vweird.f32 %v1514
    %vm1521 = vmor %vm1519, %vm1520
    %v1522 = vsel %vm1521, %v1514, %v1518
    %v1523 = vand.u32 2147483647, %v1420
    %vm1524 = vcmp.eq.f32.partialorder %v1523, 8.507059e+37
    %v1525 = vand.u32 %v1420, 2147483648
    %v1526 = vor.u32 1.1754944e-38, %v1525
    %v1527 = vsel %vm1524, %v1526, %v1522
    %v1528 = vmul.f32 %v1397, %v1527
    %v1529 = vrcp.pop %v1423
    %v1530 = vmul.f32 %v1423, %v1529
    %v1531 = vsub.f32 1.0, %v1530
    %v1532 = vmul.f32 %v1529, %v1531
    %v1533 = vadd.f32 %v1529, %v1532
    %vm1534 = vweird.f32 %v1423
    %vm1535 = vweird.f32 %v1529
    %vm1536 = vmor %vm1534, %vm1535
    %v1537 = vsel %vm1536, %v1529, %v1533
    %v1538 = vand.u32 2147483647, %v1423
    %vm1539 = vcmp.eq.f32.partialorder %v1538, 8.507059e+37
    %v1540 = vand.u32 %v1423, 2147483648
    %v1541 = vor.u32 1.1754944e-38, %v1540
    %v1542 = vsel %vm1539, %v1541, %v1537
    %v1543 = vmul.f32 %v1399, %v1542
    %v1545 = vsel %vm993, %v1438, 0
    %v1548 = vsel %vm993, %v1453, 0
    %v1551 = vsel %vm993, %v1468, 0
    %v1554 = vsel %vm993, %v1483, 0
    %v1557 = vsel %vm993, %v1498, 0
    %v1560 = vsel %vm993, %v1513, 0
    %v1563 = vsel %vm993, %v1528, 0
    %v1566 = vsel %vm993, %v1543, 0
    %1568 = vmatpush.msra.mxu0 0.0
    %1569 = vmatpush.msra.mxu0 0.0
    %1570 = vmatpush.msra.mxu0 0.0
    %1571 = vmatpush.msra.mxu0 0.0
    %1572 = vmatpush.msra.mxu0 0.0
    %1573 = vmatpush.msra.mxu0 0.0
    %1574 = vmatpush.msra.mxu0 0.0
    %1575 = vmatpush.msra.mxu0 0.0
    %1576 = vmatpush.msra.mxu0 0.0
    %1577 = vmatpush.msra.mxu0 0.0
    %1578 = vmatpush.msra.mxu0 0.0
    %1579 = vmatpush.msra.mxu0 0.0
    %1580 = vmatpush.msra.mxu0 0.0
    %1581 = vmatpush.msra.mxu0 0.0
    %1582 = vmatpush.msra.mxu0 %v904
    %1583 = vmatpush.msra.mxu0 %v901
    %1584 = vmatmul.f32.gmra.mxu0 %v1545
    %v1585 = vpop.f32.mrf.mxu0
    %v1586 = vadd.f32 0.0, %v1585
    %1587 = vmatmul.f32.gmra.mxu0 %v1548
    %v1588 = vpop.f32.mrf.mxu0
    %v1589 = vadd.f32 0.0, %v1588
    %1590 = vmatmul.f32.gmra.mxu0 %v1551
    %v1591 = vpop.f32.mrf.mxu0
    %v1592 = vadd.f32 0.0, %v1591
    %1593 = vmatmul.f32.gmra.mxu0 %v1554
    %v1594 = vpop.f32.mrf.mxu0
    %v1595 = vadd.f32 0.0, %v1594
    %1596 = vmatmul.f32.gmra.mxu0 %v1557
    %v1597 = vpop.f32.mrf.mxu0
    %v1598 = vadd.f32 0.0, %v1597
    %1599 = vmatmul.f32.gmra.mxu0 %v1560
    %v1600 = vpop.f32.mrf.mxu0
    %v1601 = vadd.f32 0.0, %v1600
    %1602 = vmatmul.f32.gmra.mxu0 %v1563
    %v1603 = vpop.f32.mrf.mxu0
    %v1604 = vadd.f32 0.0, %v1603
    %1605 = vmatmul.f32.gmra.mxu0 %v1566
    %v1606 = vpop.f32.mrf.mxu0
    %v1607 = vadd.f32 0.0, %v1606
    %1608 = vdwg.mxu0
    %v1609 = vmul.f32 %v1586, %v683
    %v1610 = vmul.f32 %v1589, %v684
    %v1611 = vmul.f32 %v1592, %v685
    %v1612 = vmul.f32 %v1595, %v686
    %v1613 = vmul.f32 %v1598, %v687
    %v1614 = vmul.f32 %v1601, %v688
    %v1615 = vmul.f32 %v1604, %v689
    %v1616 = vmul.f32 %v1607, %v690
    %v1617 = vadd.f32 %v1609, %v1611
    %v1618 = vadd.f32 %v1610, %v1612
    %v1619 = vadd.f32 %v1617, %v1613
    %v1620 = vadd.f32 %v1618, %v1614
    %v1621 = vadd.f32 %v1619, %v1615
    %v1622 = vadd.f32 %v1620, %v1616
    %v1623 = vld [vmem:[#allocation17] sm:$0xff]
    %v1624 = vld [vmem:[#allocation17 + $0x8] sm:$0xff]
    %v1625 = vld [vmem:[#allocation17 + $0x10] sm:$0xff]
    %v1626 = vld [vmem:[#allocation17 + $0x18] sm:$0xff]
    %v1628 = vsel %vm573, %v1263, 0
    %v1631 = vsel %vm573, %v1264, 0
    %v1634 = vsel %vm573, %v1621, 0
    %v1637 = vsel %vm573, %v1622, 0
    %1639 = vmatpush.msra.mxu0 0.0
    %1640 = vmatpush.msra.mxu0 0.0
    %1641 = vmatpush.msra.mxu0 0.0
    %1642 = vmatpush.msra.mxu0 0.0
    %1643 = vmatpush.msra.mxu0 0.0
    %1644 = vmatpush.msra.mxu0 0.0
    %1645 = vmatpush.msra.mxu0 0.0
    %1646 = vmatpush.msra.mxu0 0.0
    %1647 = vmatpush.msra.mxu0 0.0
    %1648 = vmatpush.msra.mxu0 0.0
    %1649 = vmatpush.msra.mxu0 0.0
    %1650 = vmatpush.msra.mxu0 0.0
    %1651 = vmatpush.msra.mxu0 %v1626
    %1652 = vmatpush.msra.mxu0 %v1625
    %1653 = vmatpush.msra.mxu0 %v1624
    %1654 = vmatpush.msra.mxu0 %v1623
    %1655 = vmatmul.f32.gmra.mxu0 %v1628
    %v1656 = vpop.f32.mrf.mxu0
    %v1657 = vadd.f32 0.0, %v1656
    %1658 = vmatmul.f32.gmra.mxu0 %v1631
    %v1659 = vpop.f32.mrf.mxu0
    %v1660 = vadd.f32 0.0, %v1659
    %1661 = vmatmul.f32.gmra.mxu0 %v1634
    %v1662 = vpop.f32.mrf.mxu0
    %v1663 = vadd.f32 0.0, %v1662
    %1664 = vmatmul.f32.gmra.mxu0 %v1637
    %v1665 = vpop.f32.mrf.mxu0
    %v1666 = vadd.f32 0.0, %v1665
    %1667 = vdwg.mxu0
    %v1668 = vadd.f32 %v679, %v1657
    %v1669 = vadd.f32 %v680, %v1660
    %v1670 = vadd.f32 %v681, %v1663
    %v1671 = vadd.f32 %v682, %v1666
    %v1672 = vld [vmem:[%s33] sm:$0x1]
    %v1674 = vperm.slane %v1672, 0
    %v1676 = vadd.f32 %v1668, %v1674
    %v1677 = vadd.f32 %v1669, %v1674
    %v1678 = vadd.f32 %v1670, %v1674
    %v1679 = vadd.f32 %v1671, %v1674
    %v1680 = vld [vmem:[#allocation19] sm:$0x1]
    %v1681 = vld [vmem:[%s37] sm:$0x1]
    %v1682 = vsel %vm573, %v1676, 0.0
    %1683 = vadd.xlane.f32.xlu0 %v1682
    %v1684 = vpop.xlane.xlu0 %1683
    %v1685 = vsel %vm573, %v1677, 0.0
    %1686 = vadd.xlane.f32.xlu0 %v1685
    %v1687 = vpop.xlane.xlu0 %1686
    %v1688 = vsel %vm573, %v1678, 0.0
    %1689 = vadd.xlane.f32.xlu0 %v1688
    %v1690 = vpop.xlane.xlu0 %1689
    %v1691 = vsel %vm573, %v1679, 0.0
    %1692 = vadd.xlane.f32.xlu0 %v1691
    %v1693 = vpop.xlane.xlu0 %1692
    %v1694 = vmul.f32 %v1684, %v592
    %v1695 = vmul.f32 %v1687, %v592
    %v1696 = vmul.f32 %v1690, %v592
    %v1697 = vmul.f32 %v1693, %v592
    %v1698 = vsub.f32 %v1676, %v1694
    %v1699 = vsub.f32 %v1677, %v1695
    %v1700 = vsub.f32 %v1678, %v1696
    %v1701 = vsub.f32 %v1679, %v1697
    %v1702 = vmul.f32 %v1698, %v1698
    %v1703 = vmul.f32 %v1699, %v1699
    %v1704 = vmul.f32 %v1700, %v1700
    %v1705 = vmul.f32 %v1701, %v1701
    %v1706 = vsel %vm573, %v1702, 0.0
    %1707 = vadd.xlane.f32.xlu0 %v1706
    %v1708 = vpop.xlane.xlu0 %1707
    %v1709 = vsel %vm573, %v1703, 0.0
    %1710 = vadd.xlane.f32.xlu0 %v1709
    %v1711 = vpop.xlane.xlu0 %1710
    %v1712 = vsel %vm573, %v1704, 0.0
    %1713 = vadd.xlane.f32.xlu0 %v1712
    %v1714 = vpop.xlane.xlu0 %1713
    %v1715 = vsel %vm573, %v1705, 0.0
    %1716 = vadd.xlane.f32.xlu0 %v1715
    %v1717 = vpop.xlane.xlu0 %1716
    %v1718 = vmul.f32 %v1708, %v592
    %v1719 = vmul.f32 %v1711, %v592
    %v1720 = vmul.f32 %v1714, %v592
    %v1721 = vmul.f32 %v1717, %v592
    %v1722 = vadd.f32 %v1718, 1e-05
    %v1723 = vadd.f32 %v1719, 1e-05
    %v1724 = vadd.f32 %v1720, 1e-05
    %v1725 = vadd.f32 %v1721, 1e-05
    %v1726 = vrsqrt.pop %v1722
    %v1727 = vmul.f32 %v1726, %v1722
    %v1728 = vmul.f32 %v1727, %v1726
    %v1729 = vmul.f32 0.5, %v1728
    %v1730 = vsub.f32 1.5, %v1729
    %v1731 = vmul.f32 %v1726, %v1730
    %vm1732 = vweird.f32 %v1722
    %vm1733 = vweird.f32 %v1726
    %vm1734 = vmor %vm1732, %vm1733
    %v1735 = vsel %vm1734, %v1726, %v1731
    %v1736 = vrsqrt.pop %v1723
    %v1737 = vmul.f32 %v1736, %v1723
    %v1738 = vmul.f32 %v1737, %v1736
    %v1739 = vmul.f32 0.5, %v1738
    %v1740 = vsub.f32 1.5, %v1739
    %v1741 = vmul.f32 %v1736, %v1740
    %vm1742 = vweird.f32 %v1723
    %vm1743 = vweird.f32 %v1736
    %vm1744 = vmor %vm1742, %vm1743
    %v1745 = vsel %vm1744, %v1736, %v1741
    %v1746 = vrsqrt.pop %v1724
    %v1747 = vmul.f32 %v1746, %v1724
    %v1748 = vmul.f32 %v1747, %v1746
    %v1749 = vmul.f32 0.5, %v1748
    %v1750 = vsub.f32 1.5, %v1749
    %v1751 = vmul.f32 %v1746, %v1750
    %vm1752 = vweird.f32 %v1724
    %vm1753 = vweird.f32 %v1746
    %vm1754 = vmor %vm1752, %vm1753
    %v1755 = vsel %vm1754, %v1746, %v1751
    %v1756 = vrsqrt.pop %v1725
    %v1757 = vmul.f32 %v1756, %v1725
    %v1758 = vmul.f32 %v1757, %v1756
    %v1759 = vmul.f32 0.5, %v1758
    %v1760 = vsub.f32 1.5, %v1759
    %v1761 = vmul.f32 %v1756, %v1760
    %vm1762 = vweird.f32 %v1725
    %vm1763 = vweird.f32 %v1756
    %vm1764 = vmor %vm1762, %vm1763
    %v1765 = vsel %vm1764, %v1756, %v1761
    %v1766 = vmul.f32 %v1698, %v1735
    %v1767 = vmul.f32 %v1699, %v1745
    %v1768 = vmul.f32 %v1700, %v1755
    %v1769 = vmul.f32 %v1701, %v1765
    %v1771 = vperm.slane %v1680, 0
    %v1773 = vmul.f32 %v1766, %v1771
    %v1774 = vmul.f32 %v1767, %v1771
    %v1775 = vmul.f32 %v1768, %v1771
    %v1776 = vmul.f32 %v1769, %v1771
    %v1778 = vperm.slane %v1681, 0
    %v1780 = vadd.f32 %v1773, %v1778
    %v1781 = vadd.f32 %v1774, %v1778
    %v1782 = vadd.f32 %v1775, %v1778
    %v1783 = vadd.f32 %v1776, %v1778
    %v1784 = vld [vmem:[#allocation20] sm:$0xff]
    %v1785 = vld [vmem:[#allocation20 + $0x8] sm:$0xff]
    %v1786 = vld [vmem:[#allocation20 + $0x10] sm:$0xff]
    %v1787 = vld [vmem:[#allocation20 + $0x18] sm:$0xff]
    %v1788 = vld [vmem:[%s41] sm:$0x1]
    %v1790 = vperm.slane %v1788, 0
    %v1793 = vsel %vm573, %v1780, 0
    %v1796 = vsel %vm573, %v1781, 0
    %v1799 = vsel %vm573, %v1782, 0
    %v1802 = vsel %vm573, %v1783, 0
    %1804 = vmatpush.msra.mxu0 0.0
    %1805 = vmatpush.msra.mxu0 0.0
    %1806 = vmatpush.msra.mxu0 0.0
    %1807 = vmatpush.msra.mxu0 0.0
    %1808 = vmatpush.msra.mxu0 0.0
    %1809 = vmatpush.msra.mxu0 0.0
    %1810 = vmatpush.msra.mxu0 0.0
    %1811 = vmatpush.msra.mxu0 0.0
    %1812 = vmatpush.msra.mxu0 0.0
    %1813 = vmatpush.msra.mxu0 0.0
    %1814 = vmatpush.msra.mxu0 0.0
    %1815 = vmatpush.msra.mxu0 0.0
    %1816 = vmatpush.msra.mxu0 %v1787
    %1817 = vmatpush.msra.mxu0 %v1786
    %1818 = vmatpush.msra.mxu0 %v1785
    %1819 = vmatpush.msra.mxu0 %v1784
    %1820 = vmatmul.f32.gmra.mxu0 %v1793
    %v1821 = vpop.f32.mrf.mxu0
    %v1822 = vadd.f32 %v1790, %v1821
    %1823 = vmatmul.f32.gmra.mxu0 %v1796
    %v1824 = vpop.f32.mrf.mxu0
    %v1825 = vadd.f32 %v1790, %v1824
    %1826 = vmatmul.f32.gmra.mxu0 %v1799
    %v1827 = vpop.f32.mrf.mxu0
    %v1828 = vadd.f32 %v1790, %v1827
    %1829 = vmatmul.f32.gmra.mxu0 %v1802
    %v1830 = vpop.f32.mrf.mxu0
    %v1831 = vadd.f32 %v1790, %v1830
    %1832 = vdwg.mxu0
    %v1833 = vmul.f32 %v1822, %v1822
    %v1834 = vmul.f32 %v1825, %v1825
    %v1835 = vmul.f32 %v1828, %v1828
    %v1836 = vmul.f32 %v1831, %v1831
    %v1837 = vmul.f32 %v1822, %v1833
    %v1838 = vmul.f32 %v1825, %v1834
    %v1839 = vmul.f32 %v1828, %v1835
    %v1840 = vmul.f32 %v1831, %v1836
    %v1841 = vmul.f32 %v1837, 0.044715
    %v1842 = vmul.f32 %v1838, 0.044715
    %v1843 = vmul.f32 %v1839, 0.044715
    %v1844 = vmul.f32 %v1840, 0.044715
    %v1845 = vadd.f32 %v1822, %v1841
    %v1846 = vadd.f32 %v1825, %v1842
    %v1847 = vadd.f32 %v1828, %v1843
    %v1848 = vadd.f32 %v1831, %v1844
    %v1849 = vmul.f32 %v1845, 0.7978846
    %v1850 = vmul.f32 %v1846, 0.7978846
    %v1851 = vmul.f32 %v1847, 0.7978846
    %v1852 = vmul.f32 %v1848, 0.7978846
    %v1853 = vtanh.pop %v1849
    %v1854 = vtanh.pop %v1850
    %v1855 = vtanh.pop %v1851
    %v1856 = vtanh.pop %v1852
    %v1857 = vadd.f32 %v1853, 1.0
    %v1858 = vadd.f32 %v1854, 1.0
    %v1859 = vadd.f32 %v1855, 1.0
    %v1860 = vadd.f32 %v1856, 1.0
    %v1861 = vmul.f32 %v1857, 0.5
    %v1862 = vmul.f32 %v1858, 0.5
    %v1863 = vmul.f32 %v1859, 0.5
    %v1864 = vmul.f32 %v1860, 0.5
    %v1865 = vmul.f32 %v1822, %v1861
    %v1866 = vmul.f32 %v1825, %v1862
    %v1867 = vmul.f32 %v1828, %v1863
    %v1868 = vmul.f32 %v1831, %v1864
    %v1869 = vld [vmem:[%s43] sm:$0xff]
    %v1870 = vld [vmem:[%s43 + $0x8] sm:$0xff]
    %v1871 = vld [vmem:[%s43 + $0x10] sm:$0xff]
    %v1872 = vld [vmem:[%s43 + $0x18] sm:$0xff]
    %v1873 = vld [vmem:[%s43 + $0x20] sm:$0xff]
    %v1874 = vld [vmem:[%s43 + $0x28] sm:$0xff]
    %v1875 = vld [vmem:[%s43 + $0x30] sm:$0xff]
    %v1876 = vld [vmem:[%s43 + $0x38] sm:$0xff]
    %v1877 = vld [vmem:[%s43 + $0x40] sm:$0xff]
    %v1878 = vld [vmem:[%s43 + $0x48] sm:$0xff]
    %v1879 = vld [vmem:[%s43 + $0x50] sm:$0xff]
    %v1880 = vld [vmem:[%s43 + $0x58] sm:$0xff]
    %v1881 = vld [vmem:[%s43 + $0x60] sm:$0xff]
    %v1882 = vld [vmem:[%s43 + $0x68] sm:$0xff]
    %v1883 = vld [vmem:[%s43 + $0x70] sm:$0xff]
    %v1884 = vld [vmem:[%s43 + $0x78] sm:$0xff]
    %1885 = vmatpush.msra.mxu0 %v1884
    %1886 = vmatpush.msra.mxu0 %v1883
    %1887 = vmatpush.msra.mxu0 %v1882
    %1888 = vmatpush.msra.mxu0 %v1881
    %1889 = vmatpush.msra.mxu0 %v1880
    %1890 = vmatpush.msra.mxu0 %v1879
    %1891 = vmatpush.msra.mxu0 %v1878
    %1892 = vmatpush.msra.mxu0 %v1877
    %1893 = vmatpush.msra.mxu0 %v1876
    %1894 = vmatpush.msra.mxu0 %v1875
    %1895 = vmatpush.msra.mxu0 %v1874
    %1896 = vmatpush.msra.mxu0 %v1873
    %1897 = vmatpush.msra.mxu0 %v1872
    %1898 = vmatpush.msra.mxu0 %v1871
    %1899 = vmatpush.msra.mxu0 %v1870
    %1900 = vmatpush.msra.mxu0 %v1869
    %1901 = vmatmul.f32.gmra.mxu0 %v1865
    %v1902 = vpop.f32.mrf.mxu0
    %v1903 = vadd.f32 0.0, %v1902
    %1904 = vmatmul.f32.gmra.mxu0 %v1866
    %v1905 = vpop.f32.mrf.mxu0
    %v1906 = vadd.f32 0.0, %v1905
    %1907 = vmatmul.f32.gmra.mxu0 %v1867
    %v1908 = vpop.f32.mrf.mxu0
    %v1909 = vadd.f32 0.0, %v1908
    %1910 = vmatmul.f32.gmra.mxu0 %v1868
    %v1911 = vpop.f32.mrf.mxu0
    %v1912 = vadd.f32 0.0, %v1911
    %1913 = vdwg.mxu0
    %v1914 = vadd.f32 %v1676, %v1903
    %v1915 = vadd.f32 %v1677, %v1906
    %v1916 = vadd.f32 %v1678, %v1909
    %v1917 = vadd.f32 %v1679, %v1912
    %v1918 = vld [vmem:[%s45] sm:$0x1]
    %v1920 = vperm.slane %v1918, 0
    %v1922 = vadd.f32 %v1914, %v1920
    %v1923 = vadd.f32 %v1915, %v1920
    %v1924 = vadd.f32 %v1916, %v1920
    %v1925 = vadd.f32 %v1917, %v1920
    %s1926 = scalar_lea.vmem [#allocation11], 1
    %v1927 = vld [vmem:[%s1926] sm:$0x1]
    %s1928 = scalar_lea.vmem [#allocation13], 1
    %v1929 = vld [vmem:[%s1928] sm:$0x1]
    %v1930 = vsel %vm573, %v1922, 0.0
    %1931 = vadd.xlane.f32.xlu0 %v1930
    %v1932 = vpop.xlane.xlu0 %1931
    %v1933 = vsel %vm573, %v1923, 0.0
    %1934 = vadd.xlane.f32.xlu0 %v1933
    %v1935 = vpop.xlane.xlu0 %1934
    %v1936 = vsel %vm573, %v1924, 0.0
    %1937 = vadd.xlane.f32.xlu0 %v1936
    %v1938 = vpop.xlane.xlu0 %1937
    %v1939 = vsel %vm573, %v1925, 0.0
    %1940 = vadd.xlane.f32.xlu0 %v1939
    %v1941 = vpop.xlane.xlu0 %1940
    %v1942 = vmul.f32 %v1932, %v592
    %v1943 = vmul.f32 %v1935, %v592
    %v1944 = vmul.f32 %v1938, %v592
    %v1945 = vmul.f32 %v1941, %v592
    %v1946 = vsub.f32 %v1922, %v1942
    %v1947 = vsub.f32 %v1923, %v1943
    %v1948 = vsub.f32 %v1924, %v1944
    %v1949 = vsub.f32 %v1925, %v1945
    %v1950 = vmul.f32 %v1946, %v1946
    %v1951 = vmul.f32 %v1947, %v1947
    %v1952 = vmul.f32 %v1948, %v1948
    %v1953 = vmul.f32 %v1949, %v1949
    %v1954 = vsel %vm573, %v1950, 0.0
    %1955 = vadd.xlane.f32.xlu0 %v1954
    %v1956 = vpop.xlane.xlu0 %1955
    %v1957 = vsel %vm573, %v1951, 0.0
    %1958 = vadd.xlane.f32.xlu0 %v1957
    %v1959 = vpop.xlane.xlu0 %1958
    %v1960 = vsel %vm573, %v1952, 0.0
    %1961 = vadd.xlane.f32.xlu0 %v1960
    %v1962 = vpop.xlane.xlu0 %1961
    %v1963 = vsel %vm573, %v1953, 0.0
    %1964 = vadd.xlane.f32.xlu0 %v1963
    %v1965 = vpop.xlane.xlu0 %1964
    %v1966 = vmul.f32 %v1956, %v592
    %v1967 = vmul.f32 %v1959, %v592
    %v1968 = vmul.f32 %v1962, %v592
    %v1969 = vmul.f32 %v1965, %v592
    %v1970 = vadd.f32 %v1966, 1e-05
    %v1971 = vadd.f32 %v1967, 1e-05
    %v1972 = vadd.f32 %v1968, 1e-05
    %v1973 = vadd.f32 %v1969, 1e-05
    %v1974 = vrsqrt.pop %v1970
    %v1975 = vmul.f32 %v1974, %v1970
    %v1976 = vmul.f32 %v1975, %v1974
    %v1977 = vmul.f32 0.5, %v1976
    %v1978 = vsub.f32 1.5, %v1977
    %v1979 = vmul.f32 %v1974, %v1978
    %vm1980 = vweird.f32 %v1970
    %vm1981 = vweird.f32 %v1974
    %vm1982 = vmor %vm1980, %vm1981
    %v1983 = vsel %vm1982, %v1974, %v1979
    %v1984 = vrsqrt.pop %v1971
    %v1985 = vmul.f32 %v1984, %v1971
    %v1986 = vmul.f32 %v1985, %v1984
    %v1987 = vmul.f32 0.5, %v1986
    %v1988 = vsub.f32 1.5, %v1987
    %v1989 = vmul.f32 %v1984, %v1988
    %vm1990 = vweird.f32 %v1971
    %vm1991 = vweird.f32 %v1984
    %vm1992 = vmor %vm1990, %vm1991
    %v1993 = vsel %vm1992, %v1984, %v1989
    %v1994 = vrsqrt.pop %v1972
    %v1995 = vmul.f32 %v1994, %v1972
    %v1996 = vmul.f32 %v1995, %v1994
    %v1997 = vmul.f32 0.5, %v1996
    %v1998 = vsub.f32 1.5, %v1997
    %v1999 = vmul.f32 %v1994, %v1998
    %vm2000 = vweird.f32 %v1972
    %vm2001 = vweird.f32 %v1994
    %vm2002 = vmor %vm2000, %vm2001
    %v2003 = vsel %vm2002, %v1994, %v1999
    %v2004 = vrsqrt.pop %v1973
    %v2005 = vmul.f32 %v2004, %v1973
    %v2006 = vmul.f32 %v2005, %v2004
    %v2007 = vmul.f32 0.5, %v2006
    %v2008 = vsub.f32 1.5, %v2007
    %v2009 = vmul.f32 %v2004, %v2008
    %vm2010 = vweird.f32 %v1973
    %vm2011 = vweird.f32 %v2004
    %vm2012 = vmor %vm2010, %vm2011
    %v2013 = vsel %vm2012, %v2004, %v2009
    %v2014 = vmul.f32 %v1946, %v1983
    %v2015 = vmul.f32 %v1947, %v1993
    %v2016 = vmul.f32 %v1948, %v2003
    %v2017 = vmul.f32 %v1949, %v2013
    %v2019 = vperm.slane %v1927, 0
    %v2021 = vmul.f32 %v2014, %v2019
    %v2022 = vmul.f32 %v2015, %v2019
    %v2023 = vmul.f32 %v2016, %v2019
    %v2024 = vmul.f32 %v2017, %v2019
    %v2026 = vperm.slane %v1929, 0
    %v2028 = vadd.f32 %v2021, %v2026
    %v2029 = vadd.f32 %v2022, %v2026
    %v2030 = vadd.f32 %v2023, %v2026
    %v2031 = vadd.f32 %v2024, %v2026
    %s2032 = scalar_lea.vmem %s25, 32
    %v2033 = vld [vmem:[%s2032] sm:$0xff]
    %v2034 = vld [vmem:[%s2032 + $0x8] sm:$0xff]
    %v2035 = vld [vmem:[%s2032 + $0x10] sm:$0xff]
    %v2036 = vld [vmem:[%s2032 + $0x18] sm:$0xff]
    %v2038 = vsel %vm573, %v2028, 0
    %v2041 = vsel %vm573, %v2029, 0
    %v2044 = vsel %vm573, %v2030, 0
    %v2047 = vsel %vm573, %v2031, 0
    %2049 = vmatpush.msra.mxu0 0.0
    %2050 = vmatpush.msra.mxu0 0.0
    %2051 = vmatpush.msra.mxu0 0.0
    %2052 = vmatpush.msra.mxu0 0.0
    %2053 = vmatpush.msra.mxu0 0.0
    %2054 = vmatpush.msra.mxu0 0.0
    %2055 = vmatpush.msra.mxu0 0.0
    %2056 = vmatpush.msra.mxu0 0.0
    %2057 = vmatpush.msra.mxu0 0.0
    %2058 = vmatpush.msra.mxu0 0.0
    %2059 = vmatpush.msra.mxu0 0.0
    %2060 = vmatpush.msra.mxu0 0.0
    %2061 = vmatpush.msra.mxu0 %v2036
    %2062 = vmatpush.msra.mxu0 %v2035
    %2063 = vmatpush.msra.mxu0 %v2034
    %2064 = vmatpush.msra.mxu0 %v2033
    %2065 = vmatmul.f32.gmra.mxu0 %v2038
    %v2066 = vpop.f32.mrf.mxu0
    %v2067 = vadd.f32 0.0, %v2066
    %2068 = vmatmul.f32.gmra.mxu0 %v2041
    %v2069 = vpop.f32.mrf.mxu0
    %v2070 = vadd.f32 0.0, %v2069
    %2071 = vmatmul.f32.gmra.mxu0 %v2044
    %v2072 = vpop.f32.mrf.mxu0
    %v2073 = vadd.f32 0.0, %v2072
    %2074 = vmatmul.f32.gmra.mxu0 %v2047
    %v2075 = vpop.f32.mrf.mxu0
    %v2076 = vadd.f32 0.0, %v2075
    %2077 = vdwg.mxu0
    %s2078 = scalar_lea.vmem [#allocation14], 32
    %v2079 = vld [vmem:[%s2078] sm:$0xff]
    %v2080 = vld [vmem:[%s2078 + $0x8] sm:$0xff]
    %v2081 = vld [vmem:[%s2078 + $0x10] sm:$0xff]
    %v2082 = vld [vmem:[%s2078 + $0x18] sm:$0xff]
    %2083 = vmatpush.msra.mxu0 0.0
    %2084 = vmatpush.msra.mxu0 0.0
    %2085 = vmatpush.msra.mxu0 0.0
    %2086 = vmatpush.msra.mxu0 0.0
    %2087 = vmatpush.msra.mxu0 0.0
    %2088 = vmatpush.msra.mxu0 0.0
    %2089 = vmatpush.msra.mxu0 0.0
    %2090 = vmatpush.msra.mxu0 0.0
    %2091 = vmatpush.msra.mxu0 0.0
    %2092 = vmatpush.msra.mxu0 0.0
    %2093 = vmatpush.msra.mxu0 0.0
    %2094 = vmatpush.msra.mxu0 0.0
    %2095 = vmatpush.msra.mxu0 %v2082
    %2096 = vmatpush.msra.mxu0 %v2081
    %2097 = vmatpush.msra.mxu0 %v2080
    %2098 = vmatpush.msra.mxu0 %v2079
    %2099 = vmatmul.f32.gmra.mxu0 %v2038
    %v2100 = vpop.f32.mrf.mxu0
    %v2101 = vadd.f32 0.0, %v2100
    %2102 = vmatmul.f32.gmra.mxu0 %v2041
    %v2103 = vpop.f32.mrf.mxu0
    %v2104 = vadd.f32 0.0, %v2103
    %2105 = vmatmul.f32.gmra.mxu0 %v2044
    %v2106 = vpop.f32.mrf.mxu0
    %v2107 = vadd.f32 0.0, %v2106
    %2108 = vmatmul.f32.gmra.mxu0 %v2047
    %v2109 = vpop.f32.mrf.mxu0
    %v2110 = vadd.f32 0.0, %v2109
    %2111 = vdwg.mxu0
    %s2112 = scalar_lea.vmem [#allocation16], 32
    %v2113 = vld [vmem:[%s2112] sm:$0xff]
    %v2114 = vld [vmem:[%s2112 + $0x8] sm:$0xff]
    %v2115 = vld [vmem:[%s2112 + $0x10] sm:$0xff]
    %v2116 = vld [vmem:[%s2112 + $0x18] sm:$0xff]
    %2117 = vmatpush.msra.mxu0 0.0
    %2118 = vmatpush.msra.mxu0 0.0
    %2119 = vmatpush.msra.mxu0 0.0
    %2120 = vmatpush.msra.mxu0 0.0
    %2121 = vmatpush.msra.mxu0 0.0
    %2122 = vmatpush.msra.mxu0 0.0
    %2123 = vmatpush.msra.mxu0 0.0
    %2124 = vmatpush.msra.mxu0 0.0
    %2125 = vmatpush.msra.mxu0 0.0
    %2126 = vmatpush.msra.mxu0 0.0
    %2127 = vmatpush.msra.mxu0 0.0
    %2128 = vmatpush.msra.mxu0 0.0
    %2129 = vmatpush.msra.mxu0 %v2116
    %2130 = vmatpush.msra.mxu0 %v2115
    %2131 = vmatpush.msra.mxu0 %v2114
    %2132 = vmatpush.msra.mxu0 %v2113
    %2133 = vmatmul.f32.gmra.mxu0 %v2038
    %v2134 = vpop.f32.mrf.mxu0
    %v2135 = vadd.f32 0.0, %v2134
    %2136 = vmatmul.f32.gmra.mxu0 %v2041
    %v2137 = vpop.f32.mrf.mxu0
    %v2138 = vadd.f32 0.0, %v2137
    %2139 = vmatmul.f32.gmra.mxu0 %v2044
    %v2140 = vpop.f32.mrf.mxu0
    %v2141 = vadd.f32 0.0, %v2140
    %2142 = vmatmul.f32.gmra.mxu0 %v2047
    %v2143 = vpop.f32.mrf.mxu0
    %v2144 = vadd.f32 0.0, %v2143
    %2145 = vdwg.mxu0
    %v2146 = vmul.f32 %v2067, %v683
    %v2147 = vmul.f32 %v2070, %v684
    %v2148 = vmul.f32 %v2067, %v685
    %v2149 = vmul.f32 %v2070, %v686
    %v2150 = vmul.f32 %v2067, %v687
    %v2151 = vmul.f32 %v2070, %v688
    %v2152 = vmul.f32 %v2067, %v689
    %v2153 = vmul.f32 %v2070, %v690
    %v2155 = vsel %vm573, %v2146, 0
    %v2158 = vsel %vm573, %v2147, 0
    %v2161 = vsel %vm573, %v2148, 0
    %v2164 = vsel %vm573, %v2149, 0
    %v2167 = vsel %vm573, %v2150, 0
    %v2170 = vsel %vm573, %v2151, 0
    %v2173 = vsel %vm573, %v2152, 0
    %v2176 = vsel %vm573, %v2153, 0
    %v2179 = vsel %vm573, %v2101, 0
    %v2182 = vsel %vm573, %v2104, 0
    %2184 = vmatpush.xpose.msra.mxu0 0.0
    %2185 = vmatpush.xpose.msra.mxu0 0.0
    %2186 = vmatpush.xpose.msra.mxu0 0.0
    %2187 = vmatpush.xpose.msra.mxu0 0.0
    %2188 = vmatpush.xpose.msra.mxu0 0.0
    %2189 = vmatpush.xpose.msra.mxu0 0.0
    %2190 = vmatpush.xpose.msra.mxu0 0.0
    %2191 = vmatpush.xpose.msra.mxu0 0.0
    %2192 = vmatpush.xpose.msra.mxu0 0.0
    %2193 = vmatpush.xpose.msra.mxu0 0.0
    %2194 = vmatpush.xpose.msra.mxu0 0.0
    %2195 = vmatpush.xpose.msra.mxu0 0.0
    %2196 = vmatpush.xpose.msra.mxu0 0.0
    %2197 = vmatpush.xpose.msra.mxu0 0.0
    %2198 = vmatpush.xpose.msra.mxu0 %v2182
    %2199 = vmatpush.xpose.msra.mxu0 %v2179
    %2200 = vmatmul.f32.gmra.mxu0 %v2155
    %v2201 = vpop.f32.mrf.mxu0
    %v2202 = vadd.f32 0.0, %v2201
    %2203 = vmatmul.f32.gmra.mxu0 %v2158
    %v2204 = vpop.f32.mrf.mxu0
    %v2205 = vadd.f32 0.0, %v2204
    %2206 = vmatmul.f32.gmra.mxu0 %v2161
    %v2207 = vpop.f32.mrf.mxu0
    %v2208 = vadd.f32 0.0, %v2207
    %2209 = vmatmul.f32.gmra.mxu0 %v2164
    %v2210 = vpop.f32.mrf.mxu0
    %v2211 = vadd.f32 0.0, %v2210
    %2212 = vmatmul.f32.gmra.mxu0 %v2167
    %v2213 = vpop.f32.mrf.mxu0
    %v2214 = vadd.f32 0.0, %v2213
    %2215 = vmatmul.f32.gmra.mxu0 %v2170
    %v2216 = vpop.f32.mrf.mxu0
    %v2217 = vadd.f32 0.0, %v2216
    %2218 = vmatmul.f32.gmra.mxu0 %v2173
    %v2219 = vpop.f32.mrf.mxu0
    %v2220 = vadd.f32 0.0, %v2219
    %2221 = vmatmul.f32.gmra.mxu0 %v2176
    %v2222 = vpop.f32.mrf.mxu0
    %v2223 = vadd.f32 0.0, %v2222
    %2224 = vdwg.mxu0
    %v2225 = vmul.f32 %v2202, 0.35355338
    %v2226 = vmul.f32 %v2205, 0.35355338
    %v2227 = vmul.f32 %v2208, 0.35355338
    %v2228 = vmul.f32 %v2211, 0.35355338
    %v2229 = vmul.f32 %v2214, 0.35355338
    %v2230 = vmul.f32 %v2217, 0.35355338
    %v2231 = vmul.f32 %v2220, 0.35355338
    %v2232 = vmul.f32 %v2223, 0.35355338
    %v2233 = vsel %vm993, %v2225, -inf
    %2234 = vmax.xlane.f32.xlu0 %v2233
    %v2235 = vpop.xlane.xlu0 %2234
    %v2236 = vsel %vm993, %v2226, -inf
    %2237 = vmax.xlane.f32.xlu0 %v2236
    %v2238 = vpop.xlane.xlu0 %2237
    %v2239 = vsel %vm993, %v2227, -inf
    %2240 = vmax.xlane.f32.xlu0 %v2239
    %v2241 = vpop.xlane.xlu0 %2240
    %v2242 = vsel %vm993, %v2228, -inf
    %2243 = vmax.xlane.f32.xlu0 %v2242
    %v2244 = vpop.xlane.xlu0 %2243
    %v2245 = vsel %vm993, %v2229, -inf
    %2246 = vmax.xlane.f32.xlu0 %v2245
    %v2247 = vpop.xlane.xlu0 %2246
    %v2248 = vsel %vm993, %v2230, -inf
    %2249 = vmax.xlane.f32.xlu0 %v2248
    %v2250 = vpop.xlane.xlu0 %2249
    %v2251 = vsel %vm993, %v2231, -inf
    %2252 = vmax.xlane.f32.xlu0 %v2251
    %v2253 = vpop.xlane.xlu0 %2252
    %v2254 = vsel %vm993, %v2232, -inf
    %2255 = vmax.xlane.f32.xlu0 %v2254
    %v2256 = vpop.xlane.xlu0 %2255
    %v2257 = vsub.f32 %v2225, %v2235
    %v2258 = vsub.f32 %v2226, %v2238
    %v2259 = vsub.f32 %v2227, %v2241
    %v2260 = vsub.f32 %v2228, %v2244
    %v2261 = vsub.f32 %v2229, %v2247
    %v2262 = vsub.f32 %v2230, %v2250
    %v2263 = vsub.f32 %v2231, %v2253
    %v2264 = vsub.f32 %v2232, %v2256
    %v2265 = vmul.f32 %v2257, 1.442695
    %v2266 = vpow.pop %v2265
    %v2267 = vmul.f32 %v2258, 1.442695
    %v2268 = vpow.pop %v2267
    %v2269 = vmul.f32 %v2259, 1.442695
    %v2270 = vpow.pop %v2269
    %v2271 = vmul.f32 %v2260, 1.442695
    %v2272 = vpow.pop %v2271
    %v2273 = vmul.f32 %v2261, 1.442695
    %v2274 = vpow.pop %v2273
    %v2275 = vmul.f32 %v2262, 1.442695
    %v2276 = vpow.pop %v2275
    %v2277 = vmul.f32 %v2263, 1.442695
    %v2278 = vpow.pop %v2277
    %v2279 = vmul.f32 %v2264, 1.442695
    %v2280 = vpow.pop %v2279
    %v2281 = vsel %vm993, %v2266, 0.0
    %2282 = vadd.xlane.f32.xlu0 %v2281
    %v2283 = vpop.xlane.xlu0 %2282
    %v2284 = vsel %vm993, %v2268, 0.0
    %2285 = vadd.xlane.f32.xlu0 %v2284
    %v2286 = vpop.xlane.xlu0 %2285
    %v2287 = vsel %vm993, %v2270, 0.0
    %2288 = vadd.xlane.f32.xlu0 %v2287
    %v2289 = vpop.xlane.xlu0 %2288
    %v2290 = vsel %vm993, %v2272, 0.0
    %2291 = vadd.xlane.f32.xlu0 %v2290
    %v2292 = vpop.xlane.xlu0 %2291
    %v2293 = vsel %vm993, %v2274, 0.0
    %2294 = vadd.xlane.f32.xlu0 %v2293
    %v2295 = vpop.xlane.xlu0 %2294
    %v2296 = vsel %vm993, %v2276, 0.0
    %2297 = vadd.xlane.f32.xlu0 %v2296
    %v2298 = vpop.xlane.xlu0 %2297
    %v2299 = vsel %vm993, %v2278, 0.0
    %2300 = vadd.xlane.f32.xlu0 %v2299
    %v2301 = vpop.xlane.xlu0 %2300
    %v2302 = vsel %vm993, %v2280, 0.0
    %2303 = vadd.xlane.f32.xlu0 %v2302
    %v2304 = vpop.xlane.xlu0 %2303
    %v2305 = vrcp.pop %v2283
    %v2306 = vmul.f32 %v2283, %v2305
    %v2307 = vsub.f32 1.0, %v2306
    %v2308 = vmul.f32 %v2305, %v2307
    %v2309 = vadd.f32 %v2305, %v2308
    %vm2310 = vweird.f32 %v2283
    %vm2311 = vweird.f32 %v2305
    %vm2312 = vmor %vm2310, %vm2311
    %v2313 = vsel %vm2312, %v2305, %v2309
    %v2314 = vand.u32 2147483647, %v2283
    %vm2315 = vcmp.eq.f32.partialorder %v2314, 8.507059e+37
    %v2316 = vand.u32 %v2283, 2147483648
    %v2317 = vor.u32 1.1754944e-38, %v2316
    %v2318 = vsel %vm2315, %v2317, %v2313
    %v2319 = vmul.f32 %v2266, %v2318
    %v2320 = vrcp.pop %v2286
    %v2321 = vmul.f32 %v2286, %v2320
    %v2322 = vsub.f32 1.0, %v2321
    %v2323 = vmul.f32 %v2320, %v2322
    %v2324 = vadd.f32 %v2320, %v2323
    %vm2325 = vweird.f32 %v2286
    %vm2326 = vweird.f32 %v2320
    %vm2327 = vmor %vm2325, %vm2326
    %v2328 = vsel %vm2327, %v2320, %v2324
    %v2329 = vand.u32 2147483647, %v2286
    %vm2330 = vcmp.eq.f32.partialorder %v2329, 8.507059e+37
    %v2331 = vand.u32 %v2286, 2147483648
    %v2332 = vor.u32 1.1754944e-38, %v2331
    %v2333 = vsel %vm2330, %v2332, %v2328
    %v2334 = vmul.f32 %v2268, %v2333
    %v2335 = vrcp.pop %v2289
    %v2336 = vmul.f32 %v2289, %v2335
    %v2337 = vsub.f32 1.0, %v2336
    %v2338 = vmul.f32 %v2335, %v2337
    %v2339 = vadd.f32 %v2335, %v2338
    %vm2340 = vweird.f32 %v2289
    %vm2341 = vweird.f32 %v2335
    %vm2342 = vmor %vm2340, %vm2341
    %v2343 = vsel %vm2342, %v2335, %v2339
    %v2344 = vand.u32 2147483647, %v2289
    %vm2345 = vcmp.eq.f32.partialorder %v2344, 8.507059e+37
    %v2346 = vand.u32 %v2289, 2147483648
    %v2347 = vor.u32 1.1754944e-38, %v2346
    %v2348 = vsel %vm2345, %v2347, %v2343
    %v2349 = vmul.f32 %v2270, %v2348
    %v2350 = vrcp.pop %v2292
    %v2351 = vmul.f32 %v2292, %v2350
    %v2352 = vsub.f32 1.0, %v2351
    %v2353 = vmul.f32 %v2350, %v2352
    %v2354 = vadd.f32 %v2350, %v2353
    %vm2355 = vweird.f32 %v2292
    %vm2356 = vweird.f32 %v2350
    %vm2357 = vmor %vm2355, %vm2356
    %v2358 = vsel %vm2357, %v2350, %v2354
    %v2359 = vand.u32 2147483647, %v2292
    %vm2360 = vcmp.eq.f32.partialorder %v2359, 8.507059e+37
    %v2361 = vand.u32 %v2292, 2147483648
    %v2362 = vor.u32 1.1754944e-38, %v2361
    %v2363 = vsel %vm2360, %v2362, %v2358
    %v2364 = vmul.f32 %v2272, %v2363
    %v2365 = vrcp.pop %v2295
    %v2366 = vmul.f32 %v2295, %v2365
    %v2367 = vsub.f32 1.0, %v2366
    %v2368 = vmul.f32 %v2365, %v2367
    %v2369 = vadd.f32 %v2365, %v2368
    %vm2370 = vweird.f32 %v2295
    %vm2371 = vweird.f32 %v2365
    %vm2372 = vmor %vm2370, %vm2371
    %v2373 = vsel %vm2372, %v2365, %v2369
    %v2374 = vand.u32 2147483647, %v2295
    %vm2375 = vcmp.eq.f32.partialorder %v2374, 8.507059e+37
    %v2376 = vand.u32 %v2295, 2147483648
    %v2377 = vor.u32 1.1754944e-38, %v2376
    %v2378 = vsel %vm2375, %v2377, %v2373
    %v2379 = vmul.f32 %v2274, %v2378
    %v2380 = vrcp.pop %v2298
    %v2381 = vmul.f32 %v2298, %v2380
    %v2382 = vsub.f32 1.0, %v2381
    %v2383 = vmul.f32 %v2380, %v2382
    %v2384 = vadd.f32 %v2380, %v2383
    %vm2385 = vweird.f32 %v2298
    %vm2386 = vweird.f32 %v2380
    %vm2387 = vmor %vm2385, %vm2386
    %v2388 = vsel %vm2387, %v2380, %v2384
    %v2389 = vand.u32 2147483647, %v2298
    %vm2390 = vcmp.eq.f32.partialorder %v2389, 8.507059e+37
    %v2391 = vand.u32 %v2298, 2147483648
    %v2392 = vor.u32 1.1754944e-38, %v2391
    %v2393 = vsel %vm2390, %v2392, %v2388
    %v2394 = vmul.f32 %v2276, %v2393
    %v2395 = vrcp.pop %v2301
    %v2396 = vmul.f32 %v2301, %v2395
    %v2397 = vsub.f32 1.0, %v2396
    %v2398 = vmul.f32 %v2395, %v2397
    %v2399 = vadd.f32 %v2395, %v2398
    %vm2400 = vweird.f32 %v2301
    %vm2401 = vweird.f32 %v2395
    %vm2402 = vmor %vm2400, %vm2401
    %v2403 = vsel %vm2402, %v2395, %v2399
    %v2404 = vand.u32 2147483647, %v2301
    %vm2405 = vcmp.eq.f32.partialorder %v2404, 8.507059e+37
    %v2406 = vand.u32 %v2301, 2147483648
    %v2407 = vor.u32 1.1754944e-38, %v2406
    %v2408 = vsel %vm2405, %v2407, %v2403
    %v2409 = vmul.f32 %v2278, %v2408
    %v2410 = vrcp.pop %v2304
    %v2411 = vmul.f32 %v2304, %v2410
    %v2412 = vsub.f32 1.0, %v2411
    %v2413 = vmul.f32 %v2410, %v2412
    %v2414 = vadd.f32 %v2410, %v2413
    %vm2415 = vweird.f32 %v2304
    %vm2416 = vweird.f32 %v2410
    %vm2417 = vmor %vm2415, %vm2416
    %v2418 = vsel %vm2417, %v2410, %v2414
    %v2419 = vand.u32 2147483647, %v2304
    %vm2420 = vcmp.eq.f32.partialorder %v2419, 8.507059e+37
    %v2421 = vand.u32 %v2304, 2147483648
    %v2422 = vor.u32 1.1754944e-38, %v2421
    %v2423 = vsel %vm2420, %v2422, %v2418
    %v2424 = vmul.f32 %v2280, %v2423
    %v2426 = vsel %vm993, %v2319, 0
    %v2429 = vsel %vm993, %v2334, 0
    %v2432 = vsel %vm993, %v2349, 0
    %v2435 = vsel %vm993, %v2364, 0
    %v2438 = vsel %vm993, %v2379, 0
    %v2441 = vsel %vm993, %v2394, 0
    %v2444 = vsel %vm993, %v2409, 0
    %v2447 = vsel %vm993, %v2424, 0
    %2449 = vmatpush.msra.mxu0 0.0
    %2450 = vmatpush.msra.mxu0 0.0
    %2451 = vmatpush.msra.mxu0 0.0
    %2452 = vmatpush.msra.mxu0 0.0
    %2453 = vmatpush.msra.mxu0 0.0
    %2454 = vmatpush.msra.mxu0 0.0
    %2455 = vmatpush.msra.mxu0 0.0
    %2456 = vmatpush.msra.mxu0 0.0
    %2457 = vmatpush.msra.mxu0 0.0
    %2458 = vmatpush.msra.mxu0 0.0
    %2459 = vmatpush.msra.mxu0 0.0
    %2460 = vmatpush.msra.mxu0 0.0
    %2461 = vmatpush.msra.mxu0 0.0
    %2462 = vmatpush.msra.mxu0 0.0
    %2463 = vmatpush.msra.mxu0 %v2138
    %2464 = vmatpush.msra.mxu0 %v2135
    %2465 = vmatmul.f32.gmra.mxu0 %v2426
    %v2466 = vpop.f32.mrf.mxu0
    %v2467 = vadd.f32 0.0, %v2466
    %2468 = vmatmul.f32.gmra.mxu0 %v2429
    %v2469 = vpop.f32.mrf.mxu0
    %v2470 = vadd.f32 0.0, %v2469
    %2471 = vmatmul.f32.gmra.mxu0 %v2432
    %v2472 = vpop.f32.mrf.mxu0
    %v2473 = vadd.f32 0.0, %v2472
    %2474 = vmatmul.f32.gmra.mxu0 %v2435
    %v2475 = vpop.f32.mrf.mxu0
    %v2476 = vadd.f32 0.0, %v2475
    %2477 = vmatmul.f32.gmra.mxu0 %v2438
    %v2478 = vpop.f32.mrf.mxu0
    %v2479 = vadd.f32 0.0, %v2478
    %2480 = vmatmul.f32.gmra.mxu0 %v2441
    %v2481 = vpop.f32.mrf.mxu0
    %v2482 = vadd.f32 0.0, %v2481
    %2483 = vmatmul.f32.gmra.mxu0 %v2444
    %v2484 = vpop.f32.mrf.mxu0
    %v2485 = vadd.f32 0.0, %v2484
    %2486 = vmatmul.f32.gmra.mxu0 %v2447
    %v2487 = vpop.f32.mrf.mxu0
    %v2488 = vadd.f32 0.0, %v2487
    %2489 = vdwg.mxu0
    %v2490 = vmul.f32 %v2467, %v683
    %v2491 = vmul.f32 %v2470, %v684
    %v2492 = vmul.f32 %v2473, %v685
    %v2493 = vmul.f32 %v2476, %v686
    %v2494 = vmul.f32 %v2479, %v687
    %v2495 = vmul.f32 %v2482, %v688
    %v2496 = vmul.f32 %v2485, %v689
    %v2497 = vmul.f32 %v2488, %v690
    %v2498 = vadd.f32 %v2490, %v2492
    %v2499 = vadd.f32 %v2491, %v2493
    %v2500 = vadd.f32 %v2498, %v2494
    %v2501 = vadd.f32 %v2499, %v2495
    %v2502 = vadd.f32 %v2500, %v2496
    %v2503 = vadd.f32 %v2501, %v2497
    %v2504 = vmul.f32 %v2073, %v683
    %v2505 = vmul.f32 %v2076, %v684
    %v2506 = vmul.f32 %v2073, %v685
    %v2507 = vmul.f32 %v2076, %v686
    %v2508 = vmul.f32 %v2073, %v687
    %v2509 = vmul.f32 %v2076, %v688
    %v2510 = vmul.f32 %v2073, %v689
    %v2511 = vmul.f32 %v2076, %v690
    %v2513 = vsel %vm573, %v2504, 0
    %v2516 = vsel %vm573, %v2505, 0
    %v2519 = vsel %vm573, %v2506, 0
    %v2522 = vsel %vm573, %v2507, 0
    %v2525 = vsel %vm573, %v2508, 0
    %v2528 = vsel %vm573, %v2509, 0
    %v2531 = vsel %vm573, %v2510, 0
    %v2534 = vsel %vm573, %v2511, 0
    %v2537 = vsel %vm573, %v2107, 0
    %v2540 = vsel %vm573, %v2110, 0
    %2542 = vmatpush.xpose.msra.mxu0 0.0
    %2543 = vmatpush.xpose.msra.mxu0 0.0
    %2544 = vmatpush.xpose.msra.mxu0 0.0
    %2545 = vmatpush.xpose.msra.mxu0 0.0
    %2546 = vmatpush.xpose.msra.mxu0 0.0
    %2547 = vmatpush.xpose.msra.mxu0 0.0
    %2548 = vmatpush.xpose.msra.mxu0 0.0
    %2549 = vmatpush.xpose.msra.mxu0 0.0
    %2550 = vmatpush.xpose.msra.mxu0 0.0
    %2551 = vmatpush.xpose.msra.mxu0 0.0
    %2552 = vmatpush.xpose.msra.mxu0 0.0
    %2553 = vmatpush.xpose.msra.mxu0 0.0
    %2554 = vmatpush.xpose.msra.mxu0 0.0
    %2555 = vmatpush.xpose.msra.mxu0 0.0
    %2556 = vmatpush.xpose.msra.mxu0 %v2540
    %2557 = vmatpush.xpose.msra.mxu0 %v2537
    %2558 = vmatmul.f32.gmra.mxu0 %v2513
    %v2559 = vpop.f32.mrf.mxu0
    %v2560 = vadd.f32 0.0, %v2559
    %2561 = vmatmul.f32.gmra.mxu0 %v2516
    %v2562 = vpop.f32.mrf.mxu0
    %v2563 = vadd.f32 0.0, %v2562
    %2564 = vmatmul.f32.gmra.mxu0 %v2519
    %v2565 = vpop.f32.mrf.mxu0
    %v2566 = vadd.f32 0.0, %v2565
    %2567 = vmatmul.f32.gmra.mxu0 %v2522
    %v2568 = vpop.f32.mrf.mxu0
    %v2569 = vadd.f32 0.0, %v2568
    %2570 = vmatmul.f32.gmra.mxu0 %v2525
    %v2571 = vpop.f32.mrf.mxu0
    %v2572 = vadd.f32 0.0, %v2571
    %2573 = vmatmul.f32.gmra.mxu0 %v2528
    %v2574 = vpop.f32.mrf.mxu0
    %v2575 = vadd.f32 0.0, %v2574
    %2576 = vmatmul.f32.gmra.mxu0 %v2531
    %v2577 = vpop.f32.mrf.mxu0
    %v2578 = vadd.f32 0.0, %v2577
    %2579 = vmatmul.f32.gmra.mxu0 %v2534
    %v2580 = vpop.f32.mrf.mxu0
    %v2581 = vadd.f32 0.0, %v2580
    %2582 = vdwg.mxu0
    %v2583 = vmul.f32 %v2560, 0.35355338
    %v2584 = vmul.f32 %v2563, 0.35355338
    %v2585 = vmul.f32 %v2566, 0.35355338
    %v2586 = vmul.f32 %v2569, 0.35355338
    %v2587 = vmul.f32 %v2572, 0.35355338
    %v2588 = vmul.f32 %v2575, 0.35355338
    %v2589 = vmul.f32 %v2578, 0.35355338
    %v2590 = vmul.f32 %v2581, 0.35355338
    %v2591 = vsel %vm993, %v2583, -inf
    %2592 = vmax.xlane.f32.xlu0 %v2591
    %v2593 = vpop.xlane.xlu0 %2592
    %v2594 = vsel %vm993, %v2584, -inf
    %2595 = vmax.xlane.f32.xlu0 %v2594
    %v2596 = vpop.xlane.xlu0 %2595
    %v2597 = vsel %vm993, %v2585, -inf
    %2598 = vmax.xlane.f32.xlu0 %v2597
    %v2599 = vpop.xlane.xlu0 %2598
    %v2600 = vsel %vm993, %v2586, -inf
    %2601 = vmax.xlane.f32.xlu0 %v2600
    %v2602 = vpop.xlane.xlu0 %2601
    %v2603 = vsel %vm993, %v2587, -inf
    %2604 = vmax.xlane.f32.xlu0 %v2603
    %v2605 = vpop.xlane.xlu0 %2604
    %v2606 = vsel %vm993, %v2588, -inf
    %2607 = vmax.xlane.f32.xlu0 %v2606
    %v2608 = vpop.xlane.xlu0 %2607
    %v2609 = vsel %vm993, %v2589, -inf
    %2610 = vmax.xlane.f32.xlu0 %v2609
    %v2611 = vpop.xlane.xlu0 %2610
    %v2612 = vsel %vm993, %v2590, -inf
    %2613 = vmax.xlane.f32.xlu0 %v2612
    %v2614 = vpop.xlane.xlu0 %2613
    %v2615 = vsub.f32 %v2583, %v2593
    %v2616 = vsub.f32 %v2584, %v2596
    %v2617 = vsub.f32 %v2585, %v2599
    %v2618 = vsub.f32 %v2586, %v2602
    %v2619 = vsub.f32 %v2587, %v2605
    %v2620 = vsub.f32 %v2588, %v2608
    %v2621 = vsub.f32 %v2589, %v2611
    %v2622 = vsub.f32 %v2590, %v2614
    %v2623 = vmul.f32 %v2615, 1.442695
    %v2624 = vpow.pop %v2623
    %v2625 = vmul.f32 %v2616, 1.442695
    %v2626 = vpow.pop %v2625
    %v2627 = vmul.f32 %v2617, 1.442695
    %v2628 = vpow.pop %v2627
    %v2629 = vmul.f32 %v2618, 1.442695
    %v2630 = vpow.pop %v2629
    %v2631 = vmul.f32 %v2619, 1.442695
    %v2632 = vpow.pop %v2631
    %v2633 = vmul.f32 %v2620, 1.442695
    %v2634 = vpow.pop %v2633
    %v2635 = vmul.f32 %v2621, 1.442695
    %v2636 = vpow.pop %v2635
    %v2637 = vmul.f32 %v2622, 1.442695
    %v2638 = vpow.pop %v2637
    %v2639 = vsel %vm993, %v2624, 0.0
    %2640 = vadd.xlane.f32.xlu0 %v2639
    %v2641 = vpop.xlane.xlu0 %2640
    %v2642 = vsel %vm993, %v2626, 0.0
    %2643 = vadd.xlane.f32.xlu0 %v2642
    %v2644 = vpop.xlane.xlu0 %2643
    %v2645 = vsel %vm993, %v2628, 0.0
    %2646 = vadd.xlane.f32.xlu0 %v2645
    %v2647 = vpop.xlane.xlu0 %2646
    %v2648 = vsel %vm993, %v2630, 0.0
    %2649 = vadd.xlane.f32.xlu0 %v2648
    %v2650 = vpop.xlane.xlu0 %2649
    %v2651 = vsel %vm993, %v2632, 0.0
    %2652 = vadd.xlane.f32.xlu0 %v2651
    %v2653 = vpop.xlane.xlu0 %2652
    %v2654 = vsel %vm993, %v2634, 0.0
    %2655 = vadd.xlane.f32.xlu0 %v2654
    %v2656 = vpop.xlane.xlu0 %2655
    %v2657 = vsel %vm993, %v2636, 0.0
    %2658 = vadd.xlane.f32.xlu0 %v2657
    %v2659 = vpop.xlane.xlu0 %2658
    %v2660 = vsel %vm993, %v2638, 0.0
    %2661 = vadd.xlane.f32.xlu0 %v2660
    %v2662 = vpop.xlane.xlu0 %2661
    %v2663 = vrcp.pop %v2641
    %v2664 = vmul.f32 %v2641, %v2663
    %v2665 = vsub.f32 1.0, %v2664
    %v2666 = vmul.f32 %v2663, %v2665
    %v2667 = vadd.f32 %v2663, %v2666
    %vm2668 = vweird.f32 %v2641
    %vm2669 = vweird.f32 %v2663
    %vm2670 = vmor %vm2668, %vm2669
    %v2671 = vsel %vm2670, %v2663, %v2667
    %v2672 = vand.u32 2147483647, %v2641
    %vm2673 = vcmp.eq.f32.partialorder %v2672, 8.507059e+37
    %v2674 = vand.u32 %v2641, 2147483648
    %v2675 = vor.u32 1.1754944e-38, %v2674
    %v2676 = vsel %vm2673, %v2675, %v2671
    %v2677 = vmul.f32 %v2624, %v2676
    %v2678 = vrcp.pop %v2644
    %v2679 = vmul.f32 %v2644, %v2678
    %v2680 = vsub.f32 1.0, %v2679
    %v2681 = vmul.f32 %v2678, %v2680
    %v2682 = vadd.f32 %v2678, %v2681
    %vm2683 = vweird.f32 %v2644
    %vm2684 = vweird.f32 %v2678
    %vm2685 = vmor %vm2683, %vm2684
    %v2686 = vsel %vm2685, %v2678, %v2682
    %v2687 = vand.u32 2147483647, %v2644
    %vm2688 = vcmp.eq.f32.partialorder %v2687, 8.507059e+37
    %v2689 = vand.u32 %v2644, 2147483648
    %v2690 = vor.u32 1.1754944e-38, %v2689
    %v2691 = vsel %vm2688, %v2690, %v2686
    %v2692 = vmul.f32 %v2626, %v2691
    %v2693 = vrcp.pop %v2647
    %v2694 = vmul.f32 %v2647, %v2693
    %v2695 = vsub.f32 1.0, %v2694
    %v2696 = vmul.f32 %v2693, %v2695
    %v2697 = vadd.f32 %v2693, %v2696
    %vm2698 = vweird.f32 %v2647
    %vm2699 = vweird.f32 %v2693
    %vm2700 = vmor %vm2698, %vm2699
    %v2701 = vsel %vm2700, %v2693, %v2697
    %v2702 = vand.u32 2147483647, %v2647
    %vm2703 = vcmp.eq.f32.partialorder %v2702, 8.507059e+37
    %v2704 = vand.u32 %v2647, 2147483648
    %v2705 = vor.u32 1.1754944e-38, %v2704
    %v2706 = vsel %vm2703, %v2705, %v2701
    %v2707 = vmul.f32 %v2628, %v2706
    %v2708 = vrcp.pop %v2650
    %v2709 = vmul.f32 %v2650, %v2708
    %v2710 = vsub.f32 1.0, %v2709
    %v2711 = vmul.f32 %v2708, %v2710
    %v2712 = vadd.f32 %v2708, %v2711
    %vm2713 = vweird.f32 %v2650
    %vm2714 = vweird.f32 %v2708
    %vm2715 = vmor %vm2713, %vm2714
    %v2716 = vsel %vm2715, %v2708, %v2712
    %v2717 = vand.u32 2147483647, %v2650
    %vm2718 = vcmp.eq.f32.partialorder %v2717, 8.507059e+37
    %v2719 = vand.u32 %v2650, 2147483648
    %v2720 = vor.u32 1.1754944e-38, %v2719
    %v2721 = vsel %vm2718, %v2720, %v2716
    %v2722 = vmul.f32 %v2630, %v2721
    %v2723 = vrcp.pop %v2653
    %v2724 = vmul.f32 %v2653, %v2723
    %v2725 = vsub.f32 1.0, %v2724
    %v2726 = vmul.f32 %v2723, %v2725
    %v2727 = vadd.f32 %v2723, %v2726
    %vm2728 = vweird.f32 %v2653
    %vm2729 = vweird.f32 %v2723
    %vm2730 = vmor %vm2728, %vm2729
    %v2731 = vsel %vm2730, %v2723, %v2727
    %v2732 = vand.u32 2147483647, %v2653
    %vm2733 = vcmp.eq.f32.partialorder %v2732, 8.507059e+37
    %v2734 = vand.u32 %v2653, 2147483648
    %v2735 = vor.u32 1.1754944e-38, %v2734
    %v2736 = vsel %vm2733, %v2735, %v2731
    %v2737 = vmul.f32 %v2632, %v2736
    %v2738 = vrcp.pop %v2656
    %v2739 = vmul.f32 %v2656, %v2738
    %v2740 = vsub.f32 1.0, %v2739
    %v2741 = vmul.f32 %v2738, %v2740
    %v2742 = vadd.f32 %v2738, %v2741
    %vm2743 = vweird.f32 %v2656
    %vm2744 = vweird.f32 %v2738
    %vm2745 = vmor %vm2743, %vm2744
    %v2746 = vsel %vm2745, %v2738, %v2742
    %v2747 = vand.u32 2147483647, %v2656
    %vm2748 = vcmp.eq.f32.partialorder %v2747, 8.507059e+37
    %v2749 = vand.u32 %v2656, 2147483648
    %v2750 = vor.u32 1.1754944e-38, %v2749
    %v2751 = vsel %vm2748, %v2750, %v2746
    %v2752 = vmul.f32 %v2634, %v2751
    %v2753 = vrcp.pop %v2659
    %v2754 = vmul.f32 %v2659, %v2753
    %v2755 = vsub.f32 1.0, %v2754
    %v2756 = vmul.f32 %v2753, %v2755
    %v2757 = vadd.f32 %v2753, %v2756
    %vm2758 = vweird.f32 %v2659
    %vm2759 = vweird.f32 %v2753
    %vm2760 = vmor %vm2758, %vm2759
    %v2761 = vsel %vm2760, %v2753, %v2757
    %v2762 = vand.u32 2147483647, %v2659
    %vm2763 = vcmp.eq.f32.partialorder %v2762, 8.507059e+37
    %v2764 = vand.u32 %v2659, 2147483648
    %v2765 = vor.u32 1.1754944e-38, %v2764
    %v2766 = vsel %vm2763, %v2765, %v2761
    %v2767 = vmul.f32 %v2636, %v2766
    %v2768 = vrcp.pop %v2662
    %v2769 = vmul.f32 %v2662, %v2768
    %v2770 = vsub.f32 1.0, %v2769
    %v2771 = vmul.f32 %v2768, %v2770
    %v2772 = vadd.f32 %v2768, %v2771
    %vm2773 = vweird.f32 %v2662
    %vm2774 = vweird.f32 %v2768
    %vm2775 = vmor %vm2773, %vm2774
    %v2776 = vsel %vm2775, %v2768, %v2772
    %v2777 = vand.u32 2147483647, %v2662
    %vm2778 = vcmp.eq.f32.partialorder %v2777, 8.507059e+37
    %v2779 = vand.u32 %v2662, 2147483648
    %v2780 = vor.u32 1.1754944e-38, %v2779
    %v2781 = vsel %vm2778, %v2780, %v2776
    %v2782 = vmul.f32 %v2638, %v2781
    %v2784 = vsel %vm993, %v2677, 0
    %v2787 = vsel %vm993, %v2692, 0
    %v2790 = vsel %vm993, %v2707, 0
    %v2793 = vsel %vm993, %v2722, 0
    %v2796 = vsel %vm993, %v2737, 0
    %v2799 = vsel %vm993, %v2752, 0
    %v2802 = vsel %vm993, %v2767, 0
    %v2805 = vsel %vm993, %v2782, 0
    %2807 = vmatpush.msra.mxu0 0.0
    %2808 = vmatpush.msra.mxu0 0.0
    %2809 = vmatpush.msra.mxu0 0.0
    %2810 = vmatpush.msra.mxu0 0.0
    %2811 = vmatpush.msra.mxu0 0.0
    %2812 = vmatpush.msra.mxu0 0.0
    %2813 = vmatpush.msra.mxu0 0.0
    %2814 = vmatpush.msra.mxu0 0.0
    %2815 = vmatpush.msra.mxu0 0.0
    %2816 = vmatpush.msra.mxu0 0.0
    %2817 = vmatpush.msra.mxu0 0.0
    %2818 = vmatpush.msra.mxu0 0.0
    %2819 = vmatpush.msra.mxu0 0.0
    %2820 = vmatpush.msra.mxu0 0.0
    %2821 = vmatpush.msra.mxu0 %v2144
    %2822 = vmatpush.msra.mxu0 %v2141
    %2823 = vmatmul.f32.gmra.mxu0 %v2784
    %v2824 = vpop.f32.mrf.mxu0
    %v2825 = vadd.f32 0.0, %v2824
    %2826 = vmatmul.f32.gmra.mxu0 %v2787
    %v2827 = vpop.f32.mrf.mxu0
    %v2828 = vadd.f32 0.0, %v2827
    %2829 = vmatmul.f32.gmra.mxu0 %v2790
    %v2830 = vpop.f32.mrf.mxu0
    %v2831 = vadd.f32 0.0, %v2830
    %2832 = vmatmul.f32.gmra.mxu0 %v2793
    %v2833 = vpop.f32.mrf.mxu0
    %v2834 = vadd.f32 0.0, %v2833
    %2835 = vmatmul.f32.gmra.mxu0 %v2796
    %v2836 = vpop.f32.mrf.mxu0
    %v2837 = vadd.f32 0.0, %v2836
    %2838 = vmatmul.f32.gmra.mxu0 %v2799
    %v2839 = vpop.f32.mrf.mxu0
    %v2840 = vadd.f32 0.0, %v2839
    %2841 = vmatmul.f32.gmra.mxu0 %v2802
    %v2842 = vpop.f32.mrf.mxu0
    %v2843 = vadd.f32 0.0, %v2842
    %2844 = vmatmul.f32.gmra.mxu0 %v2805
    %v2845 = vpop.f32.mrf.mxu0
    %v2846 = vadd.f32 0.0, %v2845
    %2847 = vdwg.mxu0
    %v2848 = vmul.f32 %v2825, %v683
    %v2849 = vmul.f32 %v2828, %v684
    %v2850 = vmul.f32 %v2831, %v685
    %v2851 = vmul.f32 %v2834, %v686
    %v2852 = vmul.f32 %v2837, %v687
    %v2853 = vmul.f32 %v2840, %v688
    %v2854 = vmul.f32 %v2843, %v689
    %v2855 = vmul.f32 %v2846, %v690
    %v2856 = vadd.f32 %v2848, %v2850
    %v2857 = vadd.f32 %v2849, %v2851
    %v2858 = vadd.f32 %v2856, %v2852
    %v2859 = vadd.f32 %v2857, %v2853
    %v2860 = vadd.f32 %v2858, %v2854
    %v2861 = vadd.f32 %v2859, %v2855
    %s2862 = scalar_lea.vmem [#allocation17], 32
    %v2863 = vld [vmem:[%s2862] sm:$0xff]
    %v2864 = vld [vmem:[%s2862 + $0x8] sm:$0xff]
    %v2865 = vld [vmem:[%s2862 + $0x10] sm:$0xff]
    %v2866 = vld [vmem:[%s2862 + $0x18] sm:$0xff]
    %v2868 = vsel %vm573, %v2502, 0
    %v2871 = vsel %vm573, %v2503, 0
    %v2874 = vsel %vm573, %v2860, 0
    %v2877 = vsel %vm573, %v2861, 0
    %2879 = vmatpush.msra.mxu0 0.0
    %2880 = vmatpush.msra.mxu0 0.0
    %2881 = vmatpush.msra.mxu0 0.0
    %2882 = vmatpush.msra.mxu0 0.0
    %2883 = vmatpush.msra.mxu0 0.0
    %2884 = vmatpush.msra.mxu0 0.0
    %2885 = vmatpush.msra.mxu0 0.0
    %2886 = vmatpush.msra.mxu0 0.0
    %2887 = vmatpush.msra.mxu0 0.0
    %2888 = vmatpush.msra.mxu0 0.0
    %2889 = vmatpush.msra.mxu0 0.0
    %2890 = vmatpush.msra.mxu0 0.0
    %2891 = vmatpush.msra.mxu0 %v2866
    %2892 = vmatpush.msra.mxu0 %v2865
    %2893 = vmatpush.msra.mxu0 %v2864
    %2894 = vmatpush.msra.mxu0 %v2863
    %2895 = vmatmul.f32.gmra.mxu0 %v2868
    %v2896 = vpop.f32.mrf.mxu0
    %v2897 = vadd.f32 0.0, %v2896
    %2898 = vmatmul.f32.gmra.mxu0 %v2871
    %v2899 = vpop.f32.mrf.mxu0
    %v2900 = vadd.f32 0.0, %v2899
    %2901 = vmatmul.f32.gmra.mxu0 %v2874
    %v2902 = vpop.f32.mrf.mxu0
    %v2903 = vadd.f32 0.0, %v2902
    %2904 = vmatmul.f32.gmra.mxu0 %v2877
    %v2905 = vpop.f32.mrf.mxu0
    %v2906 = vadd.f32 0.0, %v2905
    %2907 = vdwg.mxu0
    %v2908 = vadd.f32 %v1922, %v2897
    %v2909 = vadd.f32 %v1923, %v2900
    %v2910 = vadd.f32 %v1924, %v2903
    %v2911 = vadd.f32 %v1925, %v2906
    %s2912 = scalar_lea.vmem %s33, 1
    %v2913 = vld [vmem:[%s2912] sm:$0x1]
    %v2915 = vperm.slane %v2913, 0
    %v2917 = vadd.f32 %v2908, %v2915
    %v2918 = vadd.f32 %v2909, %v2915
    %v2919 = vadd.f32 %v2910, %v2915
    %v2920 = vadd.f32 %v2911, %v2915
    %s2921 = scalar_lea.vmem [#allocation19], 1
    %v2922 = vld [vmem:[%s2921] sm:$0x1]
    %s2923 = scalar_lea.vmem %s37, 1
    %v2924 = vld [vmem:[%s2923] sm:$0x1]
    %v2925 = vsel %vm573, %v2917, 0.0
    %2926 = vadd.xlane.f32.xlu0 %v2925
    %v2927 = vpop.xlane.xlu0 %2926
    %v2928 = vsel %vm573, %v2918, 0.0
    %2929 = vadd.xlane.f32.xlu0 %v2928
    %v2930 = vpop.xlane.xlu0 %2929
    %v2931 = vsel %vm573, %v2919, 0.0
    %2932 = vadd.xlane.f32.xlu0 %v2931
    %v2933 = vpop.xlane.xlu0 %2932
    %v2934 = vsel %vm573, %v2920, 0.0
    %2935 = vadd.xlane.f32.xlu0 %v2934
    %v2936 = vpop.xlane.xlu0 %2935
    %v2937 = vmul.f32 %v2927, %v592
    %v2938 = vmul.f32 %v2930, %v592
    %v2939 = vmul.f32 %v2933, %v592
    %v2940 = vmul.f32 %v2936, %v592
    %v2941 = vsub.f32 %v2917, %v2937
    %v2942 = vsub.f32 %v2918, %v2938
    %v2943 = vsub.f32 %v2919, %v2939
    %v2944 = vsub.f32 %v2920, %v2940
    %v2945 = vmul.f32 %v2941, %v2941
    %v2946 = vmul.f32 %v2942, %v2942
    %v2947 = vmul.f32 %v2943, %v2943
    %v2948 = vmul.f32 %v2944, %v2944
    %v2949 = vsel %vm573, %v2945, 0.0
    %2950 = vadd.xlane.f32.xlu0 %v2949
    %v2951 = vpop.xlane.xlu0 %2950
    %v2952 = vsel %vm573, %v2946, 0.0
    %2953 = vadd.xlane.f32.xlu0 %v2952
    %v2954 = vpop.xlane.xlu0 %2953
    %v2955 = vsel %vm573, %v2947, 0.0
    %2956 = vadd.xlane.f32.xlu0 %v2955
    %v2957 = vpop.xlane.xlu0 %2956
    %v2958 = vsel %vm573, %v2948, 0.0
    %2959 = vadd.xlane.f32.xlu0 %v2958
    %v2960 = vpop.xlane.xlu0 %2959
    %v2961 = vmul.f32 %v2951, %v592
    %v2962 = vmul.f32 %v2954, %v592
    %v2963 = vmul.f32 %v2957, %v592
    %v2964 = vmul.f32 %v2960, %v592
    %v2965 = vadd.f32 %v2961, 1e-05
    %v2966 = vadd.f32 %v2962, 1e-05
    %v2967 = vadd.f32 %v2963, 1e-05
    %v2968 = vadd.f32 %v2964, 1e-05
    %v2969 = vrsqrt.pop %v2965
    %v2970 = vmul.f32 %v2969, %v2965
    %v2971 = vmul.f32 %v2970, %v2969
    %v2972 = vmul.f32 0.5, %v2971
    %v2973 = vsub.f32 1.5, %v2972
    %v2974 = vmul.f32 %v2969, %v2973
    %vm2975 = vweird.f32 %v2965
    %vm2976 = vweird.f32 %v2969
    %vm2977 = vmor %vm2975, %vm2976
    %v2978 = vsel %vm2977, %v2969, %v2974
    %v2979 = vrsqrt.pop %v2966
    %v2980 = vmul.f32 %v2979, %v2966
    %v2981 = vmul.f32 %v2980, %v2979
    %v2982 = vmul.f32 0.5, %v2981
    %v2983 = vsub.f32 1.5, %v2982
    %v2984 = vmul.f32 %v2979, %v2983
    %vm2985 = vweird.f32 %v2966
    %vm2986 = vweird.f32 %v2979
    %vm2987 = vmor %vm2985, %vm2986
    %v2988 = vsel %vm2987, %v2979, %v2984
    %v2989 = vrsqrt.pop %v2967
    %v2990 = vmul.f32 %v2989, %v2967
    %v2991 = vmul.f32 %v2990, %v2989
    %v2992 = vmul.f32 0.5, %v2991
    %v2993 = vsub.f32 1.5, %v2992
    %v2994 = vmul.f32 %v2989, %v2993
    %vm2995 = vweird.f32 %v2967
    %vm2996 = vweird.f32 %v2989
    %vm2997 = vmor %vm2995, %vm2996
    %v2998 = vsel %vm2997, %v2989, %v2994
    %v2999 = vrsqrt.pop %v2968
    %v3000 = vmul.f32 %v2999, %v2968
    %v3001 = vmul.f32 %v3000, %v2999
    %v3002 = vmul.f32 0.5, %v3001
    %v3003 = vsub.f32 1.5, %v3002
    %v3004 = vmul.f32 %v2999, %v3003
    %vm3005 = vweird.f32 %v2968
    %vm3006 = vweird.f32 %v2999
    %vm3007 = vmor %vm3005, %vm3006
    %v3008 = vsel %vm3007, %v2999, %v3004
    %v3009 = vmul.f32 %v2941, %v2978
    %v3010 = vmul.f32 %v2942, %v2988
    %v3011 = vmul.f32 %v2943, %v2998
    %v3012 = vmul.f32 %v2944, %v3008
    %v3014 = vperm.slane %v2922, 0
    %v3016 = vmul.f32 %v3009, %v3014
    %v3017 = vmul.f32 %v3010, %v3014
    %v3018 = vmul.f32 %v3011, %v3014
    %v3019 = vmul.f32 %v3012, %v3014
    %v3021 = vperm.slane %v2924, 0
    %v3023 = vadd.f32 %v3016, %v3021
    %v3024 = vadd.f32 %v3017, %v3021
    %v3025 = vadd.f32 %v3018, %v3021
    %v3026 = vadd.f32 %v3019, %v3021
    %s3027 = scalar_lea.vmem [#allocation20], 32
    %v3028 = vld [vmem:[%s3027] sm:$0xff]
    %v3029 = vld [vmem:[%s3027 + $0x8] sm:$0xff]
    %v3030 = vld [vmem:[%s3027 + $0x10] sm:$0xff]
    %v3031 = vld [vmem:[%s3027 + $0x18] sm:$0xff]
    %s3032 = scalar_lea.vmem %s41, 1
    %v3033 = vld [vmem:[%s3032] sm:$0x1]
    %v3035 = vperm.slane %v3033, 0
    %v3038 = vsel %vm573, %v3023, 0
    %v3041 = vsel %vm573, %v3024, 0
    %v3044 = vsel %vm573, %v3025, 0
    %v3047 = vsel %vm573, %v3026, 0
    %3049 = vmatpush.msra.mxu0 0.0
    %3050 = vmatpush.msra.mxu0 0.0
    %3051 = vmatpush.msra.mxu0 0.0
    %3052 = vmatpush.msra.mxu0 0.0
    %3053 = vmatpush.msra.mxu0 0.0
    %3054 = vmatpush.msra.mxu0 0.0
    %3055 = vmatpush.msra.mxu0 0.0
    %3056 = vmatpush.msra.mxu0 0.0
    %3057 = vmatpush.msra.mxu0 0.0
    %3058 = vmatpush.msra.mxu0 0.0
    %3059 = vmatpush.msra.mxu0 0.0
    %3060 = vmatpush.msra.mxu0 0.0
    %3061 = vmatpush.msra.mxu0 %v3031
    %3062 = vmatpush.msra.mxu0 %v3030
    %3063 = vmatpush.msra.mxu0 %v3029
    %3064 = vmatpush.msra.mxu0 %v3028
    %3065 = vmatmul.f32.gmra.mxu0 %v3038
    %v3066 = vpop.f32.mrf.mxu0
    %v3067 = vadd.f32 %v3035, %v3066
    %3068 = vmatmul.f32.gmra.mxu0 %v3041
    %v3069 = vpop.f32.mrf.mxu0
    %v3070 = vadd.f32 %v3035, %v3069
    %3071 = vmatmul.f32.gmra.mxu0 %v3044
    %v3072 = vpop.f32.mrf.mxu0
    %v3073 = vadd.f32 %v3035, %v3072
    %3074 = vmatmul.f32.gmra.mxu0 %v3047
    %v3075 = vpop.f32.mrf.mxu0
    %v3076 = vadd.f32 %v3035, %v3075
    %3077 = vdwg.mxu0
    %v3078 = vmul.f32 %v3067, %v3067
    %v3079 = vmul.f32 %v3070, %v3070
    %v3080 = vmul.f32 %v3073, %v3073
    %v3081 = vmul.f32 %v3076, %v3076
    %v3082 = vmul.f32 %v3067, %v3078
    %v3083 = vmul.f32 %v3070, %v3079
    %v3084 = vmul.f32 %v3073, %v3080
    %v3085 = vmul.f32 %v3076, %v3081
    %v3086 = vmul.f32 %v3082, 0.044715
    %v3087 = vmul.f32 %v3083, 0.044715
    %v3088 = vmul.f32 %v3084, 0.044715
    %v3089 = vmul.f32 %v3085, 0.044715
    %v3090 = vadd.f32 %v3067, %v3086
    %v3091 = vadd.f32 %v3070, %v3087
    %v3092 = vadd.f32 %v3073, %v3088
    %v3093 = vadd.f32 %v3076, %v3089
    %v3094 = vmul.f32 %v3090, 0.7978846
    %v3095 = vmul.f32 %v3091, 0.7978846
    %v3096 = vmul.f32 %v3092, 0.7978846
    %v3097 = vmul.f32 %v3093, 0.7978846
    %v3098 = vtanh.pop %v3094
    %v3099 = vtanh.pop %v3095
    %v3100 = vtanh.pop %v3096
    %v3101 = vtanh.pop %v3097
    %v3102 = vadd.f32 %v3098, 1.0
    %v3103 = vadd.f32 %v3099, 1.0
    %v3104 = vadd.f32 %v3100, 1.0
    %v3105 = vadd.f32 %v3101, 1.0
    %v3106 = vmul.f32 %v3102, 0.5
    %v3107 = vmul.f32 %v3103, 0.5
    %v3108 = vmul.f32 %v3104, 0.5
    %v3109 = vmul.f32 %v3105, 0.5
    %v3110 = vmul.f32 %v3067, %v3106
    %v3111 = vmul.f32 %v3070, %v3107
    %v3112 = vmul.f32 %v3073, %v3108
    %v3113 = vmul.f32 %v3076, %v3109
    %s3114 = scalar_lea.vmem %s43, 128
    %v3115 = vld [vmem:[%s3114] sm:$0xff]
    %v3116 = vld [vmem:[%s3114 + $0x8] sm:$0xff]
    %v3117 = vld [vmem:[%s3114 + $0x10] sm:$0xff]
    %v3118 = vld [vmem:[%s3114 + $0x18] sm:$0xff]
    %v3119 = vld [vmem:[%s3114 + $0x20] sm:$0xff]
    %v3120 = vld [vmem:[%s3114 + $0x28] sm:$0xff]
    %v3121 = vld [vmem:[%s3114 + $0x30] sm:$0xff]
    %v3122 = vld [vmem:[%s3114 + $0x38] sm:$0xff]
    %v3123 = vld [vmem:[%s3114 + $0x40] sm:$0xff]
    %v3124 = vld [vmem:[%s3114 + $0x48] sm:$0xff]
    %v3125 = vld [vmem:[%s3114 + $0x50] sm:$0xff]
    %v3126 = vld [vmem:[%s3114 + $0x58] sm:$0xff]
    %v3127 = vld [vmem:[%s3114 + $0x60] sm:$0xff]
    %v3128 = vld [vmem:[%s3114 + $0x68] sm:$0xff]
    %v3129 = vld [vmem:[%s3114 + $0x70] sm:$0xff]
    %v3130 = vld [vmem:[%s3114 + $0x78] sm:$0xff]
    %3131 = vmatpush.msra.mxu0 %v3130
    %3132 = vmatpush.msra.mxu0 %v3129
    %3133 = vmatpush.msra.mxu0 %v3128
    %3134 = vmatpush.msra.mxu0 %v3127
    %3135 = vmatpush.msra.mxu0 %v3126
    %3136 = vmatpush.msra.mxu0 %v3125
    %3137 = vmatpush.msra.mxu0 %v3124
    %3138 = vmatpush.msra.mxu0 %v3123
    %3139 = vmatpush.msra.mxu0 %v3122
    %3140 = vmatpush.msra.mxu0 %v3121
    %3141 = vmatpush.msra.mxu0 %v3120
    %3142 = vmatpush.msra.mxu0 %v3119
    %3143 = vmatpush.msra.mxu0 %v3118
    %3144 = vmatpush.msra.mxu0 %v3117
    %3145 = vmatpush.msra.mxu0 %v3116
    %3146 = vmatpush.msra.mxu0 %v3115
    %3147 = vmatmul.f32.gmra.mxu0 %v3110
    %v3148 = vpop.f32.mrf.mxu0
    %v3149 = vadd.f32 0.0, %v3148
    %3150 = vmatmul.f32.gmra.mxu0 %v3111
    %v3151 = vpop.f32.mrf.mxu0
    %v3152 = vadd.f32 0.0, %v3151
    %3153 = vmatmul.f32.gmra.mxu0 %v3112
    %v3154 = vpop.f32.mrf.mxu0
    %v3155 = vadd.f32 0.0, %v3154
    %3156 = vmatmul.f32.gmra.mxu0 %v3113
    %v3157 = vpop.f32.mrf.mxu0
    %v3158 = vadd.f32 0.0, %v3157
    %3159 = vdwg.mxu0
    %v3160 = vadd.f32 %v2917, %v3149
    %v3161 = vadd.f32 %v2918, %v3152
    %v3162 = vadd.f32 %v2919, %v3155
    %v3163 = vadd.f32 %v2920, %v3158
    %s3164 = scalar_lea.vmem %s45, 1
    %v3165 = vld [vmem:[%s3164] sm:$0x1]
    %v3167 = vperm.slane %v3165, 0
    %v3169 = vadd.f32 %v3160, %v3167
    %v3170 = vadd.f32 %v3161, %v3167
    %v3171 = vadd.f32 %v3162, %v3167
    %v3172 = vadd.f32 %v3163, %v3167
    %v3173 = vld [vmem:[%s47] sm:$0xff]
    %v3174 = vld [vmem:[%s47 + $0x8] sm:$0xff]
    %v3175 = vld [vmem:[%s47 + $0x10] sm:$0xff]
    %v3176 = vld [vmem:[%s47 + $0x18] sm:$0xff]
    %v3177 = vld [vmem:[%s47 + $0x20] sm:$0xff]
    %v3178 = vld [vmem:[%s47 + $0x28] sm:$0xff]
    %v3179 = vld [vmem:[%s47 + $0x30] sm:$0xff]
    %v3180 = vld [vmem:[%s47 + $0x38] sm:$0xff]
    %v3181 = vld [vmem:[%s49] sm:$0x3]
    %v3183 = vperm.slane %v3181, 0
    %v3184 = vperm.slane %v3181, 1
    %v3188 = vsel %vm573, %v679, 0
    %v3191 = vsel %vm573, %v680, 0
    %v3194 = vsel %vm573, %v681, 0
    %v3197 = vsel %vm573, %v682, 0
    %3199 = vmatpush.msra.mxu0 0.0
    %3200 = vmatpush.msra.mxu0 0.0
    %3201 = vmatpush.msra.mxu0 0.0
    %3202 = vmatpush.msra.mxu0 0.0
    %3203 = vmatpush.msra.mxu0 0.0
    %3204 = vmatpush.msra.mxu0 0.0
    %3205 = vmatpush.msra.mxu0 0.0
    %3206 = vmatpush.msra.mxu0 0.0
    %3207 = vmatpush.msra.mxu0 0.0
    %3208 = vmatpush.msra.mxu0 0.0
    %3209 = vmatpush.msra.mxu0 0.0
    %3210 = vmatpush.msra.mxu0 0.0
    %3211 = vmatpush.msra.mxu0 %v3179
    %3212 = vmatpush.msra.mxu0 %v3177
    %3213 = vmatpush.msra.mxu0 %v3175
    %3214 = vmatpush.msra.mxu0 %v3173
    %3215 = vmatmul.f32.gmra.mxu0 %v3188
    %v3216 = vpop.f32.mrf.mxu0
    %v3217 = vadd.f32 %v3183, %v3216
    %3218 = vmatmul.f32.gmra.mxu0 %v3191
    %v3219 = vpop.f32.mrf.mxu0
    %v3220 = vadd.f32 %v3183, %v3219
    %3221 = vmatmul.f32.gmra.mxu0 %v3194
    %v3222 = vpop.f32.mrf.mxu0
    %v3223 = vadd.f32 %v3183, %v3222
    %3224 = vmatmul.f32.gmra.mxu0 %v3197
    %v3225 = vpop.f32.mrf.mxu0
    %v3226 = vadd.f32 %v3183, %v3225
    %3227 = vdwg.mxu0
    %3228 = vmatpush.msra.mxu0 0.0
    %3229 = vmatpush.msra.mxu0 0.0
    %3230 = vmatpush.msra.mxu0 0.0
    %3231 = vmatpush.msra.mxu0 0.0
    %3232 = vmatpush.msra.mxu0 0.0
    %3233 = vmatpush.msra.mxu0 0.0
    %3234 = vmatpush.msra.mxu0 0.0
    %3235 = vmatpush.msra.mxu0 0.0
    %3236 = vmatpush.msra.mxu0 0.0
    %3237 = vmatpush.msra.mxu0 0.0
    %3238 = vmatpush.msra.mxu0 0.0
    %3239 = vmatpush.msra.mxu0 0.0
    %3240 = vmatpush.msra.mxu0 %v3180
    %3241 = vmatpush.msra.mxu0 %v3178
    %3242 = vmatpush.msra.mxu0 %v3176
    %3243 = vmatpush.msra.mxu0 %v3174
    %3244 = vmatmul.f32.gmra.mxu0 %v3188
    %v3245 = vpop.f32.mrf.mxu0
    %v3246 = vadd.f32 %v3184, %v3245
    %3247 = vmatmul.f32.gmra.mxu0 %v3191
    %v3248 = vpop.f32.mrf.mxu0
    %v3249 = vadd.f32 %v3184, %v3248
    %3250 = vmatmul.f32.gmra.mxu0 %v3194
    %v3251 = vpop.f32.mrf.mxu0
    %v3252 = vadd.f32 %v3184, %v3251
    %3253 = vmatmul.f32.gmra.mxu0 %v3197
    %v3254 = vpop.f32.mrf.mxu0
    %v3255 = vadd.f32 %v3184, %v3254
    %3256 = vdwg.mxu0
    %v3257 = vadd.f32 %v3217, %v3220
    %v3258 = vadd.f32 %v3257, %v3223
    %v3259 = vadd.f32 %v3258, %v3226
    %v3260 = vrot.slane %v3259, 4
    %v3261 = vadd.f32 %v3259, %v3260
    %v3262 = vrot.slane %v3261, 2
    %v3263 = vadd.f32 %v3261, %v3262
    %v3264 = vrot.slane %v3263, 1
    %v3265 = vadd.f32 %v3263, %v3264
    %v3266 = vadd.f32 %v3246, %v3249
    %v3267 = vadd.f32 %v3266, %v3252
    %v3268 = vadd.f32 %v3267, %v3255
    %v3269 = vrot.slane %v3268, 4
    %v3270 = vadd.f32 %v3268, %v3269
    %v3271 = vrot.slane %v3270, 2
    %v3272 = vadd.f32 %v3270, %v3271
    %v3273 = vrot.slane %v3272, 1
    %v3274 = vadd.f32 %v3272, %v3273
    %s3275 = scalar_lea.vmem %s47, 64
    %v3276 = vld [vmem:[%s3275] sm:$0xff]
    %v3277 = vld [vmem:[%s3275 + $0x8] sm:$0xff]
    %v3278 = vld [vmem:[%s3275 + $0x10] sm:$0xff]
    %v3279 = vld [vmem:[%s3275 + $0x18] sm:$0xff]
    %v3280 = vld [vmem:[%s3275 + $0x20] sm:$0xff]
    %v3281 = vld [vmem:[%s3275 + $0x28] sm:$0xff]
    %v3282 = vld [vmem:[%s3275 + $0x30] sm:$0xff]
    %v3283 = vld [vmem:[%s3275 + $0x38] sm:$0xff]
    %3284 = vmatpush.msra.mxu0 0.0
    %3285 = vmatpush.msra.mxu0 0.0
    %3286 = vmatpush.msra.mxu0 0.0
    %3287 = vmatpush.msra.mxu0 0.0
    %3288 = vmatpush.msra.mxu0 0.0
    %3289 = vmatpush.msra.mxu0 0.0
    %3290 = vmatpush.msra.mxu0 0.0
    %3291 = vmatpush.msra.mxu0 0.0
    %3292 = vmatpush.msra.mxu0 0.0
    %3293 = vmatpush.msra.mxu0 0.0
    %3294 = vmatpush.msra.mxu0 0.0
    %3295 = vmatpush.msra.mxu0 0.0
    %3296 = vmatpush.msra.mxu0 %v3282
    %3297 = vmatpush.msra.mxu0 %v3280
    %3298 = vmatpush.msra.mxu0 %v3278
    %3299 = vmatpush.msra.mxu0 %v3276
    %3300 = vmatmul.f32.gmra.mxu0 %v3188
    %v3301 = vpop.f32.mrf.mxu0
    %v3302 = vadd.f32 %v3183, %v3301
    %3303 = vmatmul.f32.gmra.mxu0 %v3191
    %v3304 = vpop.f32.mrf.mxu0
    %v3305 = vadd.f32 %v3183, %v3304
    %3306 = vmatmul.f32.gmra.mxu0 %v3194
    %v3307 = vpop.f32.mrf.mxu0
    %v3308 = vadd.f32 %v3183, %v3307
    %3309 = vmatmul.f32.gmra.mxu0 %v3197
    %v3310 = vpop.f32.mrf.mxu0
    %v3311 = vadd.f32 %v3183, %v3310
    %3312 = vdwg.mxu0
    %3313 = vmatpush.msra.mxu0 0.0
    %3314 = vmatpush.msra.mxu0 0.0
    %3315 = vmatpush.msra.mxu0 0.0
    %3316 = vmatpush.msra.mxu0 0.0
    %3317 = vmatpush.msra.mxu0 0.0
    %3318 = vmatpush.msra.mxu0 0.0
    %3319 = vmatpush.msra.mxu0 0.0
    %3320 = vmatpush.msra.mxu0 0.0
    %3321 = vmatpush.msra.mxu0 0.0
    %3322 = vmatpush.msra.mxu0 0.0
    %3323 = vmatpush.msra.mxu0 0.0
    %3324 = vmatpush.msra.mxu0 0.0
    %3325 = vmatpush.msra.mxu0 %v3283
    %3326 = vmatpush.msra.mxu0 %v3281
    %3327 = vmatpush.msra.mxu0 %v3279
    %3328 = vmatpush.msra.mxu0 %v3277
    %3329 = vmatmul.f32.gmra.mxu0 %v3188
    %v3330 = vpop.f32.mrf.mxu0
    %v3331 = vadd.f32 %v3184, %v3330
    %3332 = vmatmul.f32.gmra.mxu0 %v3191
    %v3333 = vpop.f32.mrf.mxu0
    %v3334 = vadd.f32 %v3184, %v3333
    %3335 = vmatmul.f32.gmra.mxu0 %v3194
    %v3336 = vpop.f32.mrf.mxu0
    %v3337 = vadd.f32 %v3184, %v3336
    %3338 = vmatmul.f32.gmra.mxu0 %v3197
    %v3339 = vpop.f32.mrf.mxu0
    %v3340 = vadd.f32 %v3184, %v3339
    %3341 = vdwg.mxu0
    %v3342 = vadd.f32 %v3302, %v3305
    %v3343 = vadd.f32 %v3342, %v3308
    %v3344 = vadd.f32 %v3343, %v3311
    %v3345 = vrot.slane %v3344, 4
    %v3346 = vadd.f32 %v3344, %v3345
    %v3347 = vrot.slane %v3346, 2
    %v3348 = vadd.f32 %v3346, %v3347
    %v3349 = vrot.slane %v3348, 1
    %v3350 = vadd.f32 %v3348, %v3349
    %v3351 = vadd.f32 %v3331, %v3334
    %v3352 = vadd.f32 %v3351, %v3337
    %v3353 = vadd.f32 %v3352, %v3340
    %v3354 = vrot.slane %v3353, 4
    %v3355 = vadd.f32 %v3353, %v3354
    %v3356 = vrot.slane %v3355, 2
    %v3357 = vadd.f32 %v3355, %v3356
    %v3358 = vrot.slane %v3357, 1
    %v3359 = vadd.f32 %v3357, %v3358
    %v3360 = vadd.f32 %v3265, %v3350
    %v3361 = vadd.f32 %v3274, %v3359
    %s3362 = scalar_lea.vmem %s47, 128
    %v3363 = vld [vmem:[%s3362] sm:$0xff]
    %v3364 = vld [vmem:[%s3362 + $0x8] sm:$0xff]
    %v3365 = vld [vmem:[%s3362 + $0x10] sm:$0xff]
    %v3366 = vld [vmem:[%s3362 + $0x18] sm:$0xff]
    %v3367 = vld [vmem:[%s3362 + $0x20] sm:$0xff]
    %v3368 = vld [vmem:[%s3362 + $0x28] sm:$0xff]
    %v3369 = vld [vmem:[%s3362 + $0x30] sm:$0xff]
    %v3370 = vld [vmem:[%s3362 + $0x38] sm:$0xff]
    %3371 = vmatpush.msra.mxu0 0.0
    %3372 = vmatpush.msra.mxu0 0.0
    %3373 = vmatpush.msra.mxu0 0.0
    %3374 = vmatpush.msra.mxu0 0.0
    %3375 = vmatpush.msra.mxu0 0.0
    %3376 = vmatpush.msra.mxu0 0.0
    %3377 = vmatpush.msra.mxu0 0.0
    %3378 = vmatpush.msra.mxu0 0.0
    %3379 = vmatpush.msra.mxu0 0.0
    %3380 = vmatpush.msra.mxu0 0.0
    %3381 = vmatpush.msra.mxu0 0.0
    %3382 = vmatpush.msra.mxu0 0.0
    %3383 = vmatpush.msra.mxu0 %v3369
    %3384 = vmatpush.msra.mxu0 %v3367
    %3385 = vmatpush.msra.mxu0 %v3365
    %3386 = vmatpush.msra.mxu0 %v3363
    %3387 = vmatmul.f32.gmra.mxu0 %v3188
    %v3388 = vpop.f32.mrf.mxu0
    %v3389 = vadd.f32 %v3183, %v3388
    %3390 = vmatmul.f32.gmra.mxu0 %v3191
    %v3391 = vpop.f32.mrf.mxu0
    %v3392 = vadd.f32 %v3183, %v3391
    %3393 = vmatmul.f32.gmra.mxu0 %v3194
    %v3394 = vpop.f32.mrf.mxu0
    %v3395 = vadd.f32 %v3183, %v3394
    %3396 = vmatmul.f32.gmra.mxu0 %v3197
    %v3397 = vpop.f32.mrf.mxu0
    %v3398 = vadd.f32 %v3183, %v3397
    %3399 = vdwg.mxu0
    %3400 = vmatpush.msra.mxu0 0.0
    %3401 = vmatpush.msra.mxu0 0.0
    %3402 = vmatpush.msra.mxu0 0.0
    %3403 = vmatpush.msra.mxu0 0.0
    %3404 = vmatpush.msra.mxu0 0.0
    %3405 = vmatpush.msra.mxu0 0.0
    %3406 = vmatpush.msra.mxu0 0.0
    %3407 = vmatpush.msra.mxu0 0.0
    %3408 = vmatpush.msra.mxu0 0.0
    %3409 = vmatpush.msra.mxu0 0.0
    %3410 = vmatpush.msra.mxu0 0.0
    %3411 = vmatpush.msra.mxu0 0.0
    %3412 = vmatpush.msra.mxu0 %v3370
    %3413 = vmatpush.msra.mxu0 %v3368
    %3414 = vmatpush.msra.mxu0 %v3366
    %3415 = vmatpush.msra.mxu0 %v3364
    %3416 = vmatmul.f32.gmra.mxu0 %v3188
    %v3417 = vpop.f32.mrf.mxu0
    %v3418 = vadd.f32 %v3184, %v3417
    %3419 = vmatmul.f32.gmra.mxu0 %v3191
    %v3420 = vpop.f32.mrf.mxu0
    %v3421 = vadd.f32 %v3184, %v3420
    %3422 = vmatmul.f32.gmra.mxu0 %v3194
    %v3423 = vpop.f32.mrf.mxu0
    %v3424 = vadd.f32 %v3184, %v3423
    %3425 = vmatmul.f32.gmra.mxu0 %v3197
    %v3426 = vpop.f32.mrf.mxu0
    %v3427 = vadd.f32 %v3184, %v3426
    %3428 = vdwg.mxu0
    %v3429 = vadd.f32 %v3389, %v3392
    %v3430 = vadd.f32 %v3429, %v3395
    %v3431 = vadd.f32 %v3430, %v3398
    %v3432 = vrot.slane %v3431, 4
    %v3433 = vadd.f32 %v3431, %v3432
    %v3434 = vrot.slane %v3433, 2
    %v3435 = vadd.f32 %v3433, %v3434
    %v3436 = vrot.slane %v3435, 1
    %v3437 = vadd.f32 %v3435, %v3436
    %v3438 = vadd.f32 %v3418, %v3421
    %v3439 = vadd.f32 %v3438, %v3424
    %v3440 = vadd.f32 %v3439, %v3427
    %v3441 = vrot.slane %v3440, 4
    %v3442 = vadd.f32 %v3440, %v3441
    %v3443 = vrot.slane %v3442, 2
    %v3444 = vadd.f32 %v3442, %v3443
    %v3445 = vrot.slane %v3444, 1
    %v3446 = vadd.f32 %v3444, %v3445
    %v3447 = vadd.f32 %v3360, %v3437
    %v3448 = vadd.f32 %v3361, %v3446
    %s3449 = scalar_lea.vmem %s47, 192
    %v3450 = vld [vmem:[%s3449] sm:$0xff]
    %v3451 = vld [vmem:[%s3449 + $0x8] sm:$0xff]
    %v3452 = vld [vmem:[%s3449 + $0x10] sm:$0xff]
    %v3453 = vld [vmem:[%s3449 + $0x18] sm:$0xff]
    %v3454 = vld [vmem:[%s3449 + $0x20] sm:$0xff]
    %v3455 = vld [vmem:[%s3449 + $0x28] sm:$0xff]
    %v3456 = vld [vmem:[%s3449 + $0x30] sm:$0xff]
    %v3457 = vld [vmem:[%s3449 + $0x38] sm:$0xff]
    %3458 = vmatpush.msra.mxu0 0.0
    %3459 = vmatpush.msra.mxu0 0.0
    %3460 = vmatpush.msra.mxu0 0.0
    %3461 = vmatpush.msra.mxu0 0.0
    %3462 = vmatpush.msra.mxu0 0.0
    %3463 = vmatpush.msra.mxu0 0.0
    %3464 = vmatpush.msra.mxu0 0.0
    %3465 = vmatpush.msra.mxu0 0.0
    %3466 = vmatpush.msra.mxu0 0.0
    %3467 = vmatpush.msra.mxu0 0.0
    %3468 = vmatpush.msra.mxu0 0.0
    %3469 = vmatpush.msra.mxu0 0.0
    %3470 = vmatpush.msra.mxu0 %v3456
    %3471 = vmatpush.msra.mxu0 %v3454
    %3472 = vmatpush.msra.mxu0 %v3452
    %3473 = vmatpush.msra.mxu0 %v3450
    %3474 = vmatmul.f32.gmra.mxu0 %v3188
    %v3475 = vpop.f32.mrf.mxu0
    %v3476 = vadd.f32 %v3183, %v3475
    %3477 = vmatmul.f32.gmra.mxu0 %v3191
    %v3478 = vpop.f32.mrf.mxu0
    %v3479 = vadd.f32 %v3183, %v3478
    %3480 = vmatmul.f32.gmra.mxu0 %v3194
    %v3481 = vpop.f32.mrf.mxu0
    %v3482 = vadd.f32 %v3183, %v3481
    %3483 = vmatmul.f32.gmra.mxu0 %v3197
    %v3484 = vpop.f32.mrf.mxu0
    %v3485 = vadd.f32 %v3183, %v3484
    %3486 = vdwg.mxu0
    %3487 = vmatpush.msra.mxu0 0.0
    %3488 = vmatpush.msra.mxu0 0.0
    %3489 = vmatpush.msra.mxu0 0.0
    %3490 = vmatpush.msra.mxu0 0.0
    %3491 = vmatpush.msra.mxu0 0.0
    %3492 = vmatpush.msra.mxu0 0.0
    %3493 = vmatpush.msra.mxu0 0.0
    %3494 = vmatpush.msra.mxu0 0.0
    %3495 = vmatpush.msra.mxu0 0.0
    %3496 = vmatpush.msra.mxu0 0.0
    %3497 = vmatpush.msra.mxu0 0.0
    %3498 = vmatpush.msra.mxu0 0.0
    %3499 = vmatpush.msra.mxu0 %v3457
    %3500 = vmatpush.msra.mxu0 %v3455
    %3501 = vmatpush.msra.mxu0 %v3453
    %3502 = vmatpush.msra.mxu0 %v3451
    %3503 = vmatmul.f32.gmra.mxu0 %v3188
    %v3504 = vpop.f32.mrf.mxu0
    %v3505 = vadd.f32 %v3184, %v3504
    %3506 = vmatmul.f32.gmra.mxu0 %v3191
    %v3507 = vpop.f32.mrf.mxu0
    %v3508 = vadd.f32 %v3184, %v3507
    %3509 = vmatmul.f32.gmra.mxu0 %v3194
    %v3510 = vpop.f32.mrf.mxu0
    %v3511 = vadd.f32 %v3184, %v3510
    %3512 = vmatmul.f32.gmra.mxu0 %v3197
    %v3513 = vpop.f32.mrf.mxu0
    %v3514 = vadd.f32 %v3184, %v3513
    %3515 = vdwg.mxu0
    %v3516 = vadd.f32 %v3476, %v3479
    %v3517 = vadd.f32 %v3516, %v3482
    %v3518 = vadd.f32 %v3517, %v3485
    %v3519 = vrot.slane %v3518, 4
    %v3520 = vadd.f32 %v3518, %v3519
    %v3521 = vrot.slane %v3520, 2
    %v3522 = vadd.f32 %v3520, %v3521
    %v3523 = vrot.slane %v3522, 1
    %v3524 = vadd.f32 %v3522, %v3523
    %v3525 = vadd.f32 %v3505, %v3508
    %v3526 = vadd.f32 %v3525, %v3511
    %v3527 = vadd.f32 %v3526, %v3514
    %v3528 = vrot.slane %v3527, 4
    %v3529 = vadd.f32 %v3527, %v3528
    %v3530 = vrot.slane %v3529, 2
    %v3531 = vadd.f32 %v3529, %v3530
    %v3532 = vrot.slane %v3531, 1
    %v3533 = vadd.f32 %v3531, %v3532
    %v3534 = vadd.f32 %v3447, %v3524
    %v3535 = vadd.f32 %v3448, %v3533
    %v3536 = vmul.f32 %v3534, 0.0078125
    %v3537 = vmul.f32 %v3535, 0.0078125
    %v3538 = vsub.f32 %v3217, %v3536
    %v3539 = vsub.f32 %v3246, %v3537
    %v3540 = vsub.f32 %v3220, %v3536
    %v3541 = vsub.f32 %v3249, %v3537
    %v3542 = vsub.f32 %v3223, %v3536
    %v3543 = vsub.f32 %v3252, %v3537
    %v3544 = vsub.f32 %v3226, %v3536
    %v3545 = vsub.f32 %v3255, %v3537
    %v3546 = vmul.f32 %v3538, %v3538
    %v3547 = vmul.f32 %v3539, %v3539
    %v3548 = vmul.f32 %v3540, %v3540
    %v3549 = vmul.f32 %v3541, %v3541
    %v3550 = vmul.f32 %v3542, %v3542
    %v3551 = vmul.f32 %v3543, %v3543
    %v3552 = vmul.f32 %v3544, %v3544
    %v3553 = vmul.f32 %v3545, %v3545
    %v3554 = vadd.f32 %v3546, %v3548
    %v3555 = vadd.f32 %v3554, %v3550
    %v3556 = vadd.f32 %v3555, %v3552
    %v3557 = vrot.slane %v3556, 4
    %v3558 = vadd.f32 %v3556, %v3557
    %v3559 = vrot.slane %v3558, 2
    %v3560 = vadd.f32 %v3558, %v3559
    %v3561 = vrot.slane %v3560, 1
    %v3562 = vadd.f32 %v3560, %v3561
    %v3563 = vadd.f32 %v3547, %v3549
    %v3564 = vadd.f32 %v3563, %v3551
    %v3565 = vadd.f32 %v3564, %v3553
    %v3566 = vrot.slane %v3565, 4
    %v3567 = vadd.f32 %v3565, %v3566
    %v3568 = vrot.slane %v3567, 2
    %v3569 = vadd.f32 %v3567, %v3568
    %v3570 = vrot.slane %v3569, 1
    %v3571 = vadd.f32 %v3569, %v3570
    %v3572 = vsub.f32 %v3302, %v3536
    %v3573 = vsub.f32 %v3331, %v3537
    %v3574 = vsub.f32 %v3305, %v3536
    %v3575 = vsub.f32 %v3334, %v3537
    %v3576 = vsub.f32 %v3308, %v3536
    %v3577 = vsub.f32 %v3337, %v3537
    %v3578 = vsub.f32 %v3311, %v3536
    %v3579 = vsub.f32 %v3340, %v3537
    %v3580 = vmul.f32 %v3572, %v3572
    %v3581 = vmul.f32 %v3573, %v3573
    %v3582 = vmul.f32 %v3574, %v3574
    %v3583 = vmul.f32 %v3575, %v3575
    %v3584 = vmul.f32 %v3576, %v3576
    %v3585 = vmul.f32 %v3577, %v3577
    %v3586 = vmul.f32 %v3578, %v3578
    %v3587 = vmul.f32 %v3579, %v3579
    %v3588 = vadd.f32 %v3580, %v3582
    %v3589 = vadd.f32 %v3588, %v3584
    %v3590 = vadd.f32 %v3589, %v3586
    %v3591 = vrot.slane %v3590, 4
    %v3592 = vadd.f32 %v3590, %v3591
    %v3593 = vrot.slane %v3592, 2
    %v3594 = vadd.f32 %v3592, %v3593
    %v3595 = vrot.slane %v3594, 1
    %v3596 = vadd.f32 %v3594, %v3595
    %v3597 = vadd.f32 %v3581, %v3583
    %v3598 = vadd.f32 %v3597, %v3585
    %v3599 = vadd.f32 %v3598, %v3587
    %v3600 = vrot.slane %v3599, 4
    %v3601 = vadd.f32 %v3599, %v3600
    %v3602 = vrot.slane %v3601, 2
    %v3603 = vadd.f32 %v3601, %v3602
    %v3604 = vrot.slane %v3603, 1
    %v3605 = vadd.f32 %v3603, %v3604
    %v3606 = vadd.f32 %v3562, %v3596
    %v3607 = vadd.f32 %v3571, %v3605
    %v3608 = vsub.f32 %v3389, %v3536
    %v3609 = vsub.f32 %v3418, %v3537
    %v3610 = vsub.f32 %v3392, %v3536
    %v3611 = vsub.f32 %v3421, %v3537
    %v3612 = vsub.f32 %v3395, %v3536
    %v3613 = vsub.f32 %v3424, %v3537
    %v3614 = vsub.f32 %v3398, %v3536
    %v3615 = vsub.f32 %v3427, %v3537
    %v3616 = vmul.f32 %v3608, %v3608
    %v3617 = vmul.f32 %v3609, %v3609
    %v3618 = vmul.f32 %v3610, %v3610
    %v3619 = vmul.f32 %v3611, %v3611
    %v3620 = vmul.f32 %v3612, %v3612
    %v3621 = vmul.f32 %v3613, %v3613
    %v3622 = vmul.f32 %v3614, %v3614
    %v3623 = vmul.f32 %v3615, %v3615
    %v3624 = vadd.f32 %v3616, %v3618
    %v3625 = vadd.f32 %v3624, %v3620
    %v3626 = vadd.f32 %v3625, %v3622
    %v3627 = vrot.slane %v3626, 4
    %v3628 = vadd.f32 %v3626, %v3627
    %v3629 = vrot.slane %v3628, 2
    %v3630 = vadd.f32 %v3628, %v3629
    %v3631 = vrot.slane %v3630, 1
    %v3632 = vadd.f32 %v3630, %v3631
    %v3633 = vadd.f32 %v3617, %v3619
    %v3634 = vadd.f32 %v3633, %v3621
    %v3635 = vadd.f32 %v3634, %v3623
    %v3636 = vrot.slane %v3635, 4
    %v3637 = vadd.f32 %v3635, %v3636
    %v3638 = vrot.slane %v3637, 2
    %v3639 = vadd.f32 %v3637, %v3638
    %v3640 = vrot.slane %v3639, 1
    %v3641 = vadd.f32 %v3639, %v3640
    %v3642 = vadd.f32 %v3606, %v3632
    %v3643 = vadd.f32 %v3607, %v3641
    %v3644 = vsub.f32 %v3476, %v3536
    %v3645 = vsub.f32 %v3505, %v3537
    %v3646 = vsub.f32 %v3479, %v3536
    %v3647 = vsub.f32 %v3508, %v3537
    %v3648 = vsub.f32 %v3482, %v3536
    %v3649 = vsub.f32 %v3511, %v3537
    %v3650 = vsub.f32 %v3485, %v3536
    %v3651 = vsub.f32 %v3514, %v3537
    %v3652 = vmul.f32 %v3644, %v3644
    %v3653 = vmul.f32 %v3645, %v3645
    %v3654 = vmul.f32 %v3646, %v3646
    %v3655 = vmul.f32 %v3647, %v3647
    %v3656 = vmul.f32 %v3648, %v3648
    %v3657 = vmul.f32 %v3649, %v3649
    %v3658 = vmul.f32 %v3650, %v3650
    %v3659 = vmul.f32 %v3651, %v3651
    %v3660 = vadd.f32 %v3652, %v3654
    %v3661 = vadd.f32 %v3660, %v3656
    %v3662 = vadd.f32 %v3661, %v3658
    %v3663 = vrot.slane %v3662, 4
    %v3664 = vadd.f32 %v3662, %v3663
    %v3665 = vrot.slane %v3664, 2
    %v3666 = vadd.f32 %v3664, %v3665
    %v3667 = vrot.slane %v3666, 1
    %v3668 = vadd.f32 %v3666, %v3667
    %v3669 = vadd.f32 %v3653, %v3655
    %v3670 = vadd.f32 %v3669, %v3657
    %v3671 = vadd.f32 %v3670, %v3659
    %v3672 = vrot.slane %v3671, 4
    %v3673 = vadd.f32 %v3671, %v3672
    %v3674 = vrot.slane %v3673, 2
    %v3675 = vadd.f32 %v3673, %v3674
    %v3676 = vrot.slane %v3675, 1
    %v3677 = vadd.f32 %v3675, %v3676
    %v3678 = vadd.f32 %v3642, %v3668
    %v3679 = vadd.f32 %v3643, %v3677
    %v3680 = vmul.f32 %v3678, 0.0078125
    %v3681 = vmul.f32 %v3679, 0.0078125
    %v3682 = vadd.f32 %v3680, 1e-05
    %v3683 = vadd.f32 %v3681, 1e-05
    %v3684 = vrsqrt.pop %v3682
    %v3685 = vmul.f32 %v3684, %v3682
    %v3686 = vmul.f32 %v3685, %v3684
    %v3687 = vmul.f32 0.5, %v3686
    %v3688 = vsub.f32 1.5, %v3687
    %v3689 = vmul.f32 %v3684, %v3688
    %vm3690 = vweird.f32 %v3682
    %vm3691 = vweird.f32 %v3684
    %vm3692 = vmor %vm3690, %vm3691
    %v3693 = vsel %vm3692, %v3684, %v3689
    %v3694 = vrsqrt.pop %v3683
    %v3695 = vmul.f32 %v3694, %v3683
    %v3696 = vmul.f32 %v3695, %v3694
    %v3697 = vmul.f32 0.5, %v3696
    %v3698 = vsub.f32 1.5, %v3697
    %v3699 = vmul.f32 %v3694, %v3698
    %vm3700 = vweird.f32 %v3683
    %vm3701 = vweird.f32 %v3694
    %vm3702 = vmor %vm3700, %vm3701
    %v3703 = vsel %vm3702, %v3694, %v3699
    %v3704 = vld [vmem:[#allocation22] sm:$0xff]
    %v3705 = vld [vmem:[#allocation22 + $0x8] sm:$0xff]
    %v3706 = vld [vmem:[#allocation22 + $0x10] sm:$0xff]
    %v3707 = vld [vmem:[#allocation22 + $0x18] sm:$0xff]
    %v3708 = vld [vmem:[#allocation22 + $0x20] sm:$0xff]
    %v3709 = vld [vmem:[#allocation22 + $0x28] sm:$0xff]
    %v3710 = vld [vmem:[#allocation22 + $0x30] sm:$0xff]
    %v3711 = vld [vmem:[#allocation22 + $0x38] sm:$0xff]
    %v3712 = vld [vmem:[#allocation22 + $0x40] sm:$0xff]
    %v3713 = vld [vmem:[#allocation22 + $0x48] sm:$0xff]
    %v3714 = vld [vmem:[#allocation22 + $0x50] sm:$0xff]
    %v3715 = vld [vmem:[#allocation22 + $0x58] sm:$0xff]
    %v3716 = vld [vmem:[#allocation22 + $0x60] sm:$0xff]
    %v3717 = vld [vmem:[#allocation22 + $0x68] sm:$0xff]
    %v3718 = vld [vmem:[#allocation22 + $0x70] sm:$0xff]
    %v3719 = vld [vmem:[#allocation22 + $0x78] sm:$0xff]
    %v3720 = vld [vmem:[#allocation22 + $0x80] sm:$0xff]
    %v3721 = vld [vmem:[#allocation22 + $0x88] sm:$0xff]
    %v3722 = vld [vmem:[#allocation22 + $0x90] sm:$0xff]
    %v3723 = vld [vmem:[#allocation22 + $0x98] sm:$0xff]
    %v3724 = vld [vmem:[#allocation22 + $0xa0] sm:$0xff]
    %v3725 = vld [vmem:[#allocation22 + $0xa8] sm:$0xff]
    %v3726 = vld [vmem:[#allocation22 + $0xb0] sm:$0xff]
    %v3727 = vld [vmem:[#allocation22 + $0xb8] sm:$0xff]
    %v3728 = vld [vmem:[#allocation22 + $0xc0] sm:$0xff]
    %v3729 = vld [vmem:[#allocation22 + $0xc8] sm:$0xff]
    %v3730 = vld [vmem:[#allocation22 + $0xd0] sm:$0xff]
    %v3731 = vld [vmem:[#allocation22 + $0xd8] sm:$0xff]
    %v3732 = vld [vmem:[#allocation22 + $0xe0] sm:$0xff]
    %v3733 = vld [vmem:[#allocation22 + $0xe8] sm:$0xff]
    %v3734 = vld [vmem:[#allocation22 + $0xf0] sm:$0xff]
    %v3735 = vld [vmem:[#allocation22 + $0xf8] sm:$0xff]
    %v3736 = vld [vmem:[#allocation22 + $0x100] sm:$0xff]
    %v3737 = vld [vmem:[#allocation22 + $0x108] sm:$0xff]
    %v3738 = vld [vmem:[#allocation22 + $0x110] sm:$0xff]
    %v3739 = vld [vmem:[#allocation22 + $0x118] sm:$0xff]
    %v3740 = vld [vmem:[#allocation22 + $0x120] sm:$0xff]
    %v3741 = vld [vmem:[#allocation22 + $0x128] sm:$0xff]
    %v3742 = vld [vmem:[#allocation22 + $0x130] sm:$0xff]
    %v3743 = vld [vmem:[#allocation22 + $0x138] sm:$0xff]
    %v3744 = vld [vmem:[#allocation22 + $0x140] sm:$0xff]
    %v3745 = vld [vmem:[#allocation22 + $0x148] sm:$0xff]
    %v3746 = vld [vmem:[#allocation22 + $0x150] sm:$0xff]
    %v3747 = vld [vmem:[#allocation22 + $0x158] sm:$0xff]
    %v3748 = vld [vmem:[#allocation22 + $0x160] sm:$0xff]
    %v3749 = vld [vmem:[#allocation22 + $0x168] sm:$0xff]
    %v3750 = vld [vmem:[#allocation22 + $0x170] sm:$0xff]
    %v3751 = vld [vmem:[#allocation22 + $0x178] sm:$0xff]
    %v3752 = vld [vmem:[#allocation22 + $0x180] sm:$0xff]
    %v3753 = vld [vmem:[#allocation22 + $0x188] sm:$0xff]
    %v3754 = vld [vmem:[#allocation22 + $0x190] sm:$0xff]
    %v3755 = vld [vmem:[#allocation22 + $0x198] sm:$0xff]
    %v3756 = vld [vmem:[#allocation22 + $0x1a0] sm:$0xff]
    %v3757 = vld [vmem:[#allocation22 + $0x1a8] sm:$0xff]
    %v3758 = vld [vmem:[#allocation22 + $0x1b0] sm:$0xff]
    %v3759 = vld [vmem:[#allocation22 + $0x1b8] sm:$0xff]
    %v3760 = vld [vmem:[#allocation22 + $0x1c0] sm:$0xff]
    %v3761 = vld [vmem:[#allocation22 + $0x1c8] sm:$0xff]
    %v3762 = vld [vmem:[#allocation22 + $0x1d0] sm:$0xff]
    %v3763 = vld [vmem:[#allocation22 + $0x1d8] sm:$0xff]
    %v3764 = vld [vmem:[#allocation22 + $0x1e0] sm:$0xff]
    %v3765 = vld [vmem:[#allocation22 + $0x1e8] sm:$0xff]
    %v3766 = vld [vmem:[#allocation22 + $0x1f0] sm:$0xff]
    %v3767 = vld [vmem:[#allocation22 + $0x1f8] sm:$0xff]
    %v3768 = vld [vmem:[#allocation22 + $0x200] sm:$0xff]
    %v3769 = vld [vmem:[#allocation22 + $0x208] sm:$0xff]
    %v3770 = vld [vmem:[#allocation22 + $0x210] sm:$0xff]
    %v3771 = vld [vmem:[#allocation22 + $0x218] sm:$0xff]
    %v3772 = vld [vmem:[#allocation22 + $0x220] sm:$0xff]
    %v3773 = vld [vmem:[#allocation22 + $0x228] sm:$0xff]
    %v3774 = vld [vmem:[#allocation22 + $0x230] sm:$0xff]
    %v3775 = vld [vmem:[#allocation22 + $0x238] sm:$0xff]
    %v3776 = vld [vmem:[#allocation22 + $0x240] sm:$0xff]
    %v3777 = vld [vmem:[#allocation22 + $0x248] sm:$0xff]
    %v3778 = vld [vmem:[#allocation22 + $0x250] sm:$0xff]
    %v3779 = vld [vmem:[#allocation22 + $0x258] sm:$0xff]
    %v3780 = vld [vmem:[#allocation22 + $0x260] sm:$0xff]
    %v3781 = vld [vmem:[#allocation22 + $0x268] sm:$0xff]
    %v3782 = vld [vmem:[#allocation22 + $0x270] sm:$0xff]
    %v3783 = vld [vmem:[#allocation22 + $0x278] sm:$0xff]
    %v3784 = vld [vmem:[#allocation22 + $0x280] sm:$0xff]
    %v3785 = vld [vmem:[#allocation22 + $0x288] sm:$0xff]
    %v3786 = vld [vmem:[#allocation22 + $0x290] sm:$0xff]
    %v3787 = vld [vmem:[#allocation22 + $0x298] sm:$0xff]
    %v3788 = vld [vmem:[#allocation22 + $0x2a0] sm:$0xff]
    %v3789 = vld [vmem:[#allocation22 + $0x2a8] sm:$0xff]
    %v3790 = vld [vmem:[#allocation22 + $0x2b0] sm:$0xff]
    %v3791 = vld [vmem:[#allocation22 + $0x2b8] sm:$0xff]
    %v3792 = vld [vmem:[#allocation22 + $0x2c0] sm:$0xff]
    %v3793 = vld [vmem:[#allocation22 + $0x2c8] sm:$0xff]
    %v3794 = vld [vmem:[#allocation22 + $0x2d0] sm:$0xff]
    %v3795 = vld [vmem:[#allocation22 + $0x2d8] sm:$0xff]
    %v3796 = vld [vmem:[#allocation22 + $0x2e0] sm:$0xff]
    %v3797 = vld [vmem:[#allocation22 + $0x2e8] sm:$0xff]
    %v3798 = vld [vmem:[#allocation22 + $0x2f0] sm:$0xff]
    %v3799 = vld [vmem:[#allocation22 + $0x2f8] sm:$0xff]
    %v3800 = vld [vmem:[#allocation22 + $0x300] sm:$0xff]
    %v3801 = vld [vmem:[#allocation22 + $0x308] sm:$0xff]
    %v3802 = vld [vmem:[#allocation22 + $0x310] sm:$0xff]
    %v3803 = vld [vmem:[#allocation22 + $0x318] sm:$0xff]
    %v3804 = vld [vmem:[#allocation22 + $0x320] sm:$0xff]
    %v3805 = vld [vmem:[#allocation22 + $0x328] sm:$0xff]
    %v3806 = vld [vmem:[#allocation22 + $0x330] sm:$0xff]
    %v3807 = vld [vmem:[#allocation22 + $0x338] sm:$0xff]
    %v3808 = vld [vmem:[#allocation22 + $0x340] sm:$0xff]
    %v3809 = vld [vmem:[#allocation22 + $0x348] sm:$0xff]
    %v3810 = vld [vmem:[#allocation22 + $0x350] sm:$0xff]
    %v3811 = vld [vmem:[#allocation22 + $0x358] sm:$0xff]
    %v3812 = vld [vmem:[#allocation22 + $0x360] sm:$0xff]
    %v3813 = vld [vmem:[#allocation22 + $0x368] sm:$0xff]
    %v3814 = vld [vmem:[#allocation22 + $0x370] sm:$0xff]
    %v3815 = vld [vmem:[#allocation22 + $0x378] sm:$0xff]
    %v3816 = vld [vmem:[#allocation22 + $0x380] sm:$0xff]
    %v3817 = vld [vmem:[#allocation22 + $0x388] sm:$0xff]
    %v3818 = vld [vmem:[#allocation22 + $0x390] sm:$0xff]
    %v3819 = vld [vmem:[#allocation22 + $0x398] sm:$0xff]
    %v3820 = vld [vmem:[#allocation22 + $0x3a0] sm:$0xff]
    %v3821 = vld [vmem:[#allocation22 + $0x3a8] sm:$0xff]
    %v3822 = vld [vmem:[#allocation22 + $0x3b0] sm:$0xff]
    %v3823 = vld [vmem:[#allocation22 + $0x3b8] sm:$0xff]
    %v3824 = vld [vmem:[#allocation22 + $0x3c0] sm:$0xff]
    %v3825 = vld [vmem:[#allocation22 + $0x3c8] sm:$0xff]
    %v3826 = vld [vmem:[#allocation22 + $0x3d0] sm:$0xff]
    %v3827 = vld [vmem:[#allocation22 + $0x3d8] sm:$0xff]
    %v3828 = vld [vmem:[#allocation22 + $0x3e0] sm:$0xff]
    %v3829 = vld [vmem:[#allocation22 + $0x3e8] sm:$0xff]
    %v3830 = vld [vmem:[#allocation22 + $0x3f0] sm:$0xff]
    %v3831 = vld [vmem:[#allocation22 + $0x3f8] sm:$0xff]
    %v3832 = vmul.f32 %v3538, %v3693
    %v3833 = vmul.f32 %v3539, %v3703
    %v3834 = vmul.f32 %v3540, %v3693
    %v3835 = vmul.f32 %v3541, %v3703
    %v3836 = vmul.f32 %v3542, %v3693
    %v3837 = vmul.f32 %v3543, %v3703
    %v3838 = vmul.f32 %v3544, %v3693
    %v3839 = vmul.f32 %v3545, %v3703
    %v3840 = vld [vmem:[%s51] sm:$0x3]
    %v3842 = vperm.slane %v3840, 0
    %v3843 = vperm.slane %v3840, 1
    %v3846 = vmul.f32 %v3832, %v3842
    %v3847 = vmul.f32 %v3833, %v3843
    %v3848 = vmul.f32 %v3834, %v3842
    %v3849 = vmul.f32 %v3835, %v3843
    %v3850 = vmul.f32 %v3836, %v3842
    %v3851 = vmul.f32 %v3837, %v3843
    %v3852 = vmul.f32 %v3838, %v3842
    %v3853 = vmul.f32 %v3839, %v3843
    %v3854 = vld [vmem:[%s53] sm:$0x3]
    %v3856 = vperm.slane %v3854, 0
    %v3857 = vperm.slane %v3854, 1
    %v3860 = vadd.f32 %v3846, %v3856
    %v3861 = vadd.f32 %v3847, %v3857
    %v3862 = vadd.f32 %v3848, %v3856
    %v3863 = vadd.f32 %v3849, %v3857
    %v3864 = vadd.f32 %v3850, %v3856
    %v3865 = vadd.f32 %v3851, %v3857
    %v3866 = vadd.f32 %v3852, %v3856
    %v3867 = vadd.f32 %v3853, %v3857
    %v3868 = vmul.f32 %v3860, %v3860
    %v3869 = vmul.f32 %v3861, %v3861
    %v3870 = vmul.f32 %v3862, %v3862
    %v3871 = vmul.f32 %v3863, %v3863
    %v3872 = vmul.f32 %v3864, %v3864
    %v3873 = vmul.f32 %v3865, %v3865
    %v3874 = vmul.f32 %v3866, %v3866
    %v3875 = vmul.f32 %v3867, %v3867
    %v3876 = vmul.f32 %v3860, %v3868
    %v3877 = vmul.f32 %v3861, %v3869
    %v3878 = vmul.f32 %v3862, %v3870
    %v3879 = vmul.f32 %v3863, %v3871
    %v3880 = vmul.f32 %v3864, %v3872
    %v3881 = vmul.f32 %v3865, %v3873
    %v3882 = vmul.f32 %v3866, %v3874
    %v3883 = vmul.f32 %v3867, %v3875
    %v3884 = vmul.f32 %v3876, 0.044715
    %v3885 = vmul.f32 %v3877, 0.044715
    %v3886 = vmul.f32 %v3878, 0.044715
    %v3887 = vmul.f32 %v3879, 0.044715
    %v3888 = vmul.f32 %v3880, 0.044715
    %v3889 = vmul.f32 %v3881, 0.044715
    %v3890 = vmul.f32 %v3882, 0.044715
    %v3891 = vmul.f32 %v3883, 0.044715
    %v3892 = vadd.f32 %v3860, %v3884
    %v3893 = vadd.f32 %v3861, %v3885
    %v3894 = vadd.f32 %v3862, %v3886
    %v3895 = vadd.f32 %v3863, %v3887
    %v3896 = vadd.f32 %v3864, %v3888
    %v3897 = vadd.f32 %v3865, %v3889
    %v3898 = vadd.f32 %v3866, %v3890
    %v3899 = vadd.f32 %v3867, %v3891
    %v3900 = vmul.f32 %v3892, 0.7978846
    %v3901 = vmul.f32 %v3893, 0.7978846
    %v3902 = vmul.f32 %v3894, 0.7978846
    %v3903 = vmul.f32 %v3895, 0.7978846
    %v3904 = vmul.f32 %v3896, 0.7978846
    %v3905 = vmul.f32 %v3897, 0.7978846
    %v3906 = vmul.f32 %v3898, 0.7978846
    %v3907 = vmul.f32 %v3899, 0.7978846
    %v3908 = vtanh.pop %v3900
    %v3909 = vtanh.pop %v3901
    %v3910 = vtanh.pop %v3902
    %v3911 = vtanh.pop %v3903
    %v3912 = vtanh.pop %v3904
    %v3913 = vtanh.pop %v3905
    %v3914 = vtanh.pop %v3906
    %v3915 = vtanh.pop %v3907
    %v3916 = vadd.f32 %v3908, 1.0
    %v3917 = vadd.f32 %v3909, 1.0
    %v3918 = vadd.f32 %v3910, 1.0
    %v3919 = vadd.f32 %v3911, 1.0
    %v3920 = vadd.f32 %v3912, 1.0
    %v3921 = vadd.f32 %v3913, 1.0
    %v3922 = vadd.f32 %v3914, 1.0
    %v3923 = vadd.f32 %v3915, 1.0
    %v3924 = vmul.f32 %v3916, 0.5
    %v3925 = vmul.f32 %v3917, 0.5
    %v3926 = vmul.f32 %v3918, 0.5
    %v3927 = vmul.f32 %v3919, 0.5
    %v3928 = vmul.f32 %v3920, 0.5
    %v3929 = vmul.f32 %v3921, 0.5
    %v3930 = vmul.f32 %v3922, 0.5
    %v3931 = vmul.f32 %v3923, 0.5
    %v3932 = vmul.f32 %v3860, %v3924
    %v3933 = vmul.f32 %v3861, %v3925
    %v3934 = vmul.f32 %v3862, %v3926
    %v3935 = vmul.f32 %v3863, %v3927
    %v3936 = vmul.f32 %v3864, %v3928
    %v3937 = vmul.f32 %v3865, %v3929
    %v3938 = vmul.f32 %v3866, %v3930
    %v3939 = vmul.f32 %v3867, %v3931
    %v3940 = vld [vmem:[%s57] sm:$0xf]
    %v3942 = vperm.slane %v3940, 0
    %v3943 = vperm.slane %v3940, 1
    %v3944 = vperm.slane %v3940, 2
    %v3945 = vperm.slane %v3940, 3
    %3950 = vmatpush.msra.mxu0 %v3764
    %3951 = vmatpush.msra.mxu0 %v3760
    %3952 = vmatpush.msra.mxu0 %v3756
    %3953 = vmatpush.msra.mxu0 %v3752
    %3954 = vmatpush.msra.mxu0 %v3748
    %3955 = vmatpush.msra.mxu0 %v3744
    %3956 = vmatpush.msra.mxu0 %v3740
    %3957 = vmatpush.msra.mxu0 %v3736
    %3958 = vmatpush.msra.mxu0 %v3732
    %3959 = vmatpush.msra.mxu0 %v3728
    %3960 = vmatpush.msra.mxu0 %v3724
    %3961 = vmatpush.msra.mxu0 %v3720
    %3962 = vmatpush.msra.mxu0 %v3716
    %3963 = vmatpush.msra.mxu0 %v3712
    %3964 = vmatpush.msra.mxu0 %v3708
    %3965 = vmatpush.msra.mxu0 %v3704
    %3966 = vmatmul.f32.gmra.mxu0 %v3932
    %v3967 = vpop.f32.mrf.mxu0
    %v3968 = vadd.f32 %v3942, %v3967
    %3969 = vmatmul.f32.gmra.mxu0 %v3934
    %v3970 = vpop.f32.mrf.mxu0
    %v3971 = vadd.f32 %v3942, %v3970
    %3972 = vmatmul.f32.gmra.mxu0 %v3936
    %v3973 = vpop.f32.mrf.mxu0
    %v3974 = vadd.f32 %v3942, %v3973
    %3975 = vmatmul.f32.gmra.mxu0 %v3938
    %v3976 = vpop.f32.mrf.mxu0
    %v3977 = vadd.f32 %v3942, %v3976
    %3978 = vdwg.mxu0
    %3979 = vmatpush.msra.mxu0 %v3828
    %3980 = vmatpush.msra.mxu0 %v3824
    %3981 = vmatpush.msra.mxu0 %v3820
    %3982 = vmatpush.msra.mxu0 %v3816
    %3983 = vmatpush.msra.mxu0 %v3812
    %3984 = vmatpush.msra.mxu0 %v3808
    %3985 = vmatpush.msra.mxu0 %v3804
    %3986 = vmatpush.msra.mxu0 %v3800
    %3987 = vmatpush.msra.mxu0 %v3796
    %3988 = vmatpush.msra.mxu0 %v3792
    %3989 = vmatpush.msra.mxu0 %v3788
    %3990 = vmatpush.msra.mxu0 %v3784
    %3991 = vmatpush.msra.mxu0 %v3780
    %3992 = vmatpush.msra.mxu0 %v3776
    %3993 = vmatpush.msra.mxu0 %v3772
    %3994 = vmatpush.msra.mxu0 %v3768
    %3995 = vmatmul.f32.gmra.mxu0 %v3933
    %v3996 = vpop.f32.mrf.mxu0
    %v3997 = vadd.f32 %v3968, %v3996
    %3998 = vmatmul.f32.gmra.mxu0 %v3935
    %v3999 = vpop.f32.mrf.mxu0
    %v4000 = vadd.f32 %v3971, %v3999
    %4001 = vmatmul.f32.gmra.mxu0 %v3937
    %v4002 = vpop.f32.mrf.mxu0
    %v4003 = vadd.f32 %v3974, %v4002
    %4004 = vmatmul.f32.gmra.mxu0 %v3939
    %v4005 = vpop.f32.mrf.mxu0
    %v4006 = vadd.f32 %v3977, %v4005
    %4007 = vdwg.mxu0
    %4008 = vmatpush.msra.mxu0 %v3765
    %4009 = vmatpush.msra.mxu0 %v3761
    %4010 = vmatpush.msra.mxu0 %v3757
    %4011 = vmatpush.msra.mxu0 %v3753
    %4012 = vmatpush.msra.mxu0 %v3749
    %4013 = vmatpush.msra.mxu0 %v3745
    %4014 = vmatpush.msra.mxu0 %v3741
    %4015 = vmatpush.msra.mxu0 %v3737
    %4016 = vmatpush.msra.mxu0 %v3733
    %4017 = vmatpush.msra.mxu0 %v3729
    %4018 = vmatpush.msra.mxu0 %v3725
    %4019 = vmatpush.msra.mxu0 %v3721
    %4020 = vmatpush.msra.mxu0 %v3717
    %4021 = vmatpush.msra.mxu0 %v3713
    %4022 = vmatpush.msra.mxu0 %v3709
    %4023 = vmatpush.msra.mxu0 %v3705
    %4024 = vmatmul.f32.gmra.mxu0 %v3932
    %v4025 = vpop.f32.mrf.mxu0
    %v4026 = vadd.f32 %v3943, %v4025
    %4027 = vmatmul.f32.gmra.mxu0 %v3934
    %v4028 = vpop.f32.mrf.mxu0
    %v4029 = vadd.f32 %v3943, %v4028
    %4030 = vmatmul.f32.gmra.mxu0 %v3936
    %v4031 = vpop.f32.mrf.mxu0
    %v4032 = vadd.f32 %v3943, %v4031
    %4033 = vmatmul.f32.gmra.mxu0 %v3938
    %v4034 = vpop.f32.mrf.mxu0
    %v4035 = vadd.f32 %v3943, %v4034
    %4036 = vdwg.mxu0
    %4037 = vmatpush.msra.mxu0 %v3829
    %4038 = vmatpush.msra.mxu0 %v3825
    %4039 = vmatpush.msra.mxu0 %v3821
    %4040 = vmatpush.msra.mxu0 %v3817
    %4041 = vmatpush.msra.mxu0 %v3813
    %4042 = vmatpush.msra.mxu0 %v3809
    %4043 = vmatpush.msra.mxu0 %v3805
    %4044 = vmatpush.msra.mxu0 %v3801
    %4045 = vmatpush.msra.mxu0 %v3797
    %4046 = vmatpush.msra.mxu0 %v3793
    %4047 = vmatpush.msra.mxu0 %v3789
    %4048 = vmatpush.msra.mxu0 %v3785
    %4049 = vmatpush.msra.mxu0 %v3781
    %4050 = vmatpush.msra.mxu0 %v3777
    %4051 = vmatpush.msra.mxu0 %v3773
    %4052 = vmatpush.msra.mxu0 %v3769
    %4053 = vmatmul.f32.gmra.mxu0 %v3933
    %v4054 = vpop.f32.mrf.mxu0
    %v4055 = vadd.f32 %v4026, %v4054
    %4056 = vmatmul.f32.gmra.mxu0 %v3935
    %v4057 = vpop.f32.mrf.mxu0
    %v4058 = vadd.f32 %v4029, %v4057
    %4059 = vmatmul.f32.gmra.mxu0 %v3937
    %v4060 = vpop.f32.mrf.mxu0
    %v4061 = vadd.f32 %v4032, %v4060
    %4062 = vmatmul.f32.gmra.mxu0 %v3939
    %v4063 = vpop.f32.mrf.mxu0
    %v4064 = vadd.f32 %v4035, %v4063
    %4065 = vdwg.mxu0
    %4066 = vmatpush.msra.mxu0 %v3766
    %4067 = vmatpush.msra.mxu0 %v3762
    %4068 = vmatpush.msra.mxu0 %v3758
    %4069 = vmatpush.msra.mxu0 %v3754
    %4070 = vmatpush.msra.mxu0 %v3750
    %4071 = vmatpush.msra.mxu0 %v3746
    %4072 = vmatpush.msra.mxu0 %v3742
    %4073 = vmatpush.msra.mxu0 %v3738
    %4074 = vmatpush.msra.mxu0 %v3734
    %4075 = vmatpush.msra.mxu0 %v3730
    %4076 = vmatpush.msra.mxu0 %v3726
    %4077 = vmatpush.msra.mxu0 %v3722
    %4078 = vmatpush.msra.mxu0 %v3718
    %4079 = vmatpush.msra.mxu0 %v3714
    %4080 = vmatpush.msra.mxu0 %v3710
    %4081 = vmatpush.msra.mxu0 %v3706
    %4082 = vmatmul.f32.gmra.mxu0 %v3932
    %v4083 = vpop.f32.mrf.mxu0
    %v4084 = vadd.f32 %v3944, %v4083
    %4085 = vmatmul.f32.gmra.mxu0 %v3934
    %v4086 = vpop.f32.mrf.mxu0
    %v4087 = vadd.f32 %v3944, %v4086
    %4088 = vmatmul.f32.gmra.mxu0 %v3936
    %v4089 = vpop.f32.mrf.mxu0
    %v4090 = vadd.f32 %v3944, %v4089
    %4091 = vmatmul.f32.gmra.mxu0 %v3938
    %v4092 = vpop.f32.mrf.mxu0
    %v4093 = vadd.f32 %v3944, %v4092
    %4094 = vdwg.mxu0
    %4095 = vmatpush.msra.mxu0 %v3830
    %4096 = vmatpush.msra.mxu0 %v3826
    %4097 = vmatpush.msra.mxu0 %v3822
    %4098 = vmatpush.msra.mxu0 %v3818
    %4099 = vmatpush.msra.mxu0 %v3814
    %4100 = vmatpush.msra.mxu0 %v3810
    %4101 = vmatpush.msra.mxu0 %v3806
    %4102 = vmatpush.msra.mxu0 %v3802
    %4103 = vmatpush.msra.mxu0 %v3798
    %4104 = vmatpush.msra.mxu0 %v3794
    %4105 = vmatpush.msra.mxu0 %v3790
    %4106 = vmatpush.msra.mxu0 %v3786
    %4107 = vmatpush.msra.mxu0 %v3782
    %4108 = vmatpush.msra.mxu0 %v3778
    %4109 = vmatpush.msra.mxu0 %v3774
    %4110 = vmatpush.msra.mxu0 %v3770
    %4111 = vmatmul.f32.gmra.mxu0 %v3933
    %v4112 = vpop.f32.mrf.mxu0
    %v4113 = vadd.f32 %v4084, %v4112
    %4114 = vmatmul.f32.gmra.mxu0 %v3935
    %v4115 = vpop.f32.mrf.mxu0
    %v4116 = vadd.f32 %v4087, %v4115
    %4117 = vmatmul.f32.gmra.mxu0 %v3937
    %v4118 = vpop.f32.mrf.mxu0
    %v4119 = vadd.f32 %v4090, %v4118
    %4120 = vmatmul.f32.gmra.mxu0 %v3939
    %v4121 = vpop.f32.mrf.mxu0
    %v4122 = vadd.f32 %v4093, %v4121
    %4123 = vdwg.mxu0
    %4124 = vmatpush.msra.mxu0 %v3767
    %4125 = vmatpush.msra.mxu0 %v3763
    %4126 = vmatpush.msra.mxu0 %v3759
    %4127 = vmatpush.msra.mxu0 %v3755
    %4128 = vmatpush.msra.mxu0 %v3751
    %4129 = vmatpush.msra.mxu0 %v3747
    %4130 = vmatpush.msra.mxu0 %v3743
    %4131 = vmatpush.msra.mxu0 %v3739
    %4132 = vmatpush.msra.mxu0 %v3735
    %4133 = vmatpush.msra.mxu0 %v3731
    %4134 = vmatpush.msra.mxu0 %v3727
    %4135 = vmatpush.msra.mxu0 %v3723
    %4136 = vmatpush.msra.mxu0 %v3719
    %4137 = vmatpush.msra.mxu0 %v3715
    %4138 = vmatpush.msra.mxu0 %v3711
    %4139 = vmatpush.msra.mxu0 %v3707
    %4140 = vmatmul.f32.gmra.mxu0 %v3932
    %v4141 = vpop.f32.mrf.mxu0
    %v4142 = vadd.f32 %v3945, %v4141
    %4143 = vmatmul.f32.gmra.mxu0 %v3934
    %v4144 = vpop.f32.mrf.mxu0
    %v4145 = vadd.f32 %v3945, %v4144
    %4146 = vmatmul.f32.gmra.mxu0 %v3936
    %v4147 = vpop.f32.mrf.mxu0
    %v4148 = vadd.f32 %v3945, %v4147
    %4149 = vmatmul.f32.gmra.mxu0 %v3938
    %v4150 = vpop.f32.mrf.mxu0
    %v4151 = vadd.f32 %v3945, %v4150
    %4152 = vdwg.mxu0
    %4153 = vmatpush.msra.mxu0 %v3831
    %4154 = vmatpush.msra.mxu0 %v3827
    %4155 = vmatpush.msra.mxu0 %v3823
    %4156 = vmatpush.msra.mxu0 %v3819
    %4157 = vmatpush.msra.mxu0 %v3815
    %4158 = vmatpush.msra.mxu0 %v3811
    %4159 = vmatpush.msra.mxu0 %v3807
    %4160 = vmatpush.msra.mxu0 %v3803
    %4161 = vmatpush.msra.mxu0 %v3799
    %4162 = vmatpush.msra.mxu0 %v3795
    %4163 = vmatpush.msra.mxu0 %v3791
    %4164 = vmatpush.msra.mxu0 %v3787
    %4165 = vmatpush.msra.mxu0 %v3783
    %4166 = vmatpush.msra.mxu0 %v3779
    %4167 = vmatpush.msra.mxu0 %v3775
    %4168 = vmatpush.msra.mxu0 %v3771
    %4169 = vmatmul.f32.gmra.mxu0 %v3933
    %v4170 = vpop.f32.mrf.mxu0
    %v4171 = vadd.f32 %v4142, %v4170
    %4172 = vmatmul.f32.gmra.mxu0 %v3935
    %v4173 = vpop.f32.mrf.mxu0
    %v4174 = vadd.f32 %v4145, %v4173
    %4175 = vmatmul.f32.gmra.mxu0 %v3937
    %v4176 = vpop.f32.mrf.mxu0
    %v4177 = vadd.f32 %v4148, %v4176
    %4178 = vmatmul.f32.gmra.mxu0 %v3939
    %v4179 = vpop.f32.mrf.mxu0
    %v4180 = vadd.f32 %v4151, %v4179
    %4181 = vdwg.mxu0
    %4182 = vst [vmem:[#allocation25] sm:$0xff] %v3997
    %4183 = vst [vmem:[#allocation25 + $0x8] sm:$0xff] %v4055
    %4184 = vst [vmem:[#allocation25 + $0x10] sm:$0xff] %v4113
    %4185 = vst [vmem:[#allocation25 + $0x18] sm:$0xff] %v4171
    %4186 = vst [vmem:[#allocation25 + $0x20] sm:$0xff] %v4000
    %4187 = vst [vmem:[#allocation25 + $0x28] sm:$0xff] %v4058
    %4188 = vst [vmem:[#allocation25 + $0x30] sm:$0xff] %v4116
    %4189 = vst [vmem:[#allocation25 + $0x38] sm:$0xff] %v4174
    %4190 = vst [vmem:[#allocation25 + $0x40] sm:$0xff] %v4003
    %4191 = vst [vmem:[#allocation25 + $0x48] sm:$0xff] %v4061
    %4192 = vst [vmem:[#allocation25 + $0x50] sm:$0xff] %v4119
    %4193 = vst [vmem:[#allocation25 + $0x58] sm:$0xff] %v4177
    %4194 = vst [vmem:[#allocation25 + $0x60] sm:$0xff] %v4006
    %4195 = vst [vmem:[#allocation25 + $0x68] sm:$0xff] %v4064
    %4196 = vst [vmem:[#allocation25 + $0x70] sm:$0xff] %v4122
    %4197 = vst [vmem:[#allocation25 + $0x78] sm:$0xff] %v4180
    %v4198 = vmul.f32 %v3572, %v3693
    %v4199 = vmul.f32 %v3573, %v3703
    %v4200 = vmul.f32 %v3574, %v3693
    %v4201 = vmul.f32 %v3575, %v3703
    %v4202 = vmul.f32 %v3576, %v3693
    %v4203 = vmul.f32 %v3577, %v3703
    %v4204 = vmul.f32 %v3578, %v3693
    %v4205 = vmul.f32 %v3579, %v3703
    %v4206 = vld [vmem:[%s51] sm:$0x3]
    %v4208 = vperm.slane %v4206, 0
    %v4209 = vperm.slane %v4206, 1
    %v4212 = vmul.f32 %v4198, %v4208
    %v4213 = vmul.f32 %v4199, %v4209
    %v4214 = vmul.f32 %v4200, %v4208
    %v4215 = vmul.f32 %v4201, %v4209
    %v4216 = vmul.f32 %v4202, %v4208
    %v4217 = vmul.f32 %v4203, %v4209
    %v4218 = vmul.f32 %v4204, %v4208
    %v4219 = vmul.f32 %v4205, %v4209
    %v4220 = vld [vmem:[%s53] sm:$0x3]
    %v4222 = vperm.slane %v4220, 0
    %v4223 = vperm.slane %v4220, 1
    %v4226 = vadd.f32 %v4212, %v4222
    %v4227 = vadd.f32 %v4213, %v4223
    %v4228 = vadd.f32 %v4214, %v4222
    %v4229 = vadd.f32 %v4215, %v4223
    %v4230 = vadd.f32 %v4216, %v4222
    %v4231 = vadd.f32 %v4217, %v4223
    %v4232 = vadd.f32 %v4218, %v4222
    %v4233 = vadd.f32 %v4219, %v4223
    %v4234 = vmul.f32 %v4226, %v4226
    %v4235 = vmul.f32 %v4227, %v4227
    %v4236 = vmul.f32 %v4228, %v4228
    %v4237 = vmul.f32 %v4229, %v4229
    %v4238 = vmul.f32 %v4230, %v4230
    %v4239 = vmul.f32 %v4231, %v4231
    %v4240 = vmul.f32 %v4232, %v4232
    %v4241 = vmul.f32 %v4233, %v4233
    %v4242 = vmul.f32 %v4226, %v4234
    %v4243 = vmul.f32 %v4227, %v4235
    %v4244 = vmul.f32 %v4228, %v4236
    %v4245 = vmul.f32 %v4229, %v4237
    %v4246 = vmul.f32 %v4230, %v4238
    %v4247 = vmul.f32 %v4231, %v4239
    %v4248 = vmul.f32 %v4232, %v4240
    %v4249 = vmul.f32 %v4233, %v4241
    %v4250 = vmul.f32 %v4242, 0.044715
    %v4251 = vmul.f32 %v4243, 0.044715
    %v4252 = vmul.f32 %v4244, 0.044715
    %v4253 = vmul.f32 %v4245, 0.044715
    %v4254 = vmul.f32 %v4246, 0.044715
    %v4255 = vmul.f32 %v4247, 0.044715
    %v4256 = vmul.f32 %v4248, 0.044715
    %v4257 = vmul.f32 %v4249, 0.044715
    %v4258 = vadd.f32 %v4226, %v4250
    %v4259 = vadd.f32 %v4227, %v4251
    %v4260 = vadd.f32 %v4228, %v4252
    %v4261 = vadd.f32 %v4229, %v4253
    %v4262 = vadd.f32 %v4230, %v4254
    %v4263 = vadd.f32 %v4231, %v4255
    %v4264 = vadd.f32 %v4232, %v4256
    %v4265 = vadd.f32 %v4233, %v4257
    %v4266 = vmul.f32 %v4258, 0.7978846
    %v4267 = vmul.f32 %v4259, 0.7978846
    %v4268 = vmul.f32 %v4260, 0.7978846
    %v4269 = vmul.f32 %v4261, 0.7978846
    %v4270 = vmul.f32 %v4262, 0.7978846
    %v4271 = vmul.f32 %v4263, 0.7978846
    %v4272 = vmul.f32 %v4264, 0.7978846
    %v4273 = vmul.f32 %v4265, 0.7978846
    %v4274 = vtanh.pop %v4266
    %v4275 = vtanh.pop %v4267
    %v4276 = vtanh.pop %v4268
    %v4277 = vtanh.pop %v4269
    %v4278 = vtanh.pop %v4270
    %v4279 = vtanh.pop %v4271
    %v4280 = vtanh.pop %v4272
    %v4281 = vtanh.pop %v4273
    %v4282 = vadd.f32 %v4274, 1.0
    %v4283 = vadd.f32 %v4275, 1.0
    %v4284 = vadd.f32 %v4276, 1.0
    %v4285 = vadd.f32 %v4277, 1.0
    %v4286 = vadd.f32 %v4278, 1.0
    %v4287 = vadd.f32 %v4279, 1.0
    %v4288 = vadd.f32 %v4280, 1.0
    %v4289 = vadd.f32 %v4281, 1.0
    %v4290 = vmul.f32 %v4282, 0.5
    %v4291 = vmul.f32 %v4283, 0.5
    %v4292 = vmul.f32 %v4284, 0.5
    %v4293 = vmul.f32 %v4285, 0.5
    %v4294 = vmul.f32 %v4286, 0.5
    %v4295 = vmul.f32 %v4287, 0.5
    %v4296 = vmul.f32 %v4288, 0.5
    %v4297 = vmul.f32 %v4289, 0.5
    %v4298 = vmul.f32 %v4226, %v4290
    %v4299 = vmul.f32 %v4227, %v4291
    %v4300 = vmul.f32 %v4228, %v4292
    %v4301 = vmul.f32 %v4229, %v4293
    %v4302 = vmul.f32 %v4230, %v4294
    %v4303 = vmul.f32 %v4231, %v4295
    %v4304 = vmul.f32 %v4232, %v4296
    %v4305 = vmul.f32 %v4233, %v4297
    %v4306 = vld [vmem:[%s57] sm:$0xf]
    %v4308 = vperm.slane %v4306, 0
    %v4309 = vperm.slane %v4306, 1
    %v4310 = vperm.slane %v4306, 2
    %v4311 = vperm.slane %v4306, 3
    %4316 = vmatpush.msra.mxu0 %v3764
    %4317 = vmatpush.msra.mxu0 %v3760
    %4318 = vmatpush.msra.mxu0 %v3756
    %4319 = vmatpush.msra.mxu0 %v3752
    %4320 = vmatpush.msra.mxu0 %v3748
    %4321 = vmatpush.msra.mxu0 %v3744
    %4322 = vmatpush.msra.mxu0 %v3740
    %4323 = vmatpush.msra.mxu0 %v3736
    %4324 = vmatpush.msra.mxu0 %v3732
    %4325 = vmatpush.msra.mxu0 %v3728
    %4326 = vmatpush.msra.mxu0 %v3724
    %4327 = vmatpush.msra.mxu0 %v3720
    %4328 = vmatpush.msra.mxu0 %v3716
    %4329 = vmatpush.msra.mxu0 %v3712
    %4330 = vmatpush.msra.mxu0 %v3708
    %4331 = vmatpush.msra.mxu0 %v3704
    %4332 = vmatmul.f32.gmra.mxu0 %v4298
    %v4333 = vpop.f32.mrf.mxu0
    %v4334 = vadd.f32 %v4308, %v4333
    %4335 = vmatmul.f32.gmra.mxu0 %v4300
    %v4336 = vpop.f32.mrf.mxu0
    %v4337 = vadd.f32 %v4308, %v4336
    %4338 = vmatmul.f32.gmra.mxu0 %v4302
    %v4339 = vpop.f32.mrf.mxu0
    %v4340 = vadd.f32 %v4308, %v4339
    %4341 = vmatmul.f32.gmra.mxu0 %v4304
    %v4342 = vpop.f32.mrf.mxu0
    %v4343 = vadd.f32 %v4308, %v4342
    %4344 = vdwg.mxu0
    %4345 = vmatpush.msra.mxu0 %v3828
    %4346 = vmatpush.msra.mxu0 %v3824
    %4347 = vmatpush.msra.mxu0 %v3820
    %4348 = vmatpush.msra.mxu0 %v3816
    %4349 = vmatpush.msra.mxu0 %v3812
    %4350 = vmatpush.msra.mxu0 %v3808
    %4351 = vmatpush.msra.mxu0 %v3804
    %4352 = vmatpush.msra.mxu0 %v3800
    %4353 = vmatpush.msra.mxu0 %v3796
    %4354 = vmatpush.msra.mxu0 %v3792
    %4355 = vmatpush.msra.mxu0 %v3788
    %4356 = vmatpush.msra.mxu0 %v3784
    %4357 = vmatpush.msra.mxu0 %v3780
    %4358 = vmatpush.msra.mxu0 %v3776
    %4359 = vmatpush.msra.mxu0 %v3772
    %4360 = vmatpush.msra.mxu0 %v3768
    %4361 = vmatmul.f32.gmra.mxu0 %v4299
    %v4362 = vpop.f32.mrf.mxu0
    %v4363 = vadd.f32 %v4334, %v4362
    %4364 = vmatmul.f32.gmra.mxu0 %v4301
    %v4365 = vpop.f32.mrf.mxu0
    %v4366 = vadd.f32 %v4337, %v4365
    %4367 = vmatmul.f32.gmra.mxu0 %v4303
    %v4368 = vpop.f32.mrf.mxu0
    %v4369 = vadd.f32 %v4340, %v4368
    %4370 = vmatmul.f32.gmra.mxu0 %v4305
    %v4371 = vpop.f32.mrf.mxu0
    %v4372 = vadd.f32 %v4343, %v4371
    %4373 = vdwg.mxu0
    %4374 = vmatpush.msra.mxu0 %v3765
    %4375 = vmatpush.msra.mxu0 %v3761
    %4376 = vmatpush.msra.mxu0 %v3757
    %4377 = vmatpush.msra.mxu0 %v3753
    %4378 = vmatpush.msra.mxu0 %v3749
    %4379 = vmatpush.msra.mxu0 %v3745
    %4380 = vmatpush.msra.mxu0 %v3741
    %4381 = vmatpush.msra.mxu0 %v3737
    %4382 = vmatpush.msra.mxu0 %v3733
    %4383 = vmatpush.msra.mxu0 %v3729
    %4384 = vmatpush.msra.mxu0 %v3725
    %4385 = vmatpush.msra.mxu0 %v3721
    %4386 = vmatpush.msra.mxu0 %v3717
    %4387 = vmatpush.msra.mxu0 %v3713
    %4388 = vmatpush.msra.mxu0 %v3709
    %4389 = vmatpush.msra.mxu0 %v3705
    %4390 = vmatmul.f32.gmra.mxu0 %v4298
    %v4391 = vpop.f32.mrf.mxu0
    %v4392 = vadd.f32 %v4309, %v4391
    %4393 = vmatmul.f32.gmra.mxu0 %v4300
    %v4394 = vpop.f32.mrf.mxu0
    %v4395 = vadd.f32 %v4309, %v4394
    %4396 = vmatmul.f32.gmra.mxu0 %v4302
    %v4397 = vpop.f32.mrf.mxu0
    %v4398 = vadd.f32 %v4309, %v4397
    %4399 = vmatmul.f32.gmra.mxu0 %v4304
    %v4400 = vpop.f32.mrf.mxu0
    %v4401 = vadd.f32 %v4309, %v4400
    %4402 = vdwg.mxu0
    %4403 = vmatpush.msra.mxu0 %v3829
    %4404 = vmatpush.msra.mxu0 %v3825
    %4405 = vmatpush.msra.mxu0 %v3821
    %4406 = vmatpush.msra.mxu0 %v3817
    %4407 = vmatpush.msra.mxu0 %v3813
    %4408 = vmatpush.msra.mxu0 %v3809
    %4409 = vmatpush.msra.mxu0 %v3805
    %4410 = vmatpush.msra.mxu0 %v3801
    %4411 = vmatpush.msra.mxu0 %v3797
    %4412 = vmatpush.msra.mxu0 %v3793
    %4413 = vmatpush.msra.mxu0 %v3789
    %4414 = vmatpush.msra.mxu0 %v3785
    %4415 = vmatpush.msra.mxu0 %v3781
    %4416 = vmatpush.msra.mxu0 %v3777
    %4417 = vmatpush.msra.mxu0 %v3773
    %4418 = vmatpush.msra.mxu0 %v3769
    %4419 = vmatmul.f32.gmra.mxu0 %v4299
    %v4420 = vpop.f32.mrf.mxu0
    %v4421 = vadd.f32 %v4392, %v4420
    %4422 = vmatmul.f32.gmra.mxu0 %v4301
    %v4423 = vpop.f32.mrf.mxu0
    %v4424 = vadd.f32 %v4395, %v4423
    %4425 = vmatmul.f32.gmra.mxu0 %v4303
    %v4426 = vpop.f32.mrf.mxu0
    %v4427 = vadd.f32 %v4398, %v4426
    %4428 = vmatmul.f32.gmra.mxu0 %v4305
    %v4429 = vpop.f32.mrf.mxu0
    %v4430 = vadd.f32 %v4401, %v4429
    %4431 = vdwg.mxu0
    %4432 = vmatpush.msra.mxu0 %v3766
    %4433 = vmatpush.msra.mxu0 %v3762
    %4434 = vmatpush.msra.mxu0 %v3758
    %4435 = vmatpush.msra.mxu0 %v3754
    %4436 = vmatpush.msra.mxu0 %v3750
    %4437 = vmatpush.msra.mxu0 %v3746
    %4438 = vmatpush.msra.mxu0 %v3742
    %4439 = vmatpush.msra.mxu0 %v3738
    %4440 = vmatpush.msra.mxu0 %v3734
    %4441 = vmatpush.msra.mxu0 %v3730
    %4442 = vmatpush.msra.mxu0 %v3726
    %4443 = vmatpush.msra.mxu0 %v3722
    %4444 = vmatpush.msra.mxu0 %v3718
    %4445 = vmatpush.msra.mxu0 %v3714
    %4446 = vmatpush.msra.mxu0 %v3710
    %4447 = vmatpush.msra.mxu0 %v3706
    %4448 = vmatmul.f32.gmra.mxu0 %v4298
    %v4449 = vpop.f32.mrf.mxu0
    %v4450 = vadd.f32 %v4310, %v4449
    %4451 = vmatmul.f32.gmra.mxu0 %v4300
    %v4452 = vpop.f32.mrf.mxu0
    %v4453 = vadd.f32 %v4310, %v4452
    %4454 = vmatmul.f32.gmra.mxu0 %v4302
    %v4455 = vpop.f32.mrf.mxu0
    %v4456 = vadd.f32 %v4310, %v4455
    %4457 = vmatmul.f32.gmra.mxu0 %v4304
    %v4458 = vpop.f32.mrf.mxu0
    %v4459 = vadd.f32 %v4310, %v4458
    %4460 = vdwg.mxu0
    %4461 = vmatpush.msra.mxu0 %v3830
    %4462 = vmatpush.msra.mxu0 %v3826
    %4463 = vmatpush.msra.mxu0 %v3822
    %4464 = vmatpush.msra.mxu0 %v3818
    %4465 = vmatpush.msra.mxu0 %v3814
    %4466 = vmatpush.msra.mxu0 %v3810
    %4467 = vmatpush.msra.mxu0 %v3806
    %4468 = vmatpush.msra.mxu0 %v3802
    %4469 = vmatpush.msra.mxu0 %v3798
    %4470 = vmatpush.msra.mxu0 %v3794
    %4471 = vmatpush.msra.mxu0 %v3790
    %4472 = vmatpush.msra.mxu0 %v3786
    %4473 = vmatpush.msra.mxu0 %v3782
    %4474 = vmatpush.msra.mxu0 %v3778
    %4475 = vmatpush.msra.mxu0 %v3774
    %4476 = vmatpush.msra.mxu0 %v3770
    %4477 = vmatmul.f32.gmra.mxu0 %v4299
    %v4478 = vpop.f32.mrf.mxu0
    %v4479 = vadd.f32 %v4450, %v4478
    %4480 = vmatmul.f32.gmra.mxu0 %v4301
    %v4481 = vpop.f32.mrf.mxu0
    %v4482 = vadd.f32 %v4453, %v4481
    %4483 = vmatmul.f32.gmra.mxu0 %v4303
    %v4484 = vpop.f32.mrf.mxu0
    %v4485 = vadd.f32 %v4456, %v4484
    %4486 = vmatmul.f32.gmra.mxu0 %v4305
    %v4487 = vpop.f32.mrf.mxu0
    %v4488 = vadd.f32 %v4459, %v4487
    %4489 = vdwg.mxu0
    %4490 = vmatpush.msra.mxu0 %v3767
    %4491 = vmatpush.msra.mxu0 %v3763
    %4492 = vmatpush.msra.mxu0 %v3759
    %4493 = vmatpush.msra.mxu0 %v3755
    %4494 = vmatpush.msra.mxu0 %v3751
    %4495 = vmatpush.msra.mxu0 %v3747
    %4496 = vmatpush.msra.mxu0 %v3743
    %4497 = vmatpush.msra.mxu0 %v3739
    %4498 = vmatpush.msra.mxu0 %v3735
    %4499 = vmatpush.msra.mxu0 %v3731
    %4500 = vmatpush.msra.mxu0 %v3727
    %4501 = vmatpush.msra.mxu0 %v3723
    %4502 = vmatpush.msra.mxu0 %v3719
    %4503 = vmatpush.msra.mxu0 %v3715
    %4504 = vmatpush.msra.mxu0 %v3711
    %4505 = vmatpush.msra.mxu0 %v3707
    %4506 = vmatmul.f32.gmra.mxu0 %v4298
    %v4507 = vpop.f32.mrf.mxu0
    %v4508 = vadd.f32 %v4311, %v4507
    %4509 = vmatmul.f32.gmra.mxu0 %v4300
    %v4510 = vpop.f32.mrf.mxu0
    %v4511 = vadd.f32 %v4311, %v4510
    %4512 = vmatmul.f32.gmra.mxu0 %v4302
    %v4513 = vpop.f32.mrf.mxu0
    %v4514 = vadd.f32 %v4311, %v4513
    %4515 = vmatmul.f32.gmra.mxu0 %v4304
    %v4516 = vpop.f32.mrf.mxu0
    %v4517 = vadd.f32 %v4311, %v4516
    %4518 = vdwg.mxu0
    %4519 = vmatpush.msra.mxu0 %v3831
    %4520 = vmatpush.msra.mxu0 %v3827
    %4521 = vmatpush.msra.mxu0 %v3823
    %4522 = vmatpush.msra.mxu0 %v3819
    %4523 = vmatpush.msra.mxu0 %v3815
    %4524 = vmatpush.msra.mxu0 %v3811
    %4525 = vmatpush.msra.mxu0 %v3807
    %4526 = vmatpush.msra.mxu0 %v3803
    %4527 = vmatpush.msra.mxu0 %v3799
    %4528 = vmatpush.msra.mxu0 %v3795
    %4529 = vmatpush.msra.mxu0 %v3791
    %4530 = vmatpush.msra.mxu0 %v3787
    %4531 = vmatpush.msra.mxu0 %v3783
    %4532 = vmatpush.msra.mxu0 %v3779
    %4533 = vmatpush.msra.mxu0 %v3775
    %4534 = vmatpush.msra.mxu0 %v3771
    %4535 = vmatmul.f32.gmra.mxu0 %v4299
    %v4536 = vpop.f32.mrf.mxu0
    %v4537 = vadd.f32 %v4508, %v4536
    %4538 = vmatmul.f32.gmra.mxu0 %v4301
    %v4539 = vpop.f32.mrf.mxu0
    %v4540 = vadd.f32 %v4511, %v4539
    %4541 = vmatmul.f32.gmra.mxu0 %v4303
    %v4542 = vpop.f32.mrf.mxu0
    %v4543 = vadd.f32 %v4514, %v4542
    %4544 = vmatmul.f32.gmra.mxu0 %v4305
    %v4545 = vpop.f32.mrf.mxu0
    %v4546 = vadd.f32 %v4517, %v4545
    %4547 = vdwg.mxu0
    %4548 = vst [vmem:[#allocation25 + $0x80] sm:$0xff] %v4363
    %4549 = vst [vmem:[#allocation25 + $0x88] sm:$0xff] %v4421
    %4550 = vst [vmem:[#allocation25 + $0x90] sm:$0xff] %v4479
    %4551 = vst [vmem:[#allocation25 + $0x98] sm:$0xff] %v4537
    %4552 = vst [vmem:[#allocation25 + $0xa0] sm:$0xff] %v4366
    %4553 = vst [vmem:[#allocation25 + $0xa8] sm:$0xff] %v4424
    %4554 = vst [vmem:[#allocation25 + $0xb0] sm:$0xff] %v4482
    %4555 = vst [vmem:[#allocation25 + $0xb8] sm:$0xff] %v4540
    %4556 = vst [vmem:[#allocation25 + $0xc0] sm:$0xff] %v4369
    %4557 = vst [vmem:[#allocation25 + $0xc8] sm:$0xff] %v4427
    %4558 = vst [vmem:[#allocation25 + $0xd0] sm:$0xff] %v4485
    %4559 = vst [vmem:[#allocation25 + $0xd8] sm:$0xff] %v4543
    %4560 = vst [vmem:[#allocation25 + $0xe0] sm:$0xff] %v4372
    %4561 = vst [vmem:[#allocation25 + $0xe8] sm:$0xff] %v4430
    %4562 = vst [vmem:[#allocation25 + $0xf0] sm:$0xff] %v4488
    %4563 = vst [vmem:[#allocation25 + $0xf8] sm:$0xff] %v4546
    %v4564 = vmul.f32 %v3608, %v3693
    %v4565 = vmul.f32 %v3609, %v3703
    %v4566 = vmul.f32 %v3610, %v3693
    %v4567 = vmul.f32 %v3611, %v3703
    %v4568 = vmul.f32 %v3612, %v3693
    %v4569 = vmul.f32 %v3613, %v3703
    %v4570 = vmul.f32 %v3614, %v3693
    %v4571 = vmul.f32 %v3615, %v3703
    %v4572 = vld [vmem:[%s51] sm:$0x3]
    %v4574 = vperm.slane %v4572, 0
    %v4575 = vperm.slane %v4572, 1
    %v4578 = vmul.f32 %v4564, %v4574
    %v4579 = vmul.f32 %v4565, %v4575
    %v4580 = vmul.f32 %v4566, %v4574
    %v4581 = vmul.f32 %v4567, %v4575
    %v4582 = vmul.f32 %v4568, %v4574
    %v4583 = vmul.f32 %v4569, %v4575
    %v4584 = vmul.f32 %v4570, %v4574
    %v4585 = vmul.f32 %v4571, %v4575
    %v4586 = vld [vmem:[%s53] sm:$0x3]
    %v4588 = vperm.slane %v4586, 0
    %v4589 = vperm.slane %v4586, 1
    %v4592 = vadd.f32 %v4578, %v4588
    %v4593 = vadd.f32 %v4579, %v4589
    %v4594 = vadd.f32 %v4580, %v4588
    %v4595 = vadd.f32 %v4581, %v4589
    %v4596 = vadd.f32 %v4582, %v4588
    %v4597 = vadd.f32 %v4583, %v4589
    %v4598 = vadd.f32 %v4584, %v4588
    %v4599 = vadd.f32 %v4585, %v4589
    %v4600 = vmul.f32 %v4592, %v4592
    %v4601 = vmul.f32 %v4593, %v4593
    %v4602 = vmul.f32 %v4594, %v4594
    %v4603 = vmul.f32 %v4595, %v4595
    %v4604 = vmul.f32 %v4596, %v4596
    %v4605 = vmul.f32 %v4597, %v4597
    %v4606 = vmul.f32 %v4598, %v4598
    %v4607 = vmul.f32 %v4599, %v4599
    %v4608 = vmul.f32 %v4592, %v4600
    %v4609 = vmul.f32 %v4593, %v4601
    %v4610 = vmul.f32 %v4594, %v4602
    %v4611 = vmul.f32 %v4595, %v4603
    %v4612 = vmul.f32 %v4596, %v4604
    %v4613 = vmul.f32 %v4597, %v4605
    %v4614 = vmul.f32 %v4598, %v4606
    %v4615 = vmul.f32 %v4599, %v4607
    %v4616 = vmul.f32 %v4608, 0.044715
    %v4617 = vmul.f32 %v4609, 0.044715
    %v4618 = vmul.f32 %v4610, 0.044715
    %v4619 = vmul.f32 %v4611, 0.044715
    %v4620 = vmul.f32 %v4612, 0.044715
    %v4621 = vmul.f32 %v4613, 0.044715
    %v4622 = vmul.f32 %v4614, 0.044715
    %v4623 = vmul.f32 %v4615, 0.044715
    %v4624 = vadd.f32 %v4592, %v4616
    %v4625 = vadd.f32 %v4593, %v4617
    %v4626 = vadd.f32 %v4594, %v4618
    %v4627 = vadd.f32 %v4595, %v4619
    %v4628 = vadd.f32 %v4596, %v4620
    %v4629 = vadd.f32 %v4597, %v4621
    %v4630 = vadd.f32 %v4598, %v4622
    %v4631 = vadd.f32 %v4599, %v4623
    %v4632 = vmul.f32 %v4624, 0.7978846
    %v4633 = vmul.f32 %v4625, 0.7978846
    %v4634 = vmul.f32 %v4626, 0.7978846
    %v4635 = vmul.f32 %v4627, 0.7978846
    %v4636 = vmul.f32 %v4628, 0.7978846
    %v4637 = vmul.f32 %v4629, 0.7978846
    %v4638 = vmul.f32 %v4630, 0.7978846
    %v4639 = vmul.f32 %v4631, 0.7978846
    %v4640 = vtanh.pop %v4632
    %v4641 = vtanh.pop %v4633
    %v4642 = vtanh.pop %v4634
    %v4643 = vtanh.pop %v4635
    %v4644 = vtanh.pop %v4636
    %v4645 = vtanh.pop %v4637
    %v4646 = vtanh.pop %v4638
    %v4647 = vtanh.pop %v4639
    %v4648 = vadd.f32 %v4640, 1.0
    %v4649 = vadd.f32 %v4641, 1.0
    %v4650 = vadd.f32 %v4642, 1.0
    %v4651 = vadd.f32 %v4643, 1.0
    %v4652 = vadd.f32 %v4644, 1.0
    %v4653 = vadd.f32 %v4645, 1.0
    %v4654 = vadd.f32 %v4646, 1.0
    %v4655 = vadd.f32 %v4647, 1.0
    %v4656 = vmul.f32 %v4648, 0.5
    %v4657 = vmul.f32 %v4649, 0.5
    %v4658 = vmul.f32 %v4650, 0.5
    %v4659 = vmul.f32 %v4651, 0.5
    %v4660 = vmul.f32 %v4652, 0.5
    %v4661 = vmul.f32 %v4653, 0.5
    %v4662 = vmul.f32 %v4654, 0.5
    %v4663 = vmul.f32 %v4655, 0.5
    %v4664 = vmul.f32 %v4592, %v4656
    %v4665 = vmul.f32 %v4593, %v4657
    %v4666 = vmul.f32 %v4594, %v4658
    %v4667 = vmul.f32 %v4595, %v4659
    %v4668 = vmul.f32 %v4596, %v4660
    %v4669 = vmul.f32 %v4597, %v4661
    %v4670 = vmul.f32 %v4598, %v4662
    %v4671 = vmul.f32 %v4599, %v4663
    %v4672 = vld [vmem:[%s57] sm:$0xf]
    %v4674 = vperm.slane %v4672, 0
    %v4675 = vperm.slane %v4672, 1
    %v4676 = vperm.slane %v4672, 2
    %v4677 = vperm.slane %v4672, 3
    %4682 = vmatpush.msra.mxu0 %v3764
    %4683 = vmatpush.msra.mxu0 %v3760
    %4684 = vmatpush.msra.mxu0 %v3756
    %4685 = vmatpush.msra.mxu0 %v3752
    %4686 = vmatpush.msra.mxu0 %v3748
    %4687 = vmatpush.msra.mxu0 %v3744
    %4688 = vmatpush.msra.mxu0 %v3740
    %4689 = vmatpush.msra.mxu0 %v3736
    %4690 = vmatpush.msra.mxu0 %v3732
    %4691 = vmatpush.msra.mxu0 %v3728
    %4692 = vmatpush.msra.mxu0 %v3724
    %4693 = vmatpush.msra.mxu0 %v3720
    %4694 = vmatpush.msra.mxu0 %v3716
    %4695 = vmatpush.msra.mxu0 %v3712
    %4696 = vmatpush.msra.mxu0 %v3708
    %4697 = vmatpush.msra.mxu0 %v3704
    %4698 = vmatmul.f32.gmra.mxu0 %v4664
    %v4699 = vpop.f32.mrf.mxu0
    %v4700 = vadd.f32 %v4674, %v4699
    %4701 = vmatmul.f32.gmra.mxu0 %v4666
    %v4702 = vpop.f32.mrf.mxu0
    %v4703 = vadd.f32 %v4674, %v4702
    %4704 = vmatmul.f32.gmra.mxu0 %v4668
    %v4705 = vpop.f32.mrf.mxu0
    %v4706 = vadd.f32 %v4674, %v4705
    %4707 = vmatmul.f32.gmra.mxu0 %v4670
    %v4708 = vpop.f32.mrf.mxu0
    %v4709 = vadd.f32 %v4674, %v4708
    %4710 = vdwg.mxu0
    %4711 = vmatpush.msra.mxu0 %v3828
    %4712 = vmatpush.msra.mxu0 %v3824
    %4713 = vmatpush.msra.mxu0 %v3820
    %4714 = vmatpush.msra.mxu0 %v3816
    %4715 = vmatpush.msra.mxu0 %v3812
    %4716 = vmatpush.msra.mxu0 %v3808
    %4717 = vmatpush.msra.mxu0 %v3804
    %4718 = vmatpush.msra.mxu0 %v3800
    %4719 = vmatpush.msra.mxu0 %v3796
    %4720 = vmatpush.msra.mxu0 %v3792
    %4721 = vmatpush.msra.mxu0 %v3788
    %4722 = vmatpush.msra.mxu0 %v3784
    %4723 = vmatpush.msra.mxu0 %v3780
    %4724 = vmatpush.msra.mxu0 %v3776
    %4725 = vmatpush.msra.mxu0 %v3772
    %4726 = vmatpush.msra.mxu0 %v3768
    %4727 = vmatmul.f32.gmra.mxu0 %v4665
    %v4728 = vpop.f32.mrf.mxu0
    %v4729 = vadd.f32 %v4700, %v4728
    %4730 = vmatmul.f32.gmra.mxu0 %v4667
    %v4731 = vpop.f32.mrf.mxu0
    %v4732 = vadd.f32 %v4703, %v4731
    %4733 = vmatmul.f32.gmra.mxu0 %v4669
    %v4734 = vpop.f32.mrf.mxu0
    %v4735 = vadd.f32 %v4706, %v4734
    %4736 = vmatmul.f32.gmra.mxu0 %v4671
    %v4737 = vpop.f32.mrf.mxu0
    %v4738 = vadd.f32 %v4709, %v4737
    %4739 = vdwg.mxu0
    %4740 = vmatpush.msra.mxu0 %v3765
    %4741 = vmatpush.msra.mxu0 %v3761
    %4742 = vmatpush.msra.mxu0 %v3757
    %4743 = vmatpush.msra.mxu0 %v3753
    %4744 = vmatpush.msra.mxu0 %v3749
    %4745 = vmatpush.msra.mxu0 %v3745
    %4746 = vmatpush.msra.mxu0 %v3741
    %4747 = vmatpush.msra.mxu0 %v3737
    %4748 = vmatpush.msra.mxu0 %v3733
    %4749 = vmatpush.msra.mxu0 %v3729
    %4750 = vmatpush.msra.mxu0 %v3725
    %4751 = vmatpush.msra.mxu0 %v3721
    %4752 = vmatpush.msra.mxu0 %v3717
    %4753 = vmatpush.msra.mxu0 %v3713
    %4754 = vmatpush.msra.mxu0 %v3709
    %4755 = vmatpush.msra.mxu0 %v3705
    %4756 = vmatmul.f32.gmra.mxu0 %v4664
    %v4757 = vpop.f32.mrf.mxu0
    %v4758 = vadd.f32 %v4675, %v4757
    %4759 = vmatmul.f32.gmra.mxu0 %v4666
    %v4760 = vpop.f32.mrf.mxu0
    %v4761 = vadd.f32 %v4675, %v4760
    %4762 = vmatmul.f32.gmra.mxu0 %v4668
    %v4763 = vpop.f32.mrf.mxu0
    %v4764 = vadd.f32 %v4675, %v4763
    %4765 = vmatmul.f32.gmra.mxu0 %v4670
    %v4766 = vpop.f32.mrf.mxu0
    %v4767 = vadd.f32 %v4675, %v4766
    %4768 = vdwg.mxu0
    %4769 = vmatpush.msra.mxu0 %v3829
    %4770 = vmatpush.msra.mxu0 %v3825
    %4771 = vmatpush.msra.mxu0 %v3821
    %4772 = vmatpush.msra.mxu0 %v3817
    %4773 = vmatpush.msra.mxu0 %v3813
    %4774 = vmatpush.msra.mxu0 %v3809
    %4775 = vmatpush.msra.mxu0 %v3805
    %4776 = vmatpush.msra.mxu0 %v3801
    %4777 = vmatpush.msra.mxu0 %v3797
    %4778 = vmatpush.msra.mxu0 %v3793
    %4779 = vmatpush.msra.mxu0 %v3789
    %4780 = vmatpush.msra.mxu0 %v3785
    %4781 = vmatpush.msra.mxu0 %v3781
    %4782 = vmatpush.msra.mxu0 %v3777
    %4783 = vmatpush.msra.mxu0 %v3773
    %4784 = vmatpush.msra.mxu0 %v3769
    %4785 = vmatmul.f32.gmra.mxu0 %v4665
    %v4786 = vpop.f32.mrf.mxu0
    %v4787 = vadd.f32 %v4758, %v4786
    %4788 = vmatmul.f32.gmra.mxu0 %v4667
    %v4789 = vpop.f32.mrf.mxu0
    %v4790 = vadd.f32 %v4761, %v4789
    %4791 = vmatmul.f32.gmra.mxu0 %v4669
    %v4792 = vpop.f32.mrf.mxu0
    %v4793 = vadd.f32 %v4764, %v4792
    %4794 = vmatmul.f32.gmra.mxu0 %v4671
    %v4795 = vpop.f32.mrf.mxu0
    %v4796 = vadd.f32 %v4767, %v4795
    %4797 = vdwg.mxu0
    %4798 = vmatpush.msra.mxu0 %v3766
    %4799 = vmatpush.msra.mxu0 %v3762
    %4800 = vmatpush.msra.mxu0 %v3758
    %4801 = vmatpush.msra.mxu0 %v3754
    %4802 = vmatpush.msra.mxu0 %v3750
    %4803 = vmatpush.msra.mxu0 %v3746
    %4804 = vmatpush.msra.mxu0 %v3742
    %4805 = vmatpush.msra.mxu0 %v3738
    %4806 = vmatpush.msra.mxu0 %v3734
    %4807 = vmatpush.msra.mxu0 %v3730
    %4808 = vmatpush.msra.mxu0 %v3726
    %4809 = vmatpush.msra.mxu0 %v3722
    %4810 = vmatpush.msra.mxu0 %v3718
    %4811 = vmatpush.msra.mxu0 %v3714
    %4812 = vmatpush.msra.mxu0 %v3710
    %4813 = vmatpush.msra.mxu0 %v3706
    %4814 = vmatmul.f32.gmra.mxu0 %v4664
    %v4815 = vpop.f32.mrf.mxu0
    %v4816 = vadd.f32 %v4676, %v4815
    %4817 = vmatmul.f32.gmra.mxu0 %v4666
    %v4818 = vpop.f32.mrf.mxu0
    %v4819 = vadd.f32 %v4676, %v4818
    %4820 = vmatmul.f32.gmra.mxu0 %v4668
    %v4821 = vpop.f32.mrf.mxu0
    %v4822 = vadd.f32 %v4676, %v4821
    %4823 = vmatmul.f32.gmra.mxu0 %v4670
    %v4824 = vpop.f32.mrf.mxu0
    %v4825 = vadd.f32 %v4676, %v4824
    %4826 = vdwg.mxu0
    %4827 = vmatpush.msra.mxu0 %v3830
    %4828 = vmatpush.msra.mxu0 %v3826
    %4829 = vmatpush.msra.mxu0 %v3822
    %4830 = vmatpush.msra.mxu0 %v3818
    %4831 = vmatpush.msra.mxu0 %v3814
    %4832 = vmatpush.msra.mxu0 %v3810
    %4833 = vmatpush.msra.mxu0 %v3806
    %4834 = vmatpush.msra.mxu0 %v3802
    %4835 = vmatpush.msra.mxu0 %v3798
    %4836 = vmatpush.msra.mxu0 %v3794
    %4837 = vmatpush.msra.mxu0 %v3790
    %4838 = vmatpush.msra.mxu0 %v3786
    %4839 = vmatpush.msra.mxu0 %v3782
    %4840 = vmatpush.msra.mxu0 %v3778
    %4841 = vmatpush.msra.mxu0 %v3774
    %4842 = vmatpush.msra.mxu0 %v3770
    %4843 = vmatmul.f32.gmra.mxu0 %v4665
    %v4844 = vpop.f32.mrf.mxu0
    %v4845 = vadd.f32 %v4816, %v4844
    %4846 = vmatmul.f32.gmra.mxu0 %v4667
    %v4847 = vpop.f32.mrf.mxu0
    %v4848 = vadd.f32 %v4819, %v4847
    %4849 = vmatmul.f32.gmra.mxu0 %v4669
    %v4850 = vpop.f32.mrf.mxu0
    %v4851 = vadd.f32 %v4822, %v4850
    %4852 = vmatmul.f32.gmra.mxu0 %v4671
    %v4853 = vpop.f32.mrf.mxu0
    %v4854 = vadd.f32 %v4825, %v4853
    %4855 = vdwg.mxu0
    %4856 = vmatpush.msra.mxu0 %v3767
    %4857 = vmatpush.msra.mxu0 %v3763
    %4858 = vmatpush.msra.mxu0 %v3759
    %4859 = vmatpush.msra.mxu0 %v3755
    %4860 = vmatpush.msra.mxu0 %v3751
    %4861 = vmatpush.msra.mxu0 %v3747
    %4862 = vmatpush.msra.mxu0 %v3743
    %4863 = vmatpush.msra.mxu0 %v3739
    %4864 = vmatpush.msra.mxu0 %v3735
    %4865 = vmatpush.msra.mxu0 %v3731
    %4866 = vmatpush.msra.mxu0 %v3727
    %4867 = vmatpush.msra.mxu0 %v3723
    %4868 = vmatpush.msra.mxu0 %v3719
    %4869 = vmatpush.msra.mxu0 %v3715
    %4870 = vmatpush.msra.mxu0 %v3711
    %4871 = vmatpush.msra.mxu0 %v3707
    %4872 = vmatmul.f32.gmra.mxu0 %v4664
    %v4873 = vpop.f32.mrf.mxu0
    %v4874 = vadd.f32 %v4677, %v4873
    %4875 = vmatmul.f32.gmra.mxu0 %v4666
    %v4876 = vpop.f32.mrf.mxu0
    %v4877 = vadd.f32 %v4677, %v4876
    %4878 = vmatmul.f32.gmra.mxu0 %v4668
    %v4879 = vpop.f32.mrf.mxu0
    %v4880 = vadd.f32 %v4677, %v4879
    %4881 = vmatmul.f32.gmra.mxu0 %v4670
    %v4882 = vpop.f32.mrf.mxu0
    %v4883 = vadd.f32 %v4677, %v4882
    %4884 = vdwg.mxu0
    %4885 = vmatpush.msra.mxu0 %v3831
    %4886 = vmatpush.msra.mxu0 %v3827
    %4887 = vmatpush.msra.mxu0 %v3823
    %4888 = vmatpush.msra.mxu0 %v3819
    %4889 = vmatpush.msra.mxu0 %v3815
    %4890 = vmatpush.msra.mxu0 %v3811
    %4891 = vmatpush.msra.mxu0 %v3807
    %4892 = vmatpush.msra.mxu0 %v3803
    %4893 = vmatpush.msra.mxu0 %v3799
    %4894 = vmatpush.msra.mxu0 %v3795
    %4895 = vmatpush.msra.mxu0 %v3791
    %4896 = vmatpush.msra.mxu0 %v3787
    %4897 = vmatpush.msra.mxu0 %v3783
    %4898 = vmatpush.msra.mxu0 %v3779
    %4899 = vmatpush.msra.mxu0 %v3775
    %4900 = vmatpush.msra.mxu0 %v3771
    %4901 = vmatmul.f32.gmra.mxu0 %v4665
    %v4902 = vpop.f32.mrf.mxu0
    %v4903 = vadd.f32 %v4874, %v4902
    %4904 = vmatmul.f32.gmra.mxu0 %v4667
    %v4905 = vpop.f32.mrf.mxu0
    %v4906 = vadd.f32 %v4877, %v4905
    %4907 = vmatmul.f32.gmra.mxu0 %v4669
    %v4908 = vpop.f32.mrf.mxu0
    %v4909 = vadd.f32 %v4880, %v4908
    %4910 = vmatmul.f32.gmra.mxu0 %v4671
    %v4911 = vpop.f32.mrf.mxu0
    %v4912 = vadd.f32 %v4883, %v4911
    %4913 = vdwg.mxu0
    %4914 = vst [vmem:[#allocation25 + $0x100] sm:$0xff] %v4729
    %4915 = vst [vmem:[#allocation25 + $0x108] sm:$0xff] %v4787
    %4916 = vst [vmem:[#allocation25 + $0x110] sm:$0xff] %v4845
    %4917 = vst [vmem:[#allocation25 + $0x118] sm:$0xff] %v4903
    %4918 = vst [vmem:[#allocation25 + $0x120] sm:$0xff] %v4732
    %4919 = vst [vmem:[#allocation25 + $0x128] sm:$0xff] %v4790
    %4920 = vst [vmem:[#allocation25 + $0x130] sm:$0xff] %v4848
    %4921 = vst [vmem:[#allocation25 + $0x138] sm:$0xff] %v4906
    %4922 = vst [vmem:[#allocation25 + $0x140] sm:$0xff] %v4735
    %4923 = vst [vmem:[#allocation25 + $0x148] sm:$0xff] %v4793
    %4924 = vst [vmem:[#allocation25 + $0x150] sm:$0xff] %v4851
    %4925 = vst [vmem:[#allocation25 + $0x158] sm:$0xff] %v4909
    %4926 = vst [vmem:[#allocation25 + $0x160] sm:$0xff] %v4738
    %4927 = vst [vmem:[#allocation25 + $0x168] sm:$0xff] %v4796
    %4928 = vst [vmem:[#allocation25 + $0x170] sm:$0xff] %v4854
    %4929 = vst [vmem:[#allocation25 + $0x178] sm:$0xff] %v4912
    %v4930 = vmul.f32 %v3644, %v3693
    %v4931 = vmul.f32 %v3645, %v3703
    %v4932 = vmul.f32 %v3646, %v3693
    %v4933 = vmul.f32 %v3647, %v3703
    %v4934 = vmul.f32 %v3648, %v3693
    %v4935 = vmul.f32 %v3649, %v3703
    %v4936 = vmul.f32 %v3650, %v3693
    %v4937 = vmul.f32 %v3651, %v3703
    %v4938 = vld [vmem:[%s51] sm:$0x3]
    %v4940 = vperm.slane %v4938, 0
    %v4941 = vperm.slane %v4938, 1
    %v4944 = vmul.f32 %v4930, %v4940
    %v4945 = vmul.f32 %v4931, %v4941
    %v4946 = vmul.f32 %v4932, %v4940
    %v4947 = vmul.f32 %v4933, %v4941
    %v4948 = vmul.f32 %v4934, %v4940
    %v4949 = vmul.f32 %v4935, %v4941
    %v4950 = vmul.f32 %v4936, %v4940
    %v4951 = vmul.f32 %v4937, %v4941
    %v4952 = vld [vmem:[%s53] sm:$0x3]
    %v4954 = vperm.slane %v4952, 0
    %v4955 = vperm.slane %v4952, 1
    %v4958 = vadd.f32 %v4944, %v4954
    %v4959 = vadd.f32 %v4945, %v4955
    %v4960 = vadd.f32 %v4946, %v4954
    %v4961 = vadd.f32 %v4947, %v4955
    %v4962 = vadd.f32 %v4948, %v4954
    %v4963 = vadd.f32 %v4949, %v4955
    %v4964 = vadd.f32 %v4950, %v4954
    %v4965 = vadd.f32 %v4951, %v4955
    %v4966 = vmul.f32 %v4958, %v4958
    %v4967 = vmul.f32 %v4959, %v4959
    %v4968 = vmul.f32 %v4960, %v4960
    %v4969 = vmul.f32 %v4961, %v4961
    %v4970 = vmul.f32 %v4962, %v4962
    %v4971 = vmul.f32 %v4963, %v4963
    %v4972 = vmul.f32 %v4964, %v4964
    %v4973 = vmul.f32 %v4965, %v4965
    %v4974 = vmul.f32 %v4958, %v4966
    %v4975 = vmul.f32 %v4959, %v4967
    %v4976 = vmul.f32 %v4960, %v4968
    %v4977 = vmul.f32 %v4961, %v4969
    %v4978 = vmul.f32 %v4962, %v4970
    %v4979 = vmul.f32 %v4963, %v4971
    %v4980 = vmul.f32 %v4964, %v4972
    %v4981 = vmul.f32 %v4965, %v4973
    %v4982 = vmul.f32 %v4974, 0.044715
    %v4983 = vmul.f32 %v4975, 0.044715
    %v4984 = vmul.f32 %v4976, 0.044715
    %v4985 = vmul.f32 %v4977, 0.044715
    %v4986 = vmul.f32 %v4978, 0.044715
    %v4987 = vmul.f32 %v4979, 0.044715
    %v4988 = vmul.f32 %v4980, 0.044715
    %v4989 = vmul.f32 %v4981, 0.044715
    %v4990 = vadd.f32 %v4958, %v4982
    %v4991 = vadd.f32 %v4959, %v4983
    %v4992 = vadd.f32 %v4960, %v4984
    %v4993 = vadd.f32 %v4961, %v4985
    %v4994 = vadd.f32 %v4962, %v4986
    %v4995 = vadd.f32 %v4963, %v4987
    %v4996 = vadd.f32 %v4964, %v4988
    %v4997 = vadd.f32 %v4965, %v4989
    %v4998 = vmul.f32 %v4990, 0.7978846
    %v4999 = vmul.f32 %v4991, 0.7978846
    %v5000 = vmul.f32 %v4992, 0.7978846
    %v5001 = vmul.f32 %v4993, 0.7978846
    %v5002 = vmul.f32 %v4994, 0.7978846
    %v5003 = vmul.f32 %v4995, 0.7978846
    %v5004 = vmul.f32 %v4996, 0.7978846
    %v5005 = vmul.f32 %v4997, 0.7978846
    %v5006 = vtanh.pop %v4998
    %v5007 = vtanh.pop %v4999
    %v5008 = vtanh.pop %v5000
    %v5009 = vtanh.pop %v5001
    %v5010 = vtanh.pop %v5002
    %v5011 = vtanh.pop %v5003
    %v5012 = vtanh.pop %v5004
    %v5013 = vtanh.pop %v5005
    %v5014 = vadd.f32 %v5006, 1.0
    %v5015 = vadd.f32 %v5007, 1.0
    %v5016 = vadd.f32 %v5008, 1.0
    %v5017 = vadd.f32 %v5009, 1.0
    %v5018 = vadd.f32 %v5010, 1.0
    %v5019 = vadd.f32 %v5011, 1.0
    %v5020 = vadd.f32 %v5012, 1.0
    %v5021 = vadd.f32 %v5013, 1.0
    %v5022 = vmul.f32 %v5014, 0.5
    %v5023 = vmul.f32 %v5015, 0.5
    %v5024 = vmul.f32 %v5016, 0.5
    %v5025 = vmul.f32 %v5017, 0.5
    %v5026 = vmul.f32 %v5018, 0.5
    %v5027 = vmul.f32 %v5019, 0.5
    %v5028 = vmul.f32 %v5020, 0.5
    %v5029 = vmul.f32 %v5021, 0.5
    %v5030 = vmul.f32 %v4958, %v5022
    %v5031 = vmul.f32 %v4959, %v5023
    %v5032 = vmul.f32 %v4960, %v5024
    %v5033 = vmul.f32 %v4961, %v5025
    %v5034 = vmul.f32 %v4962, %v5026
    %v5035 = vmul.f32 %v4963, %v5027
    %v5036 = vmul.f32 %v4964, %v5028
    %v5037 = vmul.f32 %v4965, %v5029
    %v5038 = vld [vmem:[%s57] sm:$0xf]
    %v5040 = vperm.slane %v5038, 0
    %v5041 = vperm.slane %v5038, 1
    %v5042 = vperm.slane %v5038, 2
    %v5043 = vperm.slane %v5038, 3
    %5048 = vmatpush.msra.mxu0 %v3764
    %5049 = vmatpush.msra.mxu0 %v3760
    %5050 = vmatpush.msra.mxu0 %v3756
    %5051 = vmatpush.msra.mxu0 %v3752
    %5052 = vmatpush.msra.mxu0 %v3748
    %5053 = vmatpush.msra.mxu0 %v3744
    %5054 = vmatpush.msra.mxu0 %v3740
    %5055 = vmatpush.msra.mxu0 %v3736
    %5056 = vmatpush.msra.mxu0 %v3732
    %5057 = vmatpush.msra.mxu0 %v3728
    %5058 = vmatpush.msra.mxu0 %v3724
    %5059 = vmatpush.msra.mxu0 %v3720
    %5060 = vmatpush.msra.mxu0 %v3716
    %5061 = vmatpush.msra.mxu0 %v3712
    %5062 = vmatpush.msra.mxu0 %v3708
    %5063 = vmatpush.msra.mxu0 %v3704
    %5064 = vmatmul.f32.gmra.mxu0 %v5030
    %v5065 = vpop.f32.mrf.mxu0
    %v5066 = vadd.f32 %v5040, %v5065
    %5067 = vmatmul.f32.gmra.mxu0 %v5032
    %v5068 = vpop.f32.mrf.mxu0
    %v5069 = vadd.f32 %v5040, %v5068
    %5070 = vmatmul.f32.gmra.mxu0 %v5034
    %v5071 = vpop.f32.mrf.mxu0
    %v5072 = vadd.f32 %v5040, %v5071
    %5073 = vmatmul.f32.gmra.mxu0 %v5036
    %v5074 = vpop.f32.mrf.mxu0
    %v5075 = vadd.f32 %v5040, %v5074
    %5076 = vdwg.mxu0
    %5077 = vmatpush.msra.mxu0 %v3828
    %5078 = vmatpush.msra.mxu0 %v3824
    %5079 = vmatpush.msra.mxu0 %v3820
    %5080 = vmatpush.msra.mxu0 %v3816
    %5081 = vmatpush.msra.mxu0 %v3812
    %5082 = vmatpush.msra.mxu0 %v3808
    %5083 = vmatpush.msra.mxu0 %v3804
    %5084 = vmatpush.msra.mxu0 %v3800
    %5085 = vmatpush.msra.mxu0 %v3796
    %5086 = vmatpush.msra.mxu0 %v3792
    %5087 = vmatpush.msra.mxu0 %v3788
    %5088 = vmatpush.msra.mxu0 %v3784
    %5089 = vmatpush.msra.mxu0 %v3780
    %5090 = vmatpush.msra.mxu0 %v3776
    %5091 = vmatpush.msra.mxu0 %v3772
    %5092 = vmatpush.msra.mxu0 %v3768
    %5093 = vmatmul.f32.gmra.mxu0 %v5031
    %v5094 = vpop.f32.mrf.mxu0
    %v5095 = vadd.f32 %v5066, %v5094
    %5096 = vmatmul.f32.gmra.mxu0 %v5033
    %v5097 = vpop.f32.mrf.mxu0
    %v5098 = vadd.f32 %v5069, %v5097
    %5099 = vmatmul.f32.gmra.mxu0 %v5035
    %v5100 = vpop.f32.mrf.mxu0
    %v5101 = vadd.f32 %v5072, %v5100
    %5102 = vmatmul.f32.gmra.mxu0 %v5037
    %v5103 = vpop.f32.mrf.mxu0
    %v5104 = vadd.f32 %v5075, %v5103
    %5105 = vdwg.mxu0
    %5106 = vmatpush.msra.mxu0 %v3765
    %5107 = vmatpush.msra.mxu0 %v3761
    %5108 = vmatpush.msra.mxu0 %v3757
    %5109 = vmatpush.msra.mxu0 %v3753
    %5110 = vmatpush.msra.mxu0 %v3749
    %5111 = vmatpush.msra.mxu0 %v3745
    %5112 = vmatpush.msra.mxu0 %v3741
    %5113 = vmatpush.msra.mxu0 %v3737
    %5114 = vmatpush.msra.mxu0 %v3733
    %5115 = vmatpush.msra.mxu0 %v3729
    %5116 = vmatpush.msra.mxu0 %v3725
    %5117 = vmatpush.msra.mxu0 %v3721
    %5118 = vmatpush.msra.mxu0 %v3717
    %5119 = vmatpush.msra.mxu0 %v3713
    %5120 = vmatpush.msra.mxu0 %v3709
    %5121 = vmatpush.msra.mxu0 %v3705
    %5122 = vmatmul.f32.gmra.mxu0 %v5030
    %v5123 = vpop.f32.mrf.mxu0
    %v5124 = vadd.f32 %v5041, %v5123
    %5125 = vmatmul.f32.gmra.mxu0 %v5032
    %v5126 = vpop.f32.mrf.mxu0
    %v5127 = vadd.f32 %v5041, %v5126
    %5128 = vmatmul.f32.gmra.mxu0 %v5034
    %v5129 = vpop.f32.mrf.mxu0
    %v5130 = vadd.f32 %v5041, %v5129
    %5131 = vmatmul.f32.gmra.mxu0 %v5036
    %v5132 = vpop.f32.mrf.mxu0
    %v5133 = vadd.f32 %v5041, %v5132
    %5134 = vdwg.mxu0
    %5135 = vmatpush.msra.mxu0 %v3829
    %5136 = vmatpush.msra.mxu0 %v3825
    %5137 = vmatpush.msra.mxu0 %v3821
    %5138 = vmatpush.msra.mxu0 %v3817
    %5139 = vmatpush.msra.mxu0 %v3813
    %5140 = vmatpush.msra.mxu0 %v3809
    %5141 = vmatpush.msra.mxu0 %v3805
    %5142 = vmatpush.msra.mxu0 %v3801
    %5143 = vmatpush.msra.mxu0 %v3797
    %5144 = vmatpush.msra.mxu0 %v3793
    %5145 = vmatpush.msra.mxu0 %v3789
    %5146 = vmatpush.msra.mxu0 %v3785
    %5147 = vmatpush.msra.mxu0 %v3781
    %5148 = vmatpush.msra.mxu0 %v3777
    %5149 = vmatpush.msra.mxu0 %v3773
    %5150 = vmatpush.msra.mxu0 %v3769
    %5151 = vmatmul.f32.gmra.mxu0 %v5031
    %v5152 = vpop.f32.mrf.mxu0
    %v5153 = vadd.f32 %v5124, %v5152
    %5154 = vmatmul.f32.gmra.mxu0 %v5033
    %v5155 = vpop.f32.mrf.mxu0
    %v5156 = vadd.f32 %v5127, %v5155
    %5157 = vmatmul.f32.gmra.mxu0 %v5035
    %v5158 = vpop.f32.mrf.mxu0
    %v5159 = vadd.f32 %v5130, %v5158
    %5160 = vmatmul.f32.gmra.mxu0 %v5037
    %v5161 = vpop.f32.mrf.mxu0
    %v5162 = vadd.f32 %v5133, %v5161
    %5163 = vdwg.mxu0
    %5164 = vmatpush.msra.mxu0 %v3766
    %5165 = vmatpush.msra.mxu0 %v3762
    %5166 = vmatpush.msra.mxu0 %v3758
    %5167 = vmatpush.msra.mxu0 %v3754
    %5168 = vmatpush.msra.mxu0 %v3750
    %5169 = vmatpush.msra.mxu0 %v3746
    %5170 = vmatpush.msra.mxu0 %v3742
    %5171 = vmatpush.msra.mxu0 %v3738
    %5172 = vmatpush.msra.mxu0 %v3734
    %5173 = vmatpush.msra.mxu0 %v3730
    %5174 = vmatpush.msra.mxu0 %v3726
    %5175 = vmatpush.msra.mxu0 %v3722
    %5176 = vmatpush.msra.mxu0 %v3718
    %5177 = vmatpush.msra.mxu0 %v3714
    %5178 = vmatpush.msra.mxu0 %v3710
    %5179 = vmatpush.msra.mxu0 %v3706
    %5180 = vmatmul.f32.gmra.mxu0 %v5030
    %v5181 = vpop.f32.mrf.mxu0
    %v5182 = vadd.f32 %v5042, %v5181
    %5183 = vmatmul.f32.gmra.mxu0 %v5032
    %v5184 = vpop.f32.mrf.mxu0
    %v5185 = vadd.f32 %v5042, %v5184
    %5186 = vmatmul.f32.gmra.mxu0 %v5034
    %v5187 = vpop.f32.mrf.mxu0
    %v5188 = vadd.f32 %v5042, %v5187
    %5189 = vmatmul.f32.gmra.mxu0 %v5036
    %v5190 = vpop.f32.mrf.mxu0
    %v5191 = vadd.f32 %v5042, %v5190
    %5192 = vdwg.mxu0
    %5193 = vmatpush.msra.mxu0 %v3830
    %5194 = vmatpush.msra.mxu0 %v3826
    %5195 = vmatpush.msra.mxu0 %v3822
    %5196 = vmatpush.msra.mxu0 %v3818
    %5197 = vmatpush.msra.mxu0 %v3814
    %5198 = vmatpush.msra.mxu0 %v3810
    %5199 = vmatpush.msra.mxu0 %v3806
    %5200 = vmatpush.msra.mxu0 %v3802
    %5201 = vmatpush.msra.mxu0 %v3798
    %5202 = vmatpush.msra.mxu0 %v3794
    %5203 = vmatpush.msra.mxu0 %v3790
    %5204 = vmatpush.msra.mxu0 %v3786
    %5205 = vmatpush.msra.mxu0 %v3782
    %5206 = vmatpush.msra.mxu0 %v3778
    %5207 = vmatpush.msra.mxu0 %v3774
    %5208 = vmatpush.msra.mxu0 %v3770
    %5209 = vmatmul.f32.gmra.mxu0 %v5031
    %v5210 = vpop.f32.mrf.mxu0
    %v5211 = vadd.f32 %v5182, %v5210
    %5212 = vmatmul.f32.gmra.mxu0 %v5033
    %v5213 = vpop.f32.mrf.mxu0
    %v5214 = vadd.f32 %v5185, %v5213
    %5215 = vmatmul.f32.gmra.mxu0 %v5035
    %v5216 = vpop.f32.mrf.mxu0
    %v5217 = vadd.f32 %v5188, %v5216
    %5218 = vmatmul.f32.gmra.mxu0 %v5037
    %v5219 = vpop.f32.mrf.mxu0
    %v5220 = vadd.f32 %v5191, %v5219
    %5221 = vdwg.mxu0
    %5222 = vmatpush.msra.mxu0 %v3767
    %5223 = vmatpush.msra.mxu0 %v3763
    %5224 = vmatpush.msra.mxu0 %v3759
    %5225 = vmatpush.msra.mxu0 %v3755
    %5226 = vmatpush.msra.mxu0 %v3751
    %5227 = vmatpush.msra.mxu0 %v3747
    %5228 = vmatpush.msra.mxu0 %v3743
    %5229 = vmatpush.msra.mxu0 %v3739
    %5230 = vmatpush.msra.mxu0 %v3735
    %5231 = vmatpush.msra.mxu0 %v3731
    %5232 = vmatpush.msra.mxu0 %v3727
    %5233 = vmatpush.msra.mxu0 %v3723
    %5234 = vmatpush.msra.mxu0 %v3719
    %5235 = vmatpush.msra.mxu0 %v3715
    %5236 = vmatpush.msra.mxu0 %v3711
    %5237 = vmatpush.msra.mxu0 %v3707
    %5238 = vmatmul.f32.gmra.mxu0 %v5030
    %v5239 = vpop.f32.mrf.mxu0
    %v5240 = vadd.f32 %v5043, %v5239
    %5241 = vmatmul.f32.gmra.mxu0 %v5032
    %v5242 = vpop.f32.mrf.mxu0
    %v5243 = vadd.f32 %v5043, %v5242
    %5244 = vmatmul.f32.gmra.mxu0 %v5034
    %v5245 = vpop.f32.mrf.mxu0
    %v5246 = vadd.f32 %v5043, %v5245
    %5247 = vmatmul.f32.gmra.mxu0 %v5036
    %v5248 = vpop.f32.mrf.mxu0
    %v5249 = vadd.f32 %v5043, %v5248
    %5250 = vdwg.mxu0
    %5251 = vmatpush.msra.mxu0 %v3831
    %5252 = vmatpush.msra.mxu0 %v3827
    %5253 = vmatpush.msra.mxu0 %v3823
    %5254 = vmatpush.msra.mxu0 %v3819
    %5255 = vmatpush.msra.mxu0 %v3815
    %5256 = vmatpush.msra.mxu0 %v3811
    %5257 = vmatpush.msra.mxu0 %v3807
    %5258 = vmatpush.msra.mxu0 %v3803
    %5259 = vmatpush.msra.mxu0 %v3799
    %5260 = vmatpush.msra.mxu0 %v3795
    %5261 = vmatpush.msra.mxu0 %v3791
    %5262 = vmatpush.msra.mxu0 %v3787
    %5263 = vmatpush.msra.mxu0 %v3783
    %5264 = vmatpush.msra.mxu0 %v3779
    %5265 = vmatpush.msra.mxu0 %v3775
    %5266 = vmatpush.msra.mxu0 %v3771
    %5267 = vmatmul.f32.gmra.mxu0 %v5031
    %v5268 = vpop.f32.mrf.mxu0
    %v5269 = vadd.f32 %v5240, %v5268
    %5270 = vmatmul.f32.gmra.mxu0 %v5033
    %v5271 = vpop.f32.mrf.mxu0
    %v5272 = vadd.f32 %v5243, %v5271
    %5273 = vmatmul.f32.gmra.mxu0 %v5035
    %v5274 = vpop.f32.mrf.mxu0
    %v5275 = vadd.f32 %v5246, %v5274
    %5276 = vmatmul.f32.gmra.mxu0 %v5037
    %v5277 = vpop.f32.mrf.mxu0
    %v5278 = vadd.f32 %v5249, %v5277
    %5279 = vdwg.mxu0
    %5280 = vst [vmem:[#allocation25 + $0x180] sm:$0xff] %v5095
    %5281 = vst [vmem:[#allocation25 + $0x188] sm:$0xff] %v5153
    %5282 = vst [vmem:[#allocation25 + $0x190] sm:$0xff] %v5211
    %5283 = vst [vmem:[#allocation25 + $0x198] sm:$0xff] %v5269
    %5284 = vst [vmem:[#allocation25 + $0x1a0] sm:$0xff] %v5098
    %5285 = vst [vmem:[#allocation25 + $0x1a8] sm:$0xff] %v5156
    %5286 = vst [vmem:[#allocation25 + $0x1b0] sm:$0xff] %v5214
    %5287 = vst [vmem:[#allocation25 + $0x1b8] sm:$0xff] %v5272
    %5288 = vst [vmem:[#allocation25 + $0x1c0] sm:$0xff] %v5101
    %5289 = vst [vmem:[#allocation25 + $0x1c8] sm:$0xff] %v5159
    %5290 = vst [vmem:[#allocation25 + $0x1d0] sm:$0xff] %v5217
    %5291 = vst [vmem:[#allocation25 + $0x1d8] sm:$0xff] %v5275
    %5292 = vst [vmem:[#allocation25 + $0x1e0] sm:$0xff] %v5104
    %5293 = vst [vmem:[#allocation25 + $0x1e8] sm:$0xff] %v5162
    %5294 = vst [vmem:[#allocation25 + $0x1f0] sm:$0xff] %v5220
    %5295 = vst [vmem:[#allocation25 + $0x1f8] sm:$0xff] %v5278
    %v5296 = vld [vmem:[#allocation23] sm:$0xff]
    %v5297 = vld [vmem:[#allocation23 + $0x8] sm:$0xff]
    %v5298 = vld [vmem:[#allocation23 + $0x10] sm:$0xff]
    %v5299 = vld [vmem:[#allocation23 + $0x18] sm:$0xff]
    %v5300 = vld [vmem:[#allocation23 + $0x20] sm:$0xff]
    %v5301 = vld [vmem:[#allocation23 + $0x28] sm:$0xff]
    %v5302 = vld [vmem:[#allocation23 + $0x30] sm:$0xff]
    %v5303 = vld [vmem:[#allocation23 + $0x38] sm:$0xff]
    %v5304 = vld [vmem:[#allocation23 + $0x40] sm:$0xff]
    %v5305 = vld [vmem:[#allocation23 + $0x48] sm:$0xff]
    %v5306 = vld [vmem:[#allocation23 + $0x50] sm:$0xff]
    %v5307 = vld [vmem:[#allocation23 + $0x58] sm:$0xff]
    %v5308 = vld [vmem:[#allocation23 + $0x60] sm:$0xff]
    %v5309 = vld [vmem:[#allocation23 + $0x68] sm:$0xff]
    %v5310 = vld [vmem:[#allocation23 + $0x70] sm:$0xff]
    %v5311 = vld [vmem:[#allocation23 + $0x78] sm:$0xff]
    %v5312 = vld [vmem:[%s61] sm:$0xf]
    %v5314 = vperm.slane %v5312, 0
    %v5315 = vperm.slane %v5312, 1
    %v5316 = vperm.slane %v5312, 2
    %v5317 = vperm.slane %v5312, 3
    %v5323 = vsel %vm573, %v1676, 0
    %v5326 = vsel %vm573, %v1677, 0
    %v5329 = vsel %vm573, %v1678, 0
    %v5332 = vsel %vm573, %v1679, 0
    %5334 = vmatpush.msra.mxu0 0.0
    %5335 = vmatpush.msra.mxu0 0.0
    %5336 = vmatpush.msra.mxu0 0.0
    %5337 = vmatpush.msra.mxu0 0.0
    %5338 = vmatpush.msra.mxu0 0.0
    %5339 = vmatpush.msra.mxu0 0.0
    %5340 = vmatpush.msra.mxu0 0.0
    %5341 = vmatpush.msra.mxu0 0.0
    %5342 = vmatpush.msra.mxu0 0.0
    %5343 = vmatpush.msra.mxu0 0.0
    %5344 = vmatpush.msra.mxu0 0.0
    %5345 = vmatpush.msra.mxu0 0.0
    %5346 = vmatpush.msra.mxu0 %v5308
    %5347 = vmatpush.msra.mxu0 %v5304
    %5348 = vmatpush.msra.mxu0 %v5300
    %5349 = vmatpush.msra.mxu0 %v5296
    %5350 = vmatmul.f32.gmra.mxu0 %v5323
    %v5351 = vpop.f32.mrf.mxu0
    %v5352 = vadd.f32 %v5314, %v5351
    %5353 = vmatmul.f32.gmra.mxu0 %v5326
    %v5354 = vpop.f32.mrf.mxu0
    %v5355 = vadd.f32 %v5314, %v5354
    %5356 = vmatmul.f32.gmra.mxu0 %v5329
    %v5357 = vpop.f32.mrf.mxu0
    %v5358 = vadd.f32 %v5314, %v5357
    %5359 = vmatmul.f32.gmra.mxu0 %v5332
    %v5360 = vpop.f32.mrf.mxu0
    %v5361 = vadd.f32 %v5314, %v5360
    %5362 = vdwg.mxu0
    %5363 = vmatpush.msra.mxu0 0.0
    %5364 = vmatpush.msra.mxu0 0.0
    %5365 = vmatpush.msra.mxu0 0.0
    %5366 = vmatpush.msra.mxu0 0.0
    %5367 = vmatpush.msra.mxu0 0.0
    %5368 = vmatpush.msra.mxu0 0.0
    %5369 = vmatpush.msra.mxu0 0.0
    %5370 = vmatpush.msra.mxu0 0.0
    %5371 = vmatpush.msra.mxu0 0.0
    %5372 = vmatpush.msra.mxu0 0.0
    %5373 = vmatpush.msra.mxu0 0.0
    %5374 = vmatpush.msra.mxu0 0.0
    %5375 = vmatpush.msra.mxu0 %v5309
    %5376 = vmatpush.msra.mxu0 %v5305
    %5377 = vmatpush.msra.mxu0 %v5301
    %5378 = vmatpush.msra.mxu0 %v5297
    %5379 = vmatmul.f32.gmra.mxu0 %v5323
    %v5380 = vpop.f32.mrf.mxu0
    %v5381 = vadd.f32 %v5315, %v5380
    %5382 = vmatmul.f32.gmra.mxu0 %v5326
    %v5383 = vpop.f32.mrf.mxu0
    %v5384 = vadd.f32 %v5315, %v5383
    %5385 = vmatmul.f32.gmra.mxu0 %v5329
    %v5386 = vpop.f32.mrf.mxu0
    %v5387 = vadd.f32 %v5315, %v5386
    %5388 = vmatmul.f32.gmra.mxu0 %v5332
    %v5389 = vpop.f32.mrf.mxu0
    %v5390 = vadd.f32 %v5315, %v5389
    %5391 = vdwg.mxu0
    %5392 = vmatpush.msra.mxu0 0.0
    %5393 = vmatpush.msra.mxu0 0.0
    %5394 = vmatpush.msra.mxu0 0.0
    %5395 = vmatpush.msra.mxu0 0.0
    %5396 = vmatpush.msra.mxu0 0.0
    %5397 = vmatpush.msra.mxu0 0.0
    %5398 = vmatpush.msra.mxu0 0.0
    %5399 = vmatpush.msra.mxu0 0.0
    %5400 = vmatpush.msra.mxu0 0.0
    %5401 = vmatpush.msra.mxu0 0.0
    %5402 = vmatpush.msra.mxu0 0.0
    %5403 = vmatpush.msra.mxu0 0.0
    %5404 = vmatpush.msra.mxu0 %v5310
    %5405 = vmatpush.msra.mxu0 %v5306
    %5406 = vmatpush.msra.mxu0 %v5302
    %5407 = vmatpush.msra.mxu0 %v5298
    %5408 = vmatmul.f32.gmra.mxu0 %v5323
    %v5409 = vpop.f32.mrf.mxu0
    %v5410 = vadd.f32 %v5316, %v5409
    %5411 = vmatmul.f32.gmra.mxu0 %v5326
    %v5412 = vpop.f32.mrf.mxu0
    %v5413 = vadd.f32 %v5316, %v5412
    %5414 = vmatmul.f32.gmra.mxu0 %v5329
    %v5415 = vpop.f32.mrf.mxu0
    %v5416 = vadd.f32 %v5316, %v5415
    %5417 = vmatmul.f32.gmra.mxu0 %v5332
    %v5418 = vpop.f32.mrf.mxu0
    %v5419 = vadd.f32 %v5316, %v5418
    %5420 = vdwg.mxu0
    %5421 = vmatpush.msra.mxu0 0.0
    %5422 = vmatpush.msra.mxu0 0.0
    %5423 = vmatpush.msra.mxu0 0.0
    %5424 = vmatpush.msra.mxu0 0.0
    %5425 = vmatpush.msra.mxu0 0.0
    %5426 = vmatpush.msra.mxu0 0.0
    %5427 = vmatpush.msra.mxu0 0.0
    %5428 = vmatpush.msra.mxu0 0.0
    %5429 = vmatpush.msra.mxu0 0.0
    %5430 = vmatpush.msra.mxu0 0.0
    %5431 = vmatpush.msra.mxu0 0.0
    %5432 = vmatpush.msra.mxu0 0.0
    %5433 = vmatpush.msra.mxu0 %v5311
    %5434 = vmatpush.msra.mxu0 %v5307
    %5435 = vmatpush.msra.mxu0 %v5303
    %5436 = vmatpush.msra.mxu0 %v5299
    %5437 = vmatmul.f32.gmra.mxu0 %v5323
    %v5438 = vpop.f32.mrf.mxu0
    %v5439 = vadd.f32 %v5317, %v5438
    %5440 = vmatmul.f32.gmra.mxu0 %v5326
    %v5441 = vpop.f32.mrf.mxu0
    %v5442 = vadd.f32 %v5317, %v5441
    %5443 = vmatmul.f32.gmra.mxu0 %v5329
    %v5444 = vpop.f32.mrf.mxu0
    %v5445 = vadd.f32 %v5317, %v5444
    %5446 = vmatmul.f32.gmra.mxu0 %v5332
    %v5447 = vpop.f32.mrf.mxu0
    %v5448 = vadd.f32 %v5317, %v5447
    %5449 = vdwg.mxu0
    %5450 = vst [vmem:[#allocation26] sm:$0xff] %v5352
    %5451 = vst [vmem:[#allocation26 + $0x8] sm:$0xff] %v5381
    %5452 = vst [vmem:[#allocation26 + $0x10] sm:$0xff] %v5410
    %5453 = vst [vmem:[#allocation26 + $0x18] sm:$0xff] %v5439
    %5454 = vst [vmem:[#allocation26 + $0x20] sm:$0xff] %v5355
    %5455 = vst [vmem:[#allocation26 + $0x28] sm:$0xff] %v5384
    %5456 = vst [vmem:[#allocation26 + $0x30] sm:$0xff] %v5413
    %5457 = vst [vmem:[#allocation26 + $0x38] sm:$0xff] %v5442
    %5458 = vst [vmem:[#allocation26 + $0x40] sm:$0xff] %v5358
    %5459 = vst [vmem:[#allocation26 + $0x48] sm:$0xff] %v5387
    %5460 = vst [vmem:[#allocation26 + $0x50] sm:$0xff] %v5416
    %5461 = vst [vmem:[#allocation26 + $0x58] sm:$0xff] %v5445
    %5462 = vst [vmem:[#allocation26 + $0x60] sm:$0xff] %v5361
    %5463 = vst [vmem:[#allocation26 + $0x68] sm:$0xff] %v5390
    %5464 = vst [vmem:[#allocation26 + $0x70] sm:$0xff] %v5419
    %5465 = vst [vmem:[#allocation26 + $0x78] sm:$0xff] %v5448
    %5466 = vst.msk [vmem:[#allocation28] sm:$0xff] %vm573, %v1922
    %5467 = vst.msk [vmem:[#allocation28 + $0x8] sm:$0xff] %vm573, %v1923
    %5468 = vst.msk [vmem:[#allocation28 + $0x10] sm:$0xff] %vm573, %v1924
    %5469 = vst.msk [vmem:[#allocation28 + $0x18] sm:$0xff] %vm573, %v1925
    %s5470 = scalar_lea.vmem [#allocation28], 32
    %5471 = vst.msk [vmem:[%s5470] sm:$0xff] %vm573, %v2917
    %5472 = vst.msk [vmem:[%s5470 + $0x8] sm:$0xff] %vm573, %v2918
    %5473 = vst.msk [vmem:[%s5470 + $0x10] sm:$0xff] %vm573, %v2919
    %5474 = vst.msk [vmem:[%s5470 + $0x18] sm:$0xff] %vm573, %v2920
    %s5475 = scalar_lea.vmem [#allocation28], 64
    %5476 = vst.msk [vmem:[%s5475] sm:$0xff] %vm573, %v3169
    %5477 = vst.msk [vmem:[%s5475 + $0x8] sm:$0xff] %vm573, %v3170
    %5478 = vst.msk [vmem:[%s5475 + $0x10] sm:$0xff] %vm573, %v3171
    %5479 = vst.msk [vmem:[%s5475 + $0x18] sm:$0xff] %vm573, %v3172
    // Predicated region
    $region182: #{tpu_custom_call.1} parent=1 // pred_check
      _
    $region183: #{tpu_custom_call.1} parent=1 // pred_check_branch
      %5481 = sbr.rel (0) target = $region185
    $region184: #{tpu_custom_call.1} parent=1 // pred_region
      %5483 = vsyncadd [#allocation4], 0
      %s5484 = sshll.u32 [#allocation25], 4
      %s5485 = int_to_ptr.vmem [resolvable:$true] %s5484
      %s5486 = sshll.u32 %s63, 4
      %s5487 = int_to_ptr.hbm [resolvable:$true] %s5486
      %5492 = dma.vmem_to_hbm [thread:$0]  %s5485, 8192, %s5487, [#allocation4], 512, 512, 32
    $region185: #{tpu_custom_call.1} parent=1 // pred_fallthru
      _
    // Predicated region
    $region186: #{tpu_custom_call.1} parent=1 // pred_check
      _
    $region187: #{tpu_custom_call.1} parent=1 // pred_check_branch
      %5494 = sbr.rel (0) target = $region189
    $region188: #{tpu_custom_call.1} parent=1 // pred_region
      %5496 = vsyncadd [#allocation27], 0
      %s5497 = sshll.u32 [#allocation26], 4
      %s5498 = int_to_ptr.vmem [resolvable:$true] %s5497
      %s5499 = sshll.u32 %s65, 4
      %s5500 = int_to_ptr.hbm [resolvable:$true] %s5499
      %5505 = dma.vmem_to_hbm [thread:$0]  %s5498, 2048, %s5500, [#allocation27], 512, 512, 32
    $region189: #{tpu_custom_call.1} parent=1 // pred_fallthru
      _
    // Predicated region
    $region190: #{tpu_custom_call.1} parent=1 // pred_check
      _
    $region191: #{tpu_custom_call.1} parent=1 // pred_check_branch
      %5507 = sbr.rel (0) target = $region193
    $region192: #{tpu_custom_call.1} parent=1 // pred_region
      %5509 = vsyncadd [#allocation27], 0
      %s5510 = sshll.u32 [#allocation28], 4
      %s5511 = int_to_ptr.vmem [resolvable:$true] %s5510
      %s5512 = sshll.u32 %s67, 4
      %s5513 = int_to_ptr.hbm [resolvable:$true] %s5512
      %5518 = dma.vmem_to_hbm [thread:$0]  %s5511, 1536, %s5513, [#allocation27], 128, 128, 8
    $region193: #{tpu_custom_call.1} parent=1 // pred_fallthru
      _
    // Predicated region
    $region194: #{tpu_custom_call.1} parent=1 // pred_check
      _
    $region195: #{tpu_custom_call.1} parent=1 // pred_check_branch
      %5520 = sbr.rel (0) target = $region197
    $region196: #{tpu_custom_call.1} parent=1 // pred_region
      %5522 = dma.done [#allocation4], 8192
    $region197: #{tpu_custom_call.1} parent=1 // pred_fallthru
      _
    // Predicated region
    $region198: #{tpu_custom_call.1} parent=1 // pred_check
      _
    $region199: #{tpu_custom_call.1} parent=1 // pred_check_branch
      %5524 = sbr.rel (0) target = $region201
    $region200: #{tpu_custom_call.1} parent=1 // pred_region
      %5526 = dma.done [#allocation27], 2048
    $region201: #{tpu_custom_call.1} parent=1 // pred_fallthru
      _
    // Predicated region
    $region202: #{tpu_custom_call.1} parent=1 // pred_check
      _
    $region203: #{tpu_custom_call.1} parent=1 // pred_check_branch
      %5528 = sbr.rel (0) target = $region205
    $region204: #{tpu_custom_call.1} parent=1 // pred_region
      %5530 = dma.done [#allocation27], 1536
    $region205: #{tpu_custom_call.1} parent=1 // pred_fallthru
      _
    %5531 = vsyncpa [#allocation3], 1
    %5532 = vsyncpa [#allocation6], 1
    %5533 = vsyncpa [#allocation9], 1
    %5534 = vsyncpa [#allocation12], 1
    %5535 = vsyncpa [#allocation15], 1
    %5536 = vsyncpa [#allocation18], 1
    %5537 = vsyncpa [#allocation21], 1
    %5538 = vsyncpa [#allocation24], 1
    %5539 = vsyncpa [#allocation4], 1
    %5540 = vsyncpa [#allocation27], 1

</llo_original>
